<compile_context>
chip_gen: v6e
topology: v6e:2x2x1
jax: 0.10.0
libtpu: 0.0.40
codegen_flags: <defaults>
</compile_context>

<pallas_src>
import functools
import math

import jax
import jax.numpy as jnp
from jax.experimental import pallas as pl
from jax.experimental.pallas import tpu as pltpu


def _iot_kernel(B, S, D, H, L, NC, FC,
                x_ref, num_ref, mask_ref,
                wqv_ref, wko_ref, w1_ref, w2_ref,
                pv_ref, l1b_ref,
                w1h_ref, w2h_ref, headb_ref,
                o_ref, xs_ref):
    Dh = D // H
    BS = B * S
    Nn = num_ref.shape[1]
    MH = w2h_ref.shape[0]          # mlp hidden (256)
    CP = o_ref.shape[1]            # padded class dim (128)
    bf16 = jnp.bfloat16
    f32 = jnp.float32

    def layer_norm(y, w, b):
        # One-pass stats (E[x], E[x^2]); fine for D=32 well-scaled activations.
        mu = jnp.mean(y, axis=-1, keepdims=True)
        ex2 = jnp.mean(y * y, axis=-1, keepdims=True)
        var = ex2 - mu * mu
        return (y - mu) * jax.lax.rsqrt(var + 1e-5) * w + b

    # Additive block-diagonal batch mask (0 same batch / -1e30 cross batch).
    # NOTE: -1e30 is only safe because the score path stays f32
    # (preferred_element_type=f32); do not move scores to bf16.
    mask_add = mask_ref[...]                         # (BS, BS) f32

    x = x_ref[...]                                   # (BS, D) f32 residual

    for l in range(L):                               # L = 2, fully unrolled
        pv = pv_ref[l]                               # (8, D) packed f32 params
        # rows: 0 bq(scaled) 1 bv 2 bo 3 ln1w 4 ln1b 5 ln2w 6 ln2b 7 lin2b
        xb = x.astype(bf16)

        # ---- fused Q/V projection (softmax scale folded into Wq/bq) ----
        qv = jnp.dot(xb, wqv_ref[l], preferred_element_type=f32)   # (BS, 2D)
        q = (qv[:, 0:D] + pv[0:1, :]).astype(bf16)
        v = (qv[:, D:2 * D] + pv[1:2, :]).astype(bf16)

        # ---- K produced already transposed: kT = Wk^T @ x^T.
        # One shared activation transpose per layer replaces 4 per-head K
        # transposes.  The key bias is omitted: softmax is invariant to a
        # per-row additive shift, so it cannot change the forward output.
        xT = jnp.transpose(x).astype(bf16)                          # (D, BS)
        kT = jnp.dot(wko_ref[l, 0], xT,
                     preferred_element_type=f32).astype(bf16)       # (D, BS)

        heads = []
        for h in range(H):
            qh = q[:, h * Dh:(h + 1) * Dh]          # (BS, Dh) lane slice
            kTh = kT[h * Dh:(h + 1) * Dh, :]        # (Dh, BS) sublane slice
            vh = v[:, h * Dh:(h + 1) * Dh]
            sc = jnp.dot(qh, kTh, preferred_element_type=f32) + mask_add
            m = jnp.max(sc, axis=-1, keepdims=True)
            e = jnp.exp(sc - m)
            r = pl.reciprocal(jnp.sum(e, axis=-1, keepdims=True), approx=True)
            oh = jnp.dot(e.astype(bf16), vh, preferred_element_type=f32) * r
            heads.append(oh)
        attn = jnp.concatenate(heads, axis=-1).astype(bf16)         # (BS, D)
        attn = jnp.dot(attn, wko_ref[l, 1],
                       preferred_element_type=f32) + pv[2:3, :]
        x = layer_norm(x + attn, pv[3:4, :], pv[4:5, :])

        # ---- feed-forward, chunked over FF (eval-mode dropout = identity) ----
        xb = x.astype(bf16)
        ff = jnp.zeros((BS, D), f32)
        for c in range(NC):
            h1 = jnp.dot(xb, w1_ref[l, c],
                         preferred_element_type=f32) + l1b_ref[l, c]
            h1 = jnp.maximum(h1, 0.0).astype(bf16)
            ff = ff + jnp.dot(h1, w2_ref[l, c], preferred_element_type=f32)
        ff = ff + pv[7:8, :]
        x = layer_norm(x + ff, pv[5:6, :], pv[6:7, :])

    # ---- classification head: flatten(start_dim=1) ++ numerical -> MLP ----
    # flat_cat @ W1[:S*D] == sum_s (rows at sequence position s) @ W1[s*D:(s+1)*D]
    # Rows for position s are pulled back from a small VMEM scratch with a
    # strided pl.ds instead of building the (B, S*D) flatten via lane concats.
    xs_ref[...] = x
    hb = jnp.dot(num_ref[...].astype(bf16), w1h_ref[S * D:S * D + Nn, :],
                 preferred_element_type=f32) + headb_ref[:, 0:MH]
    for s in range(S):
        rows = xs_ref[pl.ds(s, B, stride=S), :].astype(bf16)        # (B, D)
        hb = hb + jnp.dot(rows, w1h_ref[s * D:(s + 1) * D, :],
                          preferred_element_type=f32)
    hb = jnp.maximum(hb, 0.0).astype(bf16)
    o_ref[...] = jnp.dot(hb, w2h_ref[...],
                         preferred_element_type=f32) + headb_ref[:, MH:MH + CP]


def init_params(key, num_numerical, cat_cardinalities, num_classes,
                embed_dim=32, num_heads=4, num_layers=2, dim_feedforward=2048,
                mlp_hidden=256, ffn_chunks=4, out_pad=128):
    D, H, L, FF = embed_dim, num_heads, num_layers, dim_feedforward
    Dh = D // H
    S = len(cat_cardinalities)
    NC = ffn_chunks
    FC = FF // NC
    scale = 1.0 / math.sqrt(Dh)
    bf16 = jnp.bfloat16
    keys = iter(jax.random.split(key, 64))

    def lin(k, fan_in, fan_out):
        bound = 1.0 / math.sqrt(fan_in)
        kw, kb = jax.random.split(k)
        w = jax.random.uniform(kw, (fan_in, fan_out), jnp.float32, -bound, bound)
        b = jax.random.uniform(kb, (fan_out,), jnp.float32, -bound, bound)
        return w, b

    p = {}
    p['embed_tables'] = [0.02 * jax.random.normal(next(keys), (c, D), jnp.float32)
                         for c in cat_cardinalities]
    p['pos_enc'] = jax.random.normal(next(keys), (S, D), jnp.float32)

    wqv_l, wko_l, w1_l, w2_l, pv_l, l1b_l = [], [], [], [], [], []
    for _ in range(L):
        w_in, b_in = lin(next(keys), D, 3 * D)        # in_proj: columns [q|k|v]
        wq = w_in[:, 0:D] * scale                     # softmax scale folded in
        wk = w_in[:, D:2 * D]
        wv = w_in[:, 2 * D:3 * D]
        bq = b_in[0:D] * scale
        bv = b_in[2 * D:3 * D]
        # key bias b_in[D:2D] dropped: redundant for attention output
        # (softmax row-shift invariance).
        w_o, b_o = lin(next(keys), D, D)              # out_proj
        w_1, b_1 = lin(next(keys), D, FF)             # FFN 1
        w_2, b_2 = lin(next(keys), FF, D)             # FFN 2
        ln1w = jnp.ones((D,), jnp.float32); ln1b = jnp.zeros((D,), jnp.float32)
        ln2w = jnp.ones((D,), jnp.float32); ln2b = jnp.zeros((D,), jnp.float32)

        wqv_l.append(jnp.concatenate([wq, wv], axis=1))            # (D, 2D)
        wko_l.append(jnp.stack([wk.T, w_o]))                       # (2, D, D)
        w1_l.append(w_1.reshape(D, NC, FC).transpose(1, 0, 2))     # (NC, D, FC)
        w2_l.append(w_2.reshape(NC, FC, D))                        # (NC, FC, D)
        pv_l.append(jnp.stack([bq, bv, b_o, ln1w, ln1b, ln2w, ln2b, b_2]))
        l1b_l.append(b_1.reshape(NC, 1, FC))                       # (NC, 1, FC)

    p['wqv'] = jnp.stack(wqv_l).astype(bf16)           # (L, D, 2D)
    p['wko'] = jnp.stack(wko_l).astype(bf16)           # (L, 2, D, D)
    p['w1'] = jnp.stack(w1_l).astype(bf16)             # (L, NC, D, FC)
    p['w2'] = jnp.stack(w2_l).astype(bf16)             # (L, NC, FC, D)
    p['pv'] = jnp.stack(pv_l).astype(jnp.float32)      # (L, 8, D)
    p['l1b'] = jnp.stack(l1b_l).astype(jnp.float32)    # (L, NC, 1, FC)

    w1h, b1h = lin(next(keys), D * S + num_numerical, mlp_hidden)
    w2h, b2h = lin(next(keys), mlp_hidden, num_classes)
    c_pad = max(out_pad, num_classes)                  # lane-dense output
    p['w1_head'] = w1h.astype(bf16)                    # (S*D + Nn, 256)
    p['w2_head'] = jnp.zeros((mlp_hidden, c_pad), bf16).at[:, :num_classes].set(
        w2h.astype(bf16))
    headb = jnp.zeros((1, mlp_hidden + c_pad), jnp.float32)
    headb = headb.at[0, :mlp_hidden].set(b1h)
    headb = headb.at[0, mlp_hidden:mlp_hidden + num_classes].set(b2h)
    p['head_b'] = headb                                # (1, 256 + c_pad)
    p['num_classes'] = num_classes
    return p


def iot_transformer_forward(params, numerical, categorical, *, num_heads=4):
    # --- glue: embedding gather + positional encoding (plain JAX) ---
    # TODO(synk): the PyTorch data-dependent ValueError checks on categorical
    # indices have no in-kernel equivalent; indices are assumed in-range.
    tokens = [params['embed_tables'][i][categorical[:, i]] + params['pos_enc'][i]
              for i in range(len(params['embed_tables']))]
    cat_seq = jnp.stack(tokens, axis=1).astype(jnp.float32)   # (B, S, D)
    B, S, D = cat_seq.shape
    L = params['wqv'].shape[0]
    NC = params['w1'].shape[1]
    FC = params['w1'].shape[3]
    C = params['num_classes']
    c_pad = params['w2_head'].shape[-1]
    BS = B * S

    x0 = cat_seq.reshape(BS, D)                        # batch folded into M

    # Additive block-diagonal mask (f32): 0 within a batch element, -1e30
    # across, precomputed once outside the kernel.
    bids = jnp.repeat(jnp.arange(B, dtype=jnp.int32), S)
    mask_add = jnp.where(bids[:, None] == bids[None, :], 0.0, -1e30)
    mask_add = mask_add.astype(jnp.float32)

    kernel = functools.partial(_iot_kernel, B, S, D, num_heads, L, NC, FC)
    inputs = (x0, numerical.astype(jnp.float32), mask_add,
              params['wqv'], params['wko'], params['w1'], params['w2'],
              params['pv'], params['l1b'],
              params['w1_head'], params['w2_head'], params['head_b'])

    out = pl.pallas_call(
        kernel,
        out_shape=jax.ShapeDtypeStruct((B, c_pad), jnp.float32),
        in_specs=[pl.BlockSpec(memory_space=pltpu.MemorySpace.VMEM)
                  for _ in inputs],
        out_specs=pl.BlockSpec(memory_space=pltpu.MemorySpace.VMEM),
        scratch_shapes=[pltpu.VMEM((BS, D), jnp.float32)],
    )(*inputs)
    return out[:, :C]


if __name__ == "__main__":
    key = jax.random.PRNGKey(0)
    pkey, nkey, ckey = jax.random.split(key, 3)

    num_numerical = 4
    cat_cardinalities = [10, 7, 5, 12, 6, 8]     # -> seq len S = 6
    num_classes = 5
    batch = 2

    params = init_params(pkey, num_numerical, cat_cardinalities, num_classes)

    numerical = jax.random.normal(nkey, (batch, num_numerical), jnp.float32)
    cards = jnp.array(cat_cardinalities, dtype=jnp.int32)
    categorical = (jax.random.randint(ckey, (batch, len(cat_cardinalities)),
                                      0, 10_000, dtype=jnp.int32) % cards)

    out = iot_transformer_forward(params, numerical, categorical)
    out = jax.block_until_ready(out)
    assert out.shape == (batch, num_classes)
    print("KERNEL_OK")
</pallas_src>

<mosaic_0001>
module attributes {stable_mosaic.version = 11 : i64} {
  func.func @_iot_kernel(%arg0: memref<12x32xf32, #tpu.memory_space<vmem>>, %arg1: memref<2x4xf32, #tpu.memory_space<vmem>>, %arg2: memref<12x12xf32, #tpu.memory_space<vmem>>, %arg3: memref<2x32x64xbf16, #tpu.memory_space<vmem>>, %arg4: memref<2x2x32x32xbf16, #tpu.memory_space<vmem>>, %arg5: memref<2x4x32x512xbf16, #tpu.memory_space<vmem>>, %arg6: memref<2x4x512x32xbf16, #tpu.memory_space<vmem>>, %arg7: memref<2x8x32xf32, #tpu.memory_space<vmem>>, %arg8: memref<2x4x1x512xf32, #tpu.memory_space<vmem>>, %arg9: memref<196x256xbf16, #tpu.memory_space<vmem>>, %arg10: memref<256x128xbf16, #tpu.memory_space<vmem>>, %arg11: memref<1x384xf32, #tpu.memory_space<vmem>>, %arg12: memref<2x128xf32, #tpu.memory_space<vmem>>, %arg13: memref<12x32xf32, #tpu.memory_space<vmem>>) attributes {dimension_semantics = [], scalar_prefetch = 0 : i64, scratch_operands = 1 : i64, tpu.core_type = #tpu.core_type<tc>} {
    %c0 = arith.constant 0 : index
    %c0_0 = arith.constant 0 : index
    %0 = vector.load %arg2[%c0, %c0_0] : memref<12x12xf32, #tpu.memory_space<vmem>>, vector<12x12xf32>
    %c0_1 = arith.constant 0 : index
    %c0_2 = arith.constant 0 : index
    %1 = vector.load %arg0[%c0_1, %c0_2] : memref<12x32xf32, #tpu.memory_space<vmem>>, vector<12x32xf32>
    %c0_3 = arith.constant 0 : index
    %c0_4 = arith.constant 0 : index
    %c0_5 = arith.constant 0 : index
    %2 = vector.load %arg7[%c0_3, %c0_4, %c0_5] : memref<2x8x32xf32, #tpu.memory_space<vmem>>, vector<1x8x32xf32>
    %3 = vector.shape_cast %2 : vector<1x8x32xf32> to vector<8x32xf32>
    %4 = arith.truncf %1 : vector<12x32xf32> to vector<12x32xbf16>
    %c0_6 = arith.constant 0 : index
    %c0_7 = arith.constant 0 : index
    %c0_8 = arith.constant 0 : index
    %5 = vector.load %arg3[%c0_6, %c0_7, %c0_8] : memref<2x32x64xbf16, #tpu.memory_space<vmem>>, vector<1x32x64xbf16>
    %6 = vector.shape_cast %5 : vector<1x32x64xbf16> to vector<32x64xbf16>
    %cst = arith.constant dense<0.000000e+00> : vector<12x64xf32>
    %7 = tpu.matmul %4, %6, %cst {dimension_numbers = #tpu.dot_dimension_numbers<[1], [0], [0], [1], [0, 0, 1, 1], [], []>} : vector<12x32xbf16>, vector<32x64xbf16>, vector<12x64xf32> -> vector<12x64xf32>
    %8 = vector.extract_strided_slice %7 {offsets = [0, 0], sizes = [12, 32], strides = [1, 1]} : vector<12x64xf32> to vector<12x32xf32>
    %9 = vector.extract_strided_slice %3 {offsets = [0, 0], sizes = [1, 32], strides = [1, 1]} : vector<8x32xf32> to vector<1x32xf32>
    %10 = vector.broadcast %9 : vector<1x32xf32> to vector<12x32xf32>
    %11 = arith.addf %8, %10 : vector<12x32xf32>
    %12 = arith.truncf %11 : vector<12x32xf32> to vector<12x32xbf16>
    %13 = vector.extract_strided_slice %7 {offsets = [0, 32], sizes = [12, 32], strides = [1, 1]} : vector<12x64xf32> to vector<12x32xf32>
    %14 = vector.extract_strided_slice %3 {offsets = [1, 0], sizes = [1, 32], strides = [1, 1]} : vector<8x32xf32> to vector<1x32xf32>
    %15 = vector.broadcast %14 : vector<1x32xf32> to vector<12x32xf32>
    %16 = arith.addf %13, %15 : vector<12x32xf32>
    %17 = arith.truncf %16 : vector<12x32xf32> to vector<12x32xbf16>
    %18 = tpu.transpose %1, [1, 0] : vector<12x32xf32> -> vector<32x12xf32>
    %19 = arith.truncf %18 : vector<32x12xf32> to vector<32x12xbf16>
    %c0_9 = arith.constant 0 : index
    %c0_10 = arith.constant 0 : index
    %c0_11 = arith.constant 0 : index
    %c0_12 = arith.constant 0 : index
    %20 = vector.load %arg4[%c0_9, %c0_10, %c0_11, %c0_12] : memref<2x2x32x32xbf16, #tpu.memory_space<vmem>>, vector<1x1x32x32xbf16>
    %21 = vector.shape_cast %20 : vector<1x1x32x32xbf16> to vector<32x32xbf16>
    %cst_13 = arith.constant dense<0.000000e+00> : vector<32x12xf32>
    %22 = tpu.matmul %21, %19, %cst_13 {dimension_numbers = #tpu.dot_dimension_numbers<[1], [0], [0], [1], [0, 0, 1, 1], [], []>} : vector<32x32xbf16>, vector<32x12xbf16>, vector<32x12xf32> -> vector<32x12xf32>
    %23 = arith.truncf %22 : vector<32x12xf32> to vector<32x12xbf16>
    %24 = vector.extract_strided_slice %12 {offsets = [0, 0], sizes = [12, 8], strides = [1, 1]} : vector<12x32xbf16> to vector<12x8xbf16>
    %25 = vector.extract_strided_slice %23 {offsets = [0, 0], sizes = [8, 12], strides = [1, 1]} : vector<32x12xbf16> to vector<8x12xbf16>
    %26 = vector.extract_strided_slice %17 {offsets = [0, 0], sizes = [12, 8], strides = [1, 1]} : vector<12x32xbf16> to vector<12x8xbf16>
    %cst_14 = arith.constant dense<0.000000e+00> : vector<12x12xf32>
    %27 = tpu.matmul %24, %25, %cst_14 {dimension_numbers = #tpu.dot_dimension_numbers<[1], [0], [0], [1], [0, 0, 1, 1], [], []>} : vector<12x8xbf16>, vector<8x12xbf16>, vector<12x12xf32> -> vector<12x12xf32>
    %28 = arith.addf %27, %0 : vector<12x12xf32>
    %cst_15 = arith.constant dense<0xFF800000> : vector<12xf32>
    %29 = vector.multi_reduction <maximumf>, %28, %cst_15 [1] : vector<12x12xf32> to vector<12xf32>
    %30 = vector.shape_cast %29 : vector<12xf32> to vector<12x1xf32>
    %31 = vector.broadcast %30 : vector<12x1xf32> to vector<12x12xf32>
    %32 = arith.subf %28, %31 : vector<12x12xf32>
    %33 = math.exp %32 : vector<12x12xf32>
    %cst_16 = arith.constant dense<0.000000e+00> : vector<12xf32>
    %34 = vector.multi_reduction <add>, %33, %cst_16 [1] : vector<12x12xf32> to vector<12xf32>
    %35 = vector.shape_cast %34 : vector<12xf32> to vector<12x1xf32>
    %36 = tpu.reciprocal %35 {approx = true} : vector<12x1xf32> -> vector<12x1xf32>
    %37 = arith.truncf %33 : vector<12x12xf32> to vector<12x12xbf16>
    %cst_17 = arith.constant dense<0.000000e+00> : vector<12x8xf32>
    %38 = tpu.matmul %37, %26, %cst_17 {dimension_numbers = #tpu.dot_dimension_numbers<[1], [0], [0], [1], [0, 0, 1, 1], [], []>} : vector<12x12xbf16>, vector<12x8xbf16>, vector<12x8xf32> -> vector<12x8xf32>
    %39 = vector.broadcast %36 : vector<12x1xf32> to vector<12x8xf32>
    %40 = arith.mulf %38, %39 : vector<12x8xf32>
    %41 = vector.extract_strided_slice %12 {offsets = [0, 8], sizes = [12, 8], strides = [1, 1]} : vector<12x32xbf16> to vector<12x8xbf16>
    %42 = vector.extract_strided_slice %23 {offsets = [8, 0], sizes = [8, 12], strides = [1, 1]} : vector<32x12xbf16> to vector<8x12xbf16>
    %43 = vector.extract_strided_slice %17 {offsets = [0, 8], sizes = [12, 8], strides = [1, 1]} : vector<12x32xbf16> to vector<12x8xbf16>
    %cst_18 = arith.constant dense<0.000000e+00> : vector<12x12xf32>
    %44 = tpu.matmul %41, %42, %cst_18 {dimension_numbers = #tpu.dot_dimension_numbers<[1], [0], [0], [1], [0, 0, 1, 1], [], []>} : vector<12x8xbf16>, vector<8x12xbf16>, vector<12x12xf32> -> vector<12x12xf32>
    %45 = arith.addf %44, %0 : vector<12x12xf32>
    %cst_19 = arith.constant dense<0xFF800000> : vector<12xf32>
    %46 = vector.multi_reduction <maximumf>, %45, %cst_19 [1] : vector<12x12xf32> to vector<12xf32>
    %47 = vector.shape_cast %46 : vector<12xf32> to vector<12x1xf32>
    %48 = vector.broadcast %47 : vector<12x1xf32> to vector<12x12xf32>
    %49 = arith.subf %45, %48 : vector<12x12xf32>
    %50 = math.exp %49 : vector<12x12xf32>
    %cst_20 = arith.constant dense<0.000000e+00> : vector<12xf32>
    %51 = vector.multi_reduction <add>, %50, %cst_20 [1] : vector<12x12xf32> to vector<12xf32>
    %52 = vector.shape_cast %51 : vector<12xf32> to vector<12x1xf32>
    %53 = tpu.reciprocal %52 {approx = true} : vector<12x1xf32> -> vector<12x1xf32>
    %54 = arith.truncf %50 : vector<12x12xf32> to vector<12x12xbf16>
    %cst_21 = arith.constant dense<0.000000e+00> : vector<12x8xf32>
    %55 = tpu.matmul %54, %43, %cst_21 {dimension_numbers = #tpu.dot_dimension_numbers<[1], [0], [0], [1], [0, 0, 1, 1], [], []>} : vector<12x12xbf16>, vector<12x8xbf16>, vector<12x8xf32> -> vector<12x8xf32>
    %56 = vector.broadcast %53 : vector<12x1xf32> to vector<12x8xf32>
    %57 = arith.mulf %55, %56 : vector<12x8xf32>
    %58 = vector.extract_strided_slice %12 {offsets = [0, 16], sizes = [12, 8], strides = [1, 1]} : vector<12x32xbf16> to vector<12x8xbf16>
    %59 = vector.extract_strided_slice %23 {offsets = [16, 0], sizes = [8, 12], strides = [1, 1]} : vector<32x12xbf16> to vector<8x12xbf16>
    %60 = vector.extract_strided_slice %17 {offsets = [0, 16], sizes = [12, 8], strides = [1, 1]} : vector<12x32xbf16> to vector<12x8xbf16>
    %cst_22 = arith.constant dense<0.000000e+00> : vector<12x12xf32>
    %61 = tpu.matmul %58, %59, %cst_22 {dimension_numbers = #tpu.dot_dimension_numbers<[1], [0], [0], [1], [0, 0, 1, 1], [], []>} : vector<12x8xbf16>, vector<8x12xbf16>, vector<12x12xf32> -> vector<12x12xf32>
    %62 = arith.addf %61, %0 : vector<12x12xf32>
    %cst_23 = arith.constant dense<0xFF800000> : vector<12xf32>
    %63 = vector.multi_reduction <maximumf>, %62, %cst_23 [1] : vector<12x12xf32> to vector<12xf32>
    %64 = vector.shape_cast %63 : vector<12xf32> to vector<12x1xf32>
    %65 = vector.broadcast %64 : vector<12x1xf32> to vector<12x12xf32>
    %66 = arith.subf %62, %65 : vector<12x12xf32>
    %67 = math.exp %66 : vector<12x12xf32>
    %cst_24 = arith.constant dense<0.000000e+00> : vector<12xf32>
    %68 = vector.multi_reduction <add>, %67, %cst_24 [1] : vector<12x12xf32> to vector<12xf32>
    %69 = vector.shape_cast %68 : vector<12xf32> to vector<12x1xf32>
    %70 = tpu.reciprocal %69 {approx = true} : vector<12x1xf32> -> vector<12x1xf32>
    %71 = arith.truncf %67 : vector<12x12xf32> to vector<12x12xbf16>
    %cst_25 = arith.constant dense<0.000000e+00> : vector<12x8xf32>
    %72 = tpu.matmul %71, %60, %cst_25 {dimension_numbers = #tpu.dot_dimension_numbers<[1], [0], [0], [1], [0, 0, 1, 1], [], []>} : vector<12x12xbf16>, vector<12x8xbf16>, vector<12x8xf32> -> vector<12x8xf32>
    %73 = vector.broadcast %70 : vector<12x1xf32> to vector<12x8xf32>
    %74 = arith.mulf %72, %73 : vector<12x8xf32>
    %75 = vector.extract_strided_slice %12 {offsets = [0, 24], sizes = [12, 8], strides = [1, 1]} : vector<12x32xbf16> to vector<12x8xbf16>
    %76 = vector.extract_strided_slice %23 {offsets = [24, 0], sizes = [8, 12], strides = [1, 1]} : vector<32x12xbf16> to vector<8x12xbf16>
    %77 = vector.extract_strided_slice %17 {offsets = [0, 24], sizes = [12, 8], strides = [1, 1]} : vector<12x32xbf16> to vector<12x8xbf16>
    %cst_26 = arith.constant dense<0.000000e+00> : vector<12x12xf32>
    %78 = tpu.matmul %75, %76, %cst_26 {dimension_numbers = #tpu.dot_dimension_numbers<[1], [0], [0], [1], [0, 0, 1, 1], [], []>} : vector<12x8xbf16>, vector<8x12xbf16>, vector<12x12xf32> -> vector<12x12xf32>
    %79 = arith.addf %78, %0 : vector<12x12xf32>
    %cst_27 = arith.constant dense<0xFF800000> : vector<12xf32>
    %80 = vector.multi_reduction <maximumf>, %79, %cst_27 [1] : vector<12x12xf32> to vector<12xf32>
    %81 = vector.shape_cast %80 : vector<12xf32> to vector<12x1xf32>
    %82 = vector.broadcast %81 : vector<12x1xf32> to vector<12x12xf32>
    %83 = arith.subf %79, %82 : vector<12x12xf32>
    %84 = math.exp %83 : vector<12x12xf32>
    %cst_28 = arith.constant dense<0.000000e+00> : vector<12xf32>
    %85 = vector.multi_reduction <add>, %84, %cst_28 [1] : vector<12x12xf32> to vector<12xf32>
    %86 = vector.shape_cast %85 : vector<12xf32> to vector<12x1xf32>
    %87 = tpu.reciprocal %86 {approx = true} : vector<12x1xf32> -> vector<12x1xf32>
    %88 = arith.truncf %84 : vector<12x12xf32> to vector<12x12xbf16>
    %cst_29 = arith.constant dense<0.000000e+00> : vector<12x8xf32>
    %89 = tpu.matmul %88, %77, %cst_29 {dimension_numbers = #tpu.dot_dimension_numbers<[1], [0], [0], [1], [0, 0, 1, 1], [], []>} : vector<12x12xbf16>, vector<12x8xbf16>, vector<12x8xf32> -> vector<12x8xf32>
    %90 = vector.broadcast %87 : vector<12x1xf32> to vector<12x8xf32>
    %91 = arith.mulf %89, %90 : vector<12x8xf32>
    %92 = tpu.concatenate %40, %57, %74, %91 in 1 : vector<12x8xf32>, vector<12x8xf32>, vector<12x8xf32>, vector<12x8xf32> -> vector<12x32xf32>
    %93 = arith.truncf %92 : vector<12x32xf32> to vector<12x32xbf16>
    %c0_30 = arith.constant 0 : index
    %c1 = arith.constant 1 : index
    %c0_31 = arith.constant 0 : index
    %c0_32 = arith.constant 0 : index
    %94 = vector.load %arg4[%c0_30, %c1, %c0_31, %c0_32] : memref<2x2x32x32xbf16, #tpu.memory_space<vmem>>, vector<1x1x32x32xbf16>
    %95 = vector.shape_cast %94 : vector<1x1x32x32xbf16> to vector<32x32xbf16>
    %cst_33 = arith.constant dense<0.000000e+00> : vector<12x32xf32>
    %96 = tpu.matmul %93, %95, %cst_33 {dimension_numbers = #tpu.dot_dimension_numbers<[1], [0], [0], [1], [0, 0, 1, 1], [], []>} : vector<12x32xbf16>, vector<32x32xbf16>, vector<12x32xf32> -> vector<12x32xf32>
    %97 = vector.extract_strided_slice %3 {offsets = [2, 0], sizes = [1, 32], strides = [1, 1]} : vector<8x32xf32> to vector<1x32xf32>
    %98 = vector.broadcast %97 : vector<1x32xf32> to vector<12x32xf32>
    %99 = arith.addf %96, %98 : vector<12x32xf32>
    %100 = arith.addf %1, %99 : vector<12x32xf32>
    %101 = vector.extract_strided_slice %3 {offsets = [3, 0], sizes = [1, 32], strides = [1, 1]} : vector<8x32xf32> to vector<1x32xf32>
    %102 = vector.extract_strided_slice %3 {offsets = [4, 0], sizes = [1, 32], strides = [1, 1]} : vector<8x32xf32> to vector<1x32xf32>
    %cst_34 = arith.constant dense<0.000000e+00> : vector<12xf32>
    %103 = vector.multi_reduction <add>, %100, %cst_34 [1] : vector<12x32xf32> to vector<12xf32>
    %104 = vector.shape_cast %103 : vector<12xf32> to vector<12x1xf32>
    %cst_35 = arith.constant 3.200000e+01 : f32
    %105 = vector.broadcast %cst_35 : f32 to vector<12x1xf32>
    %106 = arith.divf %104, %105 : vector<12x1xf32>
    %107 = arith.mulf %100, %100 : vector<12x32xf32>
    %cst_36 = arith.constant dense<0.000000e+00> : vector<12xf32>
    %108 = vector.multi_reduction <add>, %107, %cst_36 [1] : vector<12x32xf32> to vector<12xf32>
    %109 = vector.shape_cast %108 : vector<12xf32> to vector<12x1xf32>
    %cst_37 = arith.constant 3.200000e+01 : f32
    %110 = vector.broadcast %cst_37 : f32 to vector<12x1xf32>
    %111 = arith.divf %109, %110 : vector<12x1xf32>
    %112 = arith.mulf %106, %106 : vector<12x1xf32>
    %113 = arith.subf %111, %112 : vector<12x1xf32>
    %114 = vector.broadcast %106 : vector<12x1xf32> to vector<12x32xf32>
    %115 = arith.subf %100, %114 : vector<12x32xf32>
    %cst_38 = arith.constant 9.99999974E-6 : f32
    %116 = vector.broadcast %cst_38 : f32 to vector<12x1xf32>
    %117 = arith.addf %113, %116 : vector<12x1xf32>
    %118 = math.rsqrt %117 : vector<12x1xf32>
    %119 = vector.broadcast %118 : vector<12x1xf32> to vector<12x32xf32>
    %120 = arith.mulf %115, %119 : vector<12x32xf32>
    %121 = vector.broadcast %101 : vector<1x32xf32> to vector<12x32xf32>
    %122 = arith.mulf %120, %121 : vector<12x32xf32>
    %123 = vector.broadcast %102 : vector<1x32xf32> to vector<12x32xf32>
    %124 = arith.addf %122, %123 : vector<12x32xf32>
    %125 = arith.truncf %124 : vector<12x32xf32> to vector<12x32xbf16>
    %cst_39 = arith.constant 0.000000e+00 : f32
    %126 = vector.broadcast %cst_39 : f32 to vector<12x32xf32>
    %c0_40 = arith.constant 0 : index
    %c0_41 = arith.constant 0 : index
    %c0_42 = arith.constant 0 : index
    %c0_43 = arith.constant 0 : index
    %127 = vector.load %arg5[%c0_40, %c0_41, %c0_42, %c0_43] : memref<2x4x32x512xbf16, #tpu.memory_space<vmem>>, vector<1x1x32x512xbf16>
    %128 = vector.shape_cast %127 : vector<1x1x32x512xbf16> to vector<32x512xbf16>
    %cst_44 = arith.constant dense<0.000000e+00> : vector<12x512xf32>
    %129 = tpu.matmul %125, %128, %cst_44 {dimension_numbers = #tpu.dot_dimension_numbers<[1], [0], [0], [1], [0, 0, 1, 1], [], []>} : vector<12x32xbf16>, vector<32x512xbf16>, vector<12x512xf32> -> vector<12x512xf32>
    %c0_45 = arith.constant 0 : index
    %c0_46 = arith.constant 0 : index
    %c0_47 = arith.constant 0 : index
    %c0_48 = arith.constant 0 : index
    %130 = vector.load %arg8[%c0_45, %c0_46, %c0_47, %c0_48] : memref<2x4x1x512xf32, #tpu.memory_space<vmem>>, vector<1x1x1x512xf32>
    %131 = vector.shape_cast %130 : vector<1x1x1x512xf32> to vector<1x512xf32>
    %132 = vector.broadcast %131 : vector<1x512xf32> to vector<12x512xf32>
    %133 = arith.addf %129, %132 : vector<12x512xf32>
    %cst_49 = arith.constant 0.000000e+00 : f32
    %134 = vector.broadcast %cst_49 : f32 to vector<12x512xf32>
    %135 = arith.maximumf %133, %134 : vector<12x512xf32>
    %136 = arith.truncf %135 : vector<12x512xf32> to vector<12x512xbf16>
    %c0_50 = arith.constant 0 : index
    %c0_51 = arith.constant 0 : index
    %c0_52 = arith.constant 0 : index
    %c0_53 = arith.constant 0 : index
    %137 = vector.load %arg6[%c0_50, %c0_51, %c0_52, %c0_53] : memref<2x4x512x32xbf16, #tpu.memory_space<vmem>>, vector<1x1x512x32xbf16>
    %138 = vector.shape_cast %137 : vector<1x1x512x32xbf16> to vector<512x32xbf16>
    %cst_54 = arith.constant dense<0.000000e+00> : vector<12x32xf32>
    %139 = tpu.matmul %136, %138, %cst_54 {dimension_numbers = #tpu.dot_dimension_numbers<[1], [0], [0], [1], [0, 0, 1, 1], [], []>} : vector<12x512xbf16>, vector<512x32xbf16>, vector<12x32xf32> -> vector<12x32xf32>
    %140 = arith.addf %126, %139 : vector<12x32xf32>
    %c0_55 = arith.constant 0 : index
    %c1_56 = arith.constant 1 : index
    %c0_57 = arith.constant 0 : index
    %c0_58 = arith.constant 0 : index
    %141 = vector.load %arg5[%c0_55, %c1_56, %c0_57, %c0_58] : memref<2x4x32x512xbf16, #tpu.memory_space<vmem>>, vector<1x1x32x512xbf16>
    %142 = vector.shape_cast %141 : vector<1x1x32x512xbf16> to vector<32x512xbf16>
    %cst_59 = arith.constant dense<0.000000e+00> : vector<12x512xf32>
    %143 = tpu.matmul %125, %142, %cst_59 {dimension_numbers = #tpu.dot_dimension_numbers<[1], [0], [0], [1], [0, 0, 1, 1], [], []>} : vector<12x32xbf16>, vector<32x512xbf16>, vector<12x512xf32> -> vector<12x512xf32>
    %c0_60 = arith.constant 0 : index
    %c1_61 = arith.constant 1 : index
    %c0_62 = arith.constant 0 : index
    %c0_63 = arith.constant 0 : index
    %144 = vector.load %arg8[%c0_60, %c1_61, %c0_62, %c0_63] : memref<2x4x1x512xf32, #tpu.memory_space<vmem>>, vector<1x1x1x512xf32>
    %145 = vector.shape_cast %144 : vector<1x1x1x512xf32> to vector<1x512xf32>
    %146 = vector.broadcast %145 : vector<1x512xf32> to vector<12x512xf32>
    %147 = arith.addf %143, %146 : vector<12x512xf32>
    %cst_64 = arith.constant 0.000000e+00 : f32
    %148 = vector.broadcast %cst_64 : f32 to vector<12x512xf32>
    %149 = arith.maximumf %147, %148 : vector<12x512xf32>
    %150 = arith.truncf %149 : vector<12x512xf32> to vector<12x512xbf16>
    %c0_65 = arith.constant 0 : index
    %c1_66 = arith.constant 1 : index
    %c0_67 = arith.constant 0 : index
    %c0_68 = arith.constant 0 : index
    %151 = vector.load %arg6[%c0_65, %c1_66, %c0_67, %c0_68] : memref<2x4x512x32xbf16, #tpu.memory_space<vmem>>, vector<1x1x512x32xbf16>
    %152 = vector.shape_cast %151 : vector<1x1x512x32xbf16> to vector<512x32xbf16>
    %cst_69 = arith.constant dense<0.000000e+00> : vector<12x32xf32>
    %153 = tpu.matmul %150, %152, %cst_69 {dimension_numbers = #tpu.dot_dimension_numbers<[1], [0], [0], [1], [0, 0, 1, 1], [], []>} : vector<12x512xbf16>, vector<512x32xbf16>, vector<12x32xf32> -> vector<12x32xf32>
    %154 = arith.addf %140, %153 : vector<12x32xf32>
    %c0_70 = arith.constant 0 : index
    %c2 = arith.constant 2 : index
    %c0_71 = arith.constant 0 : index
    %c0_72 = arith.constant 0 : index
    %155 = vector.load %arg5[%c0_70, %c2, %c0_71, %c0_72] : memref<2x4x32x512xbf16, #tpu.memory_space<vmem>>, vector<1x1x32x512xbf16>
    %156 = vector.shape_cast %155 : vector<1x1x32x512xbf16> to vector<32x512xbf16>
    %cst_73 = arith.constant dense<0.000000e+00> : vector<12x512xf32>
    %157 = tpu.matmul %125, %156, %cst_73 {dimension_numbers = #tpu.dot_dimension_numbers<[1], [0], [0], [1], [0, 0, 1, 1], [], []>} : vector<12x32xbf16>, vector<32x512xbf16>, vector<12x512xf32> -> vector<12x512xf32>
    %c0_74 = arith.constant 0 : index
    %c2_75 = arith.constant 2 : index
    %c0_76 = arith.constant 0 : index
    %c0_77 = arith.constant 0 : index
    %158 = vector.load %arg8[%c0_74, %c2_75, %c0_76, %c0_77] : memref<2x4x1x512xf32, #tpu.memory_space<vmem>>, vector<1x1x1x512xf32>
    %159 = vector.shape_cast %158 : vector<1x1x1x512xf32> to vector<1x512xf32>
    %160 = vector.broadcast %159 : vector<1x512xf32> to vector<12x512xf32>
    %161 = arith.addf %157, %160 : vector<12x512xf32>
    %cst_78 = arith.constant 0.000000e+00 : f32
    %162 = vector.broadcast %cst_78 : f32 to vector<12x512xf32>
    %163 = arith.maximumf %161, %162 : vector<12x512xf32>
    %164 = arith.truncf %163 : vector<12x512xf32> to vector<12x512xbf16>
    %c0_79 = arith.constant 0 : index
    %c2_80 = arith.constant 2 : index
    %c0_81 = arith.constant 0 : index
    %c0_82 = arith.constant 0 : index
    %165 = vector.load %arg6[%c0_79, %c2_80, %c0_81, %c0_82] : memref<2x4x512x32xbf16, #tpu.memory_space<vmem>>, vector<1x1x512x32xbf16>
    %166 = vector.shape_cast %165 : vector<1x1x512x32xbf16> to vector<512x32xbf16>
    %cst_83 = arith.constant dense<0.000000e+00> : vector<12x32xf32>
    %167 = tpu.matmul %164, %166, %cst_83 {dimension_numbers = #tpu.dot_dimension_numbers<[1], [0], [0], [1], [0, 0, 1, 1], [], []>} : vector<12x512xbf16>, vector<512x32xbf16>, vector<12x32xf32> -> vector<12x32xf32>
    %168 = arith.addf %154, %167 : vector<12x32xf32>
    %c0_84 = arith.constant 0 : index
    %c3 = arith.constant 3 : index
    %c0_85 = arith.constant 0 : index
    %c0_86 = arith.constant 0 : index
    %169 = vector.load %arg5[%c0_84, %c3, %c0_85, %c0_86] : memref<2x4x32x512xbf16, #tpu.memory_space<vmem>>, vector<1x1x32x512xbf16>
    %170 = vector.shape_cast %169 : vector<1x1x32x512xbf16> to vector<32x512xbf16>
    %cst_87 = arith.constant dense<0.000000e+00> : vector<12x512xf32>
    %171 = tpu.matmul %125, %170, %cst_87 {dimension_numbers = #tpu.dot_dimension_numbers<[1], [0], [0], [1], [0, 0, 1, 1], [], []>} : vector<12x32xbf16>, vector<32x512xbf16>, vector<12x512xf32> -> vector<12x512xf32>
    %c0_88 = arith.constant 0 : index
    %c3_89 = arith.constant 3 : index
    %c0_90 = arith.constant 0 : index
    %c0_91 = arith.constant 0 : index
    %172 = vector.load %arg8[%c0_88, %c3_89, %c0_90, %c0_91] : memref<2x4x1x512xf32, #tpu.memory_space<vmem>>, vector<1x1x1x512xf32>
    %173 = vector.shape_cast %172 : vector<1x1x1x512xf32> to vector<1x512xf32>
    %174 = vector.broadcast %173 : vector<1x512xf32> to vector<12x512xf32>
    %175 = arith.addf %171, %174 : vector<12x512xf32>
    %cst_92 = arith.constant 0.000000e+00 : f32
    %176 = vector.broadcast %cst_92 : f32 to vector<12x512xf32>
    %177 = arith.maximumf %175, %176 : vector<12x512xf32>
    %178 = arith.truncf %177 : vector<12x512xf32> to vector<12x512xbf16>
    %c0_93 = arith.constant 0 : index
    %c3_94 = arith.constant 3 : index
    %c0_95 = arith.constant 0 : index
    %c0_96 = arith.constant 0 : index
    %179 = vector.load %arg6[%c0_93, %c3_94, %c0_95, %c0_96] : memref<2x4x512x32xbf16, #tpu.memory_space<vmem>>, vector<1x1x512x32xbf16>
    %180 = vector.shape_cast %179 : vector<1x1x512x32xbf16> to vector<512x32xbf16>
    %cst_97 = arith.constant dense<0.000000e+00> : vector<12x32xf32>
    %181 = tpu.matmul %178, %180, %cst_97 {dimension_numbers = #tpu.dot_dimension_numbers<[1], [0], [0], [1], [0, 0, 1, 1], [], []>} : vector<12x512xbf16>, vector<512x32xbf16>, vector<12x32xf32> -> vector<12x32xf32>
    %182 = arith.addf %168, %181 : vector<12x32xf32>
    %183 = vector.extract_strided_slice %3 {offsets = [7, 0], sizes = [1, 32], strides = [1, 1]} : vector<8x32xf32> to vector<1x32xf32>
    %184 = vector.broadcast %183 : vector<1x32xf32> to vector<12x32xf32>
    %185 = arith.addf %182, %184 : vector<12x32xf32>
    %186 = arith.addf %124, %185 : vector<12x32xf32>
    %187 = vector.extract_strided_slice %3 {offsets = [5, 0], sizes = [1, 32], strides = [1, 1]} : vector<8x32xf32> to vector<1x32xf32>
    %188 = vector.extract_strided_slice %3 {offsets = [6, 0], sizes = [1, 32], strides = [1, 1]} : vector<8x32xf32> to vector<1x32xf32>
    %cst_98 = arith.constant dense<0.000000e+00> : vector<12xf32>
    %189 = vector.multi_reduction <add>, %186, %cst_98 [1] : vector<12x32xf32> to vector<12xf32>
    %190 = vector.shape_cast %189 : vector<12xf32> to vector<12x1xf32>
    %cst_99 = arith.constant 3.200000e+01 : f32
    %191 = vector.broadcast %cst_99 : f32 to vector<12x1xf32>
    %192 = arith.divf %190, %191 : vector<12x1xf32>
    %193 = arith.mulf %186, %186 : vector<12x32xf32>
    %cst_100 = arith.constant dense<0.000000e+00> : vector<12xf32>
    %194 = vector.multi_reduction <add>, %193, %cst_100 [1] : vector<12x32xf32> to vector<12xf32>
    %195 = vector.shape_cast %194 : vector<12xf32> to vector<12x1xf32>
    %cst_101 = arith.constant 3.200000e+01 : f32
    %196 = vector.broadcast %cst_101 : f32 to vector<12x1xf32>
    %197 = arith.divf %195, %196 : vector<12x1xf32>
    %198 = arith.mulf %192, %192 : vector<12x1xf32>
    %199 = arith.subf %197, %198 : vector<12x1xf32>
    %200 = vector.broadcast %192 : vector<12x1xf32> to vector<12x32xf32>
    %201 = arith.subf %186, %200 : vector<12x32xf32>
    %cst_102 = arith.constant 9.99999974E-6 : f32
    %202 = vector.broadcast %cst_102 : f32 to vector<12x1xf32>
    %203 = arith.addf %199, %202 : vector<12x1xf32>
    %204 = math.rsqrt %203 : vector<12x1xf32>
    %205 = vector.broadcast %204 : vector<12x1xf32> to vector<12x32xf32>
    %206 = arith.mulf %201, %205 : vector<12x32xf32>
    %207 = vector.broadcast %187 : vector<1x32xf32> to vector<12x32xf32>
    %208 = arith.mulf %206, %207 : vector<12x32xf32>
    %209 = vector.broadcast %188 : vector<1x32xf32> to vector<12x32xf32>
    %210 = arith.addf %208, %209 : vector<12x32xf32>
    %c1_103 = arith.constant 1 : index
    %c0_104 = arith.constant 0 : index
    %c0_105 = arith.constant 0 : index
    %211 = vector.load %arg7[%c1_103, %c0_104, %c0_105] : memref<2x8x32xf32, #tpu.memory_space<vmem>>, vector<1x8x32xf32>
    %212 = vector.shape_cast %211 : vector<1x8x32xf32> to vector<8x32xf32>
    %213 = arith.truncf %210 : vector<12x32xf32> to vector<12x32xbf16>
    %c1_106 = arith.constant 1 : index
    %c0_107 = arith.constant 0 : index
    %c0_108 = arith.constant 0 : index
    %214 = vector.load %arg3[%c1_106, %c0_107, %c0_108] : memref<2x32x64xbf16, #tpu.memory_space<vmem>>, vector<1x32x64xbf16>
    %215 = vector.shape_cast %214 : vector<1x32x64xbf16> to vector<32x64xbf16>
    %cst_109 = arith.constant dense<0.000000e+00> : vector<12x64xf32>
    %216 = tpu.matmul %213, %215, %cst_109 {dimension_numbers = #tpu.dot_dimension_numbers<[1], [0], [0], [1], [0, 0, 1, 1], [], []>} : vector<12x32xbf16>, vector<32x64xbf16>, vector<12x64xf32> -> vector<12x64xf32>
    %217 = vector.extract_strided_slice %216 {offsets = [0, 0], sizes = [12, 32], strides = [1, 1]} : vector<12x64xf32> to vector<12x32xf32>
    %218 = vector.extract_strided_slice %212 {offsets = [0, 0], sizes = [1, 32], strides = [1, 1]} : vector<8x32xf32> to vector<1x32xf32>
    %219 = vector.broadcast %218 : vector<1x32xf32> to vector<12x32xf32>
    %220 = arith.addf %217, %219 : vector<12x32xf32>
    %221 = arith.truncf %220 : vector<12x32xf32> to vector<12x32xbf16>
    %222 = vector.extract_strided_slice %216 {offsets = [0, 32], sizes = [12, 32], strides = [1, 1]} : vector<12x64xf32> to vector<12x32xf32>
    %223 = vector.extract_strided_slice %212 {offsets = [1, 0], sizes = [1, 32], strides = [1, 1]} : vector<8x32xf32> to vector<1x32xf32>
    %224 = vector.broadcast %223 : vector<1x32xf32> to vector<12x32xf32>
    %225 = arith.addf %222, %224 : vector<12x32xf32>
    %226 = arith.truncf %225 : vector<12x32xf32> to vector<12x32xbf16>
    %227 = tpu.transpose %210, [1, 0] : vector<12x32xf32> -> vector<32x12xf32>
    %228 = arith.truncf %227 : vector<32x12xf32> to vector<32x12xbf16>
    %c1_110 = arith.constant 1 : index
    %c0_111 = arith.constant 0 : index
    %c0_112 = arith.constant 0 : index
    %c0_113 = arith.constant 0 : index
    %229 = vector.load %arg4[%c1_110, %c0_111, %c0_112, %c0_113] : memref<2x2x32x32xbf16, #tpu.memory_space<vmem>>, vector<1x1x32x32xbf16>
    %230 = vector.shape_cast %229 : vector<1x1x32x32xbf16> to vector<32x32xbf16>
    %cst_114 = arith.constant dense<0.000000e+00> : vector<32x12xf32>
    %231 = tpu.matmul %230, %228, %cst_114 {dimension_numbers = #tpu.dot_dimension_numbers<[1], [0], [0], [1], [0, 0, 1, 1], [], []>} : vector<32x32xbf16>, vector<32x12xbf16>, vector<32x12xf32> -> vector<32x12xf32>
    %232 = arith.truncf %231 : vector<32x12xf32> to vector<32x12xbf16>
    %233 = vector.extract_strided_slice %221 {offsets = [0, 0], sizes = [12, 8], strides = [1, 1]} : vector<12x32xbf16> to vector<12x8xbf16>
    %234 = vector.extract_strided_slice %232 {offsets = [0, 0], sizes = [8, 12], strides = [1, 1]} : vector<32x12xbf16> to vector<8x12xbf16>
    %235 = vector.extract_strided_slice %226 {offsets = [0, 0], sizes = [12, 8], strides = [1, 1]} : vector<12x32xbf16> to vector<12x8xbf16>
    %cst_115 = arith.constant dense<0.000000e+00> : vector<12x12xf32>
    %236 = tpu.matmul %233, %234, %cst_115 {dimension_numbers = #tpu.dot_dimension_numbers<[1], [0], [0], [1], [0, 0, 1, 1], [], []>} : vector<12x8xbf16>, vector<8x12xbf16>, vector<12x12xf32> -> vector<12x12xf32>
    %237 = arith.addf %236, %0 : vector<12x12xf32>
    %cst_116 = arith.constant dense<0xFF800000> : vector<12xf32>
    %238 = vector.multi_reduction <maximumf>, %237, %cst_116 [1] : vector<12x12xf32> to vector<12xf32>
    %239 = vector.shape_cast %238 : vector<12xf32> to vector<12x1xf32>
    %240 = vector.broadcast %239 : vector<12x1xf32> to vector<12x12xf32>
    %241 = arith.subf %237, %240 : vector<12x12xf32>
    %242 = math.exp %241 : vector<12x12xf32>
    %cst_117 = arith.constant dense<0.000000e+00> : vector<12xf32>
    %243 = vector.multi_reduction <add>, %242, %cst_117 [1] : vector<12x12xf32> to vector<12xf32>
    %244 = vector.shape_cast %243 : vector<12xf32> to vector<12x1xf32>
    %245 = tpu.reciprocal %244 {approx = true} : vector<12x1xf32> -> vector<12x1xf32>
    %246 = arith.truncf %242 : vector<12x12xf32> to vector<12x12xbf16>
    %cst_118 = arith.constant dense<0.000000e+00> : vector<12x8xf32>
    %247 = tpu.matmul %246, %235, %cst_118 {dimension_numbers = #tpu.dot_dimension_numbers<[1], [0], [0], [1], [0, 0, 1, 1], [], []>} : vector<12x12xbf16>, vector<12x8xbf16>, vector<12x8xf32> -> vector<12x8xf32>
    %248 = vector.broadcast %245 : vector<12x1xf32> to vector<12x8xf32>
    %249 = arith.mulf %247, %248 : vector<12x8xf32>
    %250 = vector.extract_strided_slice %221 {offsets = [0, 8], sizes = [12, 8], strides = [1, 1]} : vector<12x32xbf16> to vector<12x8xbf16>
    %251 = vector.extract_strided_slice %232 {offsets = [8, 0], sizes = [8, 12], strides = [1, 1]} : vector<32x12xbf16> to vector<8x12xbf16>
    %252 = vector.extract_strided_slice %226 {offsets = [0, 8], sizes = [12, 8], strides = [1, 1]} : vector<12x32xbf16> to vector<12x8xbf16>
    %cst_119 = arith.constant dense<0.000000e+00> : vector<12x12xf32>
    %253 = tpu.matmul %250, %251, %cst_119 {dimension_numbers = #tpu.dot_dimension_numbers<[1], [0], [0], [1], [0, 0, 1, 1], [], []>} : vector<12x8xbf16>, vector<8x12xbf16>, vector<12x12xf32> -> vector<12x12xf32>
    %254 = arith.addf %253, %0 : vector<12x12xf32>
    %cst_120 = arith.constant dense<0xFF800000> : vector<12xf32>
    %255 = vector.multi_reduction <maximumf>, %254, %cst_120 [1] : vector<12x12xf32> to vector<12xf32>
    %256 = vector.shape_cast %255 : vector<12xf32> to vector<12x1xf32>
    %257 = vector.broadcast %256 : vector<12x1xf32> to vector<12x12xf32>
    %258 = arith.subf %254, %257 : vector<12x12xf32>
    %259 = math.exp %258 : vector<12x12xf32>
    %cst_121 = arith.constant dense<0.000000e+00> : vector<12xf32>
    %260 = vector.multi_reduction <add>, %259, %cst_121 [1] : vector<12x12xf32> to vector<12xf32>
    %261 = vector.shape_cast %260 : vector<12xf32> to vector<12x1xf32>
    %262 = tpu.reciprocal %261 {approx = true} : vector<12x1xf32> -> vector<12x1xf32>
    %263 = arith.truncf %259 : vector<12x12xf32> to vector<12x12xbf16>
    %cst_122 = arith.constant dense<0.000000e+00> : vector<12x8xf32>
    %264 = tpu.matmul %263, %252, %cst_122 {dimension_numbers = #tpu.dot_dimension_numbers<[1], [0], [0], [1], [0, 0, 1, 1], [], []>} : vector<12x12xbf16>, vector<12x8xbf16>, vector<12x8xf32> -> vector<12x8xf32>
    %265 = vector.broadcast %262 : vector<12x1xf32> to vector<12x8xf32>
    %266 = arith.mulf %264, %265 : vector<12x8xf32>
    %267 = vector.extract_strided_slice %221 {offsets = [0, 16], sizes = [12, 8], strides = [1, 1]} : vector<12x32xbf16> to vector<12x8xbf16>
    %268 = vector.extract_strided_slice %232 {offsets = [16, 0], sizes = [8, 12], strides = [1, 1]} : vector<32x12xbf16> to vector<8x12xbf16>
    %269 = vector.extract_strided_slice %226 {offsets = [0, 16], sizes = [12, 8], strides = [1, 1]} : vector<12x32xbf16> to vector<12x8xbf16>
    %cst_123 = arith.constant dense<0.000000e+00> : vector<12x12xf32>
    %270 = tpu.matmul %267, %268, %cst_123 {dimension_numbers = #tpu.dot_dimension_numbers<[1], [0], [0], [1], [0, 0, 1, 1], [], []>} : vector<12x8xbf16>, vector<8x12xbf16>, vector<12x12xf32> -> vector<12x12xf32>
    %271 = arith.addf %270, %0 : vector<12x12xf32>
    %cst_124 = arith.constant dense<0xFF800000> : vector<12xf32>
    %272 = vector.multi_reduction <maximumf>, %271, %cst_124 [1] : vector<12x12xf32> to vector<12xf32>
    %273 = vector.shape_cast %272 : vector<12xf32> to vector<12x1xf32>
    %274 = vector.broadcast %273 : vector<12x1xf32> to vector<12x12xf32>
    %275 = arith.subf %271, %274 : vector<12x12xf32>
    %276 = math.exp %275 : vector<12x12xf32>
    %cst_125 = arith.constant dense<0.000000e+00> : vector<12xf32>
    %277 = vector.multi_reduction <add>, %276, %cst_125 [1] : vector<12x12xf32> to vector<12xf32>
    %278 = vector.shape_cast %277 : vector<12xf32> to vector<12x1xf32>
    %279 = tpu.reciprocal %278 {approx = true} : vector<12x1xf32> -> vector<12x1xf32>
    %280 = arith.truncf %276 : vector<12x12xf32> to vector<12x12xbf16>
    %cst_126 = arith.constant dense<0.000000e+00> : vector<12x8xf32>
    %281 = tpu.matmul %280, %269, %cst_126 {dimension_numbers = #tpu.dot_dimension_numbers<[1], [0], [0], [1], [0, 0, 1, 1], [], []>} : vector<12x12xbf16>, vector<12x8xbf16>, vector<12x8xf32> -> vector<12x8xf32>
    %282 = vector.broadcast %279 : vector<12x1xf32> to vector<12x8xf32>
    %283 = arith.mulf %281, %282 : vector<12x8xf32>
    %284 = vector.extract_strided_slice %221 {offsets = [0, 24], sizes = [12, 8], strides = [1, 1]} : vector<12x32xbf16> to vector<12x8xbf16>
    %285 = vector.extract_strided_slice %232 {offsets = [24, 0], sizes = [8, 12], strides = [1, 1]} : vector<32x12xbf16> to vector<8x12xbf16>
    %286 = vector.extract_strided_slice %226 {offsets = [0, 24], sizes = [12, 8], strides = [1, 1]} : vector<12x32xbf16> to vector<12x8xbf16>
    %cst_127 = arith.constant dense<0.000000e+00> : vector<12x12xf32>
    %287 = tpu.matmul %284, %285, %cst_127 {dimension_numbers = #tpu.dot_dimension_numbers<[1], [0], [0], [1], [0, 0, 1, 1], [], []>} : vector<12x8xbf16>, vector<8x12xbf16>, vector<12x12xf32> -> vector<12x12xf32>
    %288 = arith.addf %287, %0 : vector<12x12xf32>
    %cst_128 = arith.constant dense<0xFF800000> : vector<12xf32>
    %289 = vector.multi_reduction <maximumf>, %288, %cst_128 [1] : vector<12x12xf32> to vector<12xf32>
    %290 = vector.shape_cast %289 : vector<12xf32> to vector<12x1xf32>
    %291 = vector.broadcast %290 : vector<12x1xf32> to vector<12x12xf32>
    %292 = arith.subf %288, %291 : vector<12x12xf32>
    %293 = math.exp %292 : vector<12x12xf32>
    %cst_129 = arith.constant dense<0.000000e+00> : vector<12xf32>
    %294 = vector.multi_reduction <add>, %293, %cst_129 [1] : vector<12x12xf32> to vector<12xf32>
    %295 = vector.shape_cast %294 : vector<12xf32> to vector<12x1xf32>
    %296 = tpu.reciprocal %295 {approx = true} : vector<12x1xf32> -> vector<12x1xf32>
    %297 = arith.truncf %293 : vector<12x12xf32> to vector<12x12xbf16>
    %cst_130 = arith.constant dense<0.000000e+00> : vector<12x8xf32>
    %298 = tpu.matmul %297, %286, %cst_130 {dimension_numbers = #tpu.dot_dimension_numbers<[1], [0], [0], [1], [0, 0, 1, 1], [], []>} : vector<12x12xbf16>, vector<12x8xbf16>, vector<12x8xf32> -> vector<12x8xf32>
    %299 = vector.broadcast %296 : vector<12x1xf32> to vector<12x8xf32>
    %300 = arith.mulf %298, %299 : vector<12x8xf32>
    %301 = tpu.concatenate %249, %266, %283, %300 in 1 : vector<12x8xf32>, vector<12x8xf32>, vector<12x8xf32>, vector<12x8xf32> -> vector<12x32xf32>
    %302 = arith.truncf %301 : vector<12x32xf32> to vector<12x32xbf16>
    %c1_131 = arith.constant 1 : index
    %c1_132 = arith.constant 1 : index
    %c0_133 = arith.constant 0 : index
    %c0_134 = arith.constant 0 : index
    %303 = vector.load %arg4[%c1_131, %c1_132, %c0_133, %c0_134] : memref<2x2x32x32xbf16, #tpu.memory_space<vmem>>, vector<1x1x32x32xbf16>
    %304 = vector.shape_cast %303 : vector<1x1x32x32xbf16> to vector<32x32xbf16>
    %cst_135 = arith.constant dense<0.000000e+00> : vector<12x32xf32>
    %305 = tpu.matmul %302, %304, %cst_135 {dimension_numbers = #tpu.dot_dimension_numbers<[1], [0], [0], [1], [0, 0, 1, 1], [], []>} : vector<12x32xbf16>, vector<32x32xbf16>, vector<12x32xf32> -> vector<12x32xf32>
    %306 = vector.extract_strided_slice %212 {offsets = [2, 0], sizes = [1, 32], strides = [1, 1]} : vector<8x32xf32> to vector<1x32xf32>
    %307 = vector.broadcast %306 : vector<1x32xf32> to vector<12x32xf32>
    %308 = arith.addf %305, %307 : vector<12x32xf32>
    %309 = arith.addf %210, %308 : vector<12x32xf32>
    %310 = vector.extract_strided_slice %212 {offsets = [3, 0], sizes = [1, 32], strides = [1, 1]} : vector<8x32xf32> to vector<1x32xf32>
    %311 = vector.extract_strided_slice %212 {offsets = [4, 0], sizes = [1, 32], strides = [1, 1]} : vector<8x32xf32> to vector<1x32xf32>
    %cst_136 = arith.constant dense<0.000000e+00> : vector<12xf32>
    %312 = vector.multi_reduction <add>, %309, %cst_136 [1] : vector<12x32xf32> to vector<12xf32>
    %313 = vector.shape_cast %312 : vector<12xf32> to vector<12x1xf32>
    %cst_137 = arith.constant 3.200000e+01 : f32
    %314 = vector.broadcast %cst_137 : f32 to vector<12x1xf32>
    %315 = arith.divf %313, %314 : vector<12x1xf32>
    %316 = arith.mulf %309, %309 : vector<12x32xf32>
    %cst_138 = arith.constant dense<0.000000e+00> : vector<12xf32>
    %317 = vector.multi_reduction <add>, %316, %cst_138 [1] : vector<12x32xf32> to vector<12xf32>
    %318 = vector.shape_cast %317 : vector<12xf32> to vector<12x1xf32>
    %cst_139 = arith.constant 3.200000e+01 : f32
    %319 = vector.broadcast %cst_139 : f32 to vector<12x1xf32>
    %320 = arith.divf %318, %319 : vector<12x1xf32>
    %321 = arith.mulf %315, %315 : vector<12x1xf32>
    %322 = arith.subf %320, %321 : vector<12x1xf32>
    %323 = vector.broadcast %315 : vector<12x1xf32> to vector<12x32xf32>
    %324 = arith.subf %309, %323 : vector<12x32xf32>
    %cst_140 = arith.constant 9.99999974E-6 : f32
    %325 = vector.broadcast %cst_140 : f32 to vector<12x1xf32>
    %326 = arith.addf %322, %325 : vector<12x1xf32>
    %327 = math.rsqrt %326 : vector<12x1xf32>
    %328 = vector.broadcast %327 : vector<12x1xf32> to vector<12x32xf32>
    %329 = arith.mulf %324, %328 : vector<12x32xf32>
    %330 = vector.broadcast %310 : vector<1x32xf32> to vector<12x32xf32>
    %331 = arith.mulf %329, %330 : vector<12x32xf32>
    %332 = vector.broadcast %311 : vector<1x32xf32> to vector<12x32xf32>
    %333 = arith.addf %331, %332 : vector<12x32xf32>
    %334 = arith.truncf %333 : vector<12x32xf32> to vector<12x32xbf16>
    %cst_141 = arith.constant 0.000000e+00 : f32
    %335 = vector.broadcast %cst_141 : f32 to vector<12x32xf32>
    %c1_142 = arith.constant 1 : index
    %c0_143 = arith.constant 0 : index
    %c0_144 = arith.constant 0 : index
    %c0_145 = arith.constant 0 : index
    %336 = vector.load %arg5[%c1_142, %c0_143, %c0_144, %c0_145] : memref<2x4x32x512xbf16, #tpu.memory_space<vmem>>, vector<1x1x32x512xbf16>
    %337 = vector.shape_cast %336 : vector<1x1x32x512xbf16> to vector<32x512xbf16>
    %cst_146 = arith.constant dense<0.000000e+00> : vector<12x512xf32>
    %338 = tpu.matmul %334, %337, %cst_146 {dimension_numbers = #tpu.dot_dimension_numbers<[1], [0], [0], [1], [0, 0, 1, 1], [], []>} : vector<12x32xbf16>, vector<32x512xbf16>, vector<12x512xf32> -> vector<12x512xf32>
    %c1_147 = arith.constant 1 : index
    %c0_148 = arith.constant 0 : index
    %c0_149 = arith.constant 0 : index
    %c0_150 = arith.constant 0 : index
    %339 = vector.load %arg8[%c1_147, %c0_148, %c0_149, %c0_150] : memref<2x4x1x512xf32, #tpu.memory_space<vmem>>, vector<1x1x1x512xf32>
    %340 = vector.shape_cast %339 : vector<1x1x1x512xf32> to vector<1x512xf32>
    %341 = vector.broadcast %340 : vector<1x512xf32> to vector<12x512xf32>
    %342 = arith.addf %338, %341 : vector<12x512xf32>
    %cst_151 = arith.constant 0.000000e+00 : f32
    %343 = vector.broadcast %cst_151 : f32 to vector<12x512xf32>
    %344 = arith.maximumf %342, %343 : vector<12x512xf32>
    %345 = arith.truncf %344 : vector<12x512xf32> to vector<12x512xbf16>
    %c1_152 = arith.constant 1 : index
    %c0_153 = arith.constant 0 : index
    %c0_154 = arith.constant 0 : index
    %c0_155 = arith.constant 0 : index
    %346 = vector.load %arg6[%c1_152, %c0_153, %c0_154, %c0_155] : memref<2x4x512x32xbf16, #tpu.memory_space<vmem>>, vector<1x1x512x32xbf16>
    %347 = vector.shape_cast %346 : vector<1x1x512x32xbf16> to vector<512x32xbf16>
    %cst_156 = arith.constant dense<0.000000e+00> : vector<12x32xf32>
    %348 = tpu.matmul %345, %347, %cst_156 {dimension_numbers = #tpu.dot_dimension_numbers<[1], [0], [0], [1], [0, 0, 1, 1], [], []>} : vector<12x512xbf16>, vector<512x32xbf16>, vector<12x32xf32> -> vector<12x32xf32>
    %349 = arith.addf %335, %348 : vector<12x32xf32>
    %c1_157 = arith.constant 1 : index
    %c1_158 = arith.constant 1 : index
    %c0_159 = arith.constant 0 : index
    %c0_160 = arith.constant 0 : index
    %350 = vector.load %arg5[%c1_157, %c1_158, %c0_159, %c0_160] : memref<2x4x32x512xbf16, #tpu.memory_space<vmem>>, vector<1x1x32x512xbf16>
    %351 = vector.shape_cast %350 : vector<1x1x32x512xbf16> to vector<32x512xbf16>
    %cst_161 = arith.constant dense<0.000000e+00> : vector<12x512xf32>
    %352 = tpu.matmul %334, %351, %cst_161 {dimension_numbers = #tpu.dot_dimension_numbers<[1], [0], [0], [1], [0, 0, 1, 1], [], []>} : vector<12x32xbf16>, vector<32x512xbf16>, vector<12x512xf32> -> vector<12x512xf32>
    %c1_162 = arith.constant 1 : index
    %c1_163 = arith.constant 1 : index
    %c0_164 = arith.constant 0 : index
    %c0_165 = arith.constant 0 : index
    %353 = vector.load %arg8[%c1_162, %c1_163, %c0_164, %c0_165] : memref<2x4x1x512xf32, #tpu.memory_space<vmem>>, vector<1x1x1x512xf32>
    %354 = vector.shape_cast %353 : vector<1x1x1x512xf32> to vector<1x512xf32>
    %355 = vector.broadcast %354 : vector<1x512xf32> to vector<12x512xf32>
    %356 = arith.addf %352, %355 : vector<12x512xf32>
    %cst_166 = arith.constant 0.000000e+00 : f32
    %357 = vector.broadcast %cst_166 : f32 to vector<12x512xf32>
    %358 = arith.maximumf %356, %357 : vector<12x512xf32>
    %359 = arith.truncf %358 : vector<12x512xf32> to vector<12x512xbf16>
    %c1_167 = arith.constant 1 : index
    %c1_168 = arith.constant 1 : index
    %c0_169 = arith.constant 0 : index
    %c0_170 = arith.constant 0 : index
    %360 = vector.load %arg6[%c1_167, %c1_168, %c0_169, %c0_170] : memref<2x4x512x32xbf16, #tpu.memory_space<vmem>>, vector<1x1x512x32xbf16>
    %361 = vector.shape_cast %360 : vector<1x1x512x32xbf16> to vector<512x32xbf16>
    %cst_171 = arith.constant dense<0.000000e+00> : vector<12x32xf32>
    %362 = tpu.matmul %359, %361, %cst_171 {dimension_numbers = #tpu.dot_dimension_numbers<[1], [0], [0], [1], [0, 0, 1, 1], [], []>} : vector<12x512xbf16>, vector<512x32xbf16>, vector<12x32xf32> -> vector<12x32xf32>
    %363 = arith.addf %349, %362 : vector<12x32xf32>
    %c1_172 = arith.constant 1 : index
    %c2_173 = arith.constant 2 : index
    %c0_174 = arith.constant 0 : index
    %c0_175 = arith.constant 0 : index
    %364 = vector.load %arg5[%c1_172, %c2_173, %c0_174, %c0_175] : memref<2x4x32x512xbf16, #tpu.memory_space<vmem>>, vector<1x1x32x512xbf16>
    %365 = vector.shape_cast %364 : vector<1x1x32x512xbf16> to vector<32x512xbf16>
    %cst_176 = arith.constant dense<0.000000e+00> : vector<12x512xf32>
    %366 = tpu.matmul %334, %365, %cst_176 {dimension_numbers = #tpu.dot_dimension_numbers<[1], [0], [0], [1], [0, 0, 1, 1], [], []>} : vector<12x32xbf16>, vector<32x512xbf16>, vector<12x512xf32> -> vector<12x512xf32>
    %c1_177 = arith.constant 1 : index
    %c2_178 = arith.constant 2 : index
    %c0_179 = arith.constant 0 : index
    %c0_180 = arith.constant 0 : index
    %367 = vector.load %arg8[%c1_177, %c2_178, %c0_179, %c0_180] : memref<2x4x1x512xf32, #tpu.memory_space<vmem>>, vector<1x1x1x512xf32>
    %368 = vector.shape_cast %367 : vector<1x1x1x512xf32> to vector<1x512xf32>
    %369 = vector.broadcast %368 : vector<1x512xf32> to vector<12x512xf32>
    %370 = arith.addf %366, %369 : vector<12x512xf32>
    %cst_181 = arith.constant 0.000000e+00 : f32
    %371 = vector.broadcast %cst_181 : f32 to vector<12x512xf32>
    %372 = arith.maximumf %370, %371 : vector<12x512xf32>
    %373 = arith.truncf %372 : vector<12x512xf32> to vector<12x512xbf16>
    %c1_182 = arith.constant 1 : index
    %c2_183 = arith.constant 2 : index
    %c0_184 = arith.constant 0 : index
    %c0_185 = arith.constant 0 : index
    %374 = vector.load %arg6[%c1_182, %c2_183, %c0_184, %c0_185] : memref<2x4x512x32xbf16, #tpu.memory_space<vmem>>, vector<1x1x512x32xbf16>
    %375 = vector.shape_cast %374 : vector<1x1x512x32xbf16> to vector<512x32xbf16>
    %cst_186 = arith.constant dense<0.000000e+00> : vector<12x32xf32>
    %376 = tpu.matmul %373, %375, %cst_186 {dimension_numbers = #tpu.dot_dimension_numbers<[1], [0], [0], [1], [0, 0, 1, 1], [], []>} : vector<12x512xbf16>, vector<512x32xbf16>, vector<12x32xf32> -> vector<12x32xf32>
    %377 = arith.addf %363, %376 : vector<12x32xf32>
    %c1_187 = arith.constant 1 : index
    %c3_188 = arith.constant 3 : index
    %c0_189 = arith.constant 0 : index
    %c0_190 = arith.constant 0 : index
    %378 = vector.load %arg5[%c1_187, %c3_188, %c0_189, %c0_190] : memref<2x4x32x512xbf16, #tpu.memory_space<vmem>>, vector<1x1x32x512xbf16>
    %379 = vector.shape_cast %378 : vector<1x1x32x512xbf16> to vector<32x512xbf16>
    %cst_191 = arith.constant dense<0.000000e+00> : vector<12x512xf32>
    %380 = tpu.matmul %334, %379, %cst_191 {dimension_numbers = #tpu.dot_dimension_numbers<[1], [0], [0], [1], [0, 0, 1, 1], [], []>} : vector<12x32xbf16>, vector<32x512xbf16>, vector<12x512xf32> -> vector<12x512xf32>
    %c1_192 = arith.constant 1 : index
    %c3_193 = arith.constant 3 : index
    %c0_194 = arith.constant 0 : index
    %c0_195 = arith.constant 0 : index
    %381 = vector.load %arg8[%c1_192, %c3_193, %c0_194, %c0_195] : memref<2x4x1x512xf32, #tpu.memory_space<vmem>>, vector<1x1x1x512xf32>
    %382 = vector.shape_cast %381 : vector<1x1x1x512xf32> to vector<1x512xf32>
    %383 = vector.broadcast %382 : vector<1x512xf32> to vector<12x512xf32>
    %384 = arith.addf %380, %383 : vector<12x512xf32>
    %cst_196 = arith.constant 0.000000e+00 : f32
    %385 = vector.broadcast %cst_196 : f32 to vector<12x512xf32>
    %386 = arith.maximumf %384, %385 : vector<12x512xf32>
    %387 = arith.truncf %386 : vector<12x512xf32> to vector<12x512xbf16>
    %c1_197 = arith.constant 1 : index
    %c3_198 = arith.constant 3 : index
    %c0_199 = arith.constant 0 : index
    %c0_200 = arith.constant 0 : index
    %388 = vector.load %arg6[%c1_197, %c3_198, %c0_199, %c0_200] : memref<2x4x512x32xbf16, #tpu.memory_space<vmem>>, vector<1x1x512x32xbf16>
    %389 = vector.shape_cast %388 : vector<1x1x512x32xbf16> to vector<512x32xbf16>
    %cst_201 = arith.constant dense<0.000000e+00> : vector<12x32xf32>
    %390 = tpu.matmul %387, %389, %cst_201 {dimension_numbers = #tpu.dot_dimension_numbers<[1], [0], [0], [1], [0, 0, 1, 1], [], []>} : vector<12x512xbf16>, vector<512x32xbf16>, vector<12x32xf32> -> vector<12x32xf32>
    %391 = arith.addf %377, %390 : vector<12x32xf32>
    %392 = vector.extract_strided_slice %212 {offsets = [7, 0], sizes = [1, 32], strides = [1, 1]} : vector<8x32xf32> to vector<1x32xf32>
    %393 = vector.broadcast %392 : vector<1x32xf32> to vector<12x32xf32>
    %394 = arith.addf %391, %393 : vector<12x32xf32>
    %395 = arith.addf %333, %394 : vector<12x32xf32>
    %396 = vector.extract_strided_slice %212 {offsets = [5, 0], sizes = [1, 32], strides = [1, 1]} : vector<8x32xf32> to vector<1x32xf32>
    %397 = vector.extract_strided_slice %212 {offsets = [6, 0], sizes = [1, 32], strides = [1, 1]} : vector<8x32xf32> to vector<1x32xf32>
    %cst_202 = arith.constant dense<0.000000e+00> : vector<12xf32>
    %398 = vector.multi_reduction <add>, %395, %cst_202 [1] : vector<12x32xf32> to vector<12xf32>
    %399 = vector.shape_cast %398 : vector<12xf32> to vector<12x1xf32>
    %cst_203 = arith.constant 3.200000e+01 : f32
    %400 = vector.broadcast %cst_203 : f32 to vector<12x1xf32>
    %401 = arith.divf %399, %400 : vector<12x1xf32>
    %402 = arith.mulf %395, %395 : vector<12x32xf32>
    %cst_204 = arith.constant dense<0.000000e+00> : vector<12xf32>
    %403 = vector.multi_reduction <add>, %402, %cst_204 [1] : vector<12x32xf32> to vector<12xf32>
    %404 = vector.shape_cast %403 : vector<12xf32> to vector<12x1xf32>
    %cst_205 = arith.constant 3.200000e+01 : f32
    %405 = vector.broadcast %cst_205 : f32 to vector<12x1xf32>
    %406 = arith.divf %404, %405 : vector<12x1xf32>
    %407 = arith.mulf %401, %401 : vector<12x1xf32>
    %408 = arith.subf %406, %407 : vector<12x1xf32>
    %409 = vector.broadcast %401 : vector<12x1xf32> to vector<12x32xf32>
    %410 = arith.subf %395, %409 : vector<12x32xf32>
    %cst_206 = arith.constant 9.99999974E-6 : f32
    %411 = vector.broadcast %cst_206 : f32 to vector<12x1xf32>
    %412 = arith.addf %408, %411 : vector<12x1xf32>
    %413 = math.rsqrt %412 : vector<12x1xf32>
    %414 = vector.broadcast %413 : vector<12x1xf32> to vector<12x32xf32>
    %415 = arith.mulf %410, %414 : vector<12x32xf32>
    %416 = vector.broadcast %396 : vector<1x32xf32> to vector<12x32xf32>
    %417 = arith.mulf %415, %416 : vector<12x32xf32>
    %418 = vector.broadcast %397 : vector<1x32xf32> to vector<12x32xf32>
    %419 = arith.addf %417, %418 : vector<12x32xf32>
    %c0_207 = arith.constant 0 : index
    %c0_208 = arith.constant 0 : index
    %420 = vector.load %arg13[%c0_207, %c0_208] : memref<12x32xf32, #tpu.memory_space<vmem>>, vector<12x32xf32>
    tpu.vector_store %arg13[%c0_207, %c0_208], %419 {strides = array<i32>} : memref<12x32xf32, #tpu.memory_space<vmem>>, vector<12x32xf32>,
    %c0_209 = arith.constant 0 : index
    %c0_210 = arith.constant 0 : index
    %421 = vector.load %arg1[%c0_209, %c0_210] : memref<2x4xf32, #tpu.memory_space<vmem>>, vector<2x4xf32>
    %422 = arith.truncf %421 : vector<2x4xf32> to vector<2x4xbf16>
    %c192 = arith.constant 192 : index
    %c0_211 = arith.constant 0 : index
    %423 = vector.load %arg9[%c192, %c0_211] : memref<196x256xbf16, #tpu.memory_space<vmem>>, vector<4x256xbf16>
    %cst_212 = arith.constant dense<0.000000e+00> : vector<2x256xf32>
    %424 = tpu.matmul %422, %423, %cst_212 {dimension_numbers = #tpu.dot_dimension_numbers<[1], [0], [0], [1], [0, 0, 1, 1], [], []>} : vector<2x4xbf16>, vector<4x256xbf16>, vector<2x256xf32> -> vector<2x256xf32>
    %c0_213 = arith.constant 0 : index
    %c0_214 = arith.constant 0 : index
    %425 = vector.load %arg11[%c0_213, %c0_214] : memref<1x384xf32, #tpu.memory_space<vmem>>, vector<1x256xf32>
    %426 = vector.broadcast %425 : vector<1x256xf32> to vector<2x256xf32>
    %427 = arith.addf %424, %426 : vector<2x256xf32>
    %c0_215 = arith.constant 0 : index
    %c0_216 = arith.constant 0 : index
    %428 = tpu.strided_load %arg13[%c0_215, %c0_216] {strides = array<i32: 6, 1>} : memref<12x32xf32, #tpu.memory_space<vmem>>, vector<2x32xf32>
    %429 = arith.truncf %428 : vector<2x32xf32> to vector<2x32xbf16>
    %c0_217 = arith.constant 0 : index
    %c0_218 = arith.constant 0 : index
    %430 = vector.load %arg9[%c0_217, %c0_218] : memref<196x256xbf16, #tpu.memory_space<vmem>>, vector<32x256xbf16>
    %cst_219 = arith.constant dense<0.000000e+00> : vector<2x256xf32>
    %431 = tpu.matmul %429, %430, %cst_219 {dimension_numbers = #tpu.dot_dimension_numbers<[1], [0], [0], [1], [0, 0, 1, 1], [], []>} : vector<2x32xbf16>, vector<32x256xbf16>, vector<2x256xf32> -> vector<2x256xf32>
    %432 = arith.addf %427, %431 : vector<2x256xf32>
    %c1_220 = arith.constant 1 : index
    %c0_221 = arith.constant 0 : index
    %433 = tpu.strided_load %arg13[%c1_220, %c0_221] {strides = array<i32: 6, 1>} : memref<12x32xf32, #tpu.memory_space<vmem>>, vector<2x32xf32>
    %434 = arith.truncf %433 : vector<2x32xf32> to vector<2x32xbf16>
    %c32 = arith.constant 32 : index
    %c0_222 = arith.constant 0 : index
    %435 = vector.load %arg9[%c32, %c0_222] : memref<196x256xbf16, #tpu.memory_space<vmem>>, vector<32x256xbf16>
    %cst_223 = arith.constant dense<0.000000e+00> : vector<2x256xf32>
    %436 = tpu.matmul %434, %435, %cst_223 {dimension_numbers = #tpu.dot_dimension_numbers<[1], [0], [0], [1], [0, 0, 1, 1], [], []>} : vector<2x32xbf16>, vector<32x256xbf16>, vector<2x256xf32> -> vector<2x256xf32>
    %437 = arith.addf %432, %436 : vector<2x256xf32>
    %c2_224 = arith.constant 2 : index
    %c0_225 = arith.constant 0 : index
    %438 = tpu.strided_load %arg13[%c2_224, %c0_225] {strides = array<i32: 6, 1>} : memref<12x32xf32, #tpu.memory_space<vmem>>, vector<2x32xf32>
    %439 = arith.truncf %438 : vector<2x32xf32> to vector<2x32xbf16>
    %c64 = arith.constant 64 : index
    %c0_226 = arith.constant 0 : index
    %440 = vector.load %arg9[%c64, %c0_226] : memref<196x256xbf16, #tpu.memory_space<vmem>>, vector<32x256xbf16>
    %cst_227 = arith.constant dense<0.000000e+00> : vector<2x256xf32>
    %441 = tpu.matmul %439, %440, %cst_227 {dimension_numbers = #tpu.dot_dimension_numbers<[1], [0], [0], [1], [0, 0, 1, 1], [], []>} : vector<2x32xbf16>, vector<32x256xbf16>, vector<2x256xf32> -> vector<2x256xf32>
    %442 = arith.addf %437, %441 : vector<2x256xf32>
    %c3_228 = arith.constant 3 : index
    %c0_229 = arith.constant 0 : index
    %443 = tpu.strided_load %arg13[%c3_228, %c0_229] {strides = array<i32: 6, 1>} : memref<12x32xf32, #tpu.memory_space<vmem>>, vector<2x32xf32>
    %444 = arith.truncf %443 : vector<2x32xf32> to vector<2x32xbf16>
    %c96 = arith.constant 96 : index
    %c0_230 = arith.constant 0 : index
    %445 = vector.load %arg9[%c96, %c0_230] : memref<196x256xbf16, #tpu.memory_space<vmem>>, vector<32x256xbf16>
    %cst_231 = arith.constant dense<0.000000e+00> : vector<2x256xf32>
    %446 = tpu.matmul %444, %445, %cst_231 {dimension_numbers = #tpu.dot_dimension_numbers<[1], [0], [0], [1], [0, 0, 1, 1], [], []>} : vector<2x32xbf16>, vector<32x256xbf16>, vector<2x256xf32> -> vector<2x256xf32>
    %447 = arith.addf %442, %446 : vector<2x256xf32>
    %c4 = arith.constant 4 : index
    %c0_232 = arith.constant 0 : index
    %448 = tpu.strided_load %arg13[%c4, %c0_232] {strides = array<i32: 6, 1>} : memref<12x32xf32, #tpu.memory_space<vmem>>, vector<2x32xf32>
    %449 = arith.truncf %448 : vector<2x32xf32> to vector<2x32xbf16>
    %c128 = arith.constant 128 : index
    %c0_233 = arith.constant 0 : index
    %450 = vector.load %arg9[%c128, %c0_233] : memref<196x256xbf16, #tpu.memory_space<vmem>>, vector<32x256xbf16>
    %cst_234 = arith.constant dense<0.000000e+00> : vector<2x256xf32>
    %451 = tpu.matmul %449, %450, %cst_234 {dimension_numbers = #tpu.dot_dimension_numbers<[1], [0], [0], [1], [0, 0, 1, 1], [], []>} : vector<2x32xbf16>, vector<32x256xbf16>, vector<2x256xf32> -> vector<2x256xf32>
    %452 = arith.addf %447, %451 : vector<2x256xf32>
    %c5 = arith.constant 5 : index
    %c0_235 = arith.constant 0 : index
    %453 = tpu.strided_load %arg13[%c5, %c0_235] {strides = array<i32: 6, 1>} : memref<12x32xf32, #tpu.memory_space<vmem>>, vector<2x32xf32>
    %454 = arith.truncf %453 : vector<2x32xf32> to vector<2x32xbf16>
    %c160 = arith.constant 160 : index
    %c0_236 = arith.constant 0 : index
    %455 = vector.load %arg9[%c160, %c0_236] : memref<196x256xbf16, #tpu.memory_space<vmem>>, vector<32x256xbf16>
    %cst_237 = arith.constant dense<0.000000e+00> : vector<2x256xf32>
    %456 = tpu.matmul %454, %455, %cst_237 {dimension_numbers = #tpu.dot_dimension_numbers<[1], [0], [0], [1], [0, 0, 1, 1], [], []>} : vector<2x32xbf16>, vector<32x256xbf16>, vector<2x256xf32> -> vector<2x256xf32>
    %457 = arith.addf %452, %456 : vector<2x256xf32>
    %cst_238 = arith.constant 0.000000e+00 : f32
    %458 = vector.broadcast %cst_238 : f32 to vector<2x256xf32>
    %459 = arith.maximumf %457, %458 : vector<2x256xf32>
    %460 = arith.truncf %459 : vector<2x256xf32> to vector<2x256xbf16>
    %c0_239 = arith.constant 0 : index
    %c0_240 = arith.constant 0 : index
    %461 = vector.load %arg10[%c0_239, %c0_240] : memref<256x128xbf16, #tpu.memory_space<vmem>>, vector<256x128xbf16>
    %cst_241 = arith.constant dense<0.000000e+00> : vector<2x128xf32>
    %462 = tpu.matmul %460, %461, %cst_241 {dimension_numbers = #tpu.dot_dimension_numbers<[1], [0], [0], [1], [0, 0, 1, 1], [], []>} : vector<2x256xbf16>, vector<256x128xbf16>, vector<2x128xf32> -> vector<2x128xf32>
    %c0_242 = arith.constant 0 : index
    %c256 = arith.constant 256 : index
    %463 = vector.load %arg11[%c0_242, %c256] : memref<1x384xf32, #tpu.memory_space<vmem>>, vector<1x128xf32>
    %464 = vector.broadcast %463 : vector<1x128xf32> to vector<2x128xf32>
    %465 = arith.addf %462, %464 : vector<2x128xf32>
    %c0_243 = arith.constant 0 : index
    %c0_244 = arith.constant 0 : index
    %466 = vector.load %arg12[%c0_243, %c0_244] : memref<2x128xf32, #tpu.memory_space<vmem>>, vector<2x128xf32>
    tpu.vector_store %arg12[%c0_243, %c0_244], %465 {strides = array<i32>} : memref<2x128xf32, #tpu.memory_space<vmem>>, vector<2x128xf32>,
    return
  }
}

</mosaic_0001>

<llo_original>
// kernel: tpu_custom_call.1
$region0: #{tpu_custom_call.1}
  #allocation0 [shape = 'u32[]', space=smem, size = 0x4, offset = 0x4, fixed_abs, tag = 'smem constant byte address 0x4 - core index']
  #allocation1 [shape = 'u32[144,128]{1,0:T(1,128)}', space=vmem, size = 0x12000, scoped, tag = 'internal scratch']
  #allocation2 [shape = 'f32[12,32]{1,0:T(8,128)}', space=vmem, size = 0x2000, scoped, tag = 'scratch operand']
  %s0 = inlined_call_operand.vmem [shape: f32[12,32], index: 0, kind: input, shape index: {}]
  %s1 = inlined_call_operand.vmem [shape: f32[2,4], index: 1, kind: input, shape index: {}]
  %s2 = inlined_call_operand.vmem [shape: f32[12,12], index: 2, kind: input, shape index: {}]
  %s3 = inlined_call_operand.vmem [shape: bf16[2,32,64], index: 3, kind: input, shape index: {}]
  %s4 = inlined_call_operand.vmem [shape: bf16[2,2,32,32], index: 4, kind: input, shape index: {}]
  %s5 = inlined_call_operand.vmem [shape: bf16[2,4,32,512], index: 5, kind: input, shape index: {}]
  %s6 = inlined_call_operand.vmem [shape: bf16[2,4,512,32], index: 6, kind: input, shape index: {}]
  %s7 = inlined_call_operand.vmem [shape: f32[2,8,32], index: 7, kind: input, shape index: {}]
  %s8 = inlined_call_operand.vmem [shape: f32[2,4,1,512], index: 8, kind: input, shape index: {}]
  %s9 = inlined_call_operand.vmem [shape: bf16[196,256], index: 9, kind: input, shape index: {}]
  %s10 = inlined_call_operand.vmem [shape: bf16[256,128], index: 10, kind: input, shape index: {}]
  %s11 = inlined_call_operand.vmem [shape: f32[1,384], index: 11, kind: input, shape index: {}]
  %s12 = inlined_call_operand.hbm [shape: f32[2,128], index: 12, kind: output, shape index: {}]
  %s13 = sld [smem:[#allocation0]]
  $region58: #{tpu_custom_call.1} parent=0
    _
  %s15 = ssub.s32 1, %s13
  %s16 = scalar_select 0, %s15, %s13
  $region1: #{tpu_custom_call.1} parent=0
    #allocation3 [shape = 'u8[1024]{0}', space=vmem, size = 0x400, scoped, tag = 'output window, operand 0, single buffered']
    #allocation4 [shape = 's32[1]{0}', space=sflag, size = 0x4, scoped, tag = 'scoped memory for tpu_custom_call.1']
    %17 = vsyncpa [#allocation4], 0
    // Predicated region
    $region2: #{tpu_custom_call.1} parent=1 // pred_check
      _
    $region3: #{tpu_custom_call.1} parent=1 // pred_check_branch
      %19 = sbr.rel (0) target = $region5
    $region4: #{tpu_custom_call.1} parent=1 // pred_region
      _
    $region5: #{tpu_custom_call.1} parent=1 // pred_fallthru
      _
    // Predicated region
    $region6: #{tpu_custom_call.1} parent=1 // pred_check
      _
    $region7: #{tpu_custom_call.1} parent=1 // pred_check_branch
      %21 = sbr.rel (0) target = $region9
    $region8: #{tpu_custom_call.1} parent=1 // pred_region
      _
    $region9: #{tpu_custom_call.1} parent=1 // pred_fallthru
      _
    // Predicated region
    $region10: #{tpu_custom_call.1} parent=1 // pred_check
      _
    $region11: #{tpu_custom_call.1} parent=1 // pred_check_branch
      %23 = sbr.rel (0) target = $region13
    $region12: #{tpu_custom_call.1} parent=1 // pred_region
      _
    $region13: #{tpu_custom_call.1} parent=1 // pred_fallthru
      _
    // Predicated region
    $region14: #{tpu_custom_call.1} parent=1 // pred_check
      _
    $region15: #{tpu_custom_call.1} parent=1 // pred_check_branch
      %25 = sbr.rel (0) target = $region17
    $region16: #{tpu_custom_call.1} parent=1 // pred_region
      _
    $region17: #{tpu_custom_call.1} parent=1 // pred_fallthru
      _
    // Predicated region
    $region18: #{tpu_custom_call.1} parent=1 // pred_check
      _
    $region19: #{tpu_custom_call.1} parent=1 // pred_check_branch
      %27 = sbr.rel (0) target = $region21
    $region20: #{tpu_custom_call.1} parent=1 // pred_region
      _
    $region21: #{tpu_custom_call.1} parent=1 // pred_fallthru
      _
    // Predicated region
    $region22: #{tpu_custom_call.1} parent=1 // pred_check
      _
    $region23: #{tpu_custom_call.1} parent=1 // pred_check_branch
      %29 = sbr.rel (0) target = $region25
    $region24: #{tpu_custom_call.1} parent=1 // pred_region
      _
    $region25: #{tpu_custom_call.1} parent=1 // pred_fallthru
      _
    // Predicated region
    $region26: #{tpu_custom_call.1} parent=1 // pred_check
      _
    $region27: #{tpu_custom_call.1} parent=1 // pred_check_branch
      %31 = sbr.rel (0) target = $region29
    $region28: #{tpu_custom_call.1} parent=1 // pred_region
      _
    $region29: #{tpu_custom_call.1} parent=1 // pred_fallthru
      _
    // Predicated region
    $region30: #{tpu_custom_call.1} parent=1 // pred_check
      _
    $region31: #{tpu_custom_call.1} parent=1 // pred_check_branch
      %33 = sbr.rel (0) target = $region33
    $region32: #{tpu_custom_call.1} parent=1 // pred_region
      _
    $region33: #{tpu_custom_call.1} parent=1 // pred_fallthru
      _
    // Predicated region
    $region34: #{tpu_custom_call.1} parent=1 // pred_check
      _
    $region35: #{tpu_custom_call.1} parent=1 // pred_check_branch
      %35 = sbr.rel (0) target = $region37
    $region36: #{tpu_custom_call.1} parent=1 // pred_region
      _
    $region37: #{tpu_custom_call.1} parent=1 // pred_fallthru
      _
    // Predicated region
    $region38: #{tpu_custom_call.1} parent=1 // pred_check
      _
    $region39: #{tpu_custom_call.1} parent=1 // pred_check_branch
      %37 = sbr.rel (0) target = $region41
    $region40: #{tpu_custom_call.1} parent=1 // pred_region
      _
    $region41: #{tpu_custom_call.1} parent=1 // pred_fallthru
      _
    // Predicated region
    $region42: #{tpu_custom_call.1} parent=1 // pred_check
      _
    $region43: #{tpu_custom_call.1} parent=1 // pred_check_branch
      %39 = sbr.rel (0) target = $region45
    $region44: #{tpu_custom_call.1} parent=1 // pred_region
      _
    $region45: #{tpu_custom_call.1} parent=1 // pred_fallthru
      _
    // Predicated region
    $region46: #{tpu_custom_call.1} parent=1 // pred_check
      _
    $region47: #{tpu_custom_call.1} parent=1 // pred_check_branch
      %41 = sbr.rel (0) target = $region49
    $region48: #{tpu_custom_call.1} parent=1 // pred_region
      _
    $region49: #{tpu_custom_call.1} parent=1 // pred_fallthru
      _
    %v43 = vld [vmem:[%s2] sm:$0xff]
    %v44 = vld [vmem:[%s2 + $0x8] sm:$0xf]
    %v45 = vld [vmem:[%s0] sm:$0xff]
    %v46 = vld [vmem:[%s0 + $0x8] sm:$0xf]
    %v47 = vld [vmem:[%s7] sm:$0xff]
    %v48 = vpack.c.bf16 %v46, %v45
    %v49 = vld [vmem:[%s3] sm:$0xf]
    %v50 = vld [vmem:[%s3 + $0x4] sm:$0xf]
    %v51 = vld [vmem:[%s3 + $0x8] sm:$0xf]
    %v52 = vld [vmem:[%s3 + $0xc] sm:$0xf]
    %v57 = vunpack.c.l.b16 %v49
    %v58 = vunpack.c.l.b16 %v50
    %v59 = vunpack.c.l.b16 %v51
    %v60 = vunpack.c.l.b16 %v52
    %v61 = vpack.c.b16 %v58, %v57
    %v62 = vpack.c.b16 %v60, %v59
    %vm65 = vcmask 261120
    %v67 = vsel %vm65, %v48, 0
    %69 = vmatprep.subr.bf16.mxu0 0
    %70 = vmatpush1.bf16.msra.mxu0 0
    %71 = vmatprep.subr.bf16.mxu0 0
    %72 = vmatpush1.bf16.msra.mxu0 0
    %73 = vmatprep.subr.bf16.mxu0 0
    %74 = vmatpush1.bf16.msra.mxu0 0
    %75 = vmatprep.subr.bf16.mxu0 0
    %76 = vmatpush1.bf16.msra.mxu0 0
    %77 = vmatprep.subr.bf16.mxu0 0
    %78 = vmatpush1.bf16.msra.mxu0 0
    %79 = vmatprep.subr.bf16.mxu0 0
    %80 = vmatpush1.bf16.msra.mxu0 0
    %81 = vmatprep.subr.bf16.mxu0 0
    %82 = vmatpush1.bf16.msra.mxu0 %v62
    %83 = vmatprep.subr.bf16.mxu0 0
    %84 = vmatpush1.bf16.msra.mxu0 %v61
    %85 = vmatprep.subr.bf16.mxu0 0
    %86 = vmatpush2.bf16.msra.mxu0 0
    %87 = vmatprep.subr.bf16.mxu0 0
    %88 = vmatpush2.bf16.msra.mxu0 0
    %89 = vmatprep.subr.bf16.mxu0 0
    %90 = vmatpush2.bf16.msra.mxu0 0
    %91 = vmatprep.subr.bf16.mxu0 0
    %92 = vmatpush2.bf16.msra.mxu0 0
    %93 = vmatprep.subr.bf16.mxu0 0
    %94 = vmatpush2.bf16.msra.mxu0 0
    %95 = vmatprep.subr.bf16.mxu0 0
    %96 = vmatpush2.bf16.msra.mxu0 0
    %97 = vmatprep.subr.bf16.mxu0 0
    %98 = vmatpush2.bf16.msra.mxu0 0
    %99 = vmatprep.subr.bf16.mxu0 0
    %100 = vmatpush2.bf16.msra.mxu0 0
    %101 = vmatprep.mubr.bf16.mxu0 0
    %102 = vmatmul.mubr.bf16.gmra.mxu0 %v67
    %v103 = vpop.f32.mrf.mxu0
    %v104 = vadd.f32 0.0, %v103
    %v105 = vpop.f32.mrf.mxu0
    %v106 = vpop.f32.mrf.mxu0
    %v107 = vadd.f32 0.0, %v106
    %v108 = vpop.f32.mrf.mxu0
    %109 = vdwg.mxu0
    %v110 = vlaneseq
    %v111 = vshrl.u32 %v110, 7
    %v112 = vsub.s32 0, %v111
    %v113 = vrot.slane %v47, %v112
    %v114 = vadd.f32 %v104, %v113
    %v115 = vadd.f32 %v107, %v113
    %v116 = vpack.c.bf16 %v115, %v114
    %v117 = vlaneseq
    %v118 = vshrl.u32 %v117, 7
    %v119 = vsub.s32 1, %v118
    %v120 = vrot.slane %v47, %v119
    %122 = vrot.lane.b32.xlu0 %v120, 32
    %v123 = vpop.permute.xlu0 %122
    %v125 = vadd.f32 %v104, %v123
    %v126 = vadd.f32 %v107, %v123
    %v127 = vpack.c.bf16 %v126, %v125
    %128 = vxpose.xlu0.b32.start [1/16] %v45, 128
    %129 = vxpose.xlu0.b32.cont [2/16] %v46, 128
    %130 = vxpose.xlu0.b32.cont [3/16] 0.0, 128
    %131 = vxpose.xlu0.b32.cont [4/16] 0.0, 128
    %132 = vxpose.xlu0.b32.cont [5/16] 0.0, 128
    %133 = vxpose.xlu0.b32.cont [6/16] 0.0, 128
    %134 = vxpose.xlu0.b32.cont [7/16] 0.0, 128
    %135 = vxpose.xlu0.b32.cont [8/16] 0.0, 128
    %136 = vxpose.xlu0.b32.cont [9/16] 0.0, 128
    %137 = vxpose.xlu0.b32.cont [10/16] 0.0, 128
    %138 = vxpose.xlu0.b32.cont [11/16] 0.0, 128
    %139 = vxpose.xlu0.b32.cont [12/16] 0.0, 128
    %140 = vxpose.xlu0.b32.cont [13/16] 0.0, 128
    %141 = vxpose.xlu0.b32.cont [14/16] 0.0, 128
    %142 = vxpose.xlu0.b32.cont [15/16] 0.0, 128
    %143 = vxpose.xlu0.b32.end [16/16] 0.0, 128
    %v144 = vpop.trf.xlu0
    %v145 = vpop.trf.xlu0
    %v146 = vpop.trf.xlu0
    %v147 = vpop.trf.xlu0
    %v148 = vpop.trf.xlu0
    %v149 = vpop.trf.xlu0
    %v150 = vpop.trf.xlu0
    %v151 = vpop.trf.xlu0
    %v152 = vpop.trf.xlu0
    %v153 = vpop.trf.xlu0
    %v154 = vpop.trf.xlu0
    %v155 = vpop.trf.xlu0
    %v156 = vpop.trf.xlu0
    %v157 = vpop.trf.xlu0
    %v158 = vpop.trf.xlu0
    %v159 = vpop.trf.xlu0
    %v160 = vpack.c.bf16 %v145, %v144
    %v161 = vpack.c.bf16 %v147, %v146
    %v162 = vld [vmem:[%s4] sm:$0xf]
    %v163 = vld [vmem:[%s4 + $0x4] sm:$0xf]
    %v164 = vld [vmem:[%s4 + $0x8] sm:$0xf]
    %v165 = vld [vmem:[%s4 + $0xc] sm:$0xf]
    %v170 = vunpack.c.l.b16 %v162
    %v171 = vunpack.c.l.b16 %v163
    %v172 = vunpack.c.l.b16 %v164
    %v173 = vunpack.c.l.b16 %v165
    %v174 = vpack.c.b16 %v171, %v170
    %v175 = vpack.c.b16 %v173, %v172
    %v177 = vsel %vm65, %v174, 0
    %v180 = vsel %vm65, %v175, 0
    %182 = vmatprep.subr.bf16.mxu0 0
    %183 = vmatpush1.bf16.msra.mxu0 0
    %184 = vmatprep.subr.bf16.mxu0 0
    %185 = vmatpush1.bf16.msra.mxu0 0
    %186 = vmatprep.subr.bf16.mxu0 0
    %187 = vmatpush1.bf16.msra.mxu0 0
    %188 = vmatprep.subr.bf16.mxu0 0
    %189 = vmatpush1.bf16.msra.mxu0 0
    %190 = vmatprep.subr.bf16.mxu0 0
    %191 = vmatpush1.bf16.msra.mxu0 0
    %192 = vmatprep.subr.bf16.mxu0 0
    %193 = vmatpush1.bf16.msra.mxu0 0
    %194 = vmatprep.subr.bf16.mxu0 0
    %195 = vmatpush1.bf16.msra.mxu0 %v161
    %196 = vmatprep.subr.bf16.mxu0 0
    %197 = vmatpush1.bf16.msra.mxu0 %v160
    %198 = vmatprep.subr.bf16.mxu0 0
    %199 = vmatpush2.bf16.msra.mxu0 0
    %200 = vmatprep.subr.bf16.mxu0 0
    %201 = vmatpush2.bf16.msra.mxu0 0
    %202 = vmatprep.subr.bf16.mxu0 0
    %203 = vmatpush2.bf16.msra.mxu0 0
    %204 = vmatprep.subr.bf16.mxu0 0
    %205 = vmatpush2.bf16.msra.mxu0 0
    %206 = vmatprep.subr.bf16.mxu0 0
    %207 = vmatpush2.bf16.msra.mxu0 0
    %208 = vmatprep.subr.bf16.mxu0 0
    %209 = vmatpush2.bf16.msra.mxu0 0
    %210 = vmatprep.subr.bf16.mxu0 0
    %211 = vmatpush2.bf16.msra.mxu0 0
    %212 = vmatprep.subr.bf16.mxu0 0
    %213 = vmatpush2.bf16.msra.mxu0 0
    %214 = vmatprep.mubr.bf16.mxu0 0
    %215 = vmatmul.mubr.bf16.gmra.mxu0 %v177
    %v216 = vpop.f32.mrf.mxu0
    %v217 = vadd.f32 0.0, %v216
    %v218 = vpop.f32.mrf.mxu0
    %v219 = vpop.f32.mrf.mxu0
    %v220 = vadd.f32 0.0, %v219
    %v221 = vpop.f32.mrf.mxu0
    %222 = vmatprep.mubr.bf16.mxu0 0
    %223 = vmatmul.mubr.bf16.gmra.mxu0 %v180
    %v224 = vpop.f32.mrf.mxu0
    %v225 = vadd.f32 0.0, %v224
    %v226 = vpop.f32.mrf.mxu0
    %v227 = vpop.f32.mrf.mxu0
    %v228 = vadd.f32 0.0, %v227
    %v229 = vpop.f32.mrf.mxu0
    %230 = vdwg.mxu0
    %v231 = vpack.c.bf16 %v220, %v217
    %v232 = vpack.c.bf16 %v228, %v225
    %vm233 = vcmask 64512
    %v235 = vsel %vm233, %v116, 0
    %vm237 = vcmask 1043456
    %v239 = vsel %vm237, %v231, 0
    %241 = vmatprep.subr.bf16.mxu0 0
    %242 = vmatpush1.bf16.msra.mxu0 0
    %243 = vmatprep.subr.bf16.mxu0 0
    %244 = vmatpush1.bf16.msra.mxu0 0
    %245 = vmatprep.subr.bf16.mxu0 0
    %246 = vmatpush1.bf16.msra.mxu0 0
    %247 = vmatprep.subr.bf16.mxu0 0
    %248 = vmatpush1.bf16.msra.mxu0 0
    %249 = vmatprep.subr.bf16.mxu0 0
    %250 = vmatpush1.bf16.msra.mxu0 0
    %251 = vmatprep.subr.bf16.mxu0 0
    %252 = vmatpush1.bf16.msra.mxu0 0
    %253 = vmatprep.subr.bf16.mxu0 0
    %254 = vmatpush1.bf16.msra.mxu0 0
    %255 = vmatprep.subr.bf16.mxu0 0
    %256 = vmatpush1.bf16.msra.mxu0 %v239
    %257 = vmatprep.subr.bf16.mxu0 0
    %258 = vmatpush2.bf16.msra.mxu0 0
    %259 = vmatprep.subr.bf16.mxu0 0
    %260 = vmatpush2.bf16.msra.mxu0 0
    %261 = vmatprep.subr.bf16.mxu0 0
    %262 = vmatpush2.bf16.msra.mxu0 0
    %263 = vmatprep.subr.bf16.mxu0 0
    %264 = vmatpush2.bf16.msra.mxu0 0
    %265 = vmatprep.subr.bf16.mxu0 0
    %266 = vmatpush2.bf16.msra.mxu0 0
    %267 = vmatprep.subr.bf16.mxu0 0
    %268 = vmatpush2.bf16.msra.mxu0 0
    %269 = vmatprep.subr.bf16.mxu0 0
    %270 = vmatpush2.bf16.msra.mxu0 0
    %271 = vmatprep.subr.bf16.mxu0 0
    %272 = vmatpush2.bf16.msra.mxu0 0
    %273 = vmatprep.mubr.bf16.mxu0 0
    %274 = vmatmul.mubr.bf16.gmra.mxu0 %v235
    %v275 = vpop.f32.mrf.mxu0
    %v276 = vadd.f32 %v43, %v275
    %v277 = vpop.f32.mrf.mxu0
    %v278 = vpop.f32.mrf.mxu0
    %v279 = vadd.f32 %v44, %v278
    %v280 = vpop.f32.mrf.mxu0
    %281 = vdwg.mxu0
    %vm282 = vcmask 97280
    %v283 = vsel %vm282, %v276, -inf
    %284 = vmax.xlane.f32.xlu0 %v283
    %v285 = vpop.xlane.xlu0 %284
    %vm286 = vcmask 93184
    %v287 = vsel %vm286, %v279, -inf
    %288 = vmax.xlane.f32.xlu0 %v287
    %v289 = vpop.xlane.xlu0 %288
    %v290 = vsub.f32 %v276, %v285
    %v291 = vsub.f32 %v279, %v289
    %v292 = vmul.f32 %v290, 1.442695
    %v293 = vpow.pop %v292
    %v294 = vmul.f32 %v291, 1.442695
    %v295 = vpow.pop %v294
    %v296 = vsel %vm282, %v293, 0.0
    %297 = vadd.xlane.f32.xlu0 %v296
    %v298 = vpop.xlane.xlu0 %297
    %v299 = vsel %vm286, %v295, 0.0
    %300 = vadd.xlane.f32.xlu0 %v299
    %v301 = vpop.xlane.xlu0 %300
    %v302 = vrcp.pop %v298
    %v303 = vrcp.pop %v301
    %v304 = vpack.c.bf16 %v295, %v293
    %306 = vrot.lane.b32.xlu0 %v127, 96
    %v307 = vpop.permute.xlu0 %306
    %v309 = vsel %vm282, %v304, 0
    %vm311 = vcmask 1045504
    %v313 = vsel %vm311, %v307, 0
    %315 = vmatprep.subr.bf16.mxu0 0
    %316 = vmatpush1.bf16.msra.mxu0 0
    %317 = vmatprep.subr.bf16.mxu0 0
    %318 = vmatpush1.bf16.msra.mxu0 0
    %319 = vmatprep.subr.bf16.mxu0 0
    %320 = vmatpush1.bf16.msra.mxu0 0
    %321 = vmatprep.subr.bf16.mxu0 0
    %322 = vmatpush1.bf16.msra.mxu0 0
    %323 = vmatprep.subr.bf16.mxu0 0
    %324 = vmatpush1.bf16.msra.mxu0 0
    %325 = vmatprep.subr.bf16.mxu0 0
    %326 = vmatpush1.bf16.msra.mxu0 0
    %327 = vmatprep.subr.bf16.mxu0 0
    %328 = vmatpush1.bf16.msra.mxu0 0
    %329 = vmatprep.subr.bf16.mxu0 0
    %330 = vmatpush1.bf16.msra.mxu0 %v313
    %331 = vmatprep.subr.bf16.mxu0 0
    %332 = vmatpush2.bf16.msra.mxu0 0
    %333 = vmatprep.subr.bf16.mxu0 0
    %334 = vmatpush2.bf16.msra.mxu0 0
    %335 = vmatprep.subr.bf16.mxu0 0
    %336 = vmatpush2.bf16.msra.mxu0 0
    %337 = vmatprep.subr.bf16.mxu0 0
    %338 = vmatpush2.bf16.msra.mxu0 0
    %339 = vmatprep.subr.bf16.mxu0 0
    %340 = vmatpush2.bf16.msra.mxu0 0
    %341 = vmatprep.subr.bf16.mxu0 0
    %342 = vmatpush2.bf16.msra.mxu0 0
    %343 = vmatprep.subr.bf16.mxu0 0
    %344 = vmatpush2.bf16.msra.mxu0 0
    %345 = vmatprep.subr.bf16.mxu0 0
    %346 = vmatpush2.bf16.msra.mxu0 0
    %347 = vmatprep.mubr.bf16.mxu0 0
    %348 = vmatmul.mubr.bf16.gmra.mxu0 %v309
    %v349 = vpop.f32.mrf.mxu0
    %v350 = vadd.f32 0.0, %v349
    %v351 = vpop.f32.mrf.mxu0
    %v352 = vpop.f32.mrf.mxu0
    %v353 = vadd.f32 0.0, %v352
    %v354 = vpop.f32.mrf.mxu0
    %355 = vdwg.mxu0
    %v356 = vmul.f32 %v350, %v302
    %v357 = vmul.f32 %v353, %v303
    %359 = vrot.lane.b32.xlu0 %v116, 120
    %v360 = vpop.permute.xlu0 %359
    %v362 = vrot.slane %v231, 4
    %v364 = vsel %vm233, %v360, 0
    %v367 = vsel %vm237, %v362, 0
    %369 = vmatprep.subr.bf16.mxu0 0
    %370 = vmatpush1.bf16.msra.mxu0 0
    %371 = vmatprep.subr.bf16.mxu0 0
    %372 = vmatpush1.bf16.msra.mxu0 0
    %373 = vmatprep.subr.bf16.mxu0 0
    %374 = vmatpush1.bf16.msra.mxu0 0
    %375 = vmatprep.subr.bf16.mxu0 0
    %376 = vmatpush1.bf16.msra.mxu0 0
    %377 = vmatprep.subr.bf16.mxu0 0
    %378 = vmatpush1.bf16.msra.mxu0 0
    %379 = vmatprep.subr.bf16.mxu0 0
    %380 = vmatpush1.bf16.msra.mxu0 0
    %381 = vmatprep.subr.bf16.mxu0 0
    %382 = vmatpush1.bf16.msra.mxu0 0
    %383 = vmatprep.subr.bf16.mxu0 0
    %384 = vmatpush1.bf16.msra.mxu0 %v367
    %385 = vmatprep.subr.bf16.mxu0 0
    %386 = vmatpush2.bf16.msra.mxu0 0
    %387 = vmatprep.subr.bf16.mxu0 0
    %388 = vmatpush2.bf16.msra.mxu0 0
    %389 = vmatprep.subr.bf16.mxu0 0
    %390 = vmatpush2.bf16.msra.mxu0 0
    %391 = vmatprep.subr.bf16.mxu0 0
    %392 = vmatpush2.bf16.msra.mxu0 0
    %393 = vmatprep.subr.bf16.mxu0 0
    %394 = vmatpush2.bf16.msra.mxu0 0
    %395 = vmatprep.subr.bf16.mxu0 0
    %396 = vmatpush2.bf16.msra.mxu0 0
    %397 = vmatprep.subr.bf16.mxu0 0
    %398 = vmatpush2.bf16.msra.mxu0 0
    %399 = vmatprep.subr.bf16.mxu0 0
    %400 = vmatpush2.bf16.msra.mxu0 0
    %401 = vmatprep.mubr.bf16.mxu0 0
    %402 = vmatmul.mubr.bf16.gmra.mxu0 %v364
    %v403 = vpop.f32.mrf.mxu0
    %v404 = vadd.f32 %v43, %v403
    %v405 = vpop.f32.mrf.mxu0
    %v406 = vpop.f32.mrf.mxu0
    %v407 = vadd.f32 %v44, %v406
    %v408 = vpop.f32.mrf.mxu0
    %409 = vdwg.mxu0
    %v410 = vsel %vm282, %v404, -inf
    %411 = vmax.xlane.f32.xlu0 %v410
    %v412 = vpop.xlane.xlu0 %411
    %v413 = vsel %vm286, %v407, -inf
    %414 = vmax.xlane.f32.xlu0 %v413
    %v415 = vpop.xlane.xlu0 %414
    %v416 = vsub.f32 %v404, %v412
    %v417 = vsub.f32 %v407, %v415
    %v418 = vmul.f32 %v416, 1.442695
    %v419 = vpow.pop %v418
    %v420 = vmul.f32 %v417, 1.442695
    %v421 = vpow.pop %v420
    %v422 = vsel %vm282, %v419, 0.0
    %423 = vadd.xlane.f32.xlu0 %v422
    %v424 = vpop.xlane.xlu0 %423
    %v425 = vsel %vm286, %v421, 0.0
    %426 = vadd.xlane.f32.xlu0 %v425
    %v427 = vpop.xlane.xlu0 %426
    %v428 = vrcp.pop %v424
    %v429 = vrcp.pop %v427
    %v430 = vpack.c.bf16 %v421, %v419
    %431 = vrot.lane.b32.xlu0 %v127, 88
    %v432 = vpop.permute.xlu0 %431
    %v434 = vsel %vm282, %v430, 0
    %v437 = vsel %vm311, %v432, 0
    %439 = vmatprep.subr.bf16.mxu0 0
    %440 = vmatpush1.bf16.msra.mxu0 0
    %441 = vmatprep.subr.bf16.mxu0 0
    %442 = vmatpush1.bf16.msra.mxu0 0
    %443 = vmatprep.subr.bf16.mxu0 0
    %444 = vmatpush1.bf16.msra.mxu0 0
    %445 = vmatprep.subr.bf16.mxu0 0
    %446 = vmatpush1.bf16.msra.mxu0 0
    %447 = vmatprep.subr.bf16.mxu0 0
    %448 = vmatpush1.bf16.msra.mxu0 0
    %449 = vmatprep.subr.bf16.mxu0 0
    %450 = vmatpush1.bf16.msra.mxu0 0
    %451 = vmatprep.subr.bf16.mxu0 0
    %452 = vmatpush1.bf16.msra.mxu0 0
    %453 = vmatprep.subr.bf16.mxu0 0
    %454 = vmatpush1.bf16.msra.mxu0 %v437
    %455 = vmatprep.subr.bf16.mxu0 0
    %456 = vmatpush2.bf16.msra.mxu0 0
    %457 = vmatprep.subr.bf16.mxu0 0
    %458 = vmatpush2.bf16.msra.mxu0 0
    %459 = vmatprep.subr.bf16.mxu0 0
    %460 = vmatpush2.bf16.msra.mxu0 0
    %461 = vmatprep.subr.bf16.mxu0 0
    %462 = vmatpush2.bf16.msra.mxu0 0
    %463 = vmatprep.subr.bf16.mxu0 0
    %464 = vmatpush2.bf16.msra.mxu0 0
    %465 = vmatprep.subr.bf16.mxu0 0
    %466 = vmatpush2.bf16.msra.mxu0 0
    %467 = vmatprep.subr.bf16.mxu0 0
    %468 = vmatpush2.bf16.msra.mxu0 0
    %469 = vmatprep.subr.bf16.mxu0 0
    %470 = vmatpush2.bf16.msra.mxu0 0
    %471 = vmatprep.mubr.bf16.mxu0 0
    %472 = vmatmul.mubr.bf16.gmra.mxu0 %v434
    %v473 = vpop.f32.mrf.mxu0
    %v474 = vadd.f32 0.0, %v473
    %v475 = vpop.f32.mrf.mxu0
    %v476 = vpop.f32.mrf.mxu0
    %v477 = vadd.f32 0.0, %v476
    %v478 = vpop.f32.mrf.mxu0
    %479 = vdwg.mxu0
    %v480 = vmul.f32 %v474, %v428
    %v481 = vmul.f32 %v477, %v429
    %482 = vrot.lane.b32.xlu0 %v116, 112
    %v483 = vpop.permute.xlu0 %482
    %v485 = vsel %vm233, %v483, 0
    %v488 = vsel %vm237, %v232, 0
    %490 = vmatprep.subr.bf16.mxu0 0
    %491 = vmatpush1.bf16.msra.mxu0 0
    %492 = vmatprep.subr.bf16.mxu0 0
    %493 = vmatpush1.bf16.msra.mxu0 0
    %494 = vmatprep.subr.bf16.mxu0 0
    %495 = vmatpush1.bf16.msra.mxu0 0
    %496 = vmatprep.subr.bf16.mxu0 0
    %497 = vmatpush1.bf16.msra.mxu0 0
    %498 = vmatprep.subr.bf16.mxu0 0
    %499 = vmatpush1.bf16.msra.mxu0 0
    %500 = vmatprep.subr.bf16.mxu0 0
    %501 = vmatpush1.bf16.msra.mxu0 0
    %502 = vmatprep.subr.bf16.mxu0 0
    %503 = vmatpush1.bf16.msra.mxu0 0
    %504 = vmatprep.subr.bf16.mxu0 0
    %505 = vmatpush1.bf16.msra.mxu0 %v488
    %506 = vmatprep.subr.bf16.mxu0 0
    %507 = vmatpush2.bf16.msra.mxu0 0
    %508 = vmatprep.subr.bf16.mxu0 0
    %509 = vmatpush2.bf16.msra.mxu0 0
    %510 = vmatprep.subr.bf16.mxu0 0
    %511 = vmatpush2.bf16.msra.mxu0 0
    %512 = vmatprep.subr.bf16.mxu0 0
    %513 = vmatpush2.bf16.msra.mxu0 0
    %514 = vmatprep.subr.bf16.mxu0 0
    %515 = vmatpush2.bf16.msra.mxu0 0
    %516 = vmatprep.subr.bf16.mxu0 0
    %517 = vmatpush2.bf16.msra.mxu0 0
    %518 = vmatprep.subr.bf16.mxu0 0
    %519 = vmatpush2.bf16.msra.mxu0 0
    %520 = vmatprep.subr.bf16.mxu0 0
    %521 = vmatpush2.bf16.msra.mxu0 0
    %522 = vmatprep.mubr.bf16.mxu0 0
    %523 = vmatmul.mubr.bf16.gmra.mxu0 %v485
    %v524 = vpop.f32.mrf.mxu0
    %v525 = vadd.f32 %v43, %v524
    %v526 = vpop.f32.mrf.mxu0
    %v527 = vpop.f32.mrf.mxu0
    %v528 = vadd.f32 %v44, %v527
    %v529 = vpop.f32.mrf.mxu0
    %530 = vdwg.mxu0
    %v531 = vsel %vm282, %v525, -inf
    %532 = vmax.xlane.f32.xlu0 %v531
    %v533 = vpop.xlane.xlu0 %532
    %v534 = vsel %vm286, %v528, -inf
    %535 = vmax.xlane.f32.xlu0 %v534
    %v536 = vpop.xlane.xlu0 %535
    %v537 = vsub.f32 %v525, %v533
    %v538 = vsub.f32 %v528, %v536
    %v539 = vmul.f32 %v537, 1.442695
    %v540 = vpow.pop %v539
    %v541 = vmul.f32 %v538, 1.442695
    %v542 = vpow.pop %v541
    %v543 = vsel %vm282, %v540, 0.0
    %544 = vadd.xlane.f32.xlu0 %v543
    %v545 = vpop.xlane.xlu0 %544
    %v546 = vsel %vm286, %v542, 0.0
    %547 = vadd.xlane.f32.xlu0 %v546
    %v548 = vpop.xlane.xlu0 %547
    %v549 = vrcp.pop %v545
    %v550 = vrcp.pop %v548
    %v551 = vpack.c.bf16 %v542, %v540
    %552 = vrot.lane.b32.xlu0 %v127, 80
    %v553 = vpop.permute.xlu0 %552
    %v555 = vsel %vm282, %v551, 0
    %v558 = vsel %vm311, %v553, 0
    %560 = vmatprep.subr.bf16.mxu0 0
    %561 = vmatpush1.bf16.msra.mxu0 0
    %562 = vmatprep.subr.bf16.mxu0 0
    %563 = vmatpush1.bf16.msra.mxu0 0
    %564 = vmatprep.subr.bf16.mxu0 0
    %565 = vmatpush1.bf16.msra.mxu0 0
    %566 = vmatprep.subr.bf16.mxu0 0
    %567 = vmatpush1.bf16.msra.mxu0 0
    %568 = vmatprep.subr.bf16.mxu0 0
    %569 = vmatpush1.bf16.msra.mxu0 0
    %570 = vmatprep.subr.bf16.mxu0 0
    %571 = vmatpush1.bf16.msra.mxu0 0
    %572 = vmatprep.subr.bf16.mxu0 0
    %573 = vmatpush1.bf16.msra.mxu0 0
    %574 = vmatprep.subr.bf16.mxu0 0
    %575 = vmatpush1.bf16.msra.mxu0 %v558
    %576 = vmatprep.subr.bf16.mxu0 0
    %577 = vmatpush2.bf16.msra.mxu0 0
    %578 = vmatprep.subr.bf16.mxu0 0
    %579 = vmatpush2.bf16.msra.mxu0 0
    %580 = vmatprep.subr.bf16.mxu0 0
    %581 = vmatpush2.bf16.msra.mxu0 0
    %582 = vmatprep.subr.bf16.mxu0 0
    %583 = vmatpush2.bf16.msra.mxu0 0
    %584 = vmatprep.subr.bf16.mxu0 0
    %585 = vmatpush2.bf16.msra.mxu0 0
    %586 = vmatprep.subr.bf16.mxu0 0
    %587 = vmatpush2.bf16.msra.mxu0 0
    %588 = vmatprep.subr.bf16.mxu0 0
    %589 = vmatpush2.bf16.msra.mxu0 0
    %590 = vmatprep.subr.bf16.mxu0 0
    %591 = vmatpush2.bf16.msra.mxu0 0
    %592 = vmatprep.mubr.bf16.mxu0 0
    %593 = vmatmul.mubr.bf16.gmra.mxu0 %v555
    %v594 = vpop.f32.mrf.mxu0
    %v595 = vadd.f32 0.0, %v594
    %v596 = vpop.f32.mrf.mxu0
    %v597 = vpop.f32.mrf.mxu0
    %v598 = vadd.f32 0.0, %v597
    %v599 = vpop.f32.mrf.mxu0
    %600 = vdwg.mxu0
    %v601 = vmul.f32 %v595, %v549
    %v602 = vmul.f32 %v598, %v550
    %603 = vrot.lane.b32.xlu0 %v116, 104
    %v604 = vpop.permute.xlu0 %603
    %v606 = vrot.slane %v232, 4
    %v608 = vsel %vm233, %v604, 0
    %v611 = vsel %vm237, %v606, 0
    %613 = vmatprep.subr.bf16.mxu0 0
    %614 = vmatpush1.bf16.msra.mxu0 0
    %615 = vmatprep.subr.bf16.mxu0 0
    %616 = vmatpush1.bf16.msra.mxu0 0
    %617 = vmatprep.subr.bf16.mxu0 0
    %618 = vmatpush1.bf16.msra.mxu0 0
    %619 = vmatprep.subr.bf16.mxu0 0
    %620 = vmatpush1.bf16.msra.mxu0 0
    %621 = vmatprep.subr.bf16.mxu0 0
    %622 = vmatpush1.bf16.msra.mxu0 0
    %623 = vmatprep.subr.bf16.mxu0 0
    %624 = vmatpush1.bf16.msra.mxu0 0
    %625 = vmatprep.subr.bf16.mxu0 0
    %626 = vmatpush1.bf16.msra.mxu0 0
    %627 = vmatprep.subr.bf16.mxu0 0
    %628 = vmatpush1.bf16.msra.mxu0 %v611
    %629 = vmatprep.subr.bf16.mxu0 0
    %630 = vmatpush2.bf16.msra.mxu0 0
    %631 = vmatprep.subr.bf16.mxu0 0
    %632 = vmatpush2.bf16.msra.mxu0 0
    %633 = vmatprep.subr.bf16.mxu0 0
    %634 = vmatpush2.bf16.msra.mxu0 0
    %635 = vmatprep.subr.bf16.mxu0 0
    %636 = vmatpush2.bf16.msra.mxu0 0
    %637 = vmatprep.subr.bf16.mxu0 0
    %638 = vmatpush2.bf16.msra.mxu0 0
    %639 = vmatprep.subr.bf16.mxu0 0
    %640 = vmatpush2.bf16.msra.mxu0 0
    %641 = vmatprep.subr.bf16.mxu0 0
    %642 = vmatpush2.bf16.msra.mxu0 0
    %643 = vmatprep.subr.bf16.mxu0 0
    %644 = vmatpush2.bf16.msra.mxu0 0
    %645 = vmatprep.mubr.bf16.mxu0 0
    %646 = vmatmul.mubr.bf16.gmra.mxu0 %v608
    %v647 = vpop.f32.mrf.mxu0
    %v648 = vadd.f32 %v43, %v647
    %v649 = vpop.f32.mrf.mxu0
    %v650 = vpop.f32.mrf.mxu0
    %v651 = vadd.f32 %v44, %v650
    %v652 = vpop.f32.mrf.mxu0
    %653 = vdwg.mxu0
    %v654 = vsel %vm282, %v648, -inf
    %655 = vmax.xlane.f32.xlu0 %v654
    %v656 = vpop.xlane.xlu0 %655
    %v657 = vsel %vm286, %v651, -inf
    %658 = vmax.xlane.f32.xlu0 %v657
    %v659 = vpop.xlane.xlu0 %658
    %v660 = vsub.f32 %v648, %v656
    %v661 = vsub.f32 %v651, %v659
    %v662 = vmul.f32 %v660, 1.442695
    %v663 = vpow.pop %v662
    %v664 = vmul.f32 %v661, 1.442695
    %v665 = vpow.pop %v664
    %v666 = vsel %vm282, %v663, 0.0
    %667 = vadd.xlane.f32.xlu0 %v666
    %v668 = vpop.xlane.xlu0 %667
    %v669 = vsel %vm286, %v665, 0.0
    %670 = vadd.xlane.f32.xlu0 %v669
    %v671 = vpop.xlane.xlu0 %670
    %v672 = vrcp.pop %v668
    %v673 = vrcp.pop %v671
    %v674 = vpack.c.bf16 %v665, %v663
    %675 = vrot.lane.b32.xlu0 %v127, 72
    %v676 = vpop.permute.xlu0 %675
    %v678 = vsel %vm282, %v674, 0
    %v681 = vsel %vm311, %v676, 0
    %683 = vmatprep.subr.bf16.mxu0 0
    %684 = vmatpush1.bf16.msra.mxu0 0
    %685 = vmatprep.subr.bf16.mxu0 0
    %686 = vmatpush1.bf16.msra.mxu0 0
    %687 = vmatprep.subr.bf16.mxu0 0
    %688 = vmatpush1.bf16.msra.mxu0 0
    %689 = vmatprep.subr.bf16.mxu0 0
    %690 = vmatpush1.bf16.msra.mxu0 0
    %691 = vmatprep.subr.bf16.mxu0 0
    %692 = vmatpush1.bf16.msra.mxu0 0
    %693 = vmatprep.subr.bf16.mxu0 0
    %694 = vmatpush1.bf16.msra.mxu0 0
    %695 = vmatprep.subr.bf16.mxu0 0
    %696 = vmatpush1.bf16.msra.mxu0 0
    %697 = vmatprep.subr.bf16.mxu0 0
    %698 = vmatpush1.bf16.msra.mxu0 %v681
    %699 = vmatprep.subr.bf16.mxu0 0
    %700 = vmatpush2.bf16.msra.mxu0 0
    %701 = vmatprep.subr.bf16.mxu0 0
    %702 = vmatpush2.bf16.msra.mxu0 0
    %703 = vmatprep.subr.bf16.mxu0 0
    %704 = vmatpush2.bf16.msra.mxu0 0
    %705 = vmatprep.subr.bf16.mxu0 0
    %706 = vmatpush2.bf16.msra.mxu0 0
    %707 = vmatprep.subr.bf16.mxu0 0
    %708 = vmatpush2.bf16.msra.mxu0 0
    %709 = vmatprep.subr.bf16.mxu0 0
    %710 = vmatpush2.bf16.msra.mxu0 0
    %711 = vmatprep.subr.bf16.mxu0 0
    %712 = vmatpush2.bf16.msra.mxu0 0
    %713 = vmatprep.subr.bf16.mxu0 0
    %714 = vmatpush2.bf16.msra.mxu0 0
    %715 = vmatprep.mubr.bf16.mxu0 0
    %716 = vmatmul.mubr.bf16.gmra.mxu0 %v678
    %v717 = vpop.f32.mrf.mxu0
    %v718 = vadd.f32 0.0, %v717
    %v719 = vpop.f32.mrf.mxu0
    %v720 = vpop.f32.mrf.mxu0
    %v721 = vadd.f32 0.0, %v720
    %v722 = vpop.f32.mrf.mxu0
    %723 = vdwg.mxu0
    %v724 = vmul.f32 %v718, %v672
    %v725 = vmul.f32 %v721, %v673
    %728 = vrot.lane.b32.xlu0 %v480, 8
    %v729 = vpop.permute.xlu0 %728
    %730 = vrot.lane.b32.xlu0 %v481, 8
    %v731 = vpop.permute.xlu0 %730
    %736 = vrot.lane.b32.xlu0 %v601, 16
    %v737 = vpop.permute.xlu0 %736
    %738 = vrot.lane.b32.xlu0 %v602, 16
    %v739 = vpop.permute.xlu0 %738
    %744 = vrot.lane.b32.xlu0 %v724, 24
    %v745 = vpop.permute.xlu0 %744
    %746 = vrot.lane.b32.xlu0 %v725, 24
    %v747 = vpop.permute.xlu0 %746
    %v750 = vsel %vm233, %v356, %v729
    %v751 = vsel %vm233, %v357, %v731
    %vm752 = vcmask 130048
    %v753 = vsel %vm752, %v750, %v737
    %v754 = vsel %vm752, %v751, %v739
    %vm755 = vcmask 195584
    %v756 = vsel %vm755, %v753, %v745
    %v757 = vsel %vm755, %v754, %v747
    %v758 = vpack.c.bf16 %v757, %v756
    %s759 = scalar_lea.vmem %s4, 16
    %v760 = vld [vmem:[%s759] sm:$0xf]
    %v761 = vld [vmem:[%s759 + $0x4] sm:$0xf]
    %v762 = vld [vmem:[%s759 + $0x8] sm:$0xf]
    %v763 = vld [vmem:[%s759 + $0xc] sm:$0xf]
    %v764 = vlaneseq
    %v765 = vshrl.u32 %v764, 7
    %v766 = vsub.s32 2, %v765
    %v767 = vrot.slane %v47, %v766
    %v772 = vunpack.c.l.b16 %v760
    %v773 = vunpack.c.l.b16 %v761
    %v774 = vunpack.c.l.b16 %v762
    %v775 = vunpack.c.l.b16 %v763
    %v776 = vpack.c.b16 %v773, %v772
    %v777 = vpack.c.b16 %v775, %v774
    %v781 = vsel %vm65, %v758, 0
    %783 = vmatprep.subr.bf16.mxu0 0
    %784 = vmatpush1.bf16.msra.mxu0 0
    %785 = vmatprep.subr.bf16.mxu0 0
    %786 = vmatpush1.bf16.msra.mxu0 0
    %787 = vmatprep.subr.bf16.mxu0 0
    %788 = vmatpush1.bf16.msra.mxu0 0
    %789 = vmatprep.subr.bf16.mxu0 0
    %790 = vmatpush1.bf16.msra.mxu0 0
    %791 = vmatprep.subr.bf16.mxu0 0
    %792 = vmatpush1.bf16.msra.mxu0 0
    %793 = vmatprep.subr.bf16.mxu0 0
    %794 = vmatpush1.bf16.msra.mxu0 0
    %795 = vmatprep.subr.bf16.mxu0 0
    %796 = vmatpush1.bf16.msra.mxu0 %v777
    %797 = vmatprep.subr.bf16.mxu0 0
    %798 = vmatpush1.bf16.msra.mxu0 %v776
    %799 = vmatprep.subr.bf16.mxu0 0
    %800 = vmatpush2.bf16.msra.mxu0 0
    %801 = vmatprep.subr.bf16.mxu0 0
    %802 = vmatpush2.bf16.msra.mxu0 0
    %803 = vmatprep.subr.bf16.mxu0 0
    %804 = vmatpush2.bf16.msra.mxu0 0
    %805 = vmatprep.subr.bf16.mxu0 0
    %806 = vmatpush2.bf16.msra.mxu0 0
    %807 = vmatprep.subr.bf16.mxu0 0
    %808 = vmatpush2.bf16.msra.mxu0 0
    %809 = vmatprep.subr.bf16.mxu0 0
    %810 = vmatpush2.bf16.msra.mxu0 0
    %811 = vmatprep.subr.bf16.mxu0 0
    %812 = vmatpush2.bf16.msra.mxu0 0
    %813 = vmatprep.subr.bf16.mxu0 0
    %814 = vmatpush2.bf16.msra.mxu0 0
    %815 = vmatprep.mubr.bf16.mxu0 0
    %816 = vmatmul.mubr.bf16.gmra.mxu0 %v781
    %v817 = vpop.f32.mrf.mxu0
    %v818 = vadd.f32 %v767, %v817
    %v819 = vpop.f32.mrf.mxu0
    %v820 = vpop.f32.mrf.mxu0
    %v821 = vadd.f32 %v767, %v820
    %v822 = vpop.f32.mrf.mxu0
    %823 = vdwg.mxu0
    %v824 = vadd.f32 %v45, %v818
    %v825 = vadd.f32 %v46, %v821
    %v826 = vsel %vm65, %v824, 0.0
    %827 = vadd.xlane.f32.xlu0 %v826
    %v828 = vpop.xlane.xlu0 %827
    %vm829 = vcmask 257024
    %v830 = vsel %vm829, %v825, 0.0
    %831 = vadd.xlane.f32.xlu0 %v830
    %v832 = vpop.xlane.xlu0 %831
    %v833 = vrcp.pop 32.0
    %v834 = vmul.f32 %v828, %v833
    %v835 = vmul.f32 %v832, %v833
    %v836 = vmul.f32 %v824, %v824
    %v837 = vmul.f32 %v825, %v825
    %v838 = vsel %vm65, %v836, 0.0
    %839 = vadd.xlane.f32.xlu0 %v838
    %v840 = vpop.xlane.xlu0 %839
    %v841 = vsel %vm829, %v837, 0.0
    %842 = vadd.xlane.f32.xlu0 %v841
    %v843 = vpop.xlane.xlu0 %842
    %v844 = vmul.f32 %v840, %v833
    %v845 = vmul.f32 %v843, %v833
    %v846 = vmul.f32 %v834, %v834
    %v847 = vmul.f32 %v835, %v835
    %v848 = vsub.f32 %v844, %v846
    %v849 = vsub.f32 %v845, %v847
    %v850 = vsub.f32 %v824, %v834
    %v851 = vsub.f32 %v825, %v835
    %v852 = vadd.f32 %v848, 1e-05
    %v853 = vadd.f32 %v849, 1e-05
    %v854 = vrsqrt.pop %v852
    %v855 = vrsqrt.pop %v853
    %v856 = vmul.f32 %v850, %v854
    %v857 = vmul.f32 %v851, %v855
    %v858 = vlaneseq
    %v859 = vshrl.u32 %v858, 7
    %v860 = vsub.s32 3, %v859
    %v861 = vrot.slane %v47, %v860
    %v862 = vmul.f32 %v856, %v861
    %v863 = vmul.f32 %v857, %v861
    %v864 = vlaneseq
    %v865 = vshrl.u32 %v864, 7
    %v866 = vsub.s32 4, %v865
    %v867 = vrot.slane %v47, %v866
    %v868 = vadd.f32 %v862, %v867
    %v869 = vadd.f32 %v863, %v867
    %v870 = vpack.c.bf16 %v869, %v868
    %v871 = vld [vmem:[%s5] sm:$0xff]
    %v872 = vld [vmem:[%s5 + $0x8] sm:$0xff]
    %v873 = vld [vmem:[%s5 + $0x10] sm:$0xff]
    %v874 = vld [vmem:[%s5 + $0x18] sm:$0xff]
    %v875 = vld [vmem:[%s5 + $0x20] sm:$0xff]
    %v876 = vld [vmem:[%s5 + $0x28] sm:$0xff]
    %v877 = vld [vmem:[%s5 + $0x30] sm:$0xff]
    %v878 = vld [vmem:[%s5 + $0x38] sm:$0xff]
    %v879 = vld [vmem:[%s8] sm:$0xf]
    %v881 = vlaneseq
    %v882 = vshrl.u32 %v881, 7
    %v883 = vsub.s32 0, %v882
    %v884 = vrot.slane %v879, %v883
    %v885 = vlaneseq
    %v886 = vshrl.u32 %v885, 7
    %v887 = vsub.s32 1, %v886
    %v888 = vrot.slane %v879, %v887
    %v889 = vlaneseq
    %v890 = vshrl.u32 %v889, 7
    %v891 = vsub.s32 2, %v890
    %v892 = vrot.slane %v879, %v891
    %v893 = vlaneseq
    %v894 = vshrl.u32 %v893, 7
    %v895 = vsub.s32 3, %v894
    %v896 = vrot.slane %v879, %v895
    %v909 = vunpack.c.l.b16 %v871
    %v910 = vunpack.c.h.b16 %v871
    %v911 = vunpack.c.l.b16 %v872
    %v912 = vunpack.c.h.b16 %v872
    %v913 = vunpack.c.l.b16 %v873
    %v914 = vunpack.c.h.b16 %v873
    %v915 = vunpack.c.l.b16 %v874
    %v916 = vunpack.c.h.b16 %v874
    %v917 = vunpack.c.l.b16 %v875
    %v918 = vunpack.c.h.b16 %v875
    %v919 = vunpack.c.l.b16 %v876
    %v920 = vunpack.c.h.b16 %v876
    %v921 = vunpack.c.l.b16 %v877
    %v922 = vunpack.c.h.b16 %v877
    %v923 = vunpack.c.l.b16 %v878
    %v924 = vunpack.c.h.b16 %v878
    %v925 = vpack.c.b16 %v913, %v909
    %v926 = vpack.c.b16 %v914, %v910
    %v927 = vpack.c.b16 %v915, %v911
    %v928 = vpack.c.b16 %v916, %v912
    %v929 = vpack.c.b16 %v921, %v917
    %v930 = vpack.c.b16 %v922, %v918
    %v931 = vpack.c.b16 %v923, %v919
    %v932 = vpack.c.b16 %v924, %v920
    %v942 = vsel %vm65, %v870, 0
    %944 = vmatprep.subr.bf16.mxu0 0
    %945 = vmatpush1.bf16.msra.mxu0 0
    %946 = vmatprep.subr.bf16.mxu0 0
    %947 = vmatpush1.bf16.msra.mxu0 0
    %948 = vmatprep.subr.bf16.mxu0 0
    %949 = vmatpush1.bf16.msra.mxu0 0
    %950 = vmatprep.subr.bf16.mxu0 0
    %951 = vmatpush1.bf16.msra.mxu0 0
    %952 = vmatprep.subr.bf16.mxu0 0
    %953 = vmatpush1.bf16.msra.mxu0 0
    %954 = vmatprep.subr.bf16.mxu0 0
    %955 = vmatpush1.bf16.msra.mxu0 0
    %956 = vmatprep.subr.bf16.mxu0 %v930
    %957 = vmatpush1.bf16.msra.mxu0 %v929
    %958 = vmatprep.subr.bf16.mxu0 %v926
    %959 = vmatpush1.bf16.msra.mxu0 %v925
    %960 = vmatprep.subr.bf16.mxu0 0
    %961 = vmatpush2.bf16.msra.mxu0 0
    %962 = vmatprep.subr.bf16.mxu0 0
    %963 = vmatpush2.bf16.msra.mxu0 0
    %964 = vmatprep.subr.bf16.mxu0 0
    %965 = vmatpush2.bf16.msra.mxu0 0
    %966 = vmatprep.subr.bf16.mxu0 0
    %967 = vmatpush2.bf16.msra.mxu0 0
    %968 = vmatprep.subr.bf16.mxu0 0
    %969 = vmatpush2.bf16.msra.mxu0 0
    %970 = vmatprep.subr.bf16.mxu0 0
    %971 = vmatpush2.bf16.msra.mxu0 0
    %972 = vmatprep.subr.bf16.mxu0 0
    %973 = vmatpush2.bf16.msra.mxu0 0
    %974 = vmatprep.subr.bf16.mxu0 0
    %975 = vmatpush2.bf16.msra.mxu0 0
    %976 = vmatprep.mubr.bf16.mxu0 0
    %977 = vmatmul.mubr.bf16.gmra.mxu0 %v942
    %v978 = vpop.f32.mrf.mxu0
    %v979 = vadd.f32 %v884, %v978
    %v980 = vpop.f32.mrf.mxu0
    %v981 = vadd.f32 %v888, %v980
    %v982 = vpop.f32.mrf.mxu0
    %v983 = vadd.f32 %v884, %v982
    %v984 = vpop.f32.mrf.mxu0
    %v985 = vadd.f32 %v888, %v984
    %986 = vdwg.mxu0
    %987 = vmatprep.subr.bf16.mxu0 0
    %988 = vmatpush1.bf16.msra.mxu0 0
    %989 = vmatprep.subr.bf16.mxu0 0
    %990 = vmatpush1.bf16.msra.mxu0 0
    %991 = vmatprep.subr.bf16.mxu0 0
    %992 = vmatpush1.bf16.msra.mxu0 0
    %993 = vmatprep.subr.bf16.mxu0 0
    %994 = vmatpush1.bf16.msra.mxu0 0
    %995 = vmatprep.subr.bf16.mxu0 0
    %996 = vmatpush1.bf16.msra.mxu0 0
    %997 = vmatprep.subr.bf16.mxu0 0
    %998 = vmatpush1.bf16.msra.mxu0 0
    %999 = vmatprep.subr.bf16.mxu0 %v932
    %1000 = vmatpush1.bf16.msra.mxu0 %v931
    %1001 = vmatprep.subr.bf16.mxu0 %v928
    %1002 = vmatpush1.bf16.msra.mxu0 %v927
    %1003 = vmatprep.subr.bf16.mxu0 0
    %1004 = vmatpush2.bf16.msra.mxu0 0
    %1005 = vmatprep.subr.bf16.mxu0 0
    %1006 = vmatpush2.bf16.msra.mxu0 0
    %1007 = vmatprep.subr.bf16.mxu0 0
    %1008 = vmatpush2.bf16.msra.mxu0 0
    %1009 = vmatprep.subr.bf16.mxu0 0
    %1010 = vmatpush2.bf16.msra.mxu0 0
    %1011 = vmatprep.subr.bf16.mxu0 0
    %1012 = vmatpush2.bf16.msra.mxu0 0
    %1013 = vmatprep.subr.bf16.mxu0 0
    %1014 = vmatpush2.bf16.msra.mxu0 0
    %1015 = vmatprep.subr.bf16.mxu0 0
    %1016 = vmatpush2.bf16.msra.mxu0 0
    %1017 = vmatprep.subr.bf16.mxu0 0
    %1018 = vmatpush2.bf16.msra.mxu0 0
    %1019 = vmatprep.mubr.bf16.mxu0 0
    %1020 = vmatmul.mubr.bf16.gmra.mxu0 %v942
    %v1021 = vpop.f32.mrf.mxu0
    %v1022 = vadd.f32 %v892, %v1021
    %v1023 = vpop.f32.mrf.mxu0
    %v1024 = vadd.f32 %v896, %v1023
    %v1025 = vpop.f32.mrf.mxu0
    %v1026 = vadd.f32 %v892, %v1025
    %v1027 = vpop.f32.mrf.mxu0
    %v1028 = vadd.f32 %v896, %v1027
    %1029 = vdwg.mxu0
    %v1030 = vmax.f32 %v979, 0.0
    %v1031 = vmax.f32 %v981, 0.0
    %v1032 = vmax.f32 %v1022, 0.0
    %v1033 = vmax.f32 %v1024, 0.0
    %v1034 = vmax.f32 %v983, 0.0
    %v1035 = vmax.f32 %v985, 0.0
    %v1036 = vmax.f32 %v1026, 0.0
    %v1037 = vmax.f32 %v1028, 0.0
    %v1038 = vpack.c.bf16 %v1034, %v1030
    %v1039 = vpack.c.bf16 %v1035, %v1031
    %v1040 = vpack.c.bf16 %v1036, %v1032
    %v1041 = vpack.c.bf16 %v1037, %v1033
    %v1042 = vld [vmem:[%s6] sm:$0xf]
    %v1043 = vld [vmem:[%s6 + $0x4] sm:$0xf]
    %v1044 = vld [vmem:[%s6 + $0x8] sm:$0xf]
    %v1045 = vld [vmem:[%s6 + $0xc] sm:$0xf]
    %v1046 = vld [vmem:[%s6 + $0x10] sm:$0xf]
    %v1047 = vld [vmem:[%s6 + $0x14] sm:$0xf]
    %v1048 = vld [vmem:[%s6 + $0x18] sm:$0xf]
    %v1049 = vld [vmem:[%s6 + $0x1c] sm:$0xf]
    %v1050 = vld [vmem:[%s6 + $0x20] sm:$0xf]
    %v1051 = vld [vmem:[%s6 + $0x24] sm:$0xf]
    %v1052 = vld [vmem:[%s6 + $0x28] sm:$0xf]
    %v1053 = vld [vmem:[%s6 + $0x2c] sm:$0xf]
    %v1054 = vld [vmem:[%s6 + $0x30] sm:$0xf]
    %v1055 = vld [vmem:[%s6 + $0x34] sm:$0xf]
    %v1056 = vld [vmem:[%s6 + $0x38] sm:$0xf]
    %v1057 = vld [vmem:[%s6 + $0x3c] sm:$0xf]
    %v1058 = vld [vmem:[%s6 + $0x40] sm:$0xf]
    %v1059 = vld [vmem:[%s6 + $0x44] sm:$0xf]
    %v1060 = vld [vmem:[%s6 + $0x48] sm:$0xf]
    %v1061 = vld [vmem:[%s6 + $0x4c] sm:$0xf]
    %v1062 = vld [vmem:[%s6 + $0x50] sm:$0xf]
    %v1063 = vld [vmem:[%s6 + $0x54] sm:$0xf]
    %v1064 = vld [vmem:[%s6 + $0x58] sm:$0xf]
    %v1065 = vld [vmem:[%s6 + $0x5c] sm:$0xf]
    %v1066 = vld [vmem:[%s6 + $0x60] sm:$0xf]
    %v1067 = vld [vmem:[%s6 + $0x64] sm:$0xf]
    %v1068 = vld [vmem:[%s6 + $0x68] sm:$0xf]
    %v1069 = vld [vmem:[%s6 + $0x6c] sm:$0xf]
    %v1070 = vld [vmem:[%s6 + $0x70] sm:$0xf]
    %v1071 = vld [vmem:[%s6 + $0x74] sm:$0xf]
    %v1072 = vld [vmem:[%s6 + $0x78] sm:$0xf]
    %v1073 = vld [vmem:[%s6 + $0x7c] sm:$0xf]
    %v1074 = vld [vmem:[%s6 + $0x80] sm:$0xf]
    %v1075 = vld [vmem:[%s6 + $0x84] sm:$0xf]
    %v1076 = vld [vmem:[%s6 + $0x88] sm:$0xf]
    %v1077 = vld [vmem:[%s6 + $0x8c] sm:$0xf]
    %v1078 = vld [vmem:[%s6 + $0x90] sm:$0xf]
    %v1079 = vld [vmem:[%s6 + $0x94] sm:$0xf]
    %v1080 = vld [vmem:[%s6 + $0x98] sm:$0xf]
    %v1081 = vld [vmem:[%s6 + $0x9c] sm:$0xf]
    %v1082 = vld [vmem:[%s6 + $0xa0] sm:$0xf]
    %v1083 = vld [vmem:[%s6 + $0xa4] sm:$0xf]
    %v1084 = vld [vmem:[%s6 + $0xa8] sm:$0xf]
    %v1085 = vld [vmem:[%s6 + $0xac] sm:$0xf]
    %v1086 = vld [vmem:[%s6 + $0xb0] sm:$0xf]
    %v1087 = vld [vmem:[%s6 + $0xb4] sm:$0xf]
    %v1088 = vld [vmem:[%s6 + $0xb8] sm:$0xf]
    %v1089 = vld [vmem:[%s6 + $0xbc] sm:$0xf]
    %v1090 = vld [vmem:[%s6 + $0xc0] sm:$0xf]
    %v1091 = vld [vmem:[%s6 + $0xc4] sm:$0xf]
    %v1092 = vld [vmem:[%s6 + $0xc8] sm:$0xf]
    %v1093 = vld [vmem:[%s6 + $0xcc] sm:$0xf]
    %v1094 = vld [vmem:[%s6 + $0xd0] sm:$0xf]
    %v1095 = vld [vmem:[%s6 + $0xd4] sm:$0xf]
    %v1096 = vld [vmem:[%s6 + $0xd8] sm:$0xf]
    %v1097 = vld [vmem:[%s6 + $0xdc] sm:$0xf]
    %v1098 = vld [vmem:[%s6 + $0xe0] sm:$0xf]
    %v1099 = vld [vmem:[%s6 + $0xe4] sm:$0xf]
    %v1100 = vld [vmem:[%s6 + $0xe8] sm:$0xf]
    %v1101 = vld [vmem:[%s6 + $0xec] sm:$0xf]
    %v1102 = vld [vmem:[%s6 + $0xf0] sm:$0xf]
    %v1103 = vld [vmem:[%s6 + $0xf4] sm:$0xf]
    %v1104 = vld [vmem:[%s6 + $0xf8] sm:$0xf]
    %v1105 = vld [vmem:[%s6 + $0xfc] sm:$0xf]
    %s1106 = scalar_lea.vmem %s5, 64
    %v1107 = vld [vmem:[%s1106] sm:$0xff]
    %v1108 = vld [vmem:[%s1106 + $0x8] sm:$0xff]
    %v1109 = vld [vmem:[%s1106 + $0x10] sm:$0xff]
    %v1110 = vld [vmem:[%s1106 + $0x18] sm:$0xff]
    %v1111 = vld [vmem:[%s1106 + $0x20] sm:$0xff]
    %v1112 = vld [vmem:[%s1106 + $0x28] sm:$0xff]
    %v1113 = vld [vmem:[%s1106 + $0x30] sm:$0xff]
    %v1114 = vld [vmem:[%s1106 + $0x38] sm:$0xff]
    %s1115 = scalar_lea.vmem %s8, 4
    %v1116 = vld [vmem:[%s1115] sm:$0xf]
    %v1118 = vlaneseq
    %v1119 = vshrl.u32 %v1118, 7
    %v1120 = vsub.s32 0, %v1119
    %v1121 = vrot.slane %v1116, %v1120
    %v1122 = vlaneseq
    %v1123 = vshrl.u32 %v1122, 7
    %v1124 = vsub.s32 1, %v1123
    %v1125 = vrot.slane %v1116, %v1124
    %v1126 = vlaneseq
    %v1127 = vshrl.u32 %v1126, 7
    %v1128 = vsub.s32 2, %v1127
    %v1129 = vrot.slane %v1116, %v1128
    %v1130 = vlaneseq
    %v1131 = vshrl.u32 %v1130, 7
    %v1132 = vsub.s32 3, %v1131
    %v1133 = vrot.slane %v1116, %v1132
    %v1146 = vunpack.c.l.b16 %v1107
    %v1147 = vunpack.c.h.b16 %v1107
    %v1148 = vunpack.c.l.b16 %v1108
    %v1149 = vunpack.c.h.b16 %v1108
    %v1150 = vunpack.c.l.b16 %v1109
    %v1151 = vunpack.c.h.b16 %v1109
    %v1152 = vunpack.c.l.b16 %v1110
    %v1153 = vunpack.c.h.b16 %v1110
    %v1154 = vunpack.c.l.b16 %v1111
    %v1155 = vunpack.c.h.b16 %v1111
    %v1156 = vunpack.c.l.b16 %v1112
    %v1157 = vunpack.c.h.b16 %v1112
    %v1158 = vunpack.c.l.b16 %v1113
    %v1159 = vunpack.c.h.b16 %v1113
    %v1160 = vunpack.c.l.b16 %v1114
    %v1161 = vunpack.c.h.b16 %v1114
    %v1162 = vpack.c.b16 %v1150, %v1146
    %v1163 = vpack.c.b16 %v1151, %v1147
    %v1164 = vpack.c.b16 %v1152, %v1148
    %v1165 = vpack.c.b16 %v1153, %v1149
    %v1166 = vpack.c.b16 %v1158, %v1154
    %v1167 = vpack.c.b16 %v1159, %v1155
    %v1168 = vpack.c.b16 %v1160, %v1156
    %v1169 = vpack.c.b16 %v1161, %v1157
    %1178 = vmatprep.subr.bf16.mxu0 0
    %1179 = vmatpush1.bf16.msra.mxu0 0
    %1180 = vmatprep.subr.bf16.mxu0 0
    %1181 = vmatpush1.bf16.msra.mxu0 0
    %1182 = vmatprep.subr.bf16.mxu0 0
    %1183 = vmatpush1.bf16.msra.mxu0 0
    %1184 = vmatprep.subr.bf16.mxu0 0
    %1185 = vmatpush1.bf16.msra.mxu0 0
    %1186 = vmatprep.subr.bf16.mxu0 0
    %1187 = vmatpush1.bf16.msra.mxu0 0
    %1188 = vmatprep.subr.bf16.mxu0 0
    %1189 = vmatpush1.bf16.msra.mxu0 0
    %1190 = vmatprep.subr.bf16.mxu0 %v1167
    %1191 = vmatpush1.bf16.msra.mxu0 %v1166
    %1192 = vmatprep.subr.bf16.mxu0 %v1163
    %1193 = vmatpush1.bf16.msra.mxu0 %v1162
    %1194 = vmatprep.subr.bf16.mxu0 0
    %1195 = vmatpush2.bf16.msra.mxu0 0
    %1196 = vmatprep.subr.bf16.mxu0 0
    %1197 = vmatpush2.bf16.msra.mxu0 0
    %1198 = vmatprep.subr.bf16.mxu0 0
    %1199 = vmatpush2.bf16.msra.mxu0 0
    %1200 = vmatprep.subr.bf16.mxu0 0
    %1201 = vmatpush2.bf16.msra.mxu0 0
    %1202 = vmatprep.subr.bf16.mxu0 0
    %1203 = vmatpush2.bf16.msra.mxu0 0
    %1204 = vmatprep.subr.bf16.mxu0 0
    %1205 = vmatpush2.bf16.msra.mxu0 0
    %1206 = vmatprep.subr.bf16.mxu0 0
    %1207 = vmatpush2.bf16.msra.mxu0 0
    %1208 = vmatprep.subr.bf16.mxu0 0
    %1209 = vmatpush2.bf16.msra.mxu0 0
    %1210 = vmatprep.mubr.bf16.mxu0 0
    %1211 = vmatmul.mubr.bf16.gmra.mxu0 %v942
    %v1212 = vpop.f32.mrf.mxu0
    %v1213 = vadd.f32 %v1121, %v1212
    %v1214 = vpop.f32.mrf.mxu0
    %v1215 = vadd.f32 %v1125, %v1214
    %v1216 = vpop.f32.mrf.mxu0
    %v1217 = vadd.f32 %v1121, %v1216
    %v1218 = vpop.f32.mrf.mxu0
    %v1219 = vadd.f32 %v1125, %v1218
    %1220 = vdwg.mxu0
    %1221 = vmatprep.subr.bf16.mxu0 0
    %1222 = vmatpush1.bf16.msra.mxu0 0
    %1223 = vmatprep.subr.bf16.mxu0 0
    %1224 = vmatpush1.bf16.msra.mxu0 0
    %1225 = vmatprep.subr.bf16.mxu0 0
    %1226 = vmatpush1.bf16.msra.mxu0 0
    %1227 = vmatprep.subr.bf16.mxu0 0
    %1228 = vmatpush1.bf16.msra.mxu0 0
    %1229 = vmatprep.subr.bf16.mxu0 0
    %1230 = vmatpush1.bf16.msra.mxu0 0
    %1231 = vmatprep.subr.bf16.mxu0 0
    %1232 = vmatpush1.bf16.msra.mxu0 0
    %1233 = vmatprep.subr.bf16.mxu0 %v1169
    %1234 = vmatpush1.bf16.msra.mxu0 %v1168
    %1235 = vmatprep.subr.bf16.mxu0 %v1165
    %1236 = vmatpush1.bf16.msra.mxu0 %v1164
    %1237 = vmatprep.subr.bf16.mxu0 0
    %1238 = vmatpush2.bf16.msra.mxu0 0
    %1239 = vmatprep.subr.bf16.mxu0 0
    %1240 = vmatpush2.bf16.msra.mxu0 0
    %1241 = vmatprep.subr.bf16.mxu0 0
    %1242 = vmatpush2.bf16.msra.mxu0 0
    %1243 = vmatprep.subr.bf16.mxu0 0
    %1244 = vmatpush2.bf16.msra.mxu0 0
    %1245 = vmatprep.subr.bf16.mxu0 0
    %1246 = vmatpush2.bf16.msra.mxu0 0
    %1247 = vmatprep.subr.bf16.mxu0 0
    %1248 = vmatpush2.bf16.msra.mxu0 0
    %1249 = vmatprep.subr.bf16.mxu0 0
    %1250 = vmatpush2.bf16.msra.mxu0 0
    %1251 = vmatprep.subr.bf16.mxu0 0
    %1252 = vmatpush2.bf16.msra.mxu0 0
    %1253 = vmatprep.mubr.bf16.mxu0 0
    %1254 = vmatmul.mubr.bf16.gmra.mxu0 %v942
    %v1255 = vpop.f32.mrf.mxu0
    %v1256 = vadd.f32 %v1129, %v1255
    %v1257 = vpop.f32.mrf.mxu0
    %v1258 = vadd.f32 %v1133, %v1257
    %v1259 = vpop.f32.mrf.mxu0
    %v1260 = vadd.f32 %v1129, %v1259
    %v1261 = vpop.f32.mrf.mxu0
    %v1262 = vadd.f32 %v1133, %v1261
    %1263 = vdwg.mxu0
    %v1264 = vmax.f32 %v1213, 0.0
    %v1265 = vmax.f32 %v1215, 0.0
    %v1266 = vmax.f32 %v1256, 0.0
    %v1267 = vmax.f32 %v1258, 0.0
    %v1268 = vmax.f32 %v1217, 0.0
    %v1269 = vmax.f32 %v1219, 0.0
    %v1270 = vmax.f32 %v1260, 0.0
    %v1271 = vmax.f32 %v1262, 0.0
    %v1272 = vpack.c.bf16 %v1268, %v1264
    %v1273 = vpack.c.bf16 %v1269, %v1265
    %v1274 = vpack.c.bf16 %v1270, %v1266
    %v1275 = vpack.c.bf16 %v1271, %v1267
    %s1276 = scalar_lea.vmem %s6, 256
    %v1277 = vld [vmem:[%s1276] sm:$0xf]
    %v1278 = vld [vmem:[%s1276 + $0x4] sm:$0xf]
    %v1279 = vld [vmem:[%s1276 + $0x8] sm:$0xf]
    %v1280 = vld [vmem:[%s1276 + $0xc] sm:$0xf]
    %v1281 = vld [vmem:[%s1276 + $0x10] sm:$0xf]
    %v1282 = vld [vmem:[%s1276 + $0x14] sm:$0xf]
    %v1283 = vld [vmem:[%s1276 + $0x18] sm:$0xf]
    %v1284 = vld [vmem:[%s1276 + $0x1c] sm:$0xf]
    %v1285 = vld [vmem:[%s1276 + $0x20] sm:$0xf]
    %v1286 = vld [vmem:[%s1276 + $0x24] sm:$0xf]
    %v1287 = vld [vmem:[%s1276 + $0x28] sm:$0xf]
    %v1288 = vld [vmem:[%s1276 + $0x2c] sm:$0xf]
    %v1289 = vld [vmem:[%s1276 + $0x30] sm:$0xf]
    %v1290 = vld [vmem:[%s1276 + $0x34] sm:$0xf]
    %v1291 = vld [vmem:[%s1276 + $0x38] sm:$0xf]
    %v1292 = vld [vmem:[%s1276 + $0x3c] sm:$0xf]
    %v1293 = vld [vmem:[%s1276 + $0x40] sm:$0xf]
    %v1294 = vld [vmem:[%s1276 + $0x44] sm:$0xf]
    %v1295 = vld [vmem:[%s1276 + $0x48] sm:$0xf]
    %v1296 = vld [vmem:[%s1276 + $0x4c] sm:$0xf]
    %v1297 = vld [vmem:[%s1276 + $0x50] sm:$0xf]
    %v1298 = vld [vmem:[%s1276 + $0x54] sm:$0xf]
    %v1299 = vld [vmem:[%s1276 + $0x58] sm:$0xf]
    %v1300 = vld [vmem:[%s1276 + $0x5c] sm:$0xf]
    %v1301 = vld [vmem:[%s1276 + $0x60] sm:$0xf]
    %v1302 = vld [vmem:[%s1276 + $0x64] sm:$0xf]
    %v1303 = vld [vmem:[%s1276 + $0x68] sm:$0xf]
    %v1304 = vld [vmem:[%s1276 + $0x6c] sm:$0xf]
    %v1305 = vld [vmem:[%s1276 + $0x70] sm:$0xf]
    %v1306 = vld [vmem:[%s1276 + $0x74] sm:$0xf]
    %v1307 = vld [vmem:[%s1276 + $0x78] sm:$0xf]
    %v1308 = vld [vmem:[%s1276 + $0x7c] sm:$0xf]
    %v1309 = vld [vmem:[%s1276 + $0x80] sm:$0xf]
    %v1310 = vld [vmem:[%s1276 + $0x84] sm:$0xf]
    %v1311 = vld [vmem:[%s1276 + $0x88] sm:$0xf]
    %v1312 = vld [vmem:[%s1276 + $0x8c] sm:$0xf]
    %v1313 = vld [vmem:[%s1276 + $0x90] sm:$0xf]
    %v1314 = vld [vmem:[%s1276 + $0x94] sm:$0xf]
    %v1315 = vld [vmem:[%s1276 + $0x98] sm:$0xf]
    %v1316 = vld [vmem:[%s1276 + $0x9c] sm:$0xf]
    %v1317 = vld [vmem:[%s1276 + $0xa0] sm:$0xf]
    %v1318 = vld [vmem:[%s1276 + $0xa4] sm:$0xf]
    %v1319 = vld [vmem:[%s1276 + $0xa8] sm:$0xf]
    %v1320 = vld [vmem:[%s1276 + $0xac] sm:$0xf]
    %v1321 = vld [vmem:[%s1276 + $0xb0] sm:$0xf]
    %v1322 = vld [vmem:[%s1276 + $0xb4] sm:$0xf]
    %v1323 = vld [vmem:[%s1276 + $0xb8] sm:$0xf]
    %v1324 = vld [vmem:[%s1276 + $0xbc] sm:$0xf]
    %v1325 = vld [vmem:[%s1276 + $0xc0] sm:$0xf]
    %v1326 = vld [vmem:[%s1276 + $0xc4] sm:$0xf]
    %v1327 = vld [vmem:[%s1276 + $0xc8] sm:$0xf]
    %v1328 = vld [vmem:[%s1276 + $0xcc] sm:$0xf]
    %v1329 = vld [vmem:[%s1276 + $0xd0] sm:$0xf]
    %v1330 = vld [vmem:[%s1276 + $0xd4] sm:$0xf]
    %v1331 = vld [vmem:[%s1276 + $0xd8] sm:$0xf]
    %v1332 = vld [vmem:[%s1276 + $0xdc] sm:$0xf]
    %v1333 = vld [vmem:[%s1276 + $0xe0] sm:$0xf]
    %v1334 = vld [vmem:[%s1276 + $0xe4] sm:$0xf]
    %v1335 = vld [vmem:[%s1276 + $0xe8] sm:$0xf]
    %v1336 = vld [vmem:[%s1276 + $0xec] sm:$0xf]
    %v1337 = vld [vmem:[%s1276 + $0xf0] sm:$0xf]
    %v1338 = vld [vmem:[%s1276 + $0xf4] sm:$0xf]
    %v1339 = vld [vmem:[%s1276 + $0xf8] sm:$0xf]
    %v1340 = vld [vmem:[%s1276 + $0xfc] sm:$0xf]
    %v1405 = vunpack.c.l.b16 %v1277
    %v1406 = vunpack.c.l.b16 %v1278
    %v1407 = vunpack.c.l.b16 %v1279
    %v1408 = vunpack.c.l.b16 %v1280
    %v1409 = vunpack.c.l.b16 %v1281
    %v1410 = vunpack.c.l.b16 %v1282
    %v1411 = vunpack.c.l.b16 %v1283
    %v1412 = vunpack.c.l.b16 %v1284
    %v1413 = vunpack.c.l.b16 %v1285
    %v1414 = vunpack.c.l.b16 %v1286
    %v1415 = vunpack.c.l.b16 %v1287
    %v1416 = vunpack.c.l.b16 %v1288
    %v1417 = vunpack.c.l.b16 %v1289
    %v1418 = vunpack.c.l.b16 %v1290
    %v1419 = vunpack.c.l.b16 %v1291
    %v1420 = vunpack.c.l.b16 %v1292
    %v1421 = vunpack.c.l.b16 %v1293
    %v1422 = vunpack.c.l.b16 %v1294
    %v1423 = vunpack.c.l.b16 %v1295
    %v1424 = vunpack.c.l.b16 %v1296
    %v1425 = vunpack.c.l.b16 %v1297
    %v1426 = vunpack.c.l.b16 %v1298
    %v1427 = vunpack.c.l.b16 %v1299
    %v1428 = vunpack.c.l.b16 %v1300
    %v1429 = vunpack.c.l.b16 %v1301
    %v1430 = vunpack.c.l.b16 %v1302
    %v1431 = vunpack.c.l.b16 %v1303
    %v1432 = vunpack.c.l.b16 %v1304
    %v1433 = vunpack.c.l.b16 %v1305
    %v1434 = vunpack.c.l.b16 %v1306
    %v1435 = vunpack.c.l.b16 %v1307
    %v1436 = vunpack.c.l.b16 %v1308
    %v1437 = vunpack.c.l.b16 %v1309
    %v1438 = vunpack.c.l.b16 %v1310
    %v1439 = vunpack.c.l.b16 %v1311
    %v1440 = vunpack.c.l.b16 %v1312
    %v1441 = vunpack.c.l.b16 %v1313
    %v1442 = vunpack.c.l.b16 %v1314
    %v1443 = vunpack.c.l.b16 %v1315
    %v1444 = vunpack.c.l.b16 %v1316
    %v1445 = vunpack.c.l.b16 %v1317
    %v1446 = vunpack.c.l.b16 %v1318
    %v1447 = vunpack.c.l.b16 %v1319
    %v1448 = vunpack.c.l.b16 %v1320
    %v1449 = vunpack.c.l.b16 %v1321
    %v1450 = vunpack.c.l.b16 %v1322
    %v1451 = vunpack.c.l.b16 %v1323
    %v1452 = vunpack.c.l.b16 %v1324
    %v1453 = vunpack.c.l.b16 %v1325
    %v1454 = vunpack.c.l.b16 %v1326
    %v1455 = vunpack.c.l.b16 %v1327
    %v1456 = vunpack.c.l.b16 %v1328
    %v1457 = vunpack.c.l.b16 %v1329
    %v1458 = vunpack.c.l.b16 %v1330
    %v1459 = vunpack.c.l.b16 %v1331
    %v1460 = vunpack.c.l.b16 %v1332
    %v1461 = vunpack.c.l.b16 %v1333
    %v1462 = vunpack.c.l.b16 %v1334
    %v1463 = vunpack.c.l.b16 %v1335
    %v1464 = vunpack.c.l.b16 %v1336
    %v1465 = vunpack.c.l.b16 %v1337
    %v1466 = vunpack.c.l.b16 %v1338
    %v1467 = vunpack.c.l.b16 %v1339
    %v1468 = vunpack.c.l.b16 %v1340
    %v1469 = vpack.c.b16 %v1406, %v1405
    %v1470 = vpack.c.b16 %v1408, %v1407
    %v1471 = vpack.c.b16 %v1410, %v1409
    %v1472 = vpack.c.b16 %v1412, %v1411
    %v1473 = vpack.c.b16 %v1414, %v1413
    %v1474 = vpack.c.b16 %v1416, %v1415
    %v1475 = vpack.c.b16 %v1418, %v1417
    %v1476 = vpack.c.b16 %v1420, %v1419
    %v1477 = vpack.c.b16 %v1422, %v1421
    %v1478 = vpack.c.b16 %v1424, %v1423
    %v1479 = vpack.c.b16 %v1426, %v1425
    %v1480 = vpack.c.b16 %v1428, %v1427
    %v1481 = vpack.c.b16 %v1430, %v1429
    %v1482 = vpack.c.b16 %v1432, %v1431
    %v1483 = vpack.c.b16 %v1434, %v1433
    %v1484 = vpack.c.b16 %v1436, %v1435
    %v1485 = vpack.c.b16 %v1438, %v1437
    %v1486 = vpack.c.b16 %v1440, %v1439
    %v1487 = vpack.c.b16 %v1442, %v1441
    %v1488 = vpack.c.b16 %v1444, %v1443
    %v1489 = vpack.c.b16 %v1446, %v1445
    %v1490 = vpack.c.b16 %v1448, %v1447
    %v1491 = vpack.c.b16 %v1450, %v1449
    %v1492 = vpack.c.b16 %v1452, %v1451
    %v1493 = vpack.c.b16 %v1454, %v1453
    %v1494 = vpack.c.b16 %v1456, %v1455
    %v1495 = vpack.c.b16 %v1458, %v1457
    %v1496 = vpack.c.b16 %v1460, %v1459
    %v1497 = vpack.c.b16 %v1462, %v1461
    %v1498 = vpack.c.b16 %v1464, %v1463
    %v1499 = vpack.c.b16 %v1466, %v1465
    %v1500 = vpack.c.b16 %v1468, %v1467
    %1533 = vmatprep.subr.bf16.mxu0 0
    %1534 = vmatpush1.bf16.msra.mxu0 %v1476
    %1535 = vmatprep.subr.bf16.mxu0 0
    %1536 = vmatpush1.bf16.msra.mxu0 %v1475
    %1537 = vmatprep.subr.bf16.mxu0 0
    %1538 = vmatpush1.bf16.msra.mxu0 %v1474
    %1539 = vmatprep.subr.bf16.mxu0 0
    %1540 = vmatpush1.bf16.msra.mxu0 %v1473
    %1541 = vmatprep.subr.bf16.mxu0 0
    %1542 = vmatpush1.bf16.msra.mxu0 %v1472
    %1543 = vmatprep.subr.bf16.mxu0 0
    %1544 = vmatpush1.bf16.msra.mxu0 %v1471
    %1545 = vmatprep.subr.bf16.mxu0 0
    %1546 = vmatpush1.bf16.msra.mxu0 %v1470
    %1547 = vmatprep.subr.bf16.mxu0 0
    %1548 = vmatpush1.bf16.msra.mxu0 %v1469
    %1549 = vmatprep.subr.bf16.mxu0 0
    %1550 = vmatpush2.bf16.msra.mxu0 %v1484
    %1551 = vmatprep.subr.bf16.mxu0 0
    %1552 = vmatpush2.bf16.msra.mxu0 %v1483
    %1553 = vmatprep.subr.bf16.mxu0 0
    %1554 = vmatpush2.bf16.msra.mxu0 %v1482
    %1555 = vmatprep.subr.bf16.mxu0 0
    %1556 = vmatpush2.bf16.msra.mxu0 %v1481
    %1557 = vmatprep.subr.bf16.mxu0 0
    %1558 = vmatpush2.bf16.msra.mxu0 %v1480
    %1559 = vmatprep.subr.bf16.mxu0 0
    %1560 = vmatpush2.bf16.msra.mxu0 %v1479
    %1561 = vmatprep.subr.bf16.mxu0 0
    %1562 = vmatpush2.bf16.msra.mxu0 %v1478
    %1563 = vmatprep.subr.bf16.mxu0 0
    %1564 = vmatpush2.bf16.msra.mxu0 %v1477
    %1565 = vmatprep.mubr.bf16.mxu0 %v1273
    %1566 = vmatmul.mubr.bf16.gmra.mxu0 %v1272
    %v1567 = vpop.f32.mrf.mxu0
    %v1568 = vadd.f32 0.0, %v1567
    %v1569 = vpop.f32.mrf.mxu0
    %v1570 = vpop.f32.mrf.mxu0
    %v1571 = vadd.f32 0.0, %v1570
    %v1572 = vpop.f32.mrf.mxu0
    %1573 = vdwg.mxu0
    %1574 = vmatprep.subr.bf16.mxu0 0
    %1575 = vmatpush1.bf16.msra.mxu0 %v1492
    %1576 = vmatprep.subr.bf16.mxu0 0
    %1577 = vmatpush1.bf16.msra.mxu0 %v1491
    %1578 = vmatprep.subr.bf16.mxu0 0
    %1579 = vmatpush1.bf16.msra.mxu0 %v1490
    %1580 = vmatprep.subr.bf16.mxu0 0
    %1581 = vmatpush1.bf16.msra.mxu0 %v1489
    %1582 = vmatprep.subr.bf16.mxu0 0
    %1583 = vmatpush1.bf16.msra.mxu0 %v1488
    %1584 = vmatprep.subr.bf16.mxu0 0
    %1585 = vmatpush1.bf16.msra.mxu0 %v1487
    %1586 = vmatprep.subr.bf16.mxu0 0
    %1587 = vmatpush1.bf16.msra.mxu0 %v1486
    %1588 = vmatprep.subr.bf16.mxu0 0
    %1589 = vmatpush1.bf16.msra.mxu0 %v1485
    %1590 = vmatprep.subr.bf16.mxu0 0
    %1591 = vmatpush2.bf16.msra.mxu0 %v1500
    %1592 = vmatprep.subr.bf16.mxu0 0
    %1593 = vmatpush2.bf16.msra.mxu0 %v1499
    %1594 = vmatprep.subr.bf16.mxu0 0
    %1595 = vmatpush2.bf16.msra.mxu0 %v1498
    %1596 = vmatprep.subr.bf16.mxu0 0
    %1597 = vmatpush2.bf16.msra.mxu0 %v1497
    %1598 = vmatprep.subr.bf16.mxu0 0
    %1599 = vmatpush2.bf16.msra.mxu0 %v1496
    %1600 = vmatprep.subr.bf16.mxu0 0
    %1601 = vmatpush2.bf16.msra.mxu0 %v1495
    %1602 = vmatprep.subr.bf16.mxu0 0
    %1603 = vmatpush2.bf16.msra.mxu0 %v1494
    %1604 = vmatprep.subr.bf16.mxu0 0
    %1605 = vmatpush2.bf16.msra.mxu0 %v1493
    %1606 = vmatprep.mubr.bf16.mxu0 %v1275
    %1607 = vmatmul.mubr.bf16.gmra.mxu0 %v1274
    %v1608 = vpop.f32.mrf.mxu0
    %v1609 = vadd.f32 %v1568, %v1608
    %v1610 = vpop.f32.mrf.mxu0
    %v1611 = vpop.f32.mrf.mxu0
    %v1612 = vadd.f32 %v1571, %v1611
    %v1613 = vpop.f32.mrf.mxu0
    %1614 = vdwg.mxu0
    %v1679 = vunpack.c.l.b16 %v1042
    %v1680 = vunpack.c.l.b16 %v1043
    %v1681 = vunpack.c.l.b16 %v1044
    %v1682 = vunpack.c.l.b16 %v1045
    %v1683 = vunpack.c.l.b16 %v1046
    %v1684 = vunpack.c.l.b16 %v1047
    %v1685 = vunpack.c.l.b16 %v1048
    %v1686 = vunpack.c.l.b16 %v1049
    %v1687 = vunpack.c.l.b16 %v1050
    %v1688 = vunpack.c.l.b16 %v1051
    %v1689 = vunpack.c.l.b16 %v1052
    %v1690 = vunpack.c.l.b16 %v1053
    %v1691 = vunpack.c.l.b16 %v1054
    %v1692 = vunpack.c.l.b16 %v1055
    %v1693 = vunpack.c.l.b16 %v1056
    %v1694 = vunpack.c.l.b16 %v1057
    %v1695 = vunpack.c.l.b16 %v1058
    %v1696 = vunpack.c.l.b16 %v1059
    %v1697 = vunpack.c.l.b16 %v1060
    %v1698 = vunpack.c.l.b16 %v1061
    %v1699 = vunpack.c.l.b16 %v1062
    %v1700 = vunpack.c.l.b16 %v1063
    %v1701 = vunpack.c.l.b16 %v1064
    %v1702 = vunpack.c.l.b16 %v1065
    %v1703 = vunpack.c.l.b16 %v1066
    %v1704 = vunpack.c.l.b16 %v1067
    %v1705 = vunpack.c.l.b16 %v1068
    %v1706 = vunpack.c.l.b16 %v1069
    %v1707 = vunpack.c.l.b16 %v1070
    %v1708 = vunpack.c.l.b16 %v1071
    %v1709 = vunpack.c.l.b16 %v1072
    %v1710 = vunpack.c.l.b16 %v1073
    %v1711 = vunpack.c.l.b16 %v1074
    %v1712 = vunpack.c.l.b16 %v1075
    %v1713 = vunpack.c.l.b16 %v1076
    %v1714 = vunpack.c.l.b16 %v1077
    %v1715 = vunpack.c.l.b16 %v1078
    %v1716 = vunpack.c.l.b16 %v1079
    %v1717 = vunpack.c.l.b16 %v1080
    %v1718 = vunpack.c.l.b16 %v1081
    %v1719 = vunpack.c.l.b16 %v1082
    %v1720 = vunpack.c.l.b16 %v1083
    %v1721 = vunpack.c.l.b16 %v1084
    %v1722 = vunpack.c.l.b16 %v1085
    %v1723 = vunpack.c.l.b16 %v1086
    %v1724 = vunpack.c.l.b16 %v1087
    %v1725 = vunpack.c.l.b16 %v1088
    %v1726 = vunpack.c.l.b16 %v1089
    %v1727 = vunpack.c.l.b16 %v1090
    %v1728 = vunpack.c.l.b16 %v1091
    %v1729 = vunpack.c.l.b16 %v1092
    %v1730 = vunpack.c.l.b16 %v1093
    %v1731 = vunpack.c.l.b16 %v1094
    %v1732 = vunpack.c.l.b16 %v1095
    %v1733 = vunpack.c.l.b16 %v1096
    %v1734 = vunpack.c.l.b16 %v1097
    %v1735 = vunpack.c.l.b16 %v1098
    %v1736 = vunpack.c.l.b16 %v1099
    %v1737 = vunpack.c.l.b16 %v1100
    %v1738 = vunpack.c.l.b16 %v1101
    %v1739 = vunpack.c.l.b16 %v1102
    %v1740 = vunpack.c.l.b16 %v1103
    %v1741 = vunpack.c.l.b16 %v1104
    %v1742 = vunpack.c.l.b16 %v1105
    %v1743 = vpack.c.b16 %v1680, %v1679
    %v1744 = vpack.c.b16 %v1682, %v1681
    %v1745 = vpack.c.b16 %v1684, %v1683
    %v1746 = vpack.c.b16 %v1686, %v1685
    %v1747 = vpack.c.b16 %v1688, %v1687
    %v1748 = vpack.c.b16 %v1690, %v1689
    %v1749 = vpack.c.b16 %v1692, %v1691
    %v1750 = vpack.c.b16 %v1694, %v1693
    %v1751 = vpack.c.b16 %v1696, %v1695
    %v1752 = vpack.c.b16 %v1698, %v1697
    %v1753 = vpack.c.b16 %v1700, %v1699
    %v1754 = vpack.c.b16 %v1702, %v1701
    %v1755 = vpack.c.b16 %v1704, %v1703
    %v1756 = vpack.c.b16 %v1706, %v1705
    %v1757 = vpack.c.b16 %v1708, %v1707
    %v1758 = vpack.c.b16 %v1710, %v1709
    %v1759 = vpack.c.b16 %v1712, %v1711
    %v1760 = vpack.c.b16 %v1714, %v1713
    %v1761 = vpack.c.b16 %v1716, %v1715
    %v1762 = vpack.c.b16 %v1718, %v1717
    %v1763 = vpack.c.b16 %v1720, %v1719
    %v1764 = vpack.c.b16 %v1722, %v1721
    %v1765 = vpack.c.b16 %v1724, %v1723
    %v1766 = vpack.c.b16 %v1726, %v1725
    %v1767 = vpack.c.b16 %v1728, %v1727
    %v1768 = vpack.c.b16 %v1730, %v1729
    %v1769 = vpack.c.b16 %v1732, %v1731
    %v1770 = vpack.c.b16 %v1734, %v1733
    %v1771 = vpack.c.b16 %v1736, %v1735
    %v1772 = vpack.c.b16 %v1738, %v1737
    %v1773 = vpack.c.b16 %v1740, %v1739
    %v1774 = vpack.c.b16 %v1742, %v1741
    %1807 = vmatprep.subr.bf16.mxu0 0
    %1808 = vmatpush1.bf16.msra.mxu0 %v1750
    %1809 = vmatprep.subr.bf16.mxu0 0
    %1810 = vmatpush1.bf16.msra.mxu0 %v1749
    %1811 = vmatprep.subr.bf16.mxu0 0
    %1812 = vmatpush1.bf16.msra.mxu0 %v1748
    %1813 = vmatprep.subr.bf16.mxu0 0
    %1814 = vmatpush1.bf16.msra.mxu0 %v1747
    %1815 = vmatprep.subr.bf16.mxu0 0
    %1816 = vmatpush1.bf16.msra.mxu0 %v1746
    %1817 = vmatprep.subr.bf16.mxu0 0
    %1818 = vmatpush1.bf16.msra.mxu0 %v1745
    %1819 = vmatprep.subr.bf16.mxu0 0
    %1820 = vmatpush1.bf16.msra.mxu0 %v1744
    %1821 = vmatprep.subr.bf16.mxu0 0
    %1822 = vmatpush1.bf16.msra.mxu0 %v1743
    %1823 = vmatprep.subr.bf16.mxu0 0
    %1824 = vmatpush2.bf16.msra.mxu0 %v1758
    %1825 = vmatprep.subr.bf16.mxu0 0
    %1826 = vmatpush2.bf16.msra.mxu0 %v1757
    %1827 = vmatprep.subr.bf16.mxu0 0
    %1828 = vmatpush2.bf16.msra.mxu0 %v1756
    %1829 = vmatprep.subr.bf16.mxu0 0
    %1830 = vmatpush2.bf16.msra.mxu0 %v1755
    %1831 = vmatprep.subr.bf16.mxu0 0
    %1832 = vmatpush2.bf16.msra.mxu0 %v1754
    %1833 = vmatprep.subr.bf16.mxu0 0
    %1834 = vmatpush2.bf16.msra.mxu0 %v1753
    %1835 = vmatprep.subr.bf16.mxu0 0
    %1836 = vmatpush2.bf16.msra.mxu0 %v1752
    %1837 = vmatprep.subr.bf16.mxu0 0
    %1838 = vmatpush2.bf16.msra.mxu0 %v1751
    %1839 = vmatprep.mubr.bf16.mxu0 %v1039
    %1840 = vmatmul.mubr.bf16.gmra.mxu0 %v1038
    %v1841 = vpop.f32.mrf.mxu0
    %v1842 = vadd.f32 %v1609, %v1841
    %v1843 = vpop.f32.mrf.mxu0
    %v1844 = vpop.f32.mrf.mxu0
    %v1845 = vadd.f32 %v1612, %v1844
    %v1846 = vpop.f32.mrf.mxu0
    %1847 = vdwg.mxu0
    %1848 = vmatprep.subr.bf16.mxu0 0
    %1849 = vmatpush1.bf16.msra.mxu0 %v1766
    %1850 = vmatprep.subr.bf16.mxu0 0
    %1851 = vmatpush1.bf16.msra.mxu0 %v1765
    %1852 = vmatprep.subr.bf16.mxu0 0
    %1853 = vmatpush1.bf16.msra.mxu0 %v1764
    %1854 = vmatprep.subr.bf16.mxu0 0
    %1855 = vmatpush1.bf16.msra.mxu0 %v1763
    %1856 = vmatprep.subr.bf16.mxu0 0
    %1857 = vmatpush1.bf16.msra.mxu0 %v1762
    %1858 = vmatprep.subr.bf16.mxu0 0
    %1859 = vmatpush1.bf16.msra.mxu0 %v1761
    %1860 = vmatprep.subr.bf16.mxu0 0
    %1861 = vmatpush1.bf16.msra.mxu0 %v1760
    %1862 = vmatprep.subr.bf16.mxu0 0
    %1863 = vmatpush1.bf16.msra.mxu0 %v1759
    %1864 = vmatprep.subr.bf16.mxu0 0
    %1865 = vmatpush2.bf16.msra.mxu0 %v1774
    %1866 = vmatprep.subr.bf16.mxu0 0
    %1867 = vmatpush2.bf16.msra.mxu0 %v1773
    %1868 = vmatprep.subr.bf16.mxu0 0
    %1869 = vmatpush2.bf16.msra.mxu0 %v1772
    %1870 = vmatprep.subr.bf16.mxu0 0
    %1871 = vmatpush2.bf16.msra.mxu0 %v1771
    %1872 = vmatprep.subr.bf16.mxu0 0
    %1873 = vmatpush2.bf16.msra.mxu0 %v1770
    %1874 = vmatprep.subr.bf16.mxu0 0
    %1875 = vmatpush2.bf16.msra.mxu0 %v1769
    %1876 = vmatprep.subr.bf16.mxu0 0
    %1877 = vmatpush2.bf16.msra.mxu0 %v1768
    %1878 = vmatprep.subr.bf16.mxu0 0
    %1879 = vmatpush2.bf16.msra.mxu0 %v1767
    %1880 = vmatprep.mubr.bf16.mxu0 %v1041
    %1881 = vmatmul.mubr.bf16.gmra.mxu0 %v1040
    %v1882 = vpop.f32.mrf.mxu0
    %v1883 = vadd.f32 %v1842, %v1882
    %v1884 = vpop.f32.mrf.mxu0
    %v1885 = vpop.f32.mrf.mxu0
    %v1886 = vadd.f32 %v1845, %v1885
    %v1887 = vpop.f32.mrf.mxu0
    %1888 = vdwg.mxu0
    %s1889 = scalar_lea.vmem %s5, 128
    %v1890 = vld [vmem:[%s1889] sm:$0xff]
    %v1891 = vld [vmem:[%s1889 + $0x8] sm:$0xff]
    %v1892 = vld [vmem:[%s1889 + $0x10] sm:$0xff]
    %v1893 = vld [vmem:[%s1889 + $0x18] sm:$0xff]
    %v1894 = vld [vmem:[%s1889 + $0x20] sm:$0xff]
    %v1895 = vld [vmem:[%s1889 + $0x28] sm:$0xff]
    %v1896 = vld [vmem:[%s1889 + $0x30] sm:$0xff]
    %v1897 = vld [vmem:[%s1889 + $0x38] sm:$0xff]
    %s1898 = scalar_lea.vmem %s8, 8
    %v1899 = vld [vmem:[%s1898] sm:$0xf]
    %v1901 = vlaneseq
    %v1902 = vshrl.u32 %v1901, 7
    %v1903 = vsub.s32 0, %v1902
    %v1904 = vrot.slane %v1899, %v1903
    %v1905 = vlaneseq
    %v1906 = vshrl.u32 %v1905, 7
    %v1907 = vsub.s32 1, %v1906
    %v1908 = vrot.slane %v1899, %v1907
    %v1909 = vlaneseq
    %v1910 = vshrl.u32 %v1909, 7
    %v1911 = vsub.s32 2, %v1910
    %v1912 = vrot.slane %v1899, %v1911
    %v1913 = vlaneseq
    %v1914 = vshrl.u32 %v1913, 7
    %v1915 = vsub.s32 3, %v1914
    %v1916 = vrot.slane %v1899, %v1915
    %v1929 = vunpack.c.l.b16 %v1890
    %v1930 = vunpack.c.h.b16 %v1890
    %v1931 = vunpack.c.l.b16 %v1891
    %v1932 = vunpack.c.h.b16 %v1891
    %v1933 = vunpack.c.l.b16 %v1892
    %v1934 = vunpack.c.h.b16 %v1892
    %v1935 = vunpack.c.l.b16 %v1893
    %v1936 = vunpack.c.h.b16 %v1893
    %v1937 = vunpack.c.l.b16 %v1894
    %v1938 = vunpack.c.h.b16 %v1894
    %v1939 = vunpack.c.l.b16 %v1895
    %v1940 = vunpack.c.h.b16 %v1895
    %v1941 = vunpack.c.l.b16 %v1896
    %v1942 = vunpack.c.h.b16 %v1896
    %v1943 = vunpack.c.l.b16 %v1897
    %v1944 = vunpack.c.h.b16 %v1897
    %v1945 = vpack.c.b16 %v1933, %v1929
    %v1946 = vpack.c.b16 %v1934, %v1930
    %v1947 = vpack.c.b16 %v1935, %v1931
    %v1948 = vpack.c.b16 %v1936, %v1932
    %v1949 = vpack.c.b16 %v1941, %v1937
    %v1950 = vpack.c.b16 %v1942, %v1938
    %v1951 = vpack.c.b16 %v1943, %v1939
    %v1952 = vpack.c.b16 %v1944, %v1940
    %1961 = vmatprep.subr.bf16.mxu0 0
    %1962 = vmatpush1.bf16.msra.mxu0 0
    %1963 = vmatprep.subr.bf16.mxu0 0
    %1964 = vmatpush1.bf16.msra.mxu0 0
    %1965 = vmatprep.subr.bf16.mxu0 0
    %1966 = vmatpush1.bf16.msra.mxu0 0
    %1967 = vmatprep.subr.bf16.mxu0 0
    %1968 = vmatpush1.bf16.msra.mxu0 0
    %1969 = vmatprep.subr.bf16.mxu0 0
    %1970 = vmatpush1.bf16.msra.mxu0 0
    %1971 = vmatprep.subr.bf16.mxu0 0
    %1972 = vmatpush1.bf16.msra.mxu0 0
    %1973 = vmatprep.subr.bf16.mxu0 %v1950
    %1974 = vmatpush1.bf16.msra.mxu0 %v1949
    %1975 = vmatprep.subr.bf16.mxu0 %v1946
    %1976 = vmatpush1.bf16.msra.mxu0 %v1945
    %1977 = vmatprep.subr.bf16.mxu0 0
    %1978 = vmatpush2.bf16.msra.mxu0 0
    %1979 = vmatprep.subr.bf16.mxu0 0
    %1980 = vmatpush2.bf16.msra.mxu0 0
    %1981 = vmatprep.subr.bf16.mxu0 0
    %1982 = vmatpush2.bf16.msra.mxu0 0
    %1983 = vmatprep.subr.bf16.mxu0 0
    %1984 = vmatpush2.bf16.msra.mxu0 0
    %1985 = vmatprep.subr.bf16.mxu0 0
    %1986 = vmatpush2.bf16.msra.mxu0 0
    %1987 = vmatprep.subr.bf16.mxu0 0
    %1988 = vmatpush2.bf16.msra.mxu0 0
    %1989 = vmatprep.subr.bf16.mxu0 0
    %1990 = vmatpush2.bf16.msra.mxu0 0
    %1991 = vmatprep.subr.bf16.mxu0 0
    %1992 = vmatpush2.bf16.msra.mxu0 0
    %1993 = vmatprep.mubr.bf16.mxu0 0
    %1994 = vmatmul.mubr.bf16.gmra.mxu0 %v942
    %v1995 = vpop.f32.mrf.mxu0
    %v1996 = vadd.f32 %v1904, %v1995
    %v1997 = vpop.f32.mrf.mxu0
    %v1998 = vadd.f32 %v1908, %v1997
    %v1999 = vpop.f32.mrf.mxu0
    %v2000 = vadd.f32 %v1904, %v1999
    %v2001 = vpop.f32.mrf.mxu0
    %v2002 = vadd.f32 %v1908, %v2001
    %2003 = vdwg.mxu0
    %2004 = vmatprep.subr.bf16.mxu0 0
    %2005 = vmatpush1.bf16.msra.mxu0 0
    %2006 = vmatprep.subr.bf16.mxu0 0
    %2007 = vmatpush1.bf16.msra.mxu0 0
    %2008 = vmatprep.subr.bf16.mxu0 0
    %2009 = vmatpush1.bf16.msra.mxu0 0
    %2010 = vmatprep.subr.bf16.mxu0 0
    %2011 = vmatpush1.bf16.msra.mxu0 0
    %2012 = vmatprep.subr.bf16.mxu0 0
    %2013 = vmatpush1.bf16.msra.mxu0 0
    %2014 = vmatprep.subr.bf16.mxu0 0
    %2015 = vmatpush1.bf16.msra.mxu0 0
    %2016 = vmatprep.subr.bf16.mxu0 %v1952
    %2017 = vmatpush1.bf16.msra.mxu0 %v1951
    %2018 = vmatprep.subr.bf16.mxu0 %v1948
    %2019 = vmatpush1.bf16.msra.mxu0 %v1947
    %2020 = vmatprep.subr.bf16.mxu0 0
    %2021 = vmatpush2.bf16.msra.mxu0 0
    %2022 = vmatprep.subr.bf16.mxu0 0
    %2023 = vmatpush2.bf16.msra.mxu0 0
    %2024 = vmatprep.subr.bf16.mxu0 0
    %2025 = vmatpush2.bf16.msra.mxu0 0
    %2026 = vmatprep.subr.bf16.mxu0 0
    %2027 = vmatpush2.bf16.msra.mxu0 0
    %2028 = vmatprep.subr.bf16.mxu0 0
    %2029 = vmatpush2.bf16.msra.mxu0 0
    %2030 = vmatprep.subr.bf16.mxu0 0
    %2031 = vmatpush2.bf16.msra.mxu0 0
    %2032 = vmatprep.subr.bf16.mxu0 0
    %2033 = vmatpush2.bf16.msra.mxu0 0
    %2034 = vmatprep.subr.bf16.mxu0 0
    %2035 = vmatpush2.bf16.msra.mxu0 0
    %2036 = vmatprep.mubr.bf16.mxu0 0
    %2037 = vmatmul.mubr.bf16.gmra.mxu0 %v942
    %v2038 = vpop.f32.mrf.mxu0
    %v2039 = vadd.f32 %v1912, %v2038
    %v2040 = vpop.f32.mrf.mxu0
    %v2041 = vadd.f32 %v1916, %v2040
    %v2042 = vpop.f32.mrf.mxu0
    %v2043 = vadd.f32 %v1912, %v2042
    %v2044 = vpop.f32.mrf.mxu0
    %v2045 = vadd.f32 %v1916, %v2044
    %2046 = vdwg.mxu0
    %v2047 = vmax.f32 %v1996, 0.0
    %v2048 = vmax.f32 %v1998, 0.0
    %v2049 = vmax.f32 %v2039, 0.0
    %v2050 = vmax.f32 %v2041, 0.0
    %v2051 = vmax.f32 %v2000, 0.0
    %v2052 = vmax.f32 %v2002, 0.0
    %v2053 = vmax.f32 %v2043, 0.0
    %v2054 = vmax.f32 %v2045, 0.0
    %v2055 = vpack.c.bf16 %v2051, %v2047
    %v2056 = vpack.c.bf16 %v2052, %v2048
    %v2057 = vpack.c.bf16 %v2053, %v2049
    %v2058 = vpack.c.bf16 %v2054, %v2050
    %s2059 = scalar_lea.vmem %s6, 512
    %v2060 = vld [vmem:[%s2059] sm:$0xf]
    %v2061 = vld [vmem:[%s2059 + $0x4] sm:$0xf]
    %v2062 = vld [vmem:[%s2059 + $0x8] sm:$0xf]
    %v2063 = vld [vmem:[%s2059 + $0xc] sm:$0xf]
    %v2064 = vld [vmem:[%s2059 + $0x10] sm:$0xf]
    %v2065 = vld [vmem:[%s2059 + $0x14] sm:$0xf]
    %v2066 = vld [vmem:[%s2059 + $0x18] sm:$0xf]
    %v2067 = vld [vmem:[%s2059 + $0x1c] sm:$0xf]
    %v2068 = vld [vmem:[%s2059 + $0x20] sm:$0xf]
    %v2069 = vld [vmem:[%s2059 + $0x24] sm:$0xf]
    %v2070 = vld [vmem:[%s2059 + $0x28] sm:$0xf]
    %v2071 = vld [vmem:[%s2059 + $0x2c] sm:$0xf]
    %v2072 = vld [vmem:[%s2059 + $0x30] sm:$0xf]
    %v2073 = vld [vmem:[%s2059 + $0x34] sm:$0xf]
    %v2074 = vld [vmem:[%s2059 + $0x38] sm:$0xf]
    %v2075 = vld [vmem:[%s2059 + $0x3c] sm:$0xf]
    %v2076 = vld [vmem:[%s2059 + $0x40] sm:$0xf]
    %v2077 = vld [vmem:[%s2059 + $0x44] sm:$0xf]
    %v2078 = vld [vmem:[%s2059 + $0x48] sm:$0xf]
    %v2079 = vld [vmem:[%s2059 + $0x4c] sm:$0xf]
    %v2080 = vld [vmem:[%s2059 + $0x50] sm:$0xf]
    %v2081 = vld [vmem:[%s2059 + $0x54] sm:$0xf]
    %v2082 = vld [vmem:[%s2059 + $0x58] sm:$0xf]
    %v2083 = vld [vmem:[%s2059 + $0x5c] sm:$0xf]
    %v2084 = vld [vmem:[%s2059 + $0x60] sm:$0xf]
    %v2085 = vld [vmem:[%s2059 + $0x64] sm:$0xf]
    %v2086 = vld [vmem:[%s2059 + $0x68] sm:$0xf]
    %v2087 = vld [vmem:[%s2059 + $0x6c] sm:$0xf]
    %v2088 = vld [vmem:[%s2059 + $0x70] sm:$0xf]
    %v2089 = vld [vmem:[%s2059 + $0x74] sm:$0xf]
    %v2090 = vld [vmem:[%s2059 + $0x78] sm:$0xf]
    %v2091 = vld [vmem:[%s2059 + $0x7c] sm:$0xf]
    %v2092 = vld [vmem:[%s2059 + $0x80] sm:$0xf]
    %v2093 = vld [vmem:[%s2059 + $0x84] sm:$0xf]
    %v2094 = vld [vmem:[%s2059 + $0x88] sm:$0xf]
    %v2095 = vld [vmem:[%s2059 + $0x8c] sm:$0xf]
    %v2096 = vld [vmem:[%s2059 + $0x90] sm:$0xf]
    %v2097 = vld [vmem:[%s2059 + $0x94] sm:$0xf]
    %v2098 = vld [vmem:[%s2059 + $0x98] sm:$0xf]
    %v2099 = vld [vmem:[%s2059 + $0x9c] sm:$0xf]
    %v2100 = vld [vmem:[%s2059 + $0xa0] sm:$0xf]
    %v2101 = vld [vmem:[%s2059 + $0xa4] sm:$0xf]
    %v2102 = vld [vmem:[%s2059 + $0xa8] sm:$0xf]
    %v2103 = vld [vmem:[%s2059 + $0xac] sm:$0xf]
    %v2104 = vld [vmem:[%s2059 + $0xb0] sm:$0xf]
    %v2105 = vld [vmem:[%s2059 + $0xb4] sm:$0xf]
    %v2106 = vld [vmem:[%s2059 + $0xb8] sm:$0xf]
    %v2107 = vld [vmem:[%s2059 + $0xbc] sm:$0xf]
    %v2108 = vld [vmem:[%s2059 + $0xc0] sm:$0xf]
    %v2109 = vld [vmem:[%s2059 + $0xc4] sm:$0xf]
    %v2110 = vld [vmem:[%s2059 + $0xc8] sm:$0xf]
    %v2111 = vld [vmem:[%s2059 + $0xcc] sm:$0xf]
    %v2112 = vld [vmem:[%s2059 + $0xd0] sm:$0xf]
    %v2113 = vld [vmem:[%s2059 + $0xd4] sm:$0xf]
    %v2114 = vld [vmem:[%s2059 + $0xd8] sm:$0xf]
    %v2115 = vld [vmem:[%s2059 + $0xdc] sm:$0xf]
    %v2116 = vld [vmem:[%s2059 + $0xe0] sm:$0xf]
    %v2117 = vld [vmem:[%s2059 + $0xe4] sm:$0xf]
    %v2118 = vld [vmem:[%s2059 + $0xe8] sm:$0xf]
    %v2119 = vld [vmem:[%s2059 + $0xec] sm:$0xf]
    %v2120 = vld [vmem:[%s2059 + $0xf0] sm:$0xf]
    %v2121 = vld [vmem:[%s2059 + $0xf4] sm:$0xf]
    %v2122 = vld [vmem:[%s2059 + $0xf8] sm:$0xf]
    %v2123 = vld [vmem:[%s2059 + $0xfc] sm:$0xf]
    %v2188 = vunpack.c.l.b16 %v2060
    %v2189 = vunpack.c.l.b16 %v2061
    %v2190 = vunpack.c.l.b16 %v2062
    %v2191 = vunpack.c.l.b16 %v2063
    %v2192 = vunpack.c.l.b16 %v2064
    %v2193 = vunpack.c.l.b16 %v2065
    %v2194 = vunpack.c.l.b16 %v2066
    %v2195 = vunpack.c.l.b16 %v2067
    %v2196 = vunpack.c.l.b16 %v2068
    %v2197 = vunpack.c.l.b16 %v2069
    %v2198 = vunpack.c.l.b16 %v2070
    %v2199 = vunpack.c.l.b16 %v2071
    %v2200 = vunpack.c.l.b16 %v2072
    %v2201 = vunpack.c.l.b16 %v2073
    %v2202 = vunpack.c.l.b16 %v2074
    %v2203 = vunpack.c.l.b16 %v2075
    %v2204 = vunpack.c.l.b16 %v2076
    %v2205 = vunpack.c.l.b16 %v2077
    %v2206 = vunpack.c.l.b16 %v2078
    %v2207 = vunpack.c.l.b16 %v2079
    %v2208 = vunpack.c.l.b16 %v2080
    %v2209 = vunpack.c.l.b16 %v2081
    %v2210 = vunpack.c.l.b16 %v2082
    %v2211 = vunpack.c.l.b16 %v2083
    %v2212 = vunpack.c.l.b16 %v2084
    %v2213 = vunpack.c.l.b16 %v2085
    %v2214 = vunpack.c.l.b16 %v2086
    %v2215 = vunpack.c.l.b16 %v2087
    %v2216 = vunpack.c.l.b16 %v2088
    %v2217 = vunpack.c.l.b16 %v2089
    %v2218 = vunpack.c.l.b16 %v2090
    %v2219 = vunpack.c.l.b16 %v2091
    %v2220 = vunpack.c.l.b16 %v2092
    %v2221 = vunpack.c.l.b16 %v2093
    %v2222 = vunpack.c.l.b16 %v2094
    %v2223 = vunpack.c.l.b16 %v2095
    %v2224 = vunpack.c.l.b16 %v2096
    %v2225 = vunpack.c.l.b16 %v2097
    %v2226 = vunpack.c.l.b16 %v2098
    %v2227 = vunpack.c.l.b16 %v2099
    %v2228 = vunpack.c.l.b16 %v2100
    %v2229 = vunpack.c.l.b16 %v2101
    %v2230 = vunpack.c.l.b16 %v2102
    %v2231 = vunpack.c.l.b16 %v2103
    %v2232 = vunpack.c.l.b16 %v2104
    %v2233 = vunpack.c.l.b16 %v2105
    %v2234 = vunpack.c.l.b16 %v2106
    %v2235 = vunpack.c.l.b16 %v2107
    %v2236 = vunpack.c.l.b16 %v2108
    %v2237 = vunpack.c.l.b16 %v2109
    %v2238 = vunpack.c.l.b16 %v2110
    %v2239 = vunpack.c.l.b16 %v2111
    %v2240 = vunpack.c.l.b16 %v2112
    %v2241 = vunpack.c.l.b16 %v2113
    %v2242 = vunpack.c.l.b16 %v2114
    %v2243 = vunpack.c.l.b16 %v2115
    %v2244 = vunpack.c.l.b16 %v2116
    %v2245 = vunpack.c.l.b16 %v2117
    %v2246 = vunpack.c.l.b16 %v2118
    %v2247 = vunpack.c.l.b16 %v2119
    %v2248 = vunpack.c.l.b16 %v2120
    %v2249 = vunpack.c.l.b16 %v2121
    %v2250 = vunpack.c.l.b16 %v2122
    %v2251 = vunpack.c.l.b16 %v2123
    %v2252 = vpack.c.b16 %v2189, %v2188
    %v2253 = vpack.c.b16 %v2191, %v2190
    %v2254 = vpack.c.b16 %v2193, %v2192
    %v2255 = vpack.c.b16 %v2195, %v2194
    %v2256 = vpack.c.b16 %v2197, %v2196
    %v2257 = vpack.c.b16 %v2199, %v2198
    %v2258 = vpack.c.b16 %v2201, %v2200
    %v2259 = vpack.c.b16 %v2203, %v2202
    %v2260 = vpack.c.b16 %v2205, %v2204
    %v2261 = vpack.c.b16 %v2207, %v2206
    %v2262 = vpack.c.b16 %v2209, %v2208
    %v2263 = vpack.c.b16 %v2211, %v2210
    %v2264 = vpack.c.b16 %v2213, %v2212
    %v2265 = vpack.c.b16 %v2215, %v2214
    %v2266 = vpack.c.b16 %v2217, %v2216
    %v2267 = vpack.c.b16 %v2219, %v2218
    %v2268 = vpack.c.b16 %v2221, %v2220
    %v2269 = vpack.c.b16 %v2223, %v2222
    %v2270 = vpack.c.b16 %v2225, %v2224
    %v2271 = vpack.c.b16 %v2227, %v2226
    %v2272 = vpack.c.b16 %v2229, %v2228
    %v2273 = vpack.c.b16 %v2231, %v2230
    %v2274 = vpack.c.b16 %v2233, %v2232
    %v2275 = vpack.c.b16 %v2235, %v2234
    %v2276 = vpack.c.b16 %v2237, %v2236
    %v2277 = vpack.c.b16 %v2239, %v2238
    %v2278 = vpack.c.b16 %v2241, %v2240
    %v2279 = vpack.c.b16 %v2243, %v2242
    %v2280 = vpack.c.b16 %v2245, %v2244
    %v2281 = vpack.c.b16 %v2247, %v2246
    %v2282 = vpack.c.b16 %v2249, %v2248
    %v2283 = vpack.c.b16 %v2251, %v2250
    %2316 = vmatprep.subr.bf16.mxu0 0
    %2317 = vmatpush1.bf16.msra.mxu0 %v2259
    %2318 = vmatprep.subr.bf16.mxu0 0
    %2319 = vmatpush1.bf16.msra.mxu0 %v2258
    %2320 = vmatprep.subr.bf16.mxu0 0
    %2321 = vmatpush1.bf16.msra.mxu0 %v2257
    %2322 = vmatprep.subr.bf16.mxu0 0
    %2323 = vmatpush1.bf16.msra.mxu0 %v2256
    %2324 = vmatprep.subr.bf16.mxu0 0
    %2325 = vmatpush1.bf16.msra.mxu0 %v2255
    %2326 = vmatprep.subr.bf16.mxu0 0
    %2327 = vmatpush1.bf16.msra.mxu0 %v2254
    %2328 = vmatprep.subr.bf16.mxu0 0
    %2329 = vmatpush1.bf16.msra.mxu0 %v2253
    %2330 = vmatprep.subr.bf16.mxu0 0
    %2331 = vmatpush1.bf16.msra.mxu0 %v2252
    %2332 = vmatprep.subr.bf16.mxu0 0
    %2333 = vmatpush2.bf16.msra.mxu0 %v2267
    %2334 = vmatprep.subr.bf16.mxu0 0
    %2335 = vmatpush2.bf16.msra.mxu0 %v2266
    %2336 = vmatprep.subr.bf16.mxu0 0
    %2337 = vmatpush2.bf16.msra.mxu0 %v2265
    %2338 = vmatprep.subr.bf16.mxu0 0
    %2339 = vmatpush2.bf16.msra.mxu0 %v2264
    %2340 = vmatprep.subr.bf16.mxu0 0
    %2341 = vmatpush2.bf16.msra.mxu0 %v2263
    %2342 = vmatprep.subr.bf16.mxu0 0
    %2343 = vmatpush2.bf16.msra.mxu0 %v2262
    %2344 = vmatprep.subr.bf16.mxu0 0
    %2345 = vmatpush2.bf16.msra.mxu0 %v2261
    %2346 = vmatprep.subr.bf16.mxu0 0
    %2347 = vmatpush2.bf16.msra.mxu0 %v2260
    %2348 = vmatprep.mubr.bf16.mxu0 %v2056
    %2349 = vmatmul.mubr.bf16.gmra.mxu0 %v2055
    %v2350 = vpop.f32.mrf.mxu0
    %v2351 = vadd.f32 0.0, %v2350
    %v2352 = vpop.f32.mrf.mxu0
    %v2353 = vpop.f32.mrf.mxu0
    %v2354 = vadd.f32 0.0, %v2353
    %v2355 = vpop.f32.mrf.mxu0
    %2356 = vdwg.mxu0
    %2357 = vmatprep.subr.bf16.mxu0 0
    %2358 = vmatpush1.bf16.msra.mxu0 %v2275
    %2359 = vmatprep.subr.bf16.mxu0 0
    %2360 = vmatpush1.bf16.msra.mxu0 %v2274
    %2361 = vmatprep.subr.bf16.mxu0 0
    %2362 = vmatpush1.bf16.msra.mxu0 %v2273
    %2363 = vmatprep.subr.bf16.mxu0 0
    %2364 = vmatpush1.bf16.msra.mxu0 %v2272
    %2365 = vmatprep.subr.bf16.mxu0 0
    %2366 = vmatpush1.bf16.msra.mxu0 %v2271
    %2367 = vmatprep.subr.bf16.mxu0 0
    %2368 = vmatpush1.bf16.msra.mxu0 %v2270
    %2369 = vmatprep.subr.bf16.mxu0 0
    %2370 = vmatpush1.bf16.msra.mxu0 %v2269
    %2371 = vmatprep.subr.bf16.mxu0 0
    %2372 = vmatpush1.bf16.msra.mxu0 %v2268
    %2373 = vmatprep.subr.bf16.mxu0 0
    %2374 = vmatpush2.bf16.msra.mxu0 %v2283
    %2375 = vmatprep.subr.bf16.mxu0 0
    %2376 = vmatpush2.bf16.msra.mxu0 %v2282
    %2377 = vmatprep.subr.bf16.mxu0 0
    %2378 = vmatpush2.bf16.msra.mxu0 %v2281
    %2379 = vmatprep.subr.bf16.mxu0 0
    %2380 = vmatpush2.bf16.msra.mxu0 %v2280
    %2381 = vmatprep.subr.bf16.mxu0 0
    %2382 = vmatpush2.bf16.msra.mxu0 %v2279
    %2383 = vmatprep.subr.bf16.mxu0 0
    %2384 = vmatpush2.bf16.msra.mxu0 %v2278
    %2385 = vmatprep.subr.bf16.mxu0 0
    %2386 = vmatpush2.bf16.msra.mxu0 %v2277
    %2387 = vmatprep.subr.bf16.mxu0 0
    %2388 = vmatpush2.bf16.msra.mxu0 %v2276
    %2389 = vmatprep.mubr.bf16.mxu0 %v2058
    %2390 = vmatmul.mubr.bf16.gmra.mxu0 %v2057
    %v2391 = vpop.f32.mrf.mxu0
    %v2392 = vadd.f32 %v2351, %v2391
    %v2393 = vpop.f32.mrf.mxu0
    %v2394 = vpop.f32.mrf.mxu0
    %v2395 = vadd.f32 %v2354, %v2394
    %v2396 = vpop.f32.mrf.mxu0
    %2397 = vdwg.mxu0
    %v2398 = vadd.f32 %v1883, %v2392
    %v2399 = vadd.f32 %v1886, %v2395
    %s2400 = scalar_lea.vmem %s5, 192
    %v2401 = vld [vmem:[%s2400] sm:$0xff]
    %v2402 = vld [vmem:[%s2400 + $0x8] sm:$0xff]
    %v2403 = vld [vmem:[%s2400 + $0x10] sm:$0xff]
    %v2404 = vld [vmem:[%s2400 + $0x18] sm:$0xff]
    %v2405 = vld [vmem:[%s2400 + $0x20] sm:$0xff]
    %v2406 = vld [vmem:[%s2400 + $0x28] sm:$0xff]
    %v2407 = vld [vmem:[%s2400 + $0x30] sm:$0xff]
    %v2408 = vld [vmem:[%s2400 + $0x38] sm:$0xff]
    %s2409 = scalar_lea.vmem %s8, 12
    %v2410 = vld [vmem:[%s2409] sm:$0xf]
    %v2412 = vlaneseq
    %v2413 = vshrl.u32 %v2412, 7
    %v2414 = vsub.s32 0, %v2413
    %v2415 = vrot.slane %v2410, %v2414
    %v2416 = vlaneseq
    %v2417 = vshrl.u32 %v2416, 7
    %v2418 = vsub.s32 1, %v2417
    %v2419 = vrot.slane %v2410, %v2418
    %v2420 = vlaneseq
    %v2421 = vshrl.u32 %v2420, 7
    %v2422 = vsub.s32 2, %v2421
    %v2423 = vrot.slane %v2410, %v2422
    %v2424 = vlaneseq
    %v2425 = vshrl.u32 %v2424, 7
    %v2426 = vsub.s32 3, %v2425
    %v2427 = vrot.slane %v2410, %v2426
    %v2440 = vunpack.c.l.b16 %v2401
    %v2441 = vunpack.c.h.b16 %v2401
    %v2442 = vunpack.c.l.b16 %v2402
    %v2443 = vunpack.c.h.b16 %v2402
    %v2444 = vunpack.c.l.b16 %v2403
    %v2445 = vunpack.c.h.b16 %v2403
    %v2446 = vunpack.c.l.b16 %v2404
    %v2447 = vunpack.c.h.b16 %v2404
    %v2448 = vunpack.c.l.b16 %v2405
    %v2449 = vunpack.c.h.b16 %v2405
    %v2450 = vunpack.c.l.b16 %v2406
    %v2451 = vunpack.c.h.b16 %v2406
    %v2452 = vunpack.c.l.b16 %v2407
    %v2453 = vunpack.c.h.b16 %v2407
    %v2454 = vunpack.c.l.b16 %v2408
    %v2455 = vunpack.c.h.b16 %v2408
    %v2456 = vpack.c.b16 %v2444, %v2440
    %v2457 = vpack.c.b16 %v2445, %v2441
    %v2458 = vpack.c.b16 %v2446, %v2442
    %v2459 = vpack.c.b16 %v2447, %v2443
    %v2460 = vpack.c.b16 %v2452, %v2448
    %v2461 = vpack.c.b16 %v2453, %v2449
    %v2462 = vpack.c.b16 %v2454, %v2450
    %v2463 = vpack.c.b16 %v2455, %v2451
    %2472 = vmatprep.subr.bf16.mxu0 0
    %2473 = vmatpush1.bf16.msra.mxu0 0
    %2474 = vmatprep.subr.bf16.mxu0 0
    %2475 = vmatpush1.bf16.msra.mxu0 0
    %2476 = vmatprep.subr.bf16.mxu0 0
    %2477 = vmatpush1.bf16.msra.mxu0 0
    %2478 = vmatprep.subr.bf16.mxu0 0
    %2479 = vmatpush1.bf16.msra.mxu0 0
    %2480 = vmatprep.subr.bf16.mxu0 0
    %2481 = vmatpush1.bf16.msra.mxu0 0
    %2482 = vmatprep.subr.bf16.mxu0 0
    %2483 = vmatpush1.bf16.msra.mxu0 0
    %2484 = vmatprep.subr.bf16.mxu0 %v2461
    %2485 = vmatpush1.bf16.msra.mxu0 %v2460
    %2486 = vmatprep.subr.bf16.mxu0 %v2457
    %2487 = vmatpush1.bf16.msra.mxu0 %v2456
    %2488 = vmatprep.subr.bf16.mxu0 0
    %2489 = vmatpush2.bf16.msra.mxu0 0
    %2490 = vmatprep.subr.bf16.mxu0 0
    %2491 = vmatpush2.bf16.msra.mxu0 0
    %2492 = vmatprep.subr.bf16.mxu0 0
    %2493 = vmatpush2.bf16.msra.mxu0 0
    %2494 = vmatprep.subr.bf16.mxu0 0
    %2495 = vmatpush2.bf16.msra.mxu0 0
    %2496 = vmatprep.subr.bf16.mxu0 0
    %2497 = vmatpush2.bf16.msra.mxu0 0
    %2498 = vmatprep.subr.bf16.mxu0 0
    %2499 = vmatpush2.bf16.msra.mxu0 0
    %2500 = vmatprep.subr.bf16.mxu0 0
    %2501 = vmatpush2.bf16.msra.mxu0 0
    %2502 = vmatprep.subr.bf16.mxu0 0
    %2503 = vmatpush2.bf16.msra.mxu0 0
    %2504 = vmatprep.mubr.bf16.mxu0 0
    %2505 = vmatmul.mubr.bf16.gmra.mxu0 %v942
    %v2506 = vpop.f32.mrf.mxu0
    %v2507 = vadd.f32 %v2415, %v2506
    %v2508 = vpop.f32.mrf.mxu0
    %v2509 = vadd.f32 %v2419, %v2508
    %v2510 = vpop.f32.mrf.mxu0
    %v2511 = vadd.f32 %v2415, %v2510
    %v2512 = vpop.f32.mrf.mxu0
    %v2513 = vadd.f32 %v2419, %v2512
    %2514 = vdwg.mxu0
    %2515 = vmatprep.subr.bf16.mxu0 0
    %2516 = vmatpush1.bf16.msra.mxu0 0
    %2517 = vmatprep.subr.bf16.mxu0 0
    %2518 = vmatpush1.bf16.msra.mxu0 0
    %2519 = vmatprep.subr.bf16.mxu0 0
    %2520 = vmatpush1.bf16.msra.mxu0 0
    %2521 = vmatprep.subr.bf16.mxu0 0
    %2522 = vmatpush1.bf16.msra.mxu0 0
    %2523 = vmatprep.subr.bf16.mxu0 0
    %2524 = vmatpush1.bf16.msra.mxu0 0
    %2525 = vmatprep.subr.bf16.mxu0 0
    %2526 = vmatpush1.bf16.msra.mxu0 0
    %2527 = vmatprep.subr.bf16.mxu0 %v2463
    %2528 = vmatpush1.bf16.msra.mxu0 %v2462
    %2529 = vmatprep.subr.bf16.mxu0 %v2459
    %2530 = vmatpush1.bf16.msra.mxu0 %v2458
    %2531 = vmatprep.subr.bf16.mxu0 0
    %2532 = vmatpush2.bf16.msra.mxu0 0
    %2533 = vmatprep.subr.bf16.mxu0 0
    %2534 = vmatpush2.bf16.msra.mxu0 0
    %2535 = vmatprep.subr.bf16.mxu0 0
    %2536 = vmatpush2.bf16.msra.mxu0 0
    %2537 = vmatprep.subr.bf16.mxu0 0
    %2538 = vmatpush2.bf16.msra.mxu0 0
    %2539 = vmatprep.subr.bf16.mxu0 0
    %2540 = vmatpush2.bf16.msra.mxu0 0
    %2541 = vmatprep.subr.bf16.mxu0 0
    %2542 = vmatpush2.bf16.msra.mxu0 0
    %2543 = vmatprep.subr.bf16.mxu0 0
    %2544 = vmatpush2.bf16.msra.mxu0 0
    %2545 = vmatprep.subr.bf16.mxu0 0
    %2546 = vmatpush2.bf16.msra.mxu0 0
    %2547 = vmatprep.mubr.bf16.mxu0 0
    %2548 = vmatmul.mubr.bf16.gmra.mxu0 %v942
    %v2549 = vpop.f32.mrf.mxu0
    %v2550 = vadd.f32 %v2423, %v2549
    %v2551 = vpop.f32.mrf.mxu0
    %v2552 = vadd.f32 %v2427, %v2551
    %v2553 = vpop.f32.mrf.mxu0
    %v2554 = vadd.f32 %v2423, %v2553
    %v2555 = vpop.f32.mrf.mxu0
    %v2556 = vadd.f32 %v2427, %v2555
    %2557 = vdwg.mxu0
    %v2558 = vmax.f32 %v2507, 0.0
    %v2559 = vmax.f32 %v2509, 0.0
    %v2560 = vmax.f32 %v2550, 0.0
    %v2561 = vmax.f32 %v2552, 0.0
    %v2562 = vmax.f32 %v2511, 0.0
    %v2563 = vmax.f32 %v2513, 0.0
    %v2564 = vmax.f32 %v2554, 0.0
    %v2565 = vmax.f32 %v2556, 0.0
    %v2566 = vpack.c.bf16 %v2562, %v2558
    %v2567 = vpack.c.bf16 %v2563, %v2559
    %v2568 = vpack.c.bf16 %v2564, %v2560
    %v2569 = vpack.c.bf16 %v2565, %v2561
    %s2570 = scalar_lea.vmem %s6, 768
    %v2571 = vld [vmem:[%s2570] sm:$0xf]
    %v2572 = vld [vmem:[%s2570 + $0x4] sm:$0xf]
    %v2573 = vld [vmem:[%s2570 + $0x8] sm:$0xf]
    %v2574 = vld [vmem:[%s2570 + $0xc] sm:$0xf]
    %v2575 = vld [vmem:[%s2570 + $0x10] sm:$0xf]
    %v2576 = vld [vmem:[%s2570 + $0x14] sm:$0xf]
    %v2577 = vld [vmem:[%s2570 + $0x18] sm:$0xf]
    %v2578 = vld [vmem:[%s2570 + $0x1c] sm:$0xf]
    %v2579 = vld [vmem:[%s2570 + $0x20] sm:$0xf]
    %v2580 = vld [vmem:[%s2570 + $0x24] sm:$0xf]
    %v2581 = vld [vmem:[%s2570 + $0x28] sm:$0xf]
    %v2582 = vld [vmem:[%s2570 + $0x2c] sm:$0xf]
    %v2583 = vld [vmem:[%s2570 + $0x30] sm:$0xf]
    %v2584 = vld [vmem:[%s2570 + $0x34] sm:$0xf]
    %v2585 = vld [vmem:[%s2570 + $0x38] sm:$0xf]
    %v2586 = vld [vmem:[%s2570 + $0x3c] sm:$0xf]
    %v2587 = vld [vmem:[%s2570 + $0x40] sm:$0xf]
    %v2588 = vld [vmem:[%s2570 + $0x44] sm:$0xf]
    %v2589 = vld [vmem:[%s2570 + $0x48] sm:$0xf]
    %v2590 = vld [vmem:[%s2570 + $0x4c] sm:$0xf]
    %v2591 = vld [vmem:[%s2570 + $0x50] sm:$0xf]
    %v2592 = vld [vmem:[%s2570 + $0x54] sm:$0xf]
    %v2593 = vld [vmem:[%s2570 + $0x58] sm:$0xf]
    %v2594 = vld [vmem:[%s2570 + $0x5c] sm:$0xf]
    %v2595 = vld [vmem:[%s2570 + $0x60] sm:$0xf]
    %v2596 = vld [vmem:[%s2570 + $0x64] sm:$0xf]
    %v2597 = vld [vmem:[%s2570 + $0x68] sm:$0xf]
    %v2598 = vld [vmem:[%s2570 + $0x6c] sm:$0xf]
    %v2599 = vld [vmem:[%s2570 + $0x70] sm:$0xf]
    %v2600 = vld [vmem:[%s2570 + $0x74] sm:$0xf]
    %v2601 = vld [vmem:[%s2570 + $0x78] sm:$0xf]
    %v2602 = vld [vmem:[%s2570 + $0x7c] sm:$0xf]
    %v2603 = vld [vmem:[%s2570 + $0x80] sm:$0xf]
    %v2604 = vld [vmem:[%s2570 + $0x84] sm:$0xf]
    %v2605 = vld [vmem:[%s2570 + $0x88] sm:$0xf]
    %v2606 = vld [vmem:[%s2570 + $0x8c] sm:$0xf]
    %v2607 = vld [vmem:[%s2570 + $0x90] sm:$0xf]
    %v2608 = vld [vmem:[%s2570 + $0x94] sm:$0xf]
    %v2609 = vld [vmem:[%s2570 + $0x98] sm:$0xf]
    %v2610 = vld [vmem:[%s2570 + $0x9c] sm:$0xf]
    %v2611 = vld [vmem:[%s2570 + $0xa0] sm:$0xf]
    %v2612 = vld [vmem:[%s2570 + $0xa4] sm:$0xf]
    %v2613 = vld [vmem:[%s2570 + $0xa8] sm:$0xf]
    %v2614 = vld [vmem:[%s2570 + $0xac] sm:$0xf]
    %v2615 = vld [vmem:[%s2570 + $0xb0] sm:$0xf]
    %v2616 = vld [vmem:[%s2570 + $0xb4] sm:$0xf]
    %v2617 = vld [vmem:[%s2570 + $0xb8] sm:$0xf]
    %v2618 = vld [vmem:[%s2570 + $0xbc] sm:$0xf]
    %v2619 = vld [vmem:[%s2570 + $0xc0] sm:$0xf]
    %v2620 = vld [vmem:[%s2570 + $0xc4] sm:$0xf]
    %v2621 = vld [vmem:[%s2570 + $0xc8] sm:$0xf]
    %v2622 = vld [vmem:[%s2570 + $0xcc] sm:$0xf]
    %v2623 = vld [vmem:[%s2570 + $0xd0] sm:$0xf]
    %v2624 = vld [vmem:[%s2570 + $0xd4] sm:$0xf]
    %v2625 = vld [vmem:[%s2570 + $0xd8] sm:$0xf]
    %v2626 = vld [vmem:[%s2570 + $0xdc] sm:$0xf]
    %v2627 = vld [vmem:[%s2570 + $0xe0] sm:$0xf]
    %v2628 = vld [vmem:[%s2570 + $0xe4] sm:$0xf]
    %v2629 = vld [vmem:[%s2570 + $0xe8] sm:$0xf]
    %v2630 = vld [vmem:[%s2570 + $0xec] sm:$0xf]
    %v2631 = vld [vmem:[%s2570 + $0xf0] sm:$0xf]
    %v2632 = vld [vmem:[%s2570 + $0xf4] sm:$0xf]
    %v2633 = vld [vmem:[%s2570 + $0xf8] sm:$0xf]
    %v2634 = vld [vmem:[%s2570 + $0xfc] sm:$0xf]
    %v2699 = vunpack.c.l.b16 %v2571
    %v2700 = vunpack.c.l.b16 %v2572
    %v2701 = vunpack.c.l.b16 %v2573
    %v2702 = vunpack.c.l.b16 %v2574
    %v2703 = vunpack.c.l.b16 %v2575
    %v2704 = vunpack.c.l.b16 %v2576
    %v2705 = vunpack.c.l.b16 %v2577
    %v2706 = vunpack.c.l.b16 %v2578
    %v2707 = vunpack.c.l.b16 %v2579
    %v2708 = vunpack.c.l.b16 %v2580
    %v2709 = vunpack.c.l.b16 %v2581
    %v2710 = vunpack.c.l.b16 %v2582
    %v2711 = vunpack.c.l.b16 %v2583
    %v2712 = vunpack.c.l.b16 %v2584
    %v2713 = vunpack.c.l.b16 %v2585
    %v2714 = vunpack.c.l.b16 %v2586
    %v2715 = vunpack.c.l.b16 %v2587
    %v2716 = vunpack.c.l.b16 %v2588
    %v2717 = vunpack.c.l.b16 %v2589
    %v2718 = vunpack.c.l.b16 %v2590
    %v2719 = vunpack.c.l.b16 %v2591
    %v2720 = vunpack.c.l.b16 %v2592
    %v2721 = vunpack.c.l.b16 %v2593
    %v2722 = vunpack.c.l.b16 %v2594
    %v2723 = vunpack.c.l.b16 %v2595
    %v2724 = vunpack.c.l.b16 %v2596
    %v2725 = vunpack.c.l.b16 %v2597
    %v2726 = vunpack.c.l.b16 %v2598
    %v2727 = vunpack.c.l.b16 %v2599
    %v2728 = vunpack.c.l.b16 %v2600
    %v2729 = vunpack.c.l.b16 %v2601
    %v2730 = vunpack.c.l.b16 %v2602
    %v2731 = vunpack.c.l.b16 %v2603
    %v2732 = vunpack.c.l.b16 %v2604
    %v2733 = vunpack.c.l.b16 %v2605
    %v2734 = vunpack.c.l.b16 %v2606
    %v2735 = vunpack.c.l.b16 %v2607
    %v2736 = vunpack.c.l.b16 %v2608
    %v2737 = vunpack.c.l.b16 %v2609
    %v2738 = vunpack.c.l.b16 %v2610
    %v2739 = vunpack.c.l.b16 %v2611
    %v2740 = vunpack.c.l.b16 %v2612
    %v2741 = vunpack.c.l.b16 %v2613
    %v2742 = vunpack.c.l.b16 %v2614
    %v2743 = vunpack.c.l.b16 %v2615
    %v2744 = vunpack.c.l.b16 %v2616
    %v2745 = vunpack.c.l.b16 %v2617
    %v2746 = vunpack.c.l.b16 %v2618
    %v2747 = vunpack.c.l.b16 %v2619
    %v2748 = vunpack.c.l.b16 %v2620
    %v2749 = vunpack.c.l.b16 %v2621
    %v2750 = vunpack.c.l.b16 %v2622
    %v2751 = vunpack.c.l.b16 %v2623
    %v2752 = vunpack.c.l.b16 %v2624
    %v2753 = vunpack.c.l.b16 %v2625
    %v2754 = vunpack.c.l.b16 %v2626
    %v2755 = vunpack.c.l.b16 %v2627
    %v2756 = vunpack.c.l.b16 %v2628
    %v2757 = vunpack.c.l.b16 %v2629
    %v2758 = vunpack.c.l.b16 %v2630
    %v2759 = vunpack.c.l.b16 %v2631
    %v2760 = vunpack.c.l.b16 %v2632
    %v2761 = vunpack.c.l.b16 %v2633
    %v2762 = vunpack.c.l.b16 %v2634
    %v2763 = vpack.c.b16 %v2700, %v2699
    %v2764 = vpack.c.b16 %v2702, %v2701
    %v2765 = vpack.c.b16 %v2704, %v2703
    %v2766 = vpack.c.b16 %v2706, %v2705
    %v2767 = vpack.c.b16 %v2708, %v2707
    %v2768 = vpack.c.b16 %v2710, %v2709
    %v2769 = vpack.c.b16 %v2712, %v2711
    %v2770 = vpack.c.b16 %v2714, %v2713
    %v2771 = vpack.c.b16 %v2716, %v2715
    %v2772 = vpack.c.b16 %v2718, %v2717
    %v2773 = vpack.c.b16 %v2720, %v2719
    %v2774 = vpack.c.b16 %v2722, %v2721
    %v2775 = vpack.c.b16 %v2724, %v2723
    %v2776 = vpack.c.b16 %v2726, %v2725
    %v2777 = vpack.c.b16 %v2728, %v2727
    %v2778 = vpack.c.b16 %v2730, %v2729
    %v2779 = vpack.c.b16 %v2732, %v2731
    %v2780 = vpack.c.b16 %v2734, %v2733
    %v2781 = vpack.c.b16 %v2736, %v2735
    %v2782 = vpack.c.b16 %v2738, %v2737
    %v2783 = vpack.c.b16 %v2740, %v2739
    %v2784 = vpack.c.b16 %v2742, %v2741
    %v2785 = vpack.c.b16 %v2744, %v2743
    %v2786 = vpack.c.b16 %v2746, %v2745
    %v2787 = vpack.c.b16 %v2748, %v2747
    %v2788 = vpack.c.b16 %v2750, %v2749
    %v2789 = vpack.c.b16 %v2752, %v2751
    %v2790 = vpack.c.b16 %v2754, %v2753
    %v2791 = vpack.c.b16 %v2756, %v2755
    %v2792 = vpack.c.b16 %v2758, %v2757
    %v2793 = vpack.c.b16 %v2760, %v2759
    %v2794 = vpack.c.b16 %v2762, %v2761
    %2827 = vmatprep.subr.bf16.mxu0 0
    %2828 = vmatpush1.bf16.msra.mxu0 %v2770
    %2829 = vmatprep.subr.bf16.mxu0 0
    %2830 = vmatpush1.bf16.msra.mxu0 %v2769
    %2831 = vmatprep.subr.bf16.mxu0 0
    %2832 = vmatpush1.bf16.msra.mxu0 %v2768
    %2833 = vmatprep.subr.bf16.mxu0 0
    %2834 = vmatpush1.bf16.msra.mxu0 %v2767
    %2835 = vmatprep.subr.bf16.mxu0 0
    %2836 = vmatpush1.bf16.msra.mxu0 %v2766
    %2837 = vmatprep.subr.bf16.mxu0 0
    %2838 = vmatpush1.bf16.msra.mxu0 %v2765
    %2839 = vmatprep.subr.bf16.mxu0 0
    %2840 = vmatpush1.bf16.msra.mxu0 %v2764
    %2841 = vmatprep.subr.bf16.mxu0 0
    %2842 = vmatpush1.bf16.msra.mxu0 %v2763
    %2843 = vmatprep.subr.bf16.mxu0 0
    %2844 = vmatpush2.bf16.msra.mxu0 %v2778
    %2845 = vmatprep.subr.bf16.mxu0 0
    %2846 = vmatpush2.bf16.msra.mxu0 %v2777
    %2847 = vmatprep.subr.bf16.mxu0 0
    %2848 = vmatpush2.bf16.msra.mxu0 %v2776
    %2849 = vmatprep.subr.bf16.mxu0 0
    %2850 = vmatpush2.bf16.msra.mxu0 %v2775
    %2851 = vmatprep.subr.bf16.mxu0 0
    %2852 = vmatpush2.bf16.msra.mxu0 %v2774
    %2853 = vmatprep.subr.bf16.mxu0 0
    %2854 = vmatpush2.bf16.msra.mxu0 %v2773
    %2855 = vmatprep.subr.bf16.mxu0 0
    %2856 = vmatpush2.bf16.msra.mxu0 %v2772
    %2857 = vmatprep.subr.bf16.mxu0 0
    %2858 = vmatpush2.bf16.msra.mxu0 %v2771
    %2859 = vmatprep.mubr.bf16.mxu0 %v2567
    %2860 = vmatmul.mubr.bf16.gmra.mxu0 %v2566
    %v2861 = vpop.f32.mrf.mxu0
    %v2862 = vadd.f32 0.0, %v2861
    %v2863 = vpop.f32.mrf.mxu0
    %v2864 = vpop.f32.mrf.mxu0
    %v2865 = vadd.f32 0.0, %v2864
    %v2866 = vpop.f32.mrf.mxu0
    %2867 = vdwg.mxu0
    %2868 = vmatprep.subr.bf16.mxu0 0
    %2869 = vmatpush1.bf16.msra.mxu0 %v2786
    %2870 = vmatprep.subr.bf16.mxu0 0
    %2871 = vmatpush1.bf16.msra.mxu0 %v2785
    %2872 = vmatprep.subr.bf16.mxu0 0
    %2873 = vmatpush1.bf16.msra.mxu0 %v2784
    %2874 = vmatprep.subr.bf16.mxu0 0
    %2875 = vmatpush1.bf16.msra.mxu0 %v2783
    %2876 = vmatprep.subr.bf16.mxu0 0
    %2877 = vmatpush1.bf16.msra.mxu0 %v2782
    %2878 = vmatprep.subr.bf16.mxu0 0
    %2879 = vmatpush1.bf16.msra.mxu0 %v2781
    %2880 = vmatprep.subr.bf16.mxu0 0
    %2881 = vmatpush1.bf16.msra.mxu0 %v2780
    %2882 = vmatprep.subr.bf16.mxu0 0
    %2883 = vmatpush1.bf16.msra.mxu0 %v2779
    %2884 = vmatprep.subr.bf16.mxu0 0
    %2885 = vmatpush2.bf16.msra.mxu0 %v2794
    %2886 = vmatprep.subr.bf16.mxu0 0
    %2887 = vmatpush2.bf16.msra.mxu0 %v2793
    %2888 = vmatprep.subr.bf16.mxu0 0
    %2889 = vmatpush2.bf16.msra.mxu0 %v2792
    %2890 = vmatprep.subr.bf16.mxu0 0
    %2891 = vmatpush2.bf16.msra.mxu0 %v2791
    %2892 = vmatprep.subr.bf16.mxu0 0
    %2893 = vmatpush2.bf16.msra.mxu0 %v2790
    %2894 = vmatprep.subr.bf16.mxu0 0
    %2895 = vmatpush2.bf16.msra.mxu0 %v2789
    %2896 = vmatprep.subr.bf16.mxu0 0
    %2897 = vmatpush2.bf16.msra.mxu0 %v2788
    %2898 = vmatprep.subr.bf16.mxu0 0
    %2899 = vmatpush2.bf16.msra.mxu0 %v2787
    %2900 = vmatprep.mubr.bf16.mxu0 %v2569
    %2901 = vmatmul.mubr.bf16.gmra.mxu0 %v2568
    %v2902 = vpop.f32.mrf.mxu0
    %v2903 = vadd.f32 %v2862, %v2902
    %v2904 = vpop.f32.mrf.mxu0
    %v2905 = vpop.f32.mrf.mxu0
    %v2906 = vadd.f32 %v2865, %v2905
    %v2907 = vpop.f32.mrf.mxu0
    %2908 = vdwg.mxu0
    %v2909 = vadd.f32 %v2398, %v2903
    %v2910 = vadd.f32 %v2399, %v2906
    %v2911 = vlaneseq
    %v2912 = vshrl.u32 %v2911, 7
    %v2913 = vsub.s32 7, %v2912
    %v2914 = vrot.slane %v47, %v2913
    %v2915 = vadd.f32 %v2909, %v2914
    %v2916 = vadd.f32 %v2910, %v2914
    %v2917 = vadd.f32 %v868, %v2915
    %v2918 = vadd.f32 %v869, %v2916
    %v2919 = vsel %vm65, %v2917, 0.0
    %2920 = vadd.xlane.f32.xlu0 %v2919
    %v2921 = vpop.xlane.xlu0 %2920
    %v2922 = vsel %vm829, %v2918, 0.0
    %2923 = vadd.xlane.f32.xlu0 %v2922
    %v2924 = vpop.xlane.xlu0 %2923
    %v2925 = vmul.f32 %v2921, %v833
    %v2926 = vmul.f32 %v2924, %v833
    %v2927 = vmul.f32 %v2917, %v2917
    %v2928 = vmul.f32 %v2918, %v2918
    %v2929 = vsel %vm65, %v2927, 0.0
    %2930 = vadd.xlane.f32.xlu0 %v2929
    %v2931 = vpop.xlane.xlu0 %2930
    %v2932 = vsel %vm829, %v2928, 0.0
    %2933 = vadd.xlane.f32.xlu0 %v2932
    %v2934 = vpop.xlane.xlu0 %2933
    %v2935 = vmul.f32 %v2931, %v833
    %v2936 = vmul.f32 %v2934, %v833
    %v2937 = vmul.f32 %v2925, %v2925
    %v2938 = vmul.f32 %v2926, %v2926
    %v2939 = vsub.f32 %v2935, %v2937
    %v2940 = vsub.f32 %v2936, %v2938
    %v2941 = vsub.f32 %v2917, %v2925
    %v2942 = vsub.f32 %v2918, %v2926
    %v2943 = vadd.f32 %v2939, 1e-05
    %v2944 = vadd.f32 %v2940, 1e-05
    %v2945 = vrsqrt.pop %v2943
    %v2946 = vrsqrt.pop %v2944
    %v2947 = vmul.f32 %v2941, %v2945
    %v2948 = vmul.f32 %v2942, %v2946
    %v2949 = vlaneseq
    %v2950 = vshrl.u32 %v2949, 7
    %v2951 = vsub.s32 5, %v2950
    %v2952 = vrot.slane %v47, %v2951
    %v2953 = vmul.f32 %v2947, %v2952
    %v2954 = vmul.f32 %v2948, %v2952
    %v2955 = vlaneseq
    %v2956 = vshrl.u32 %v2955, 7
    %v2957 = vsub.s32 6, %v2956
    %v2958 = vrot.slane %v47, %v2957
    %v2959 = vadd.f32 %v2953, %v2958
    %v2960 = vadd.f32 %v2954, %v2958
    %s2961 = scalar_lea.vmem %s7, 8
    %v2962 = vld [vmem:[%s2961] sm:$0xff]
    %v2963 = vpack.c.bf16 %v2960, %v2959
    %s2964 = scalar_lea.vmem %s3, 16
    %v2965 = vld [vmem:[%s2964] sm:$0xf]
    %v2966 = vld [vmem:[%s2964 + $0x4] sm:$0xf]
    %v2967 = vld [vmem:[%s2964 + $0x8] sm:$0xf]
    %v2968 = vld [vmem:[%s2964 + $0xc] sm:$0xf]
    %v2973 = vunpack.c.l.b16 %v2965
    %v2974 = vunpack.c.l.b16 %v2966
    %v2975 = vunpack.c.l.b16 %v2967
    %v2976 = vunpack.c.l.b16 %v2968
    %v2977 = vpack.c.b16 %v2974, %v2973
    %v2978 = vpack.c.b16 %v2976, %v2975
    %v2982 = vsel %vm65, %v2963, 0
    %2984 = vmatprep.subr.bf16.mxu0 0
    %2985 = vmatpush1.bf16.msra.mxu0 0
    %2986 = vmatprep.subr.bf16.mxu0 0
    %2987 = vmatpush1.bf16.msra.mxu0 0
    %2988 = vmatprep.subr.bf16.mxu0 0
    %2989 = vmatpush1.bf16.msra.mxu0 0
    %2990 = vmatprep.subr.bf16.mxu0 0
    %2991 = vmatpush1.bf16.msra.mxu0 0
    %2992 = vmatprep.subr.bf16.mxu0 0
    %2993 = vmatpush1.bf16.msra.mxu0 0
    %2994 = vmatprep.subr.bf16.mxu0 0
    %2995 = vmatpush1.bf16.msra.mxu0 0
    %2996 = vmatprep.subr.bf16.mxu0 0
    %2997 = vmatpush1.bf16.msra.mxu0 %v2978
    %2998 = vmatprep.subr.bf16.mxu0 0
    %2999 = vmatpush1.bf16.msra.mxu0 %v2977
    %3000 = vmatprep.subr.bf16.mxu0 0
    %3001 = vmatpush2.bf16.msra.mxu0 0
    %3002 = vmatprep.subr.bf16.mxu0 0
    %3003 = vmatpush2.bf16.msra.mxu0 0
    %3004 = vmatprep.subr.bf16.mxu0 0
    %3005 = vmatpush2.bf16.msra.mxu0 0
    %3006 = vmatprep.subr.bf16.mxu0 0
    %3007 = vmatpush2.bf16.msra.mxu0 0
    %3008 = vmatprep.subr.bf16.mxu0 0
    %3009 = vmatpush2.bf16.msra.mxu0 0
    %3010 = vmatprep.subr.bf16.mxu0 0
    %3011 = vmatpush2.bf16.msra.mxu0 0
    %3012 = vmatprep.subr.bf16.mxu0 0
    %3013 = vmatpush2.bf16.msra.mxu0 0
    %3014 = vmatprep.subr.bf16.mxu0 0
    %3015 = vmatpush2.bf16.msra.mxu0 0
    %3016 = vmatprep.mubr.bf16.mxu0 0
    %3017 = vmatmul.mubr.bf16.gmra.mxu0 %v2982
    %v3018 = vpop.f32.mrf.mxu0
    %v3019 = vadd.f32 0.0, %v3018
    %v3020 = vpop.f32.mrf.mxu0
    %v3021 = vpop.f32.mrf.mxu0
    %v3022 = vadd.f32 0.0, %v3021
    %v3023 = vpop.f32.mrf.mxu0
    %3024 = vdwg.mxu0
    %v3025 = vlaneseq
    %v3026 = vshrl.u32 %v3025, 7
    %v3027 = vsub.s32 0, %v3026
    %v3028 = vrot.slane %v2962, %v3027
    %v3029 = vadd.f32 %v3019, %v3028
    %v3030 = vadd.f32 %v3022, %v3028
    %v3031 = vpack.c.bf16 %v3030, %v3029
    %v3032 = vlaneseq
    %v3033 = vshrl.u32 %v3032, 7
    %v3034 = vsub.s32 1, %v3033
    %v3035 = vrot.slane %v2962, %v3034
    %3037 = vrot.lane.b32.xlu0 %v3035, 32
    %v3038 = vpop.permute.xlu0 %3037
    %v3040 = vadd.f32 %v3019, %v3038
    %v3041 = vadd.f32 %v3022, %v3038
    %v3042 = vpack.c.bf16 %v3041, %v3040
    %3043 = vxpose.xlu0.b32.start [1/16] %v2959, 128
    %3044 = vxpose.xlu0.b32.cont [2/16] %v2960, 128
    %3045 = vxpose.xlu0.b32.cont [3/16] 0.0, 128
    %3046 = vxpose.xlu0.b32.cont [4/16] 0.0, 128
    %3047 = vxpose.xlu0.b32.cont [5/16] 0.0, 128
    %3048 = vxpose.xlu0.b32.cont [6/16] 0.0, 128
    %3049 = vxpose.xlu0.b32.cont [7/16] 0.0, 128
    %3050 = vxpose.xlu0.b32.cont [8/16] 0.0, 128
    %3051 = vxpose.xlu0.b32.cont [9/16] 0.0, 128
    %3052 = vxpose.xlu0.b32.cont [10/16] 0.0, 128
    %3053 = vxpose.xlu0.b32.cont [11/16] 0.0, 128
    %3054 = vxpose.xlu0.b32.cont [12/16] 0.0, 128
    %3055 = vxpose.xlu0.b32.cont [13/16] 0.0, 128
    %3056 = vxpose.xlu0.b32.cont [14/16] 0.0, 128
    %3057 = vxpose.xlu0.b32.cont [15/16] 0.0, 128
    %3058 = vxpose.xlu0.b32.end [16/16] 0.0, 128
    %v3059 = vpop.trf.xlu0
    %v3060 = vpop.trf.xlu0
    %v3061 = vpop.trf.xlu0
    %v3062 = vpop.trf.xlu0
    %v3063 = vpop.trf.xlu0
    %v3064 = vpop.trf.xlu0
    %v3065 = vpop.trf.xlu0
    %v3066 = vpop.trf.xlu0
    %v3067 = vpop.trf.xlu0
    %v3068 = vpop.trf.xlu0
    %v3069 = vpop.trf.xlu0
    %v3070 = vpop.trf.xlu0
    %v3071 = vpop.trf.xlu0
    %v3072 = vpop.trf.xlu0
    %v3073 = vpop.trf.xlu0
    %v3074 = vpop.trf.xlu0
    %v3075 = vpack.c.bf16 %v3060, %v3059
    %v3076 = vpack.c.bf16 %v3062, %v3061
    %s3077 = scalar_lea.vmem %s4, 32
    %v3078 = vld [vmem:[%s3077] sm:$0xf]
    %v3079 = vld [vmem:[%s3077 + $0x4] sm:$0xf]
    %v3080 = vld [vmem:[%s3077 + $0x8] sm:$0xf]
    %v3081 = vld [vmem:[%s3077 + $0xc] sm:$0xf]
    %v3086 = vunpack.c.l.b16 %v3078
    %v3087 = vunpack.c.l.b16 %v3079
    %v3088 = vunpack.c.l.b16 %v3080
    %v3089 = vunpack.c.l.b16 %v3081
    %v3090 = vpack.c.b16 %v3087, %v3086
    %v3091 = vpack.c.b16 %v3089, %v3088
    %v3093 = vsel %vm65, %v3090, 0
    %v3096 = vsel %vm65, %v3091, 0
    %3098 = vmatprep.subr.bf16.mxu0 0
    %3099 = vmatpush1.bf16.msra.mxu0 0
    %3100 = vmatprep.subr.bf16.mxu0 0
    %3101 = vmatpush1.bf16.msra.mxu0 0
    %3102 = vmatprep.subr.bf16.mxu0 0
    %3103 = vmatpush1.bf16.msra.mxu0 0
    %3104 = vmatprep.subr.bf16.mxu0 0
    %3105 = vmatpush1.bf16.msra.mxu0 0
    %3106 = vmatprep.subr.bf16.mxu0 0
    %3107 = vmatpush1.bf16.msra.mxu0 0
    %3108 = vmatprep.subr.bf16.mxu0 0
    %3109 = vmatpush1.bf16.msra.mxu0 0
    %3110 = vmatprep.subr.bf16.mxu0 0
    %3111 = vmatpush1.bf16.msra.mxu0 %v3076
    %3112 = vmatprep.subr.bf16.mxu0 0
    %3113 = vmatpush1.bf16.msra.mxu0 %v3075
    %3114 = vmatprep.subr.bf16.mxu0 0
    %3115 = vmatpush2.bf16.msra.mxu0 0
    %3116 = vmatprep.subr.bf16.mxu0 0
    %3117 = vmatpush2.bf16.msra.mxu0 0
    %3118 = vmatprep.subr.bf16.mxu0 0
    %3119 = vmatpush2.bf16.msra.mxu0 0
    %3120 = vmatprep.subr.bf16.mxu0 0
    %3121 = vmatpush2.bf16.msra.mxu0 0
    %3122 = vmatprep.subr.bf16.mxu0 0
    %3123 = vmatpush2.bf16.msra.mxu0 0
    %3124 = vmatprep.subr.bf16.mxu0 0
    %3125 = vmatpush2.bf16.msra.mxu0 0
    %3126 = vmatprep.subr.bf16.mxu0 0
    %3127 = vmatpush2.bf16.msra.mxu0 0
    %3128 = vmatprep.subr.bf16.mxu0 0
    %3129 = vmatpush2.bf16.msra.mxu0 0
    %3130 = vmatprep.mubr.bf16.mxu0 0
    %3131 = vmatmul.mubr.bf16.gmra.mxu0 %v3093
    %v3132 = vpop.f32.mrf.mxu0
    %v3133 = vadd.f32 0.0, %v3132
    %v3134 = vpop.f32.mrf.mxu0
    %v3135 = vpop.f32.mrf.mxu0
    %v3136 = vadd.f32 0.0, %v3135
    %v3137 = vpop.f32.mrf.mxu0
    %3138 = vmatprep.mubr.bf16.mxu0 0
    %3139 = vmatmul.mubr.bf16.gmra.mxu0 %v3096
    %v3140 = vpop.f32.mrf.mxu0
    %v3141 = vadd.f32 0.0, %v3140
    %v3142 = vpop.f32.mrf.mxu0
    %v3143 = vpop.f32.mrf.mxu0
    %v3144 = vadd.f32 0.0, %v3143
    %v3145 = vpop.f32.mrf.mxu0
    %3146 = vdwg.mxu0
    %v3147 = vpack.c.bf16 %v3136, %v3133
    %v3148 = vpack.c.bf16 %v3144, %v3141
    %v3150 = vsel %vm233, %v3031, 0
    %v3153 = vsel %vm237, %v3147, 0
    %3155 = vmatprep.subr.bf16.mxu0 0
    %3156 = vmatpush1.bf16.msra.mxu0 0
    %3157 = vmatprep.subr.bf16.mxu0 0
    %3158 = vmatpush1.bf16.msra.mxu0 0
    %3159 = vmatprep.subr.bf16.mxu0 0
    %3160 = vmatpush1.bf16.msra.mxu0 0
    %3161 = vmatprep.subr.bf16.mxu0 0
    %3162 = vmatpush1.bf16.msra.mxu0 0
    %3163 = vmatprep.subr.bf16.mxu0 0
    %3164 = vmatpush1.bf16.msra.mxu0 0
    %3165 = vmatprep.subr.bf16.mxu0 0
    %3166 = vmatpush1.bf16.msra.mxu0 0
    %3167 = vmatprep.subr.bf16.mxu0 0
    %3168 = vmatpush1.bf16.msra.mxu0 0
    %3169 = vmatprep.subr.bf16.mxu0 0
    %3170 = vmatpush1.bf16.msra.mxu0 %v3153
    %3171 = vmatprep.subr.bf16.mxu0 0
    %3172 = vmatpush2.bf16.msra.mxu0 0
    %3173 = vmatprep.subr.bf16.mxu0 0
    %3174 = vmatpush2.bf16.msra.mxu0 0
    %3175 = vmatprep.subr.bf16.mxu0 0
    %3176 = vmatpush2.bf16.msra.mxu0 0
    %3177 = vmatprep.subr.bf16.mxu0 0
    %3178 = vmatpush2.bf16.msra.mxu0 0
    %3179 = vmatprep.subr.bf16.mxu0 0
    %3180 = vmatpush2.bf16.msra.mxu0 0
    %3181 = vmatprep.subr.bf16.mxu0 0
    %3182 = vmatpush2.bf16.msra.mxu0 0
    %3183 = vmatprep.subr.bf16.mxu0 0
    %3184 = vmatpush2.bf16.msra.mxu0 0
    %3185 = vmatprep.subr.bf16.mxu0 0
    %3186 = vmatpush2.bf16.msra.mxu0 0
    %3187 = vmatprep.mubr.bf16.mxu0 0
    %3188 = vmatmul.mubr.bf16.gmra.mxu0 %v3150
    %v3189 = vpop.f32.mrf.mxu0
    %v3190 = vadd.f32 %v43, %v3189
    %v3191 = vpop.f32.mrf.mxu0
    %v3192 = vpop.f32.mrf.mxu0
    %v3193 = vadd.f32 %v44, %v3192
    %v3194 = vpop.f32.mrf.mxu0
    %3195 = vdwg.mxu0
    %v3196 = vsel %vm282, %v3190, -inf
    %3197 = vmax.xlane.f32.xlu0 %v3196
    %v3198 = vpop.xlane.xlu0 %3197
    %v3199 = vsel %vm286, %v3193, -inf
    %3200 = vmax.xlane.f32.xlu0 %v3199
    %v3201 = vpop.xlane.xlu0 %3200
    %v3202 = vsub.f32 %v3190, %v3198
    %v3203 = vsub.f32 %v3193, %v3201
    %v3204 = vmul.f32 %v3202, 1.442695
    %v3205 = vpow.pop %v3204
    %v3206 = vmul.f32 %v3203, 1.442695
    %v3207 = vpow.pop %v3206
    %v3208 = vsel %vm282, %v3205, 0.0
    %3209 = vadd.xlane.f32.xlu0 %v3208
    %v3210 = vpop.xlane.xlu0 %3209
    %v3211 = vsel %vm286, %v3207, 0.0
    %3212 = vadd.xlane.f32.xlu0 %v3211
    %v3213 = vpop.xlane.xlu0 %3212
    %v3214 = vrcp.pop %v3210
    %v3215 = vrcp.pop %v3213
    %v3216 = vpack.c.bf16 %v3207, %v3205
    %3218 = vrot.lane.b32.xlu0 %v3042, 96
    %v3219 = vpop.permute.xlu0 %3218
    %v3221 = vsel %vm282, %v3216, 0
    %v3224 = vsel %vm311, %v3219, 0
    %3226 = vmatprep.subr.bf16.mxu0 0
    %3227 = vmatpush1.bf16.msra.mxu0 0
    %3228 = vmatprep.subr.bf16.mxu0 0
    %3229 = vmatpush1.bf16.msra.mxu0 0
    %3230 = vmatprep.subr.bf16.mxu0 0
    %3231 = vmatpush1.bf16.msra.mxu0 0
    %3232 = vmatprep.subr.bf16.mxu0 0
    %3233 = vmatpush1.bf16.msra.mxu0 0
    %3234 = vmatprep.subr.bf16.mxu0 0
    %3235 = vmatpush1.bf16.msra.mxu0 0
    %3236 = vmatprep.subr.bf16.mxu0 0
    %3237 = vmatpush1.bf16.msra.mxu0 0
    %3238 = vmatprep.subr.bf16.mxu0 0
    %3239 = vmatpush1.bf16.msra.mxu0 0
    %3240 = vmatprep.subr.bf16.mxu0 0
    %3241 = vmatpush1.bf16.msra.mxu0 %v3224
    %3242 = vmatprep.subr.bf16.mxu0 0
    %3243 = vmatpush2.bf16.msra.mxu0 0
    %3244 = vmatprep.subr.bf16.mxu0 0
    %3245 = vmatpush2.bf16.msra.mxu0 0
    %3246 = vmatprep.subr.bf16.mxu0 0
    %3247 = vmatpush2.bf16.msra.mxu0 0
    %3248 = vmatprep.subr.bf16.mxu0 0
    %3249 = vmatpush2.bf16.msra.mxu0 0
    %3250 = vmatprep.subr.bf16.mxu0 0
    %3251 = vmatpush2.bf16.msra.mxu0 0
    %3252 = vmatprep.subr.bf16.mxu0 0
    %3253 = vmatpush2.bf16.msra.mxu0 0
    %3254 = vmatprep.subr.bf16.mxu0 0
    %3255 = vmatpush2.bf16.msra.mxu0 0
    %3256 = vmatprep.subr.bf16.mxu0 0
    %3257 = vmatpush2.bf16.msra.mxu0 0
    %3258 = vmatprep.mubr.bf16.mxu0 0
    %3259 = vmatmul.mubr.bf16.gmra.mxu0 %v3221
    %v3260 = vpop.f32.mrf.mxu0
    %v3261 = vadd.f32 0.0, %v3260
    %v3262 = vpop.f32.mrf.mxu0
    %v3263 = vpop.f32.mrf.mxu0
    %v3264 = vadd.f32 0.0, %v3263
    %v3265 = vpop.f32.mrf.mxu0
    %3266 = vdwg.mxu0
    %v3267 = vmul.f32 %v3261, %v3214
    %v3268 = vmul.f32 %v3264, %v3215
    %3270 = vrot.lane.b32.xlu0 %v3031, 120
    %v3271 = vpop.permute.xlu0 %3270
    %v3273 = vrot.slane %v3147, 4
    %v3275 = vsel %vm233, %v3271, 0
    %v3278 = vsel %vm237, %v3273, 0
    %3280 = vmatprep.subr.bf16.mxu0 0
    %3281 = vmatpush1.bf16.msra.mxu0 0
    %3282 = vmatprep.subr.bf16.mxu0 0
    %3283 = vmatpush1.bf16.msra.mxu0 0
    %3284 = vmatprep.subr.bf16.mxu0 0
    %3285 = vmatpush1.bf16.msra.mxu0 0
    %3286 = vmatprep.subr.bf16.mxu0 0
    %3287 = vmatpush1.bf16.msra.mxu0 0
    %3288 = vmatprep.subr.bf16.mxu0 0
    %3289 = vmatpush1.bf16.msra.mxu0 0
    %3290 = vmatprep.subr.bf16.mxu0 0
    %3291 = vmatpush1.bf16.msra.mxu0 0
    %3292 = vmatprep.subr.bf16.mxu0 0
    %3293 = vmatpush1.bf16.msra.mxu0 0
    %3294 = vmatprep.subr.bf16.mxu0 0
    %3295 = vmatpush1.bf16.msra.mxu0 %v3278
    %3296 = vmatprep.subr.bf16.mxu0 0
    %3297 = vmatpush2.bf16.msra.mxu0 0
    %3298 = vmatprep.subr.bf16.mxu0 0
    %3299 = vmatpush2.bf16.msra.mxu0 0
    %3300 = vmatprep.subr.bf16.mxu0 0
    %3301 = vmatpush2.bf16.msra.mxu0 0
    %3302 = vmatprep.subr.bf16.mxu0 0
    %3303 = vmatpush2.bf16.msra.mxu0 0
    %3304 = vmatprep.subr.bf16.mxu0 0
    %3305 = vmatpush2.bf16.msra.mxu0 0
    %3306 = vmatprep.subr.bf16.mxu0 0
    %3307 = vmatpush2.bf16.msra.mxu0 0
    %3308 = vmatprep.subr.bf16.mxu0 0
    %3309 = vmatpush2.bf16.msra.mxu0 0
    %3310 = vmatprep.subr.bf16.mxu0 0
    %3311 = vmatpush2.bf16.msra.mxu0 0
    %3312 = vmatprep.mubr.bf16.mxu0 0
    %3313 = vmatmul.mubr.bf16.gmra.mxu0 %v3275
    %v3314 = vpop.f32.mrf.mxu0
    %v3315 = vadd.f32 %v43, %v3314
    %v3316 = vpop.f32.mrf.mxu0
    %v3317 = vpop.f32.mrf.mxu0
    %v3318 = vadd.f32 %v44, %v3317
    %v3319 = vpop.f32.mrf.mxu0
    %3320 = vdwg.mxu0
    %v3321 = vsel %vm282, %v3315, -inf
    %3322 = vmax.xlane.f32.xlu0 %v3321
    %v3323 = vpop.xlane.xlu0 %3322
    %v3324 = vsel %vm286, %v3318, -inf
    %3325 = vmax.xlane.f32.xlu0 %v3324
    %v3326 = vpop.xlane.xlu0 %3325
    %v3327 = vsub.f32 %v3315, %v3323
    %v3328 = vsub.f32 %v3318, %v3326
    %v3329 = vmul.f32 %v3327, 1.442695
    %v3330 = vpow.pop %v3329
    %v3331 = vmul.f32 %v3328, 1.442695
    %v3332 = vpow.pop %v3331
    %v3333 = vsel %vm282, %v3330, 0.0
    %3334 = vadd.xlane.f32.xlu0 %v3333
    %v3335 = vpop.xlane.xlu0 %3334
    %v3336 = vsel %vm286, %v3332, 0.0
    %3337 = vadd.xlane.f32.xlu0 %v3336
    %v3338 = vpop.xlane.xlu0 %3337
    %v3339 = vrcp.pop %v3335
    %v3340 = vrcp.pop %v3338
    %v3341 = vpack.c.bf16 %v3332, %v3330
    %3342 = vrot.lane.b32.xlu0 %v3042, 88
    %v3343 = vpop.permute.xlu0 %3342
    %v3345 = vsel %vm282, %v3341, 0
    %v3348 = vsel %vm311, %v3343, 0
    %3350 = vmatprep.subr.bf16.mxu0 0
    %3351 = vmatpush1.bf16.msra.mxu0 0
    %3352 = vmatprep.subr.bf16.mxu0 0
    %3353 = vmatpush1.bf16.msra.mxu0 0
    %3354 = vmatprep.subr.bf16.mxu0 0
    %3355 = vmatpush1.bf16.msra.mxu0 0
    %3356 = vmatprep.subr.bf16.mxu0 0
    %3357 = vmatpush1.bf16.msra.mxu0 0
    %3358 = vmatprep.subr.bf16.mxu0 0
    %3359 = vmatpush1.bf16.msra.mxu0 0
    %3360 = vmatprep.subr.bf16.mxu0 0
    %3361 = vmatpush1.bf16.msra.mxu0 0
    %3362 = vmatprep.subr.bf16.mxu0 0
    %3363 = vmatpush1.bf16.msra.mxu0 0
    %3364 = vmatprep.subr.bf16.mxu0 0
    %3365 = vmatpush1.bf16.msra.mxu0 %v3348
    %3366 = vmatprep.subr.bf16.mxu0 0
    %3367 = vmatpush2.bf16.msra.mxu0 0
    %3368 = vmatprep.subr.bf16.mxu0 0
    %3369 = vmatpush2.bf16.msra.mxu0 0
    %3370 = vmatprep.subr.bf16.mxu0 0
    %3371 = vmatpush2.bf16.msra.mxu0 0
    %3372 = vmatprep.subr.bf16.mxu0 0
    %3373 = vmatpush2.bf16.msra.mxu0 0
    %3374 = vmatprep.subr.bf16.mxu0 0
    %3375 = vmatpush2.bf16.msra.mxu0 0
    %3376 = vmatprep.subr.bf16.mxu0 0
    %3377 = vmatpush2.bf16.msra.mxu0 0
    %3378 = vmatprep.subr.bf16.mxu0 0
    %3379 = vmatpush2.bf16.msra.mxu0 0
    %3380 = vmatprep.subr.bf16.mxu0 0
    %3381 = vmatpush2.bf16.msra.mxu0 0
    %3382 = vmatprep.mubr.bf16.mxu0 0
    %3383 = vmatmul.mubr.bf16.gmra.mxu0 %v3345
    %v3384 = vpop.f32.mrf.mxu0
    %v3385 = vadd.f32 0.0, %v3384
    %v3386 = vpop.f32.mrf.mxu0
    %v3387 = vpop.f32.mrf.mxu0
    %v3388 = vadd.f32 0.0, %v3387
    %v3389 = vpop.f32.mrf.mxu0
    %3390 = vdwg.mxu0
    %v3391 = vmul.f32 %v3385, %v3339
    %v3392 = vmul.f32 %v3388, %v3340
    %3393 = vrot.lane.b32.xlu0 %v3031, 112
    %v3394 = vpop.permute.xlu0 %3393
    %v3396 = vsel %vm233, %v3394, 0
    %v3399 = vsel %vm237, %v3148, 0
    %3401 = vmatprep.subr.bf16.mxu0 0
    %3402 = vmatpush1.bf16.msra.mxu0 0
    %3403 = vmatprep.subr.bf16.mxu0 0
    %3404 = vmatpush1.bf16.msra.mxu0 0
    %3405 = vmatprep.subr.bf16.mxu0 0
    %3406 = vmatpush1.bf16.msra.mxu0 0
    %3407 = vmatprep.subr.bf16.mxu0 0
    %3408 = vmatpush1.bf16.msra.mxu0 0
    %3409 = vmatprep.subr.bf16.mxu0 0
    %3410 = vmatpush1.bf16.msra.mxu0 0
    %3411 = vmatprep.subr.bf16.mxu0 0
    %3412 = vmatpush1.bf16.msra.mxu0 0
    %3413 = vmatprep.subr.bf16.mxu0 0
    %3414 = vmatpush1.bf16.msra.mxu0 0
    %3415 = vmatprep.subr.bf16.mxu0 0
    %3416 = vmatpush1.bf16.msra.mxu0 %v3399
    %3417 = vmatprep.subr.bf16.mxu0 0
    %3418 = vmatpush2.bf16.msra.mxu0 0
    %3419 = vmatprep.subr.bf16.mxu0 0
    %3420 = vmatpush2.bf16.msra.mxu0 0
    %3421 = vmatprep.subr.bf16.mxu0 0
    %3422 = vmatpush2.bf16.msra.mxu0 0
    %3423 = vmatprep.subr.bf16.mxu0 0
    %3424 = vmatpush2.bf16.msra.mxu0 0
    %3425 = vmatprep.subr.bf16.mxu0 0
    %3426 = vmatpush2.bf16.msra.mxu0 0
    %3427 = vmatprep.subr.bf16.mxu0 0
    %3428 = vmatpush2.bf16.msra.mxu0 0
    %3429 = vmatprep.subr.bf16.mxu0 0
    %3430 = vmatpush2.bf16.msra.mxu0 0
    %3431 = vmatprep.subr.bf16.mxu0 0
    %3432 = vmatpush2.bf16.msra.mxu0 0
    %3433 = vmatprep.mubr.bf16.mxu0 0
    %3434 = vmatmul.mubr.bf16.gmra.mxu0 %v3396
    %v3435 = vpop.f32.mrf.mxu0
    %v3436 = vadd.f32 %v43, %v3435
    %v3437 = vpop.f32.mrf.mxu0
    %v3438 = vpop.f32.mrf.mxu0
    %v3439 = vadd.f32 %v44, %v3438
    %v3440 = vpop.f32.mrf.mxu0
    %3441 = vdwg.mxu0
    %v3442 = vsel %vm282, %v3436, -inf
    %3443 = vmax.xlane.f32.xlu0 %v3442
    %v3444 = vpop.xlane.xlu0 %3443
    %v3445 = vsel %vm286, %v3439, -inf
    %3446 = vmax.xlane.f32.xlu0 %v3445
    %v3447 = vpop.xlane.xlu0 %3446
    %v3448 = vsub.f32 %v3436, %v3444
    %v3449 = vsub.f32 %v3439, %v3447
    %v3450 = vmul.f32 %v3448, 1.442695
    %v3451 = vpow.pop %v3450
    %v3452 = vmul.f32 %v3449, 1.442695
    %v3453 = vpow.pop %v3452
    %v3454 = vsel %vm282, %v3451, 0.0
    %3455 = vadd.xlane.f32.xlu0 %v3454
    %v3456 = vpop.xlane.xlu0 %3455
    %v3457 = vsel %vm286, %v3453, 0.0
    %3458 = vadd.xlane.f32.xlu0 %v3457
    %v3459 = vpop.xlane.xlu0 %3458
    %v3460 = vrcp.pop %v3456
    %v3461 = vrcp.pop %v3459
    %v3462 = vpack.c.bf16 %v3453, %v3451
    %3463 = vrot.lane.b32.xlu0 %v3042, 80
    %v3464 = vpop.permute.xlu0 %3463
    %v3466 = vsel %vm282, %v3462, 0
    %v3469 = vsel %vm311, %v3464, 0
    %3471 = vmatprep.subr.bf16.mxu0 0
    %3472 = vmatpush1.bf16.msra.mxu0 0
    %3473 = vmatprep.subr.bf16.mxu0 0
    %3474 = vmatpush1.bf16.msra.mxu0 0
    %3475 = vmatprep.subr.bf16.mxu0 0
    %3476 = vmatpush1.bf16.msra.mxu0 0
    %3477 = vmatprep.subr.bf16.mxu0 0
    %3478 = vmatpush1.bf16.msra.mxu0 0
    %3479 = vmatprep.subr.bf16.mxu0 0
    %3480 = vmatpush1.bf16.msra.mxu0 0
    %3481 = vmatprep.subr.bf16.mxu0 0
    %3482 = vmatpush1.bf16.msra.mxu0 0
    %3483 = vmatprep.subr.bf16.mxu0 0
    %3484 = vmatpush1.bf16.msra.mxu0 0
    %3485 = vmatprep.subr.bf16.mxu0 0
    %3486 = vmatpush1.bf16.msra.mxu0 %v3469
    %3487 = vmatprep.subr.bf16.mxu0 0
    %3488 = vmatpush2.bf16.msra.mxu0 0
    %3489 = vmatprep.subr.bf16.mxu0 0
    %3490 = vmatpush2.bf16.msra.mxu0 0
    %3491 = vmatprep.subr.bf16.mxu0 0
    %3492 = vmatpush2.bf16.msra.mxu0 0
    %3493 = vmatprep.subr.bf16.mxu0 0
    %3494 = vmatpush2.bf16.msra.mxu0 0
    %3495 = vmatprep.subr.bf16.mxu0 0
    %3496 = vmatpush2.bf16.msra.mxu0 0
    %3497 = vmatprep.subr.bf16.mxu0 0
    %3498 = vmatpush2.bf16.msra.mxu0 0
    %3499 = vmatprep.subr.bf16.mxu0 0
    %3500 = vmatpush2.bf16.msra.mxu0 0
    %3501 = vmatprep.subr.bf16.mxu0 0
    %3502 = vmatpush2.bf16.msra.mxu0 0
    %3503 = vmatprep.mubr.bf16.mxu0 0
    %3504 = vmatmul.mubr.bf16.gmra.mxu0 %v3466
    %v3505 = vpop.f32.mrf.mxu0
    %v3506 = vadd.f32 0.0, %v3505
    %v3507 = vpop.f32.mrf.mxu0
    %v3508 = vpop.f32.mrf.mxu0
    %v3509 = vadd.f32 0.0, %v3508
    %v3510 = vpop.f32.mrf.mxu0
    %3511 = vdwg.mxu0
    %v3512 = vmul.f32 %v3506, %v3460
    %v3513 = vmul.f32 %v3509, %v3461
    %3514 = vrot.lane.b32.xlu0 %v3031, 104
    %v3515 = vpop.permute.xlu0 %3514
    %v3517 = vrot.slane %v3148, 4
    %v3519 = vsel %vm233, %v3515, 0
    %v3522 = vsel %vm237, %v3517, 0
    %3524 = vmatprep.subr.bf16.mxu0 0
    %3525 = vmatpush1.bf16.msra.mxu0 0
    %3526 = vmatprep.subr.bf16.mxu0 0
    %3527 = vmatpush1.bf16.msra.mxu0 0
    %3528 = vmatprep.subr.bf16.mxu0 0
    %3529 = vmatpush1.bf16.msra.mxu0 0
    %3530 = vmatprep.subr.bf16.mxu0 0
    %3531 = vmatpush1.bf16.msra.mxu0 0
    %3532 = vmatprep.subr.bf16.mxu0 0
    %3533 = vmatpush1.bf16.msra.mxu0 0
    %3534 = vmatprep.subr.bf16.mxu0 0
    %3535 = vmatpush1.bf16.msra.mxu0 0
    %3536 = vmatprep.subr.bf16.mxu0 0
    %3537 = vmatpush1.bf16.msra.mxu0 0
    %3538 = vmatprep.subr.bf16.mxu0 0
    %3539 = vmatpush1.bf16.msra.mxu0 %v3522
    %3540 = vmatprep.subr.bf16.mxu0 0
    %3541 = vmatpush2.bf16.msra.mxu0 0
    %3542 = vmatprep.subr.bf16.mxu0 0
    %3543 = vmatpush2.bf16.msra.mxu0 0
    %3544 = vmatprep.subr.bf16.mxu0 0
    %3545 = vmatpush2.bf16.msra.mxu0 0
    %3546 = vmatprep.subr.bf16.mxu0 0
    %3547 = vmatpush2.bf16.msra.mxu0 0
    %3548 = vmatprep.subr.bf16.mxu0 0
    %3549 = vmatpush2.bf16.msra.mxu0 0
    %3550 = vmatprep.subr.bf16.mxu0 0
    %3551 = vmatpush2.bf16.msra.mxu0 0
    %3552 = vmatprep.subr.bf16.mxu0 0
    %3553 = vmatpush2.bf16.msra.mxu0 0
    %3554 = vmatprep.subr.bf16.mxu0 0
    %3555 = vmatpush2.bf16.msra.mxu0 0
    %3556 = vmatprep.mubr.bf16.mxu0 0
    %3557 = vmatmul.mubr.bf16.gmra.mxu0 %v3519
    %v3558 = vpop.f32.mrf.mxu0
    %v3559 = vadd.f32 %v43, %v3558
    %v3560 = vpop.f32.mrf.mxu0
    %v3561 = vpop.f32.mrf.mxu0
    %v3562 = vadd.f32 %v44, %v3561
    %v3563 = vpop.f32.mrf.mxu0
    %3564 = vdwg.mxu0
    %v3565 = vsel %vm282, %v3559, -inf
    %3566 = vmax.xlane.f32.xlu0 %v3565
    %v3567 = vpop.xlane.xlu0 %3566
    %v3568 = vsel %vm286, %v3562, -inf
    %3569 = vmax.xlane.f32.xlu0 %v3568
    %v3570 = vpop.xlane.xlu0 %3569
    %v3571 = vsub.f32 %v3559, %v3567
    %v3572 = vsub.f32 %v3562, %v3570
    %v3573 = vmul.f32 %v3571, 1.442695
    %v3574 = vpow.pop %v3573
    %v3575 = vmul.f32 %v3572, 1.442695
    %v3576 = vpow.pop %v3575
    %v3577 = vsel %vm282, %v3574, 0.0
    %3578 = vadd.xlane.f32.xlu0 %v3577
    %v3579 = vpop.xlane.xlu0 %3578
    %v3580 = vsel %vm286, %v3576, 0.0
    %3581 = vadd.xlane.f32.xlu0 %v3580
    %v3582 = vpop.xlane.xlu0 %3581
    %v3583 = vrcp.pop %v3579
    %v3584 = vrcp.pop %v3582
    %v3585 = vpack.c.bf16 %v3576, %v3574
    %3586 = vrot.lane.b32.xlu0 %v3042, 72
    %v3587 = vpop.permute.xlu0 %3586
    %v3589 = vsel %vm282, %v3585, 0
    %v3592 = vsel %vm311, %v3587, 0
    %3594 = vmatprep.subr.bf16.mxu0 0
    %3595 = vmatpush1.bf16.msra.mxu0 0
    %3596 = vmatprep.subr.bf16.mxu0 0
    %3597 = vmatpush1.bf16.msra.mxu0 0
    %3598 = vmatprep.subr.bf16.mxu0 0
    %3599 = vmatpush1.bf16.msra.mxu0 0
    %3600 = vmatprep.subr.bf16.mxu0 0
    %3601 = vmatpush1.bf16.msra.mxu0 0
    %3602 = vmatprep.subr.bf16.mxu0 0
    %3603 = vmatpush1.bf16.msra.mxu0 0
    %3604 = vmatprep.subr.bf16.mxu0 0
    %3605 = vmatpush1.bf16.msra.mxu0 0
    %3606 = vmatprep.subr.bf16.mxu0 0
    %3607 = vmatpush1.bf16.msra.mxu0 0
    %3608 = vmatprep.subr.bf16.mxu0 0
    %3609 = vmatpush1.bf16.msra.mxu0 %v3592
    %3610 = vmatprep.subr.bf16.mxu0 0
    %3611 = vmatpush2.bf16.msra.mxu0 0
    %3612 = vmatprep.subr.bf16.mxu0 0
    %3613 = vmatpush2.bf16.msra.mxu0 0
    %3614 = vmatprep.subr.bf16.mxu0 0
    %3615 = vmatpush2.bf16.msra.mxu0 0
    %3616 = vmatprep.subr.bf16.mxu0 0
    %3617 = vmatpush2.bf16.msra.mxu0 0
    %3618 = vmatprep.subr.bf16.mxu0 0
    %3619 = vmatpush2.bf16.msra.mxu0 0
    %3620 = vmatprep.subr.bf16.mxu0 0
    %3621 = vmatpush2.bf16.msra.mxu0 0
    %3622 = vmatprep.subr.bf16.mxu0 0
    %3623 = vmatpush2.bf16.msra.mxu0 0
    %3624 = vmatprep.subr.bf16.mxu0 0
    %3625 = vmatpush2.bf16.msra.mxu0 0
    %3626 = vmatprep.mubr.bf16.mxu0 0
    %3627 = vmatmul.mubr.bf16.gmra.mxu0 %v3589
    %v3628 = vpop.f32.mrf.mxu0
    %v3629 = vadd.f32 0.0, %v3628
    %v3630 = vpop.f32.mrf.mxu0
    %v3631 = vpop.f32.mrf.mxu0
    %v3632 = vadd.f32 0.0, %v3631
    %v3633 = vpop.f32.mrf.mxu0
    %3634 = vdwg.mxu0
    %v3635 = vmul.f32 %v3629, %v3583
    %v3636 = vmul.f32 %v3632, %v3584
    %3639 = vrot.lane.b32.xlu0 %v3391, 8
    %v3640 = vpop.permute.xlu0 %3639
    %3641 = vrot.lane.b32.xlu0 %v3392, 8
    %v3642 = vpop.permute.xlu0 %3641
    %3647 = vrot.lane.b32.xlu0 %v3512, 16
    %v3648 = vpop.permute.xlu0 %3647
    %3649 = vrot.lane.b32.xlu0 %v3513, 16
    %v3650 = vpop.permute.xlu0 %3649
    %3655 = vrot.lane.b32.xlu0 %v3635, 24
    %v3656 = vpop.permute.xlu0 %3655
    %3657 = vrot.lane.b32.xlu0 %v3636, 24
    %v3658 = vpop.permute.xlu0 %3657
    %v3661 = vsel %vm233, %v3267, %v3640
    %v3662 = vsel %vm233, %v3268, %v3642
    %v3663 = vsel %vm752, %v3661, %v3648
    %v3664 = vsel %vm752, %v3662, %v3650
    %v3665 = vsel %vm755, %v3663, %v3656
    %v3666 = vsel %vm755, %v3664, %v3658
    %v3667 = vpack.c.bf16 %v3666, %v3665
    %s3668 = scalar_lea.vmem %s4, 48
    %v3669 = vld [vmem:[%s3668] sm:$0xf]
    %v3670 = vld [vmem:[%s3668 + $0x4] sm:$0xf]
    %v3671 = vld [vmem:[%s3668 + $0x8] sm:$0xf]
    %v3672 = vld [vmem:[%s3668 + $0xc] sm:$0xf]
    %v3673 = vlaneseq
    %v3674 = vshrl.u32 %v3673, 7
    %v3675 = vsub.s32 2, %v3674
    %v3676 = vrot.slane %v2962, %v3675
    %v3681 = vunpack.c.l.b16 %v3669
    %v3682 = vunpack.c.l.b16 %v3670
    %v3683 = vunpack.c.l.b16 %v3671
    %v3684 = vunpack.c.l.b16 %v3672
    %v3685 = vpack.c.b16 %v3682, %v3681
    %v3686 = vpack.c.b16 %v3684, %v3683
    %v3690 = vsel %vm65, %v3667, 0
    %3692 = vmatprep.subr.bf16.mxu0 0
    %3693 = vmatpush1.bf16.msra.mxu0 0
    %3694 = vmatprep.subr.bf16.mxu0 0
    %3695 = vmatpush1.bf16.msra.mxu0 0
    %3696 = vmatprep.subr.bf16.mxu0 0
    %3697 = vmatpush1.bf16.msra.mxu0 0
    %3698 = vmatprep.subr.bf16.mxu0 0
    %3699 = vmatpush1.bf16.msra.mxu0 0
    %3700 = vmatprep.subr.bf16.mxu0 0
    %3701 = vmatpush1.bf16.msra.mxu0 0
    %3702 = vmatprep.subr.bf16.mxu0 0
    %3703 = vmatpush1.bf16.msra.mxu0 0
    %3704 = vmatprep.subr.bf16.mxu0 0
    %3705 = vmatpush1.bf16.msra.mxu0 %v3686
    %3706 = vmatprep.subr.bf16.mxu0 0
    %3707 = vmatpush1.bf16.msra.mxu0 %v3685
    %3708 = vmatprep.subr.bf16.mxu0 0
    %3709 = vmatpush2.bf16.msra.mxu0 0
    %3710 = vmatprep.subr.bf16.mxu0 0
    %3711 = vmatpush2.bf16.msra.mxu0 0
    %3712 = vmatprep.subr.bf16.mxu0 0
    %3713 = vmatpush2.bf16.msra.mxu0 0
    %3714 = vmatprep.subr.bf16.mxu0 0
    %3715 = vmatpush2.bf16.msra.mxu0 0
    %3716 = vmatprep.subr.bf16.mxu0 0
    %3717 = vmatpush2.bf16.msra.mxu0 0
    %3718 = vmatprep.subr.bf16.mxu0 0
    %3719 = vmatpush2.bf16.msra.mxu0 0
    %3720 = vmatprep.subr.bf16.mxu0 0
    %3721 = vmatpush2.bf16.msra.mxu0 0
    %3722 = vmatprep.subr.bf16.mxu0 0
    %3723 = vmatpush2.bf16.msra.mxu0 0
    %3724 = vmatprep.mubr.bf16.mxu0 0
    %3725 = vmatmul.mubr.bf16.gmra.mxu0 %v3690
    %v3726 = vpop.f32.mrf.mxu0
    %v3727 = vadd.f32 %v3676, %v3726
    %v3728 = vpop.f32.mrf.mxu0
    %v3729 = vpop.f32.mrf.mxu0
    %v3730 = vadd.f32 %v3676, %v3729
    %v3731 = vpop.f32.mrf.mxu0
    %3732 = vdwg.mxu0
    %v3733 = vadd.f32 %v2959, %v3727
    %v3734 = vadd.f32 %v2960, %v3730
    %v3735 = vsel %vm65, %v3733, 0.0
    %3736 = vadd.xlane.f32.xlu0 %v3735
    %v3737 = vpop.xlane.xlu0 %3736
    %v3738 = vsel %vm829, %v3734, 0.0
    %3739 = vadd.xlane.f32.xlu0 %v3738
    %v3740 = vpop.xlane.xlu0 %3739
    %v3741 = vmul.f32 %v3737, %v833
    %v3742 = vmul.f32 %v3740, %v833
    %v3743 = vmul.f32 %v3733, %v3733
    %v3744 = vmul.f32 %v3734, %v3734
    %v3745 = vsel %vm65, %v3743, 0.0
    %3746 = vadd.xlane.f32.xlu0 %v3745
    %v3747 = vpop.xlane.xlu0 %3746
    %v3748 = vsel %vm829, %v3744, 0.0
    %3749 = vadd.xlane.f32.xlu0 %v3748
    %v3750 = vpop.xlane.xlu0 %3749
    %v3751 = vmul.f32 %v3747, %v833
    %v3752 = vmul.f32 %v3750, %v833
    %v3753 = vmul.f32 %v3741, %v3741
    %v3754 = vmul.f32 %v3742, %v3742
    %v3755 = vsub.f32 %v3751, %v3753
    %v3756 = vsub.f32 %v3752, %v3754
    %v3757 = vsub.f32 %v3733, %v3741
    %v3758 = vsub.f32 %v3734, %v3742
    %v3759 = vadd.f32 %v3755, 1e-05
    %v3760 = vadd.f32 %v3756, 1e-05
    %v3761 = vrsqrt.pop %v3759
    %v3762 = vrsqrt.pop %v3760
    %v3763 = vmul.f32 %v3757, %v3761
    %v3764 = vmul.f32 %v3758, %v3762
    %v3765 = vlaneseq
    %v3766 = vshrl.u32 %v3765, 7
    %v3767 = vsub.s32 3, %v3766
    %v3768 = vrot.slane %v2962, %v3767
    %v3769 = vmul.f32 %v3763, %v3768
    %v3770 = vmul.f32 %v3764, %v3768
    %v3771 = vlaneseq
    %v3772 = vshrl.u32 %v3771, 7
    %v3773 = vsub.s32 4, %v3772
    %v3774 = vrot.slane %v2962, %v3773
    %v3775 = vadd.f32 %v3769, %v3774
    %v3776 = vadd.f32 %v3770, %v3774
    %v3777 = vpack.c.bf16 %v3776, %v3775
    %s3778 = scalar_lea.vmem %s5, 256
    %v3779 = vld [vmem:[%s3778] sm:$0xff]
    %v3780 = vld [vmem:[%s3778 + $0x8] sm:$0xff]
    %v3781 = vld [vmem:[%s3778 + $0x10] sm:$0xff]
    %v3782 = vld [vmem:[%s3778 + $0x18] sm:$0xff]
    %v3783 = vld [vmem:[%s3778 + $0x20] sm:$0xff]
    %v3784 = vld [vmem:[%s3778 + $0x28] sm:$0xff]
    %v3785 = vld [vmem:[%s3778 + $0x30] sm:$0xff]
    %v3786 = vld [vmem:[%s3778 + $0x38] sm:$0xff]
    %s3787 = scalar_lea.vmem %s8, 16
    %v3788 = vld [vmem:[%s3787] sm:$0xf]
    %v3790 = vlaneseq
    %v3791 = vshrl.u32 %v3790, 7
    %v3792 = vsub.s32 0, %v3791
    %v3793 = vrot.slane %v3788, %v3792
    %v3794 = vlaneseq
    %v3795 = vshrl.u32 %v3794, 7
    %v3796 = vsub.s32 1, %v3795
    %v3797 = vrot.slane %v3788, %v3796
    %v3798 = vlaneseq
    %v3799 = vshrl.u32 %v3798, 7
    %v3800 = vsub.s32 2, %v3799
    %v3801 = vrot.slane %v3788, %v3800
    %v3802 = vlaneseq
    %v3803 = vshrl.u32 %v3802, 7
    %v3804 = vsub.s32 3, %v3803
    %v3805 = vrot.slane %v3788, %v3804
    %v3818 = vunpack.c.l.b16 %v3779
    %v3819 = vunpack.c.h.b16 %v3779
    %v3820 = vunpack.c.l.b16 %v3780
    %v3821 = vunpack.c.h.b16 %v3780
    %v3822 = vunpack.c.l.b16 %v3781
    %v3823 = vunpack.c.h.b16 %v3781
    %v3824 = vunpack.c.l.b16 %v3782
    %v3825 = vunpack.c.h.b16 %v3782
    %v3826 = vunpack.c.l.b16 %v3783
    %v3827 = vunpack.c.h.b16 %v3783
    %v3828 = vunpack.c.l.b16 %v3784
    %v3829 = vunpack.c.h.b16 %v3784
    %v3830 = vunpack.c.l.b16 %v3785
    %v3831 = vunpack.c.h.b16 %v3785
    %v3832 = vunpack.c.l.b16 %v3786
    %v3833 = vunpack.c.h.b16 %v3786
    %v3834 = vpack.c.b16 %v3822, %v3818
    %v3835 = vpack.c.b16 %v3823, %v3819
    %v3836 = vpack.c.b16 %v3824, %v3820
    %v3837 = vpack.c.b16 %v3825, %v3821
    %v3838 = vpack.c.b16 %v3830, %v3826
    %v3839 = vpack.c.b16 %v3831, %v3827
    %v3840 = vpack.c.b16 %v3832, %v3828
    %v3841 = vpack.c.b16 %v3833, %v3829
    %v3851 = vsel %vm65, %v3777, 0
    %3853 = vmatprep.subr.bf16.mxu0 0
    %3854 = vmatpush1.bf16.msra.mxu0 0
    %3855 = vmatprep.subr.bf16.mxu0 0
    %3856 = vmatpush1.bf16.msra.mxu0 0
    %3857 = vmatprep.subr.bf16.mxu0 0
    %3858 = vmatpush1.bf16.msra.mxu0 0
    %3859 = vmatprep.subr.bf16.mxu0 0
    %3860 = vmatpush1.bf16.msra.mxu0 0
    %3861 = vmatprep.subr.bf16.mxu0 0
    %3862 = vmatpush1.bf16.msra.mxu0 0
    %3863 = vmatprep.subr.bf16.mxu0 0
    %3864 = vmatpush1.bf16.msra.mxu0 0
    %3865 = vmatprep.subr.bf16.mxu0 %v3839
    %3866 = vmatpush1.bf16.msra.mxu0 %v3838
    %3867 = vmatprep.subr.bf16.mxu0 %v3835
    %3868 = vmatpush1.bf16.msra.mxu0 %v3834
    %3869 = vmatprep.subr.bf16.mxu0 0
    %3870 = vmatpush2.bf16.msra.mxu0 0
    %3871 = vmatprep.subr.bf16.mxu0 0
    %3872 = vmatpush2.bf16.msra.mxu0 0
    %3873 = vmatprep.subr.bf16.mxu0 0
    %3874 = vmatpush2.bf16.msra.mxu0 0
    %3875 = vmatprep.subr.bf16.mxu0 0
    %3876 = vmatpush2.bf16.msra.mxu0 0
    %3877 = vmatprep.subr.bf16.mxu0 0
    %3878 = vmatpush2.bf16.msra.mxu0 0
    %3879 = vmatprep.subr.bf16.mxu0 0
    %3880 = vmatpush2.bf16.msra.mxu0 0
    %3881 = vmatprep.subr.bf16.mxu0 0
    %3882 = vmatpush2.bf16.msra.mxu0 0
    %3883 = vmatprep.subr.bf16.mxu0 0
    %3884 = vmatpush2.bf16.msra.mxu0 0
    %3885 = vmatprep.mubr.bf16.mxu0 0
    %3886 = vmatmul.mubr.bf16.gmra.mxu0 %v3851
    %v3887 = vpop.f32.mrf.mxu0
    %v3888 = vadd.f32 %v3793, %v3887
    %v3889 = vpop.f32.mrf.mxu0
    %v3890 = vadd.f32 %v3797, %v3889
    %v3891 = vpop.f32.mrf.mxu0
    %v3892 = vadd.f32 %v3793, %v3891
    %v3893 = vpop.f32.mrf.mxu0
    %v3894 = vadd.f32 %v3797, %v3893
    %3895 = vdwg.mxu0
    %3896 = vmatprep.subr.bf16.mxu0 0
    %3897 = vmatpush1.bf16.msra.mxu0 0
    %3898 = vmatprep.subr.bf16.mxu0 0
    %3899 = vmatpush1.bf16.msra.mxu0 0
    %3900 = vmatprep.subr.bf16.mxu0 0
    %3901 = vmatpush1.bf16.msra.mxu0 0
    %3902 = vmatprep.subr.bf16.mxu0 0
    %3903 = vmatpush1.bf16.msra.mxu0 0
    %3904 = vmatprep.subr.bf16.mxu0 0
    %3905 = vmatpush1.bf16.msra.mxu0 0
    %3906 = vmatprep.subr.bf16.mxu0 0
    %3907 = vmatpush1.bf16.msra.mxu0 0
    %3908 = vmatprep.subr.bf16.mxu0 %v3841
    %3909 = vmatpush1.bf16.msra.mxu0 %v3840
    %3910 = vmatprep.subr.bf16.mxu0 %v3837
    %3911 = vmatpush1.bf16.msra.mxu0 %v3836
    %3912 = vmatprep.subr.bf16.mxu0 0
    %3913 = vmatpush2.bf16.msra.mxu0 0
    %3914 = vmatprep.subr.bf16.mxu0 0
    %3915 = vmatpush2.bf16.msra.mxu0 0
    %3916 = vmatprep.subr.bf16.mxu0 0
    %3917 = vmatpush2.bf16.msra.mxu0 0
    %3918 = vmatprep.subr.bf16.mxu0 0
    %3919 = vmatpush2.bf16.msra.mxu0 0
    %3920 = vmatprep.subr.bf16.mxu0 0
    %3921 = vmatpush2.bf16.msra.mxu0 0
    %3922 = vmatprep.subr.bf16.mxu0 0
    %3923 = vmatpush2.bf16.msra.mxu0 0
    %3924 = vmatprep.subr.bf16.mxu0 0
    %3925 = vmatpush2.bf16.msra.mxu0 0
    %3926 = vmatprep.subr.bf16.mxu0 0
    %3927 = vmatpush2.bf16.msra.mxu0 0
    %3928 = vmatprep.mubr.bf16.mxu0 0
    %3929 = vmatmul.mubr.bf16.gmra.mxu0 %v3851
    %v3930 = vpop.f32.mrf.mxu0
    %v3931 = vadd.f32 %v3801, %v3930
    %v3932 = vpop.f32.mrf.mxu0
    %v3933 = vadd.f32 %v3805, %v3932
    %v3934 = vpop.f32.mrf.mxu0
    %v3935 = vadd.f32 %v3801, %v3934
    %v3936 = vpop.f32.mrf.mxu0
    %v3937 = vadd.f32 %v3805, %v3936
    %3938 = vdwg.mxu0
    %v3939 = vmax.f32 %v3888, 0.0
    %v3940 = vmax.f32 %v3890, 0.0
    %v3941 = vmax.f32 %v3931, 0.0
    %v3942 = vmax.f32 %v3933, 0.0
    %v3943 = vmax.f32 %v3892, 0.0
    %v3944 = vmax.f32 %v3894, 0.0
    %v3945 = vmax.f32 %v3935, 0.0
    %v3946 = vmax.f32 %v3937, 0.0
    %v3947 = vpack.c.bf16 %v3943, %v3939
    %v3948 = vpack.c.bf16 %v3944, %v3940
    %v3949 = vpack.c.bf16 %v3945, %v3941
    %v3950 = vpack.c.bf16 %v3946, %v3942
    %s3951 = scalar_lea.vmem %s6, 1024
    %v3952 = vld [vmem:[%s3951] sm:$0xf]
    %v3953 = vld [vmem:[%s3951 + $0x4] sm:$0xf]
    %v3954 = vld [vmem:[%s3951 + $0x8] sm:$0xf]
    %v3955 = vld [vmem:[%s3951 + $0xc] sm:$0xf]
    %v3956 = vld [vmem:[%s3951 + $0x10] sm:$0xf]
    %v3957 = vld [vmem:[%s3951 + $0x14] sm:$0xf]
    %v3958 = vld [vmem:[%s3951 + $0x18] sm:$0xf]
    %v3959 = vld [vmem:[%s3951 + $0x1c] sm:$0xf]
    %v3960 = vld [vmem:[%s3951 + $0x20] sm:$0xf]
    %v3961 = vld [vmem:[%s3951 + $0x24] sm:$0xf]
    %v3962 = vld [vmem:[%s3951 + $0x28] sm:$0xf]
    %v3963 = vld [vmem:[%s3951 + $0x2c] sm:$0xf]
    %v3964 = vld [vmem:[%s3951 + $0x30] sm:$0xf]
    %v3965 = vld [vmem:[%s3951 + $0x34] sm:$0xf]
    %v3966 = vld [vmem:[%s3951 + $0x38] sm:$0xf]
    %v3967 = vld [vmem:[%s3951 + $0x3c] sm:$0xf]
    %v3968 = vld [vmem:[%s3951 + $0x40] sm:$0xf]
    %v3969 = vld [vmem:[%s3951 + $0x44] sm:$0xf]
    %v3970 = vld [vmem:[%s3951 + $0x48] sm:$0xf]
    %v3971 = vld [vmem:[%s3951 + $0x4c] sm:$0xf]
    %v3972 = vld [vmem:[%s3951 + $0x50] sm:$0xf]
    %v3973 = vld [vmem:[%s3951 + $0x54] sm:$0xf]
    %v3974 = vld [vmem:[%s3951 + $0x58] sm:$0xf]
    %v3975 = vld [vmem:[%s3951 + $0x5c] sm:$0xf]
    %v3976 = vld [vmem:[%s3951 + $0x60] sm:$0xf]
    %v3977 = vld [vmem:[%s3951 + $0x64] sm:$0xf]
    %v3978 = vld [vmem:[%s3951 + $0x68] sm:$0xf]
    %v3979 = vld [vmem:[%s3951 + $0x6c] sm:$0xf]
    %v3980 = vld [vmem:[%s3951 + $0x70] sm:$0xf]
    %v3981 = vld [vmem:[%s3951 + $0x74] sm:$0xf]
    %v3982 = vld [vmem:[%s3951 + $0x78] sm:$0xf]
    %v3983 = vld [vmem:[%s3951 + $0x7c] sm:$0xf]
    %v3984 = vld [vmem:[%s3951 + $0x80] sm:$0xf]
    %v3985 = vld [vmem:[%s3951 + $0x84] sm:$0xf]
    %v3986 = vld [vmem:[%s3951 + $0x88] sm:$0xf]
    %v3987 = vld [vmem:[%s3951 + $0x8c] sm:$0xf]
    %v3988 = vld [vmem:[%s3951 + $0x90] sm:$0xf]
    %v3989 = vld [vmem:[%s3951 + $0x94] sm:$0xf]
    %v3990 = vld [vmem:[%s3951 + $0x98] sm:$0xf]
    %v3991 = vld [vmem:[%s3951 + $0x9c] sm:$0xf]
    %v3992 = vld [vmem:[%s3951 + $0xa0] sm:$0xf]
    %v3993 = vld [vmem:[%s3951 + $0xa4] sm:$0xf]
    %v3994 = vld [vmem:[%s3951 + $0xa8] sm:$0xf]
    %v3995 = vld [vmem:[%s3951 + $0xac] sm:$0xf]
    %v3996 = vld [vmem:[%s3951 + $0xb0] sm:$0xf]
    %v3997 = vld [vmem:[%s3951 + $0xb4] sm:$0xf]
    %v3998 = vld [vmem:[%s3951 + $0xb8] sm:$0xf]
    %v3999 = vld [vmem:[%s3951 + $0xbc] sm:$0xf]
    %v4000 = vld [vmem:[%s3951 + $0xc0] sm:$0xf]
    %v4001 = vld [vmem:[%s3951 + $0xc4] sm:$0xf]
    %v4002 = vld [vmem:[%s3951 + $0xc8] sm:$0xf]
    %v4003 = vld [vmem:[%s3951 + $0xcc] sm:$0xf]
    %v4004 = vld [vmem:[%s3951 + $0xd0] sm:$0xf]
    %v4005 = vld [vmem:[%s3951 + $0xd4] sm:$0xf]
    %v4006 = vld [vmem:[%s3951 + $0xd8] sm:$0xf]
    %v4007 = vld [vmem:[%s3951 + $0xdc] sm:$0xf]
    %v4008 = vld [vmem:[%s3951 + $0xe0] sm:$0xf]
    %v4009 = vld [vmem:[%s3951 + $0xe4] sm:$0xf]
    %v4010 = vld [vmem:[%s3951 + $0xe8] sm:$0xf]
    %v4011 = vld [vmem:[%s3951 + $0xec] sm:$0xf]
    %v4012 = vld [vmem:[%s3951 + $0xf0] sm:$0xf]
    %v4013 = vld [vmem:[%s3951 + $0xf4] sm:$0xf]
    %v4014 = vld [vmem:[%s3951 + $0xf8] sm:$0xf]
    %v4015 = vld [vmem:[%s3951 + $0xfc] sm:$0xf]
    %s4016 = scalar_lea.vmem %s5, 320
    %v4017 = vld [vmem:[%s4016] sm:$0xff]
    %v4018 = vld [vmem:[%s4016 + $0x8] sm:$0xff]
    %v4019 = vld [vmem:[%s4016 + $0x10] sm:$0xff]
    %v4020 = vld [vmem:[%s4016 + $0x18] sm:$0xff]
    %v4021 = vld [vmem:[%s4016 + $0x20] sm:$0xff]
    %v4022 = vld [vmem:[%s4016 + $0x28] sm:$0xff]
    %v4023 = vld [vmem:[%s4016 + $0x30] sm:$0xff]
    %v4024 = vld [vmem:[%s4016 + $0x38] sm:$0xff]
    %s4025 = scalar_lea.vmem %s8, 20
    %v4026 = vld [vmem:[%s4025] sm:$0xf]
    %v4028 = vlaneseq
    %v4029 = vshrl.u32 %v4028, 7
    %v4030 = vsub.s32 0, %v4029
    %v4031 = vrot.slane %v4026, %v4030
    %v4032 = vlaneseq
    %v4033 = vshrl.u32 %v4032, 7
    %v4034 = vsub.s32 1, %v4033
    %v4035 = vrot.slane %v4026, %v4034
    %v4036 = vlaneseq
    %v4037 = vshrl.u32 %v4036, 7
    %v4038 = vsub.s32 2, %v4037
    %v4039 = vrot.slane %v4026, %v4038
    %v4040 = vlaneseq
    %v4041 = vshrl.u32 %v4040, 7
    %v4042 = vsub.s32 3, %v4041
    %v4043 = vrot.slane %v4026, %v4042
    %v4056 = vunpack.c.l.b16 %v4017
    %v4057 = vunpack.c.h.b16 %v4017
    %v4058 = vunpack.c.l.b16 %v4018
    %v4059 = vunpack.c.h.b16 %v4018
    %v4060 = vunpack.c.l.b16 %v4019
    %v4061 = vunpack.c.h.b16 %v4019
    %v4062 = vunpack.c.l.b16 %v4020
    %v4063 = vunpack.c.h.b16 %v4020
    %v4064 = vunpack.c.l.b16 %v4021
    %v4065 = vunpack.c.h.b16 %v4021
    %v4066 = vunpack.c.l.b16 %v4022
    %v4067 = vunpack.c.h.b16 %v4022
    %v4068 = vunpack.c.l.b16 %v4023
    %v4069 = vunpack.c.h.b16 %v4023
    %v4070 = vunpack.c.l.b16 %v4024
    %v4071 = vunpack.c.h.b16 %v4024
    %v4072 = vpack.c.b16 %v4060, %v4056
    %v4073 = vpack.c.b16 %v4061, %v4057
    %v4074 = vpack.c.b16 %v4062, %v4058
    %v4075 = vpack.c.b16 %v4063, %v4059
    %v4076 = vpack.c.b16 %v4068, %v4064
    %v4077 = vpack.c.b16 %v4069, %v4065
    %v4078 = vpack.c.b16 %v4070, %v4066
    %v4079 = vpack.c.b16 %v4071, %v4067
    %4088 = vmatprep.subr.bf16.mxu0 0
    %4089 = vmatpush1.bf16.msra.mxu0 0
    %4090 = vmatprep.subr.bf16.mxu0 0
    %4091 = vmatpush1.bf16.msra.mxu0 0
    %4092 = vmatprep.subr.bf16.mxu0 0
    %4093 = vmatpush1.bf16.msra.mxu0 0
    %4094 = vmatprep.subr.bf16.mxu0 0
    %4095 = vmatpush1.bf16.msra.mxu0 0
    %4096 = vmatprep.subr.bf16.mxu0 0
    %4097 = vmatpush1.bf16.msra.mxu0 0
    %4098 = vmatprep.subr.bf16.mxu0 0
    %4099 = vmatpush1.bf16.msra.mxu0 0
    %4100 = vmatprep.subr.bf16.mxu0 %v4077
    %4101 = vmatpush1.bf16.msra.mxu0 %v4076
    %4102 = vmatprep.subr.bf16.mxu0 %v4073
    %4103 = vmatpush1.bf16.msra.mxu0 %v4072
    %4104 = vmatprep.subr.bf16.mxu0 0
    %4105 = vmatpush2.bf16.msra.mxu0 0
    %4106 = vmatprep.subr.bf16.mxu0 0
    %4107 = vmatpush2.bf16.msra.mxu0 0
    %4108 = vmatprep.subr.bf16.mxu0 0
    %4109 = vmatpush2.bf16.msra.mxu0 0
    %4110 = vmatprep.subr.bf16.mxu0 0
    %4111 = vmatpush2.bf16.msra.mxu0 0
    %4112 = vmatprep.subr.bf16.mxu0 0
    %4113 = vmatpush2.bf16.msra.mxu0 0
    %4114 = vmatprep.subr.bf16.mxu0 0
    %4115 = vmatpush2.bf16.msra.mxu0 0
    %4116 = vmatprep.subr.bf16.mxu0 0
    %4117 = vmatpush2.bf16.msra.mxu0 0
    %4118 = vmatprep.subr.bf16.mxu0 0
    %4119 = vmatpush2.bf16.msra.mxu0 0
    %4120 = vmatprep.mubr.bf16.mxu0 0
    %4121 = vmatmul.mubr.bf16.gmra.mxu0 %v3851
    %v4122 = vpop.f32.mrf.mxu0
    %v4123 = vadd.f32 %v4031, %v4122
    %v4124 = vpop.f32.mrf.mxu0
    %v4125 = vadd.f32 %v4035, %v4124
    %v4126 = vpop.f32.mrf.mxu0
    %v4127 = vadd.f32 %v4031, %v4126
    %v4128 = vpop.f32.mrf.mxu0
    %v4129 = vadd.f32 %v4035, %v4128
    %4130 = vdwg.mxu0
    %4131 = vmatprep.subr.bf16.mxu0 0
    %4132 = vmatpush1.bf16.msra.mxu0 0
    %4133 = vmatprep.subr.bf16.mxu0 0
    %4134 = vmatpush1.bf16.msra.mxu0 0
    %4135 = vmatprep.subr.bf16.mxu0 0
    %4136 = vmatpush1.bf16.msra.mxu0 0
    %4137 = vmatprep.subr.bf16.mxu0 0
    %4138 = vmatpush1.bf16.msra.mxu0 0
    %4139 = vmatprep.subr.bf16.mxu0 0
    %4140 = vmatpush1.bf16.msra.mxu0 0
    %4141 = vmatprep.subr.bf16.mxu0 0
    %4142 = vmatpush1.bf16.msra.mxu0 0
    %4143 = vmatprep.subr.bf16.mxu0 %v4079
    %4144 = vmatpush1.bf16.msra.mxu0 %v4078
    %4145 = vmatprep.subr.bf16.mxu0 %v4075
    %4146 = vmatpush1.bf16.msra.mxu0 %v4074
    %4147 = vmatprep.subr.bf16.mxu0 0
    %4148 = vmatpush2.bf16.msra.mxu0 0
    %4149 = vmatprep.subr.bf16.mxu0 0
    %4150 = vmatpush2.bf16.msra.mxu0 0
    %4151 = vmatprep.subr.bf16.mxu0 0
    %4152 = vmatpush2.bf16.msra.mxu0 0
    %4153 = vmatprep.subr.bf16.mxu0 0
    %4154 = vmatpush2.bf16.msra.mxu0 0
    %4155 = vmatprep.subr.bf16.mxu0 0
    %4156 = vmatpush2.bf16.msra.mxu0 0
    %4157 = vmatprep.subr.bf16.mxu0 0
    %4158 = vmatpush2.bf16.msra.mxu0 0
    %4159 = vmatprep.subr.bf16.mxu0 0
    %4160 = vmatpush2.bf16.msra.mxu0 0
    %4161 = vmatprep.subr.bf16.mxu0 0
    %4162 = vmatpush2.bf16.msra.mxu0 0
    %4163 = vmatprep.mubr.bf16.mxu0 0
    %4164 = vmatmul.mubr.bf16.gmra.mxu0 %v3851
    %v4165 = vpop.f32.mrf.mxu0
    %v4166 = vadd.f32 %v4039, %v4165
    %v4167 = vpop.f32.mrf.mxu0
    %v4168 = vadd.f32 %v4043, %v4167
    %v4169 = vpop.f32.mrf.mxu0
    %v4170 = vadd.f32 %v4039, %v4169
    %v4171 = vpop.f32.mrf.mxu0
    %v4172 = vadd.f32 %v4043, %v4171
    %4173 = vdwg.mxu0
    %v4174 = vmax.f32 %v4123, 0.0
    %v4175 = vmax.f32 %v4125, 0.0
    %v4176 = vmax.f32 %v4166, 0.0
    %v4177 = vmax.f32 %v4168, 0.0
    %v4178 = vmax.f32 %v4127, 0.0
    %v4179 = vmax.f32 %v4129, 0.0
    %v4180 = vmax.f32 %v4170, 0.0
    %v4181 = vmax.f32 %v4172, 0.0
    %v4182 = vpack.c.bf16 %v4178, %v4174
    %v4183 = vpack.c.bf16 %v4179, %v4175
    %v4184 = vpack.c.bf16 %v4180, %v4176
    %v4185 = vpack.c.bf16 %v4181, %v4177
    %s4186 = scalar_lea.vmem %s6, 1280
    %v4187 = vld [vmem:[%s4186] sm:$0xf]
    %v4188 = vld [vmem:[%s4186 + $0x4] sm:$0xf]
    %v4189 = vld [vmem:[%s4186 + $0x8] sm:$0xf]
    %v4190 = vld [vmem:[%s4186 + $0xc] sm:$0xf]
    %v4191 = vld [vmem:[%s4186 + $0x10] sm:$0xf]
    %v4192 = vld [vmem:[%s4186 + $0x14] sm:$0xf]
    %v4193 = vld [vmem:[%s4186 + $0x18] sm:$0xf]
    %v4194 = vld [vmem:[%s4186 + $0x1c] sm:$0xf]
    %v4195 = vld [vmem:[%s4186 + $0x20] sm:$0xf]
    %v4196 = vld [vmem:[%s4186 + $0x24] sm:$0xf]
    %v4197 = vld [vmem:[%s4186 + $0x28] sm:$0xf]
    %v4198 = vld [vmem:[%s4186 + $0x2c] sm:$0xf]
    %v4199 = vld [vmem:[%s4186 + $0x30] sm:$0xf]
    %v4200 = vld [vmem:[%s4186 + $0x34] sm:$0xf]
    %v4201 = vld [vmem:[%s4186 + $0x38] sm:$0xf]
    %v4202 = vld [vmem:[%s4186 + $0x3c] sm:$0xf]
    %v4203 = vld [vmem:[%s4186 + $0x40] sm:$0xf]
    %v4204 = vld [vmem:[%s4186 + $0x44] sm:$0xf]
    %v4205 = vld [vmem:[%s4186 + $0x48] sm:$0xf]
    %v4206 = vld [vmem:[%s4186 + $0x4c] sm:$0xf]
    %v4207 = vld [vmem:[%s4186 + $0x50] sm:$0xf]
    %v4208 = vld [vmem:[%s4186 + $0x54] sm:$0xf]
    %v4209 = vld [vmem:[%s4186 + $0x58] sm:$0xf]
    %v4210 = vld [vmem:[%s4186 + $0x5c] sm:$0xf]
    %v4211 = vld [vmem:[%s4186 + $0x60] sm:$0xf]
    %v4212 = vld [vmem:[%s4186 + $0x64] sm:$0xf]
    %v4213 = vld [vmem:[%s4186 + $0x68] sm:$0xf]
    %v4214 = vld [vmem:[%s4186 + $0x6c] sm:$0xf]
    %v4215 = vld [vmem:[%s4186 + $0x70] sm:$0xf]
    %v4216 = vld [vmem:[%s4186 + $0x74] sm:$0xf]
    %v4217 = vld [vmem:[%s4186 + $0x78] sm:$0xf]
    %v4218 = vld [vmem:[%s4186 + $0x7c] sm:$0xf]
    %v4219 = vld [vmem:[%s4186 + $0x80] sm:$0xf]
    %v4220 = vld [vmem:[%s4186 + $0x84] sm:$0xf]
    %v4221 = vld [vmem:[%s4186 + $0x88] sm:$0xf]
    %v4222 = vld [vmem:[%s4186 + $0x8c] sm:$0xf]
    %v4223 = vld [vmem:[%s4186 + $0x90] sm:$0xf]
    %v4224 = vld [vmem:[%s4186 + $0x94] sm:$0xf]
    %v4225 = vld [vmem:[%s4186 + $0x98] sm:$0xf]
    %v4226 = vld [vmem:[%s4186 + $0x9c] sm:$0xf]
    %v4227 = vld [vmem:[%s4186 + $0xa0] sm:$0xf]
    %v4228 = vld [vmem:[%s4186 + $0xa4] sm:$0xf]
    %v4229 = vld [vmem:[%s4186 + $0xa8] sm:$0xf]
    %v4230 = vld [vmem:[%s4186 + $0xac] sm:$0xf]
    %v4231 = vld [vmem:[%s4186 + $0xb0] sm:$0xf]
    %v4232 = vld [vmem:[%s4186 + $0xb4] sm:$0xf]
    %v4233 = vld [vmem:[%s4186 + $0xb8] sm:$0xf]
    %v4234 = vld [vmem:[%s4186 + $0xbc] sm:$0xf]
    %v4235 = vld [vmem:[%s4186 + $0xc0] sm:$0xf]
    %v4236 = vld [vmem:[%s4186 + $0xc4] sm:$0xf]
    %v4237 = vld [vmem:[%s4186 + $0xc8] sm:$0xf]
    %v4238 = vld [vmem:[%s4186 + $0xcc] sm:$0xf]
    %v4239 = vld [vmem:[%s4186 + $0xd0] sm:$0xf]
    %v4240 = vld [vmem:[%s4186 + $0xd4] sm:$0xf]
    %v4241 = vld [vmem:[%s4186 + $0xd8] sm:$0xf]
    %v4242 = vld [vmem:[%s4186 + $0xdc] sm:$0xf]
    %v4243 = vld [vmem:[%s4186 + $0xe0] sm:$0xf]
    %v4244 = vld [vmem:[%s4186 + $0xe4] sm:$0xf]
    %v4245 = vld [vmem:[%s4186 + $0xe8] sm:$0xf]
    %v4246 = vld [vmem:[%s4186 + $0xec] sm:$0xf]
    %v4247 = vld [vmem:[%s4186 + $0xf0] sm:$0xf]
    %v4248 = vld [vmem:[%s4186 + $0xf4] sm:$0xf]
    %v4249 = vld [vmem:[%s4186 + $0xf8] sm:$0xf]
    %v4250 = vld [vmem:[%s4186 + $0xfc] sm:$0xf]
    %v4315 = vunpack.c.l.b16 %v4187
    %v4316 = vunpack.c.l.b16 %v4188
    %v4317 = vunpack.c.l.b16 %v4189
    %v4318 = vunpack.c.l.b16 %v4190
    %v4319 = vunpack.c.l.b16 %v4191
    %v4320 = vunpack.c.l.b16 %v4192
    %v4321 = vunpack.c.l.b16 %v4193
    %v4322 = vunpack.c.l.b16 %v4194
    %v4323 = vunpack.c.l.b16 %v4195
    %v4324 = vunpack.c.l.b16 %v4196
    %v4325 = vunpack.c.l.b16 %v4197
    %v4326 = vunpack.c.l.b16 %v4198
    %v4327 = vunpack.c.l.b16 %v4199
    %v4328 = vunpack.c.l.b16 %v4200
    %v4329 = vunpack.c.l.b16 %v4201
    %v4330 = vunpack.c.l.b16 %v4202
    %v4331 = vunpack.c.l.b16 %v4203
    %v4332 = vunpack.c.l.b16 %v4204
    %v4333 = vunpack.c.l.b16 %v4205
    %v4334 = vunpack.c.l.b16 %v4206
    %v4335 = vunpack.c.l.b16 %v4207
    %v4336 = vunpack.c.l.b16 %v4208
    %v4337 = vunpack.c.l.b16 %v4209
    %v4338 = vunpack.c.l.b16 %v4210
    %v4339 = vunpack.c.l.b16 %v4211
    %v4340 = vunpack.c.l.b16 %v4212
    %v4341 = vunpack.c.l.b16 %v4213
    %v4342 = vunpack.c.l.b16 %v4214
    %v4343 = vunpack.c.l.b16 %v4215
    %v4344 = vunpack.c.l.b16 %v4216
    %v4345 = vunpack.c.l.b16 %v4217
    %v4346 = vunpack.c.l.b16 %v4218
    %v4347 = vunpack.c.l.b16 %v4219
    %v4348 = vunpack.c.l.b16 %v4220
    %v4349 = vunpack.c.l.b16 %v4221
    %v4350 = vunpack.c.l.b16 %v4222
    %v4351 = vunpack.c.l.b16 %v4223
    %v4352 = vunpack.c.l.b16 %v4224
    %v4353 = vunpack.c.l.b16 %v4225
    %v4354 = vunpack.c.l.b16 %v4226
    %v4355 = vunpack.c.l.b16 %v4227
    %v4356 = vunpack.c.l.b16 %v4228
    %v4357 = vunpack.c.l.b16 %v4229
    %v4358 = vunpack.c.l.b16 %v4230
    %v4359 = vunpack.c.l.b16 %v4231
    %v4360 = vunpack.c.l.b16 %v4232
    %v4361 = vunpack.c.l.b16 %v4233
    %v4362 = vunpack.c.l.b16 %v4234
    %v4363 = vunpack.c.l.b16 %v4235
    %v4364 = vunpack.c.l.b16 %v4236
    %v4365 = vunpack.c.l.b16 %v4237
    %v4366 = vunpack.c.l.b16 %v4238
    %v4367 = vunpack.c.l.b16 %v4239
    %v4368 = vunpack.c.l.b16 %v4240
    %v4369 = vunpack.c.l.b16 %v4241
    %v4370 = vunpack.c.l.b16 %v4242
    %v4371 = vunpack.c.l.b16 %v4243
    %v4372 = vunpack.c.l.b16 %v4244
    %v4373 = vunpack.c.l.b16 %v4245
    %v4374 = vunpack.c.l.b16 %v4246
    %v4375 = vunpack.c.l.b16 %v4247
    %v4376 = vunpack.c.l.b16 %v4248
    %v4377 = vunpack.c.l.b16 %v4249
    %v4378 = vunpack.c.l.b16 %v4250
    %v4379 = vpack.c.b16 %v4316, %v4315
    %v4380 = vpack.c.b16 %v4318, %v4317
    %v4381 = vpack.c.b16 %v4320, %v4319
    %v4382 = vpack.c.b16 %v4322, %v4321
    %v4383 = vpack.c.b16 %v4324, %v4323
    %v4384 = vpack.c.b16 %v4326, %v4325
    %v4385 = vpack.c.b16 %v4328, %v4327
    %v4386 = vpack.c.b16 %v4330, %v4329
    %v4387 = vpack.c.b16 %v4332, %v4331
    %v4388 = vpack.c.b16 %v4334, %v4333
    %v4389 = vpack.c.b16 %v4336, %v4335
    %v4390 = vpack.c.b16 %v4338, %v4337
    %v4391 = vpack.c.b16 %v4340, %v4339
    %v4392 = vpack.c.b16 %v4342, %v4341
    %v4393 = vpack.c.b16 %v4344, %v4343
    %v4394 = vpack.c.b16 %v4346, %v4345
    %v4395 = vpack.c.b16 %v4348, %v4347
    %v4396 = vpack.c.b16 %v4350, %v4349
    %v4397 = vpack.c.b16 %v4352, %v4351
    %v4398 = vpack.c.b16 %v4354, %v4353
    %v4399 = vpack.c.b16 %v4356, %v4355
    %v4400 = vpack.c.b16 %v4358, %v4357
    %v4401 = vpack.c.b16 %v4360, %v4359
    %v4402 = vpack.c.b16 %v4362, %v4361
    %v4403 = vpack.c.b16 %v4364, %v4363
    %v4404 = vpack.c.b16 %v4366, %v4365
    %v4405 = vpack.c.b16 %v4368, %v4367
    %v4406 = vpack.c.b16 %v4370, %v4369
    %v4407 = vpack.c.b16 %v4372, %v4371
    %v4408 = vpack.c.b16 %v4374, %v4373
    %v4409 = vpack.c.b16 %v4376, %v4375
    %v4410 = vpack.c.b16 %v4378, %v4377
    %4443 = vmatprep.subr.bf16.mxu0 0
    %4444 = vmatpush1.bf16.msra.mxu0 %v4386
    %4445 = vmatprep.subr.bf16.mxu0 0
    %4446 = vmatpush1.bf16.msra.mxu0 %v4385
    %4447 = vmatprep.subr.bf16.mxu0 0
    %4448 = vmatpush1.bf16.msra.mxu0 %v4384
    %4449 = vmatprep.subr.bf16.mxu0 0
    %4450 = vmatpush1.bf16.msra.mxu0 %v4383
    %4451 = vmatprep.subr.bf16.mxu0 0
    %4452 = vmatpush1.bf16.msra.mxu0 %v4382
    %4453 = vmatprep.subr.bf16.mxu0 0
    %4454 = vmatpush1.bf16.msra.mxu0 %v4381
    %4455 = vmatprep.subr.bf16.mxu0 0
    %4456 = vmatpush1.bf16.msra.mxu0 %v4380
    %4457 = vmatprep.subr.bf16.mxu0 0
    %4458 = vmatpush1.bf16.msra.mxu0 %v4379
    %4459 = vmatprep.subr.bf16.mxu0 0
    %4460 = vmatpush2.bf16.msra.mxu0 %v4394
    %4461 = vmatprep.subr.bf16.mxu0 0
    %4462 = vmatpush2.bf16.msra.mxu0 %v4393
    %4463 = vmatprep.subr.bf16.mxu0 0
    %4464 = vmatpush2.bf16.msra.mxu0 %v4392
    %4465 = vmatprep.subr.bf16.mxu0 0
    %4466 = vmatpush2.bf16.msra.mxu0 %v4391
    %4467 = vmatprep.subr.bf16.mxu0 0
    %4468 = vmatpush2.bf16.msra.mxu0 %v4390
    %4469 = vmatprep.subr.bf16.mxu0 0
    %4470 = vmatpush2.bf16.msra.mxu0 %v4389
    %4471 = vmatprep.subr.bf16.mxu0 0
    %4472 = vmatpush2.bf16.msra.mxu0 %v4388
    %4473 = vmatprep.subr.bf16.mxu0 0
    %4474 = vmatpush2.bf16.msra.mxu0 %v4387
    %4475 = vmatprep.mubr.bf16.mxu0 %v4183
    %4476 = vmatmul.mubr.bf16.gmra.mxu0 %v4182
    %v4477 = vpop.f32.mrf.mxu0
    %v4478 = vadd.f32 0.0, %v4477
    %v4479 = vpop.f32.mrf.mxu0
    %v4480 = vpop.f32.mrf.mxu0
    %v4481 = vadd.f32 0.0, %v4480
    %v4482 = vpop.f32.mrf.mxu0
    %4483 = vdwg.mxu0
    %4484 = vmatprep.subr.bf16.mxu0 0
    %4485 = vmatpush1.bf16.msra.mxu0 %v4402
    %4486 = vmatprep.subr.bf16.mxu0 0
    %4487 = vmatpush1.bf16.msra.mxu0 %v4401
    %4488 = vmatprep.subr.bf16.mxu0 0
    %4489 = vmatpush1.bf16.msra.mxu0 %v4400
    %4490 = vmatprep.subr.bf16.mxu0 0
    %4491 = vmatpush1.bf16.msra.mxu0 %v4399
    %4492 = vmatprep.subr.bf16.mxu0 0
    %4493 = vmatpush1.bf16.msra.mxu0 %v4398
    %4494 = vmatprep.subr.bf16.mxu0 0
    %4495 = vmatpush1.bf16.msra.mxu0 %v4397
    %4496 = vmatprep.subr.bf16.mxu0 0
    %4497 = vmatpush1.bf16.msra.mxu0 %v4396
    %4498 = vmatprep.subr.bf16.mxu0 0
    %4499 = vmatpush1.bf16.msra.mxu0 %v4395
    %4500 = vmatprep.subr.bf16.mxu0 0
    %4501 = vmatpush2.bf16.msra.mxu0 %v4410
    %4502 = vmatprep.subr.bf16.mxu0 0
    %4503 = vmatpush2.bf16.msra.mxu0 %v4409
    %4504 = vmatprep.subr.bf16.mxu0 0
    %4505 = vmatpush2.bf16.msra.mxu0 %v4408
    %4506 = vmatprep.subr.bf16.mxu0 0
    %4507 = vmatpush2.bf16.msra.mxu0 %v4407
    %4508 = vmatprep.subr.bf16.mxu0 0
    %4509 = vmatpush2.bf16.msra.mxu0 %v4406
    %4510 = vmatprep.subr.bf16.mxu0 0
    %4511 = vmatpush2.bf16.msra.mxu0 %v4405
    %4512 = vmatprep.subr.bf16.mxu0 0
    %4513 = vmatpush2.bf16.msra.mxu0 %v4404
    %4514 = vmatprep.subr.bf16.mxu0 0
    %4515 = vmatpush2.bf16.msra.mxu0 %v4403
    %4516 = vmatprep.mubr.bf16.mxu0 %v4185
    %4517 = vmatmul.mubr.bf16.gmra.mxu0 %v4184
    %v4518 = vpop.f32.mrf.mxu0
    %v4519 = vadd.f32 %v4478, %v4518
    %v4520 = vpop.f32.mrf.mxu0
    %v4521 = vpop.f32.mrf.mxu0
    %v4522 = vadd.f32 %v4481, %v4521
    %v4523 = vpop.f32.mrf.mxu0
    %4524 = vdwg.mxu0
    %v4589 = vunpack.c.l.b16 %v3952
    %v4590 = vunpack.c.l.b16 %v3953
    %v4591 = vunpack.c.l.b16 %v3954
    %v4592 = vunpack.c.l.b16 %v3955
    %v4593 = vunpack.c.l.b16 %v3956
    %v4594 = vunpack.c.l.b16 %v3957
    %v4595 = vunpack.c.l.b16 %v3958
    %v4596 = vunpack.c.l.b16 %v3959
    %v4597 = vunpack.c.l.b16 %v3960
    %v4598 = vunpack.c.l.b16 %v3961
    %v4599 = vunpack.c.l.b16 %v3962
    %v4600 = vunpack.c.l.b16 %v3963
    %v4601 = vunpack.c.l.b16 %v3964
    %v4602 = vunpack.c.l.b16 %v3965
    %v4603 = vunpack.c.l.b16 %v3966
    %v4604 = vunpack.c.l.b16 %v3967
    %v4605 = vunpack.c.l.b16 %v3968
    %v4606 = vunpack.c.l.b16 %v3969
    %v4607 = vunpack.c.l.b16 %v3970
    %v4608 = vunpack.c.l.b16 %v3971
    %v4609 = vunpack.c.l.b16 %v3972
    %v4610 = vunpack.c.l.b16 %v3973
    %v4611 = vunpack.c.l.b16 %v3974
    %v4612 = vunpack.c.l.b16 %v3975
    %v4613 = vunpack.c.l.b16 %v3976
    %v4614 = vunpack.c.l.b16 %v3977
    %v4615 = vunpack.c.l.b16 %v3978
    %v4616 = vunpack.c.l.b16 %v3979
    %v4617 = vunpack.c.l.b16 %v3980
    %v4618 = vunpack.c.l.b16 %v3981
    %v4619 = vunpack.c.l.b16 %v3982
    %v4620 = vunpack.c.l.b16 %v3983
    %v4621 = vunpack.c.l.b16 %v3984
    %v4622 = vunpack.c.l.b16 %v3985
    %v4623 = vunpack.c.l.b16 %v3986
    %v4624 = vunpack.c.l.b16 %v3987
    %v4625 = vunpack.c.l.b16 %v3988
    %v4626 = vunpack.c.l.b16 %v3989
    %v4627 = vunpack.c.l.b16 %v3990
    %v4628 = vunpack.c.l.b16 %v3991
    %v4629 = vunpack.c.l.b16 %v3992
    %v4630 = vunpack.c.l.b16 %v3993
    %v4631 = vunpack.c.l.b16 %v3994
    %v4632 = vunpack.c.l.b16 %v3995
    %v4633 = vunpack.c.l.b16 %v3996
    %v4634 = vunpack.c.l.b16 %v3997
    %v4635 = vunpack.c.l.b16 %v3998
    %v4636 = vunpack.c.l.b16 %v3999
    %v4637 = vunpack.c.l.b16 %v4000
    %v4638 = vunpack.c.l.b16 %v4001
    %v4639 = vunpack.c.l.b16 %v4002
    %v4640 = vunpack.c.l.b16 %v4003
    %v4641 = vunpack.c.l.b16 %v4004
    %v4642 = vunpack.c.l.b16 %v4005
    %v4643 = vunpack.c.l.b16 %v4006
    %v4644 = vunpack.c.l.b16 %v4007
    %v4645 = vunpack.c.l.b16 %v4008
    %v4646 = vunpack.c.l.b16 %v4009
    %v4647 = vunpack.c.l.b16 %v4010
    %v4648 = vunpack.c.l.b16 %v4011
    %v4649 = vunpack.c.l.b16 %v4012
    %v4650 = vunpack.c.l.b16 %v4013
    %v4651 = vunpack.c.l.b16 %v4014
    %v4652 = vunpack.c.l.b16 %v4015
    %v4653 = vpack.c.b16 %v4590, %v4589
    %v4654 = vpack.c.b16 %v4592, %v4591
    %v4655 = vpack.c.b16 %v4594, %v4593
    %v4656 = vpack.c.b16 %v4596, %v4595
    %v4657 = vpack.c.b16 %v4598, %v4597
    %v4658 = vpack.c.b16 %v4600, %v4599
    %v4659 = vpack.c.b16 %v4602, %v4601
    %v4660 = vpack.c.b16 %v4604, %v4603
    %v4661 = vpack.c.b16 %v4606, %v4605
    %v4662 = vpack.c.b16 %v4608, %v4607
    %v4663 = vpack.c.b16 %v4610, %v4609
    %v4664 = vpack.c.b16 %v4612, %v4611
    %v4665 = vpack.c.b16 %v4614, %v4613
    %v4666 = vpack.c.b16 %v4616, %v4615
    %v4667 = vpack.c.b16 %v4618, %v4617
    %v4668 = vpack.c.b16 %v4620, %v4619
    %v4669 = vpack.c.b16 %v4622, %v4621
    %v4670 = vpack.c.b16 %v4624, %v4623
    %v4671 = vpack.c.b16 %v4626, %v4625
    %v4672 = vpack.c.b16 %v4628, %v4627
    %v4673 = vpack.c.b16 %v4630, %v4629
    %v4674 = vpack.c.b16 %v4632, %v4631
    %v4675 = vpack.c.b16 %v4634, %v4633
    %v4676 = vpack.c.b16 %v4636, %v4635
    %v4677 = vpack.c.b16 %v4638, %v4637
    %v4678 = vpack.c.b16 %v4640, %v4639
    %v4679 = vpack.c.b16 %v4642, %v4641
    %v4680 = vpack.c.b16 %v4644, %v4643
    %v4681 = vpack.c.b16 %v4646, %v4645
    %v4682 = vpack.c.b16 %v4648, %v4647
    %v4683 = vpack.c.b16 %v4650, %v4649
    %v4684 = vpack.c.b16 %v4652, %v4651
    %4717 = vmatprep.subr.bf16.mxu0 0
    %4718 = vmatpush1.bf16.msra.mxu0 %v4660
    %4719 = vmatprep.subr.bf16.mxu0 0
    %4720 = vmatpush1.bf16.msra.mxu0 %v4659
    %4721 = vmatprep.subr.bf16.mxu0 0
    %4722 = vmatpush1.bf16.msra.mxu0 %v4658
    %4723 = vmatprep.subr.bf16.mxu0 0
    %4724 = vmatpush1.bf16.msra.mxu0 %v4657
    %4725 = vmatprep.subr.bf16.mxu0 0
    %4726 = vmatpush1.bf16.msra.mxu0 %v4656
    %4727 = vmatprep.subr.bf16.mxu0 0
    %4728 = vmatpush1.bf16.msra.mxu0 %v4655
    %4729 = vmatprep.subr.bf16.mxu0 0
    %4730 = vmatpush1.bf16.msra.mxu0 %v4654
    %4731 = vmatprep.subr.bf16.mxu0 0
    %4732 = vmatpush1.bf16.msra.mxu0 %v4653
    %4733 = vmatprep.subr.bf16.mxu0 0
    %4734 = vmatpush2.bf16.msra.mxu0 %v4668
    %4735 = vmatprep.subr.bf16.mxu0 0
    %4736 = vmatpush2.bf16.msra.mxu0 %v4667
    %4737 = vmatprep.subr.bf16.mxu0 0
    %4738 = vmatpush2.bf16.msra.mxu0 %v4666
    %4739 = vmatprep.subr.bf16.mxu0 0
    %4740 = vmatpush2.bf16.msra.mxu0 %v4665
    %4741 = vmatprep.subr.bf16.mxu0 0
    %4742 = vmatpush2.bf16.msra.mxu0 %v4664
    %4743 = vmatprep.subr.bf16.mxu0 0
    %4744 = vmatpush2.bf16.msra.mxu0 %v4663
    %4745 = vmatprep.subr.bf16.mxu0 0
    %4746 = vmatpush2.bf16.msra.mxu0 %v4662
    %4747 = vmatprep.subr.bf16.mxu0 0
    %4748 = vmatpush2.bf16.msra.mxu0 %v4661
    %4749 = vmatprep.mubr.bf16.mxu0 %v3948
    %4750 = vmatmul.mubr.bf16.gmra.mxu0 %v3947
    %v4751 = vpop.f32.mrf.mxu0
    %v4752 = vadd.f32 %v4519, %v4751
    %v4753 = vpop.f32.mrf.mxu0
    %v4754 = vpop.f32.mrf.mxu0
    %v4755 = vadd.f32 %v4522, %v4754
    %v4756 = vpop.f32.mrf.mxu0
    %4757 = vdwg.mxu0
    %4758 = vmatprep.subr.bf16.mxu0 0
    %4759 = vmatpush1.bf16.msra.mxu0 %v4676
    %4760 = vmatprep.subr.bf16.mxu0 0
    %4761 = vmatpush1.bf16.msra.mxu0 %v4675
    %4762 = vmatprep.subr.bf16.mxu0 0
    %4763 = vmatpush1.bf16.msra.mxu0 %v4674
    %4764 = vmatprep.subr.bf16.mxu0 0
    %4765 = vmatpush1.bf16.msra.mxu0 %v4673
    %4766 = vmatprep.subr.bf16.mxu0 0
    %4767 = vmatpush1.bf16.msra.mxu0 %v4672
    %4768 = vmatprep.subr.bf16.mxu0 0
    %4769 = vmatpush1.bf16.msra.mxu0 %v4671
    %4770 = vmatprep.subr.bf16.mxu0 0
    %4771 = vmatpush1.bf16.msra.mxu0 %v4670
    %4772 = vmatprep.subr.bf16.mxu0 0
    %4773 = vmatpush1.bf16.msra.mxu0 %v4669
    %4774 = vmatprep.subr.bf16.mxu0 0
    %4775 = vmatpush2.bf16.msra.mxu0 %v4684
    %4776 = vmatprep.subr.bf16.mxu0 0
    %4777 = vmatpush2.bf16.msra.mxu0 %v4683
    %4778 = vmatprep.subr.bf16.mxu0 0
    %4779 = vmatpush2.bf16.msra.mxu0 %v4682
    %4780 = vmatprep.subr.bf16.mxu0 0
    %4781 = vmatpush2.bf16.msra.mxu0 %v4681
    %4782 = vmatprep.subr.bf16.mxu0 0
    %4783 = vmatpush2.bf16.msra.mxu0 %v4680
    %4784 = vmatprep.subr.bf16.mxu0 0
    %4785 = vmatpush2.bf16.msra.mxu0 %v4679
    %4786 = vmatprep.subr.bf16.mxu0 0
    %4787 = vmatpush2.bf16.msra.mxu0 %v4678
    %4788 = vmatprep.subr.bf16.mxu0 0
    %4789 = vmatpush2.bf16.msra.mxu0 %v4677
    %4790 = vmatprep.mubr.bf16.mxu0 %v3950
    %4791 = vmatmul.mubr.bf16.gmra.mxu0 %v3949
    %v4792 = vpop.f32.mrf.mxu0
    %v4793 = vadd.f32 %v4752, %v4792
    %v4794 = vpop.f32.mrf.mxu0
    %v4795 = vpop.f32.mrf.mxu0
    %v4796 = vadd.f32 %v4755, %v4795
    %v4797 = vpop.f32.mrf.mxu0
    %4798 = vdwg.mxu0
    %s4799 = scalar_lea.vmem %s5, 384
    %v4800 = vld [vmem:[%s4799] sm:$0xff]
    %v4801 = vld [vmem:[%s4799 + $0x8] sm:$0xff]
    %v4802 = vld [vmem:[%s4799 + $0x10] sm:$0xff]
    %v4803 = vld [vmem:[%s4799 + $0x18] sm:$0xff]
    %v4804 = vld [vmem:[%s4799 + $0x20] sm:$0xff]
    %v4805 = vld [vmem:[%s4799 + $0x28] sm:$0xff]
    %v4806 = vld [vmem:[%s4799 + $0x30] sm:$0xff]
    %v4807 = vld [vmem:[%s4799 + $0x38] sm:$0xff]
    %s4808 = scalar_lea.vmem %s8, 24
    %v4809 = vld [vmem:[%s4808] sm:$0xf]
    %v4811 = vlaneseq
    %v4812 = vshrl.u32 %v4811, 7
    %v4813 = vsub.s32 0, %v4812
    %v4814 = vrot.slane %v4809, %v4813
    %v4815 = vlaneseq
    %v4816 = vshrl.u32 %v4815, 7
    %v4817 = vsub.s32 1, %v4816
    %v4818 = vrot.slane %v4809, %v4817
    %v4819 = vlaneseq
    %v4820 = vshrl.u32 %v4819, 7
    %v4821 = vsub.s32 2, %v4820
    %v4822 = vrot.slane %v4809, %v4821
    %v4823 = vlaneseq
    %v4824 = vshrl.u32 %v4823, 7
    %v4825 = vsub.s32 3, %v4824
    %v4826 = vrot.slane %v4809, %v4825
    %v4839 = vunpack.c.l.b16 %v4800
    %v4840 = vunpack.c.h.b16 %v4800
    %v4841 = vunpack.c.l.b16 %v4801
    %v4842 = vunpack.c.h.b16 %v4801
    %v4843 = vunpack.c.l.b16 %v4802
    %v4844 = vunpack.c.h.b16 %v4802
    %v4845 = vunpack.c.l.b16 %v4803
    %v4846 = vunpack.c.h.b16 %v4803
    %v4847 = vunpack.c.l.b16 %v4804
    %v4848 = vunpack.c.h.b16 %v4804
    %v4849 = vunpack.c.l.b16 %v4805
    %v4850 = vunpack.c.h.b16 %v4805
    %v4851 = vunpack.c.l.b16 %v4806
    %v4852 = vunpack.c.h.b16 %v4806
    %v4853 = vunpack.c.l.b16 %v4807
    %v4854 = vunpack.c.h.b16 %v4807
    %v4855 = vpack.c.b16 %v4843, %v4839
    %v4856 = vpack.c.b16 %v4844, %v4840
    %v4857 = vpack.c.b16 %v4845, %v4841
    %v4858 = vpack.c.b16 %v4846, %v4842
    %v4859 = vpack.c.b16 %v4851, %v4847
    %v4860 = vpack.c.b16 %v4852, %v4848
    %v4861 = vpack.c.b16 %v4853, %v4849
    %v4862 = vpack.c.b16 %v4854, %v4850
    %4871 = vmatprep.subr.bf16.mxu0 0
    %4872 = vmatpush1.bf16.msra.mxu0 0
    %4873 = vmatprep.subr.bf16.mxu0 0
    %4874 = vmatpush1.bf16.msra.mxu0 0
    %4875 = vmatprep.subr.bf16.mxu0 0
    %4876 = vmatpush1.bf16.msra.mxu0 0
    %4877 = vmatprep.subr.bf16.mxu0 0
    %4878 = vmatpush1.bf16.msra.mxu0 0
    %4879 = vmatprep.subr.bf16.mxu0 0
    %4880 = vmatpush1.bf16.msra.mxu0 0
    %4881 = vmatprep.subr.bf16.mxu0 0
    %4882 = vmatpush1.bf16.msra.mxu0 0
    %4883 = vmatprep.subr.bf16.mxu0 %v4860
    %4884 = vmatpush1.bf16.msra.mxu0 %v4859
    %4885 = vmatprep.subr.bf16.mxu0 %v4856
    %4886 = vmatpush1.bf16.msra.mxu0 %v4855
    %4887 = vmatprep.subr.bf16.mxu0 0
    %4888 = vmatpush2.bf16.msra.mxu0 0
    %4889 = vmatprep.subr.bf16.mxu0 0
    %4890 = vmatpush2.bf16.msra.mxu0 0
    %4891 = vmatprep.subr.bf16.mxu0 0
    %4892 = vmatpush2.bf16.msra.mxu0 0
    %4893 = vmatprep.subr.bf16.mxu0 0
    %4894 = vmatpush2.bf16.msra.mxu0 0
    %4895 = vmatprep.subr.bf16.mxu0 0
    %4896 = vmatpush2.bf16.msra.mxu0 0
    %4897 = vmatprep.subr.bf16.mxu0 0
    %4898 = vmatpush2.bf16.msra.mxu0 0
    %4899 = vmatprep.subr.bf16.mxu0 0
    %4900 = vmatpush2.bf16.msra.mxu0 0
    %4901 = vmatprep.subr.bf16.mxu0 0
    %4902 = vmatpush2.bf16.msra.mxu0 0
    %4903 = vmatprep.mubr.bf16.mxu0 0
    %4904 = vmatmul.mubr.bf16.gmra.mxu0 %v3851
    %v4905 = vpop.f32.mrf.mxu0
    %v4906 = vadd.f32 %v4814, %v4905
    %v4907 = vpop.f32.mrf.mxu0
    %v4908 = vadd.f32 %v4818, %v4907
    %v4909 = vpop.f32.mrf.mxu0
    %v4910 = vadd.f32 %v4814, %v4909
    %v4911 = vpop.f32.mrf.mxu0
    %v4912 = vadd.f32 %v4818, %v4911
    %4913 = vdwg.mxu0
    %4914 = vmatprep.subr.bf16.mxu0 0
    %4915 = vmatpush1.bf16.msra.mxu0 0
    %4916 = vmatprep.subr.bf16.mxu0 0
    %4917 = vmatpush1.bf16.msra.mxu0 0
    %4918 = vmatprep.subr.bf16.mxu0 0
    %4919 = vmatpush1.bf16.msra.mxu0 0
    %4920 = vmatprep.subr.bf16.mxu0 0
    %4921 = vmatpush1.bf16.msra.mxu0 0
    %4922 = vmatprep.subr.bf16.mxu0 0
    %4923 = vmatpush1.bf16.msra.mxu0 0
    %4924 = vmatprep.subr.bf16.mxu0 0
    %4925 = vmatpush1.bf16.msra.mxu0 0
    %4926 = vmatprep.subr.bf16.mxu0 %v4862
    %4927 = vmatpush1.bf16.msra.mxu0 %v4861
    %4928 = vmatprep.subr.bf16.mxu0 %v4858
    %4929 = vmatpush1.bf16.msra.mxu0 %v4857
    %4930 = vmatprep.subr.bf16.mxu0 0
    %4931 = vmatpush2.bf16.msra.mxu0 0
    %4932 = vmatprep.subr.bf16.mxu0 0
    %4933 = vmatpush2.bf16.msra.mxu0 0
    %4934 = vmatprep.subr.bf16.mxu0 0
    %4935 = vmatpush2.bf16.msra.mxu0 0
    %4936 = vmatprep.subr.bf16.mxu0 0
    %4937 = vmatpush2.bf16.msra.mxu0 0
    %4938 = vmatprep.subr.bf16.mxu0 0
    %4939 = vmatpush2.bf16.msra.mxu0 0
    %4940 = vmatprep.subr.bf16.mxu0 0
    %4941 = vmatpush2.bf16.msra.mxu0 0
    %4942 = vmatprep.subr.bf16.mxu0 0
    %4943 = vmatpush2.bf16.msra.mxu0 0
    %4944 = vmatprep.subr.bf16.mxu0 0
    %4945 = vmatpush2.bf16.msra.mxu0 0
    %4946 = vmatprep.mubr.bf16.mxu0 0
    %4947 = vmatmul.mubr.bf16.gmra.mxu0 %v3851
    %v4948 = vpop.f32.mrf.mxu0
    %v4949 = vadd.f32 %v4822, %v4948
    %v4950 = vpop.f32.mrf.mxu0
    %v4951 = vadd.f32 %v4826, %v4950
    %v4952 = vpop.f32.mrf.mxu0
    %v4953 = vadd.f32 %v4822, %v4952
    %v4954 = vpop.f32.mrf.mxu0
    %v4955 = vadd.f32 %v4826, %v4954
    %4956 = vdwg.mxu0
    %v4957 = vmax.f32 %v4906, 0.0
    %v4958 = vmax.f32 %v4908, 0.0
    %v4959 = vmax.f32 %v4949, 0.0
    %v4960 = vmax.f32 %v4951, 0.0
    %v4961 = vmax.f32 %v4910, 0.0
    %v4962 = vmax.f32 %v4912, 0.0
    %v4963 = vmax.f32 %v4953, 0.0
    %v4964 = vmax.f32 %v4955, 0.0
    %v4965 = vpack.c.bf16 %v4961, %v4957
    %v4966 = vpack.c.bf16 %v4962, %v4958
    %v4967 = vpack.c.bf16 %v4963, %v4959
    %v4968 = vpack.c.bf16 %v4964, %v4960
    %s4969 = scalar_lea.vmem %s6, 1536
    %v4970 = vld [vmem:[%s4969] sm:$0xf]
    %v4971 = vld [vmem:[%s4969 + $0x4] sm:$0xf]
    %v4972 = vld [vmem:[%s4969 + $0x8] sm:$0xf]
    %v4973 = vld [vmem:[%s4969 + $0xc] sm:$0xf]
    %v4974 = vld [vmem:[%s4969 + $0x10] sm:$0xf]
    %v4975 = vld [vmem:[%s4969 + $0x14] sm:$0xf]
    %v4976 = vld [vmem:[%s4969 + $0x18] sm:$0xf]
    %v4977 = vld [vmem:[%s4969 + $0x1c] sm:$0xf]
    %v4978 = vld [vmem:[%s4969 + $0x20] sm:$0xf]
    %v4979 = vld [vmem:[%s4969 + $0x24] sm:$0xf]
    %v4980 = vld [vmem:[%s4969 + $0x28] sm:$0xf]
    %v4981 = vld [vmem:[%s4969 + $0x2c] sm:$0xf]
    %v4982 = vld [vmem:[%s4969 + $0x30] sm:$0xf]
    %v4983 = vld [vmem:[%s4969 + $0x34] sm:$0xf]
    %v4984 = vld [vmem:[%s4969 + $0x38] sm:$0xf]
    %v4985 = vld [vmem:[%s4969 + $0x3c] sm:$0xf]
    %v4986 = vld [vmem:[%s4969 + $0x40] sm:$0xf]
    %v4987 = vld [vmem:[%s4969 + $0x44] sm:$0xf]
    %v4988 = vld [vmem:[%s4969 + $0x48] sm:$0xf]
    %v4989 = vld [vmem:[%s4969 + $0x4c] sm:$0xf]
    %v4990 = vld [vmem:[%s4969 + $0x50] sm:$0xf]
    %v4991 = vld [vmem:[%s4969 + $0x54] sm:$0xf]
    %v4992 = vld [vmem:[%s4969 + $0x58] sm:$0xf]
    %v4993 = vld [vmem:[%s4969 + $0x5c] sm:$0xf]
    %v4994 = vld [vmem:[%s4969 + $0x60] sm:$0xf]
    %v4995 = vld [vmem:[%s4969 + $0x64] sm:$0xf]
    %v4996 = vld [vmem:[%s4969 + $0x68] sm:$0xf]
    %v4997 = vld [vmem:[%s4969 + $0x6c] sm:$0xf]
    %v4998 = vld [vmem:[%s4969 + $0x70] sm:$0xf]
    %v4999 = vld [vmem:[%s4969 + $0x74] sm:$0xf]
    %v5000 = vld [vmem:[%s4969 + $0x78] sm:$0xf]
    %v5001 = vld [vmem:[%s4969 + $0x7c] sm:$0xf]
    %v5002 = vld [vmem:[%s4969 + $0x80] sm:$0xf]
    %v5003 = vld [vmem:[%s4969 + $0x84] sm:$0xf]
    %v5004 = vld [vmem:[%s4969 + $0x88] sm:$0xf]
    %v5005 = vld [vmem:[%s4969 + $0x8c] sm:$0xf]
    %v5006 = vld [vmem:[%s4969 + $0x90] sm:$0xf]
    %v5007 = vld [vmem:[%s4969 + $0x94] sm:$0xf]
    %v5008 = vld [vmem:[%s4969 + $0x98] sm:$0xf]
    %v5009 = vld [vmem:[%s4969 + $0x9c] sm:$0xf]
    %v5010 = vld [vmem:[%s4969 + $0xa0] sm:$0xf]
    %v5011 = vld [vmem:[%s4969 + $0xa4] sm:$0xf]
    %v5012 = vld [vmem:[%s4969 + $0xa8] sm:$0xf]
    %v5013 = vld [vmem:[%s4969 + $0xac] sm:$0xf]
    %v5014 = vld [vmem:[%s4969 + $0xb0] sm:$0xf]
    %v5015 = vld [vmem:[%s4969 + $0xb4] sm:$0xf]
    %v5016 = vld [vmem:[%s4969 + $0xb8] sm:$0xf]
    %v5017 = vld [vmem:[%s4969 + $0xbc] sm:$0xf]
    %v5018 = vld [vmem:[%s4969 + $0xc0] sm:$0xf]
    %v5019 = vld [vmem:[%s4969 + $0xc4] sm:$0xf]
    %v5020 = vld [vmem:[%s4969 + $0xc8] sm:$0xf]
    %v5021 = vld [vmem:[%s4969 + $0xcc] sm:$0xf]
    %v5022 = vld [vmem:[%s4969 + $0xd0] sm:$0xf]
    %v5023 = vld [vmem:[%s4969 + $0xd4] sm:$0xf]
    %v5024 = vld [vmem:[%s4969 + $0xd8] sm:$0xf]
    %v5025 = vld [vmem:[%s4969 + $0xdc] sm:$0xf]
    %v5026 = vld [vmem:[%s4969 + $0xe0] sm:$0xf]
    %v5027 = vld [vmem:[%s4969 + $0xe4] sm:$0xf]
    %v5028 = vld [vmem:[%s4969 + $0xe8] sm:$0xf]
    %v5029 = vld [vmem:[%s4969 + $0xec] sm:$0xf]
    %v5030 = vld [vmem:[%s4969 + $0xf0] sm:$0xf]
    %v5031 = vld [vmem:[%s4969 + $0xf4] sm:$0xf]
    %v5032 = vld [vmem:[%s4969 + $0xf8] sm:$0xf]
    %v5033 = vld [vmem:[%s4969 + $0xfc] sm:$0xf]
    %v5098 = vunpack.c.l.b16 %v4970
    %v5099 = vunpack.c.l.b16 %v4971
    %v5100 = vunpack.c.l.b16 %v4972
    %v5101 = vunpack.c.l.b16 %v4973
    %v5102 = vunpack.c.l.b16 %v4974
    %v5103 = vunpack.c.l.b16 %v4975
    %v5104 = vunpack.c.l.b16 %v4976
    %v5105 = vunpack.c.l.b16 %v4977
    %v5106 = vunpack.c.l.b16 %v4978
    %v5107 = vunpack.c.l.b16 %v4979
    %v5108 = vunpack.c.l.b16 %v4980
    %v5109 = vunpack.c.l.b16 %v4981
    %v5110 = vunpack.c.l.b16 %v4982
    %v5111 = vunpack.c.l.b16 %v4983
    %v5112 = vunpack.c.l.b16 %v4984
    %v5113 = vunpack.c.l.b16 %v4985
    %v5114 = vunpack.c.l.b16 %v4986
    %v5115 = vunpack.c.l.b16 %v4987
    %v5116 = vunpack.c.l.b16 %v4988
    %v5117 = vunpack.c.l.b16 %v4989
    %v5118 = vunpack.c.l.b16 %v4990
    %v5119 = vunpack.c.l.b16 %v4991
    %v5120 = vunpack.c.l.b16 %v4992
    %v5121 = vunpack.c.l.b16 %v4993
    %v5122 = vunpack.c.l.b16 %v4994
    %v5123 = vunpack.c.l.b16 %v4995
    %v5124 = vunpack.c.l.b16 %v4996
    %v5125 = vunpack.c.l.b16 %v4997
    %v5126 = vunpack.c.l.b16 %v4998
    %v5127 = vunpack.c.l.b16 %v4999
    %v5128 = vunpack.c.l.b16 %v5000
    %v5129 = vunpack.c.l.b16 %v5001
    %v5130 = vunpack.c.l.b16 %v5002
    %v5131 = vunpack.c.l.b16 %v5003
    %v5132 = vunpack.c.l.b16 %v5004
    %v5133 = vunpack.c.l.b16 %v5005
    %v5134 = vunpack.c.l.b16 %v5006
    %v5135 = vunpack.c.l.b16 %v5007
    %v5136 = vunpack.c.l.b16 %v5008
    %v5137 = vunpack.c.l.b16 %v5009
    %v5138 = vunpack.c.l.b16 %v5010
    %v5139 = vunpack.c.l.b16 %v5011
    %v5140 = vunpack.c.l.b16 %v5012
    %v5141 = vunpack.c.l.b16 %v5013
    %v5142 = vunpack.c.l.b16 %v5014
    %v5143 = vunpack.c.l.b16 %v5015
    %v5144 = vunpack.c.l.b16 %v5016
    %v5145 = vunpack.c.l.b16 %v5017
    %v5146 = vunpack.c.l.b16 %v5018
    %v5147 = vunpack.c.l.b16 %v5019
    %v5148 = vunpack.c.l.b16 %v5020
    %v5149 = vunpack.c.l.b16 %v5021
    %v5150 = vunpack.c.l.b16 %v5022
    %v5151 = vunpack.c.l.b16 %v5023
    %v5152 = vunpack.c.l.b16 %v5024
    %v5153 = vunpack.c.l.b16 %v5025
    %v5154 = vunpack.c.l.b16 %v5026
    %v5155 = vunpack.c.l.b16 %v5027
    %v5156 = vunpack.c.l.b16 %v5028
    %v5157 = vunpack.c.l.b16 %v5029
    %v5158 = vunpack.c.l.b16 %v5030
    %v5159 = vunpack.c.l.b16 %v5031
    %v5160 = vunpack.c.l.b16 %v5032
    %v5161 = vunpack.c.l.b16 %v5033
    %v5162 = vpack.c.b16 %v5099, %v5098
    %v5163 = vpack.c.b16 %v5101, %v5100
    %v5164 = vpack.c.b16 %v5103, %v5102
    %v5165 = vpack.c.b16 %v5105, %v5104
    %v5166 = vpack.c.b16 %v5107, %v5106
    %v5167 = vpack.c.b16 %v5109, %v5108
    %v5168 = vpack.c.b16 %v5111, %v5110
    %v5169 = vpack.c.b16 %v5113, %v5112
    %v5170 = vpack.c.b16 %v5115, %v5114
    %v5171 = vpack.c.b16 %v5117, %v5116
    %v5172 = vpack.c.b16 %v5119, %v5118
    %v5173 = vpack.c.b16 %v5121, %v5120
    %v5174 = vpack.c.b16 %v5123, %v5122
    %v5175 = vpack.c.b16 %v5125, %v5124
    %v5176 = vpack.c.b16 %v5127, %v5126
    %v5177 = vpack.c.b16 %v5129, %v5128
    %v5178 = vpack.c.b16 %v5131, %v5130
    %v5179 = vpack.c.b16 %v5133, %v5132
    %v5180 = vpack.c.b16 %v5135, %v5134
    %v5181 = vpack.c.b16 %v5137, %v5136
    %v5182 = vpack.c.b16 %v5139, %v5138
    %v5183 = vpack.c.b16 %v5141, %v5140
    %v5184 = vpack.c.b16 %v5143, %v5142
    %v5185 = vpack.c.b16 %v5145, %v5144
    %v5186 = vpack.c.b16 %v5147, %v5146
    %v5187 = vpack.c.b16 %v5149, %v5148
    %v5188 = vpack.c.b16 %v5151, %v5150
    %v5189 = vpack.c.b16 %v5153, %v5152
    %v5190 = vpack.c.b16 %v5155, %v5154
    %v5191 = vpack.c.b16 %v5157, %v5156
    %v5192 = vpack.c.b16 %v5159, %v5158
    %v5193 = vpack.c.b16 %v5161, %v5160
    %5226 = vmatprep.subr.bf16.mxu0 0
    %5227 = vmatpush1.bf16.msra.mxu0 %v5169
    %5228 = vmatprep.subr.bf16.mxu0 0
    %5229 = vmatpush1.bf16.msra.mxu0 %v5168
    %5230 = vmatprep.subr.bf16.mxu0 0
    %5231 = vmatpush1.bf16.msra.mxu0 %v5167
    %5232 = vmatprep.subr.bf16.mxu0 0
    %5233 = vmatpush1.bf16.msra.mxu0 %v5166
    %5234 = vmatprep.subr.bf16.mxu0 0
    %5235 = vmatpush1.bf16.msra.mxu0 %v5165
    %5236 = vmatprep.subr.bf16.mxu0 0
    %5237 = vmatpush1.bf16.msra.mxu0 %v5164
    %5238 = vmatprep.subr.bf16.mxu0 0
    %5239 = vmatpush1.bf16.msra.mxu0 %v5163
    %5240 = vmatprep.subr.bf16.mxu0 0
    %5241 = vmatpush1.bf16.msra.mxu0 %v5162
    %5242 = vmatprep.subr.bf16.mxu0 0
    %5243 = vmatpush2.bf16.msra.mxu0 %v5177
    %5244 = vmatprep.subr.bf16.mxu0 0
    %5245 = vmatpush2.bf16.msra.mxu0 %v5176
    %5246 = vmatprep.subr.bf16.mxu0 0
    %5247 = vmatpush2.bf16.msra.mxu0 %v5175
    %5248 = vmatprep.subr.bf16.mxu0 0
    %5249 = vmatpush2.bf16.msra.mxu0 %v5174
    %5250 = vmatprep.subr.bf16.mxu0 0
    %5251 = vmatpush2.bf16.msra.mxu0 %v5173
    %5252 = vmatprep.subr.bf16.mxu0 0
    %5253 = vmatpush2.bf16.msra.mxu0 %v5172
    %5254 = vmatprep.subr.bf16.mxu0 0
    %5255 = vmatpush2.bf16.msra.mxu0 %v5171
    %5256 = vmatprep.subr.bf16.mxu0 0
    %5257 = vmatpush2.bf16.msra.mxu0 %v5170
    %5258 = vmatprep.mubr.bf16.mxu0 %v4966
    %5259 = vmatmul.mubr.bf16.gmra.mxu0 %v4965
    %v5260 = vpop.f32.mrf.mxu0
    %v5261 = vadd.f32 0.0, %v5260
    %v5262 = vpop.f32.mrf.mxu0
    %v5263 = vpop.f32.mrf.mxu0
    %v5264 = vadd.f32 0.0, %v5263
    %v5265 = vpop.f32.mrf.mxu0
    %5266 = vdwg.mxu0
    %5267 = vmatprep.subr.bf16.mxu0 0
    %5268 = vmatpush1.bf16.msra.mxu0 %v5185
    %5269 = vmatprep.subr.bf16.mxu0 0
    %5270 = vmatpush1.bf16.msra.mxu0 %v5184
    %5271 = vmatprep.subr.bf16.mxu0 0
    %5272 = vmatpush1.bf16.msra.mxu0 %v5183
    %5273 = vmatprep.subr.bf16.mxu0 0
    %5274 = vmatpush1.bf16.msra.mxu0 %v5182
    %5275 = vmatprep.subr.bf16.mxu0 0
    %5276 = vmatpush1.bf16.msra.mxu0 %v5181
    %5277 = vmatprep.subr.bf16.mxu0 0
    %5278 = vmatpush1.bf16.msra.mxu0 %v5180
    %5279 = vmatprep.subr.bf16.mxu0 0
    %5280 = vmatpush1.bf16.msra.mxu0 %v5179
    %5281 = vmatprep.subr.bf16.mxu0 0
    %5282 = vmatpush1.bf16.msra.mxu0 %v5178
    %5283 = vmatprep.subr.bf16.mxu0 0
    %5284 = vmatpush2.bf16.msra.mxu0 %v5193
    %5285 = vmatprep.subr.bf16.mxu0 0
    %5286 = vmatpush2.bf16.msra.mxu0 %v5192
    %5287 = vmatprep.subr.bf16.mxu0 0
    %5288 = vmatpush2.bf16.msra.mxu0 %v5191
    %5289 = vmatprep.subr.bf16.mxu0 0
    %5290 = vmatpush2.bf16.msra.mxu0 %v5190
    %5291 = vmatprep.subr.bf16.mxu0 0
    %5292 = vmatpush2.bf16.msra.mxu0 %v5189
    %5293 = vmatprep.subr.bf16.mxu0 0
    %5294 = vmatpush2.bf16.msra.mxu0 %v5188
    %5295 = vmatprep.subr.bf16.mxu0 0
    %5296 = vmatpush2.bf16.msra.mxu0 %v5187
    %5297 = vmatprep.subr.bf16.mxu0 0
    %5298 = vmatpush2.bf16.msra.mxu0 %v5186
    %5299 = vmatprep.mubr.bf16.mxu0 %v4968
    %5300 = vmatmul.mubr.bf16.gmra.mxu0 %v4967
    %v5301 = vpop.f32.mrf.mxu0
    %v5302 = vadd.f32 %v5261, %v5301
    %v5303 = vpop.f32.mrf.mxu0
    %v5304 = vpop.f32.mrf.mxu0
    %v5305 = vadd.f32 %v5264, %v5304
    %v5306 = vpop.f32.mrf.mxu0
    %5307 = vdwg.mxu0
    %v5308 = vadd.f32 %v4793, %v5302
    %v5309 = vadd.f32 %v4796, %v5305
    %s5310 = scalar_lea.vmem %s5, 448
    %v5311 = vld [vmem:[%s5310] sm:$0xff]
    %v5312 = vld [vmem:[%s5310 + $0x8] sm:$0xff]
    %v5313 = vld [vmem:[%s5310 + $0x10] sm:$0xff]
    %v5314 = vld [vmem:[%s5310 + $0x18] sm:$0xff]
    %v5315 = vld [vmem:[%s5310 + $0x20] sm:$0xff]
    %v5316 = vld [vmem:[%s5310 + $0x28] sm:$0xff]
    %v5317 = vld [vmem:[%s5310 + $0x30] sm:$0xff]
    %v5318 = vld [vmem:[%s5310 + $0x38] sm:$0xff]
    %s5319 = scalar_lea.vmem %s8, 28
    %v5320 = vld [vmem:[%s5319] sm:$0xf]
    %v5322 = vlaneseq
    %v5323 = vshrl.u32 %v5322, 7
    %v5324 = vsub.s32 0, %v5323
    %v5325 = vrot.slane %v5320, %v5324
    %v5326 = vlaneseq
    %v5327 = vshrl.u32 %v5326, 7
    %v5328 = vsub.s32 1, %v5327
    %v5329 = vrot.slane %v5320, %v5328
    %v5330 = vlaneseq
    %v5331 = vshrl.u32 %v5330, 7
    %v5332 = vsub.s32 2, %v5331
    %v5333 = vrot.slane %v5320, %v5332
    %v5334 = vlaneseq
    %v5335 = vshrl.u32 %v5334, 7
    %v5336 = vsub.s32 3, %v5335
    %v5337 = vrot.slane %v5320, %v5336
    %v5350 = vunpack.c.l.b16 %v5311
    %v5351 = vunpack.c.h.b16 %v5311
    %v5352 = vunpack.c.l.b16 %v5312
    %v5353 = vunpack.c.h.b16 %v5312
    %v5354 = vunpack.c.l.b16 %v5313
    %v5355 = vunpack.c.h.b16 %v5313
    %v5356 = vunpack.c.l.b16 %v5314
    %v5357 = vunpack.c.h.b16 %v5314
    %v5358 = vunpack.c.l.b16 %v5315
    %v5359 = vunpack.c.h.b16 %v5315
    %v5360 = vunpack.c.l.b16 %v5316
    %v5361 = vunpack.c.h.b16 %v5316
    %v5362 = vunpack.c.l.b16 %v5317
    %v5363 = vunpack.c.h.b16 %v5317
    %v5364 = vunpack.c.l.b16 %v5318
    %v5365 = vunpack.c.h.b16 %v5318
    %v5366 = vpack.c.b16 %v5354, %v5350
    %v5367 = vpack.c.b16 %v5355, %v5351
    %v5368 = vpack.c.b16 %v5356, %v5352
    %v5369 = vpack.c.b16 %v5357, %v5353
    %v5370 = vpack.c.b16 %v5362, %v5358
    %v5371 = vpack.c.b16 %v5363, %v5359
    %v5372 = vpack.c.b16 %v5364, %v5360
    %v5373 = vpack.c.b16 %v5365, %v5361
    %5382 = vmatprep.subr.bf16.mxu0 0
    %5383 = vmatpush1.bf16.msra.mxu0 0
    %5384 = vmatprep.subr.bf16.mxu0 0
    %5385 = vmatpush1.bf16.msra.mxu0 0
    %5386 = vmatprep.subr.bf16.mxu0 0
    %5387 = vmatpush1.bf16.msra.mxu0 0
    %5388 = vmatprep.subr.bf16.mxu0 0
    %5389 = vmatpush1.bf16.msra.mxu0 0
    %5390 = vmatprep.subr.bf16.mxu0 0
    %5391 = vmatpush1.bf16.msra.mxu0 0
    %5392 = vmatprep.subr.bf16.mxu0 0
    %5393 = vmatpush1.bf16.msra.mxu0 0
    %5394 = vmatprep.subr.bf16.mxu0 %v5371
    %5395 = vmatpush1.bf16.msra.mxu0 %v5370
    %5396 = vmatprep.subr.bf16.mxu0 %v5367
    %5397 = vmatpush1.bf16.msra.mxu0 %v5366
    %5398 = vmatprep.subr.bf16.mxu0 0
    %5399 = vmatpush2.bf16.msra.mxu0 0
    %5400 = vmatprep.subr.bf16.mxu0 0
    %5401 = vmatpush2.bf16.msra.mxu0 0
    %5402 = vmatprep.subr.bf16.mxu0 0
    %5403 = vmatpush2.bf16.msra.mxu0 0
    %5404 = vmatprep.subr.bf16.mxu0 0
    %5405 = vmatpush2.bf16.msra.mxu0 0
    %5406 = vmatprep.subr.bf16.mxu0 0
    %5407 = vmatpush2.bf16.msra.mxu0 0
    %5408 = vmatprep.subr.bf16.mxu0 0
    %5409 = vmatpush2.bf16.msra.mxu0 0
    %5410 = vmatprep.subr.bf16.mxu0 0
    %5411 = vmatpush2.bf16.msra.mxu0 0
    %5412 = vmatprep.subr.bf16.mxu0 0
    %5413 = vmatpush2.bf16.msra.mxu0 0
    %5414 = vmatprep.mubr.bf16.mxu0 0
    %5415 = vmatmul.mubr.bf16.gmra.mxu0 %v3851
    %v5416 = vpop.f32.mrf.mxu0
    %v5417 = vadd.f32 %v5325, %v5416
    %v5418 = vpop.f32.mrf.mxu0
    %v5419 = vadd.f32 %v5329, %v5418
    %v5420 = vpop.f32.mrf.mxu0
    %v5421 = vadd.f32 %v5325, %v5420
    %v5422 = vpop.f32.mrf.mxu0
    %v5423 = vadd.f32 %v5329, %v5422
    %5424 = vdwg.mxu0
    %5425 = vmatprep.subr.bf16.mxu0 0
    %5426 = vmatpush1.bf16.msra.mxu0 0
    %5427 = vmatprep.subr.bf16.mxu0 0
    %5428 = vmatpush1.bf16.msra.mxu0 0
    %5429 = vmatprep.subr.bf16.mxu0 0
    %5430 = vmatpush1.bf16.msra.mxu0 0
    %5431 = vmatprep.subr.bf16.mxu0 0
    %5432 = vmatpush1.bf16.msra.mxu0 0
    %5433 = vmatprep.subr.bf16.mxu0 0
    %5434 = vmatpush1.bf16.msra.mxu0 0
    %5435 = vmatprep.subr.bf16.mxu0 0
    %5436 = vmatpush1.bf16.msra.mxu0 0
    %5437 = vmatprep.subr.bf16.mxu0 %v5373
    %5438 = vmatpush1.bf16.msra.mxu0 %v5372
    %5439 = vmatprep.subr.bf16.mxu0 %v5369
    %5440 = vmatpush1.bf16.msra.mxu0 %v5368
    %5441 = vmatprep.subr.bf16.mxu0 0
    %5442 = vmatpush2.bf16.msra.mxu0 0
    %5443 = vmatprep.subr.bf16.mxu0 0
    %5444 = vmatpush2.bf16.msra.mxu0 0
    %5445 = vmatprep.subr.bf16.mxu0 0
    %5446 = vmatpush2.bf16.msra.mxu0 0
    %5447 = vmatprep.subr.bf16.mxu0 0
    %5448 = vmatpush2.bf16.msra.mxu0 0
    %5449 = vmatprep.subr.bf16.mxu0 0
    %5450 = vmatpush2.bf16.msra.mxu0 0
    %5451 = vmatprep.subr.bf16.mxu0 0
    %5452 = vmatpush2.bf16.msra.mxu0 0
    %5453 = vmatprep.subr.bf16.mxu0 0
    %5454 = vmatpush2.bf16.msra.mxu0 0
    %5455 = vmatprep.subr.bf16.mxu0 0
    %5456 = vmatpush2.bf16.msra.mxu0 0
    %5457 = vmatprep.mubr.bf16.mxu0 0
    %5458 = vmatmul.mubr.bf16.gmra.mxu0 %v3851
    %v5459 = vpop.f32.mrf.mxu0
    %v5460 = vadd.f32 %v5333, %v5459
    %v5461 = vpop.f32.mrf.mxu0
    %v5462 = vadd.f32 %v5337, %v5461
    %v5463 = vpop.f32.mrf.mxu0
    %v5464 = vadd.f32 %v5333, %v5463
    %v5465 = vpop.f32.mrf.mxu0
    %v5466 = vadd.f32 %v5337, %v5465
    %5467 = vdwg.mxu0
    %v5468 = vmax.f32 %v5417, 0.0
    %v5469 = vmax.f32 %v5419, 0.0
    %v5470 = vmax.f32 %v5460, 0.0
    %v5471 = vmax.f32 %v5462, 0.0
    %v5472 = vmax.f32 %v5421, 0.0
    %v5473 = vmax.f32 %v5423, 0.0
    %v5474 = vmax.f32 %v5464, 0.0
    %v5475 = vmax.f32 %v5466, 0.0
    %v5476 = vpack.c.bf16 %v5472, %v5468
    %v5477 = vpack.c.bf16 %v5473, %v5469
    %v5478 = vpack.c.bf16 %v5474, %v5470
    %v5479 = vpack.c.bf16 %v5475, %v5471
    %s5480 = scalar_lea.vmem %s6, 1792
    %v5481 = vld [vmem:[%s5480] sm:$0xf]
    %v5482 = vld [vmem:[%s5480 + $0x4] sm:$0xf]
    %v5483 = vld [vmem:[%s5480 + $0x8] sm:$0xf]
    %v5484 = vld [vmem:[%s5480 + $0xc] sm:$0xf]
    %v5485 = vld [vmem:[%s5480 + $0x10] sm:$0xf]
    %v5486 = vld [vmem:[%s5480 + $0x14] sm:$0xf]
    %v5487 = vld [vmem:[%s5480 + $0x18] sm:$0xf]
    %v5488 = vld [vmem:[%s5480 + $0x1c] sm:$0xf]
    %v5489 = vld [vmem:[%s5480 + $0x20] sm:$0xf]
    %v5490 = vld [vmem:[%s5480 + $0x24] sm:$0xf]
    %v5491 = vld [vmem:[%s5480 + $0x28] sm:$0xf]
    %v5492 = vld [vmem:[%s5480 + $0x2c] sm:$0xf]
    %v5493 = vld [vmem:[%s5480 + $0x30] sm:$0xf]
    %v5494 = vld [vmem:[%s5480 + $0x34] sm:$0xf]
    %v5495 = vld [vmem:[%s5480 + $0x38] sm:$0xf]
    %v5496 = vld [vmem:[%s5480 + $0x3c] sm:$0xf]
    %v5497 = vld [vmem:[%s5480 + $0x40] sm:$0xf]
    %v5498 = vld [vmem:[%s5480 + $0x44] sm:$0xf]
    %v5499 = vld [vmem:[%s5480 + $0x48] sm:$0xf]
    %v5500 = vld [vmem:[%s5480 + $0x4c] sm:$0xf]
    %v5501 = vld [vmem:[%s5480 + $0x50] sm:$0xf]
    %v5502 = vld [vmem:[%s5480 + $0x54] sm:$0xf]
    %v5503 = vld [vmem:[%s5480 + $0x58] sm:$0xf]
    %v5504 = vld [vmem:[%s5480 + $0x5c] sm:$0xf]
    %v5505 = vld [vmem:[%s5480 + $0x60] sm:$0xf]
    %v5506 = vld [vmem:[%s5480 + $0x64] sm:$0xf]
    %v5507 = vld [vmem:[%s5480 + $0x68] sm:$0xf]
    %v5508 = vld [vmem:[%s5480 + $0x6c] sm:$0xf]
    %v5509 = vld [vmem:[%s5480 + $0x70] sm:$0xf]
    %v5510 = vld [vmem:[%s5480 + $0x74] sm:$0xf]
    %v5511 = vld [vmem:[%s5480 + $0x78] sm:$0xf]
    %v5512 = vld [vmem:[%s5480 + $0x7c] sm:$0xf]
    %v5513 = vld [vmem:[%s5480 + $0x80] sm:$0xf]
    %v5514 = vld [vmem:[%s5480 + $0x84] sm:$0xf]
    %v5515 = vld [vmem:[%s5480 + $0x88] sm:$0xf]
    %v5516 = vld [vmem:[%s5480 + $0x8c] sm:$0xf]
    %v5517 = vld [vmem:[%s5480 + $0x90] sm:$0xf]
    %v5518 = vld [vmem:[%s5480 + $0x94] sm:$0xf]
    %v5519 = vld [vmem:[%s5480 + $0x98] sm:$0xf]
    %v5520 = vld [vmem:[%s5480 + $0x9c] sm:$0xf]
    %v5521 = vld [vmem:[%s5480 + $0xa0] sm:$0xf]
    %v5522 = vld [vmem:[%s5480 + $0xa4] sm:$0xf]
    %v5523 = vld [vmem:[%s5480 + $0xa8] sm:$0xf]
    %v5524 = vld [vmem:[%s5480 + $0xac] sm:$0xf]
    %v5525 = vld [vmem:[%s5480 + $0xb0] sm:$0xf]
    %v5526 = vld [vmem:[%s5480 + $0xb4] sm:$0xf]
    %v5527 = vld [vmem:[%s5480 + $0xb8] sm:$0xf]
    %v5528 = vld [vmem:[%s5480 + $0xbc] sm:$0xf]
    %v5529 = vld [vmem:[%s5480 + $0xc0] sm:$0xf]
    %v5530 = vld [vmem:[%s5480 + $0xc4] sm:$0xf]
    %v5531 = vld [vmem:[%s5480 + $0xc8] sm:$0xf]
    %v5532 = vld [vmem:[%s5480 + $0xcc] sm:$0xf]
    %v5533 = vld [vmem:[%s5480 + $0xd0] sm:$0xf]
    %v5534 = vld [vmem:[%s5480 + $0xd4] sm:$0xf]
    %v5535 = vld [vmem:[%s5480 + $0xd8] sm:$0xf]
    %v5536 = vld [vmem:[%s5480 + $0xdc] sm:$0xf]
    %v5537 = vld [vmem:[%s5480 + $0xe0] sm:$0xf]
    %v5538 = vld [vmem:[%s5480 + $0xe4] sm:$0xf]
    %v5539 = vld [vmem:[%s5480 + $0xe8] sm:$0xf]
    %v5540 = vld [vmem:[%s5480 + $0xec] sm:$0xf]
    %v5541 = vld [vmem:[%s5480 + $0xf0] sm:$0xf]
    %v5542 = vld [vmem:[%s5480 + $0xf4] sm:$0xf]
    %v5543 = vld [vmem:[%s5480 + $0xf8] sm:$0xf]
    %v5544 = vld [vmem:[%s5480 + $0xfc] sm:$0xf]
    %v5609 = vunpack.c.l.b16 %v5481
    %v5610 = vunpack.c.l.b16 %v5482
    %v5611 = vunpack.c.l.b16 %v5483
    %v5612 = vunpack.c.l.b16 %v5484
    %v5613 = vunpack.c.l.b16 %v5485
    %v5614 = vunpack.c.l.b16 %v5486
    %v5615 = vunpack.c.l.b16 %v5487
    %v5616 = vunpack.c.l.b16 %v5488
    %v5617 = vunpack.c.l.b16 %v5489
    %v5618 = vunpack.c.l.b16 %v5490
    %v5619 = vunpack.c.l.b16 %v5491
    %v5620 = vunpack.c.l.b16 %v5492
    %v5621 = vunpack.c.l.b16 %v5493
    %v5622 = vunpack.c.l.b16 %v5494
    %v5623 = vunpack.c.l.b16 %v5495
    %v5624 = vunpack.c.l.b16 %v5496
    %v5625 = vunpack.c.l.b16 %v5497
    %v5626 = vunpack.c.l.b16 %v5498
    %v5627 = vunpack.c.l.b16 %v5499
    %v5628 = vunpack.c.l.b16 %v5500
    %v5629 = vunpack.c.l.b16 %v5501
    %v5630 = vunpack.c.l.b16 %v5502
    %v5631 = vunpack.c.l.b16 %v5503
    %v5632 = vunpack.c.l.b16 %v5504
    %v5633 = vunpack.c.l.b16 %v5505
    %v5634 = vunpack.c.l.b16 %v5506
    %v5635 = vunpack.c.l.b16 %v5507
    %v5636 = vunpack.c.l.b16 %v5508
    %v5637 = vunpack.c.l.b16 %v5509
    %v5638 = vunpack.c.l.b16 %v5510
    %v5639 = vunpack.c.l.b16 %v5511
    %v5640 = vunpack.c.l.b16 %v5512
    %v5641 = vunpack.c.l.b16 %v5513
    %v5642 = vunpack.c.l.b16 %v5514
    %v5643 = vunpack.c.l.b16 %v5515
    %v5644 = vunpack.c.l.b16 %v5516
    %v5645 = vunpack.c.l.b16 %v5517
    %v5646 = vunpack.c.l.b16 %v5518
    %v5647 = vunpack.c.l.b16 %v5519
    %v5648 = vunpack.c.l.b16 %v5520
    %v5649 = vunpack.c.l.b16 %v5521
    %v5650 = vunpack.c.l.b16 %v5522
    %v5651 = vunpack.c.l.b16 %v5523
    %v5652 = vunpack.c.l.b16 %v5524
    %v5653 = vunpack.c.l.b16 %v5525
    %v5654 = vunpack.c.l.b16 %v5526
    %v5655 = vunpack.c.l.b16 %v5527
    %v5656 = vunpack.c.l.b16 %v5528
    %v5657 = vunpack.c.l.b16 %v5529
    %v5658 = vunpack.c.l.b16 %v5530
    %v5659 = vunpack.c.l.b16 %v5531
    %v5660 = vunpack.c.l.b16 %v5532
    %v5661 = vunpack.c.l.b16 %v5533
    %v5662 = vunpack.c.l.b16 %v5534
    %v5663 = vunpack.c.l.b16 %v5535
    %v5664 = vunpack.c.l.b16 %v5536
    %v5665 = vunpack.c.l.b16 %v5537
    %v5666 = vunpack.c.l.b16 %v5538
    %v5667 = vunpack.c.l.b16 %v5539
    %v5668 = vunpack.c.l.b16 %v5540
    %v5669 = vunpack.c.l.b16 %v5541
    %v5670 = vunpack.c.l.b16 %v5542
    %v5671 = vunpack.c.l.b16 %v5543
    %v5672 = vunpack.c.l.b16 %v5544
    %v5673 = vpack.c.b16 %v5610, %v5609
    %v5674 = vpack.c.b16 %v5612, %v5611
    %v5675 = vpack.c.b16 %v5614, %v5613
    %v5676 = vpack.c.b16 %v5616, %v5615
    %v5677 = vpack.c.b16 %v5618, %v5617
    %v5678 = vpack.c.b16 %v5620, %v5619
    %v5679 = vpack.c.b16 %v5622, %v5621
    %v5680 = vpack.c.b16 %v5624, %v5623
    %v5681 = vpack.c.b16 %v5626, %v5625
    %v5682 = vpack.c.b16 %v5628, %v5627
    %v5683 = vpack.c.b16 %v5630, %v5629
    %v5684 = vpack.c.b16 %v5632, %v5631
    %v5685 = vpack.c.b16 %v5634, %v5633
    %v5686 = vpack.c.b16 %v5636, %v5635
    %v5687 = vpack.c.b16 %v5638, %v5637
    %v5688 = vpack.c.b16 %v5640, %v5639
    %v5689 = vpack.c.b16 %v5642, %v5641
    %v5690 = vpack.c.b16 %v5644, %v5643
    %v5691 = vpack.c.b16 %v5646, %v5645
    %v5692 = vpack.c.b16 %v5648, %v5647
    %v5693 = vpack.c.b16 %v5650, %v5649
    %v5694 = vpack.c.b16 %v5652, %v5651
    %v5695 = vpack.c.b16 %v5654, %v5653
    %v5696 = vpack.c.b16 %v5656, %v5655
    %v5697 = vpack.c.b16 %v5658, %v5657
    %v5698 = vpack.c.b16 %v5660, %v5659
    %v5699 = vpack.c.b16 %v5662, %v5661
    %v5700 = vpack.c.b16 %v5664, %v5663
    %v5701 = vpack.c.b16 %v5666, %v5665
    %v5702 = vpack.c.b16 %v5668, %v5667
    %v5703 = vpack.c.b16 %v5670, %v5669
    %v5704 = vpack.c.b16 %v5672, %v5671
    %5737 = vmatprep.subr.bf16.mxu0 0
    %5738 = vmatpush1.bf16.msra.mxu0 %v5680
    %5739 = vmatprep.subr.bf16.mxu0 0
    %5740 = vmatpush1.bf16.msra.mxu0 %v5679
    %5741 = vmatprep.subr.bf16.mxu0 0
    %5742 = vmatpush1.bf16.msra.mxu0 %v5678
    %5743 = vmatprep.subr.bf16.mxu0 0
    %5744 = vmatpush1.bf16.msra.mxu0 %v5677
    %5745 = vmatprep.subr.bf16.mxu0 0
    %5746 = vmatpush1.bf16.msra.mxu0 %v5676
    %5747 = vmatprep.subr.bf16.mxu0 0
    %5748 = vmatpush1.bf16.msra.mxu0 %v5675
    %5749 = vmatprep.subr.bf16.mxu0 0
    %5750 = vmatpush1.bf16.msra.mxu0 %v5674
    %5751 = vmatprep.subr.bf16.mxu0 0
    %5752 = vmatpush1.bf16.msra.mxu0 %v5673
    %5753 = vmatprep.subr.bf16.mxu0 0
    %5754 = vmatpush2.bf16.msra.mxu0 %v5688
    %5755 = vmatprep.subr.bf16.mxu0 0
    %5756 = vmatpush2.bf16.msra.mxu0 %v5687
    %5757 = vmatprep.subr.bf16.mxu0 0
    %5758 = vmatpush2.bf16.msra.mxu0 %v5686
    %5759 = vmatprep.subr.bf16.mxu0 0
    %5760 = vmatpush2.bf16.msra.mxu0 %v5685
    %5761 = vmatprep.subr.bf16.mxu0 0
    %5762 = vmatpush2.bf16.msra.mxu0 %v5684
    %5763 = vmatprep.subr.bf16.mxu0 0
    %5764 = vmatpush2.bf16.msra.mxu0 %v5683
    %5765 = vmatprep.subr.bf16.mxu0 0
    %5766 = vmatpush2.bf16.msra.mxu0 %v5682
    %5767 = vmatprep.subr.bf16.mxu0 0
    %5768 = vmatpush2.bf16.msra.mxu0 %v5681
    %5769 = vmatprep.mubr.bf16.mxu0 %v5477
    %5770 = vmatmul.mubr.bf16.gmra.mxu0 %v5476
    %v5771 = vpop.f32.mrf.mxu0
    %v5772 = vadd.f32 0.0, %v5771
    %v5773 = vpop.f32.mrf.mxu0
    %v5774 = vpop.f32.mrf.mxu0
    %v5775 = vadd.f32 0.0, %v5774
    %v5776 = vpop.f32.mrf.mxu0
    %5777 = vdwg.mxu0
    %5778 = vmatprep.subr.bf16.mxu0 0
    %5779 = vmatpush1.bf16.msra.mxu0 %v5696
    %5780 = vmatprep.subr.bf16.mxu0 0
    %5781 = vmatpush1.bf16.msra.mxu0 %v5695
    %5782 = vmatprep.subr.bf16.mxu0 0
    %5783 = vmatpush1.bf16.msra.mxu0 %v5694
    %5784 = vmatprep.subr.bf16.mxu0 0
    %5785 = vmatpush1.bf16.msra.mxu0 %v5693
    %5786 = vmatprep.subr.bf16.mxu0 0
    %5787 = vmatpush1.bf16.msra.mxu0 %v5692
    %5788 = vmatprep.subr.bf16.mxu0 0
    %5789 = vmatpush1.bf16.msra.mxu0 %v5691
    %5790 = vmatprep.subr.bf16.mxu0 0
    %5791 = vmatpush1.bf16.msra.mxu0 %v5690
    %5792 = vmatprep.subr.bf16.mxu0 0
    %5793 = vmatpush1.bf16.msra.mxu0 %v5689
    %5794 = vmatprep.subr.bf16.mxu0 0
    %5795 = vmatpush2.bf16.msra.mxu0 %v5704
    %5796 = vmatprep.subr.bf16.mxu0 0
    %5797 = vmatpush2.bf16.msra.mxu0 %v5703
    %5798 = vmatprep.subr.bf16.mxu0 0
    %5799 = vmatpush2.bf16.msra.mxu0 %v5702
    %5800 = vmatprep.subr.bf16.mxu0 0
    %5801 = vmatpush2.bf16.msra.mxu0 %v5701
    %5802 = vmatprep.subr.bf16.mxu0 0
    %5803 = vmatpush2.bf16.msra.mxu0 %v5700
    %5804 = vmatprep.subr.bf16.mxu0 0
    %5805 = vmatpush2.bf16.msra.mxu0 %v5699
    %5806 = vmatprep.subr.bf16.mxu0 0
    %5807 = vmatpush2.bf16.msra.mxu0 %v5698
    %5808 = vmatprep.subr.bf16.mxu0 0
    %5809 = vmatpush2.bf16.msra.mxu0 %v5697
    %5810 = vmatprep.mubr.bf16.mxu0 %v5479
    %5811 = vmatmul.mubr.bf16.gmra.mxu0 %v5478
    %v5812 = vpop.f32.mrf.mxu0
    %v5813 = vadd.f32 %v5772, %v5812
    %v5814 = vpop.f32.mrf.mxu0
    %v5815 = vpop.f32.mrf.mxu0
    %v5816 = vadd.f32 %v5775, %v5815
    %v5817 = vpop.f32.mrf.mxu0
    %5818 = vdwg.mxu0
    %v5819 = vadd.f32 %v5308, %v5813
    %v5820 = vadd.f32 %v5309, %v5816
    %v5821 = vlaneseq
    %v5822 = vshrl.u32 %v5821, 7
    %v5823 = vsub.s32 7, %v5822
    %v5824 = vrot.slane %v2962, %v5823
    %v5825 = vadd.f32 %v5819, %v5824
    %v5826 = vadd.f32 %v5820, %v5824
    %v5827 = vadd.f32 %v3775, %v5825
    %v5828 = vadd.f32 %v3776, %v5826
    %v5829 = vsel %vm65, %v5827, 0.0
    %5830 = vadd.xlane.f32.xlu0 %v5829
    %v5831 = vpop.xlane.xlu0 %5830
    %v5832 = vsel %vm829, %v5828, 0.0
    %5833 = vadd.xlane.f32.xlu0 %v5832
    %v5834 = vpop.xlane.xlu0 %5833
    %v5835 = vmul.f32 %v5831, %v833
    %v5836 = vmul.f32 %v5834, %v833
    %v5837 = vmul.f32 %v5827, %v5827
    %v5838 = vmul.f32 %v5828, %v5828
    %v5839 = vsel %vm65, %v5837, 0.0
    %5840 = vadd.xlane.f32.xlu0 %v5839
    %v5841 = vpop.xlane.xlu0 %5840
    %v5842 = vsel %vm829, %v5838, 0.0
    %5843 = vadd.xlane.f32.xlu0 %v5842
    %v5844 = vpop.xlane.xlu0 %5843
    %v5845 = vmul.f32 %v5841, %v833
    %v5846 = vmul.f32 %v5844, %v833
    %v5847 = vmul.f32 %v5835, %v5835
    %v5848 = vmul.f32 %v5836, %v5836
    %v5849 = vsub.f32 %v5845, %v5847
    %v5850 = vsub.f32 %v5846, %v5848
    %v5851 = vsub.f32 %v5827, %v5835
    %v5852 = vsub.f32 %v5828, %v5836
    %v5853 = vadd.f32 %v5849, 1e-05
    %v5854 = vadd.f32 %v5850, 1e-05
    %v5855 = vrsqrt.pop %v5853
    %v5856 = vrsqrt.pop %v5854
    %v5857 = vmul.f32 %v5851, %v5855
    %v5858 = vmul.f32 %v5852, %v5856
    %v5859 = vlaneseq
    %v5860 = vshrl.u32 %v5859, 7
    %v5861 = vsub.s32 5, %v5860
    %v5862 = vrot.slane %v2962, %v5861
    %v5863 = vmul.f32 %v5857, %v5862
    %v5864 = vmul.f32 %v5858, %v5862
    %v5865 = vlaneseq
    %v5866 = vshrl.u32 %v5865, 7
    %v5867 = vsub.s32 6, %v5866
    %v5868 = vrot.slane %v2962, %v5867
    %v5869 = vadd.f32 %v5863, %v5868
    %v5870 = vadd.f32 %v5864, %v5868
    %5871 = vst.msk [vmem:[#allocation2] sm:$0xff] %vm65, %v5869
    %5872 = vst.msk [vmem:[#allocation2 + $0x8] sm:$0xf] %vm829, %v5870
    %v5873 = vld [vmem:[%s1] sm:$0x3]
    %v5874 = vpack.c.bf16 %v5873, %v5873
    %v5875 = vld [vmem:[%s9 + $0xc0] sm:$0x33]
    %v5876 = vld [vmem:[%s11] sm:$0x3]
    %v5878 = vlaneseq
    %v5879 = vshrl.u32 %v5878, 7
    %v5880 = vsub.s32 0, %v5879
    %v5881 = vrot.slane %v5876, %v5880
    %v5882 = vlaneseq
    %v5883 = vshrl.u32 %v5882, 7
    %v5884 = vsub.s32 1, %v5883
    %v5885 = vrot.slane %v5876, %v5884
    %v5889 = vunpack.c.l.b16 %v5875
    %v5890 = vunpack.c.h.b16 %v5875
    %v5891 = vpack.c.b16 %v5889, %v5889
    %v5892 = vpack.c.b16 %v5890, %v5890
    %vm5893 = vcmask 31744
    %v5895 = vsel %vm5893, %v5874, 0
    %vm5897 = vcmask 1041408
    %v5899 = vsel %vm5897, %v5891, 0
    %v5902 = vsel %vm5897, %v5892, 0
    %5904 = vmatprep.subr.bf16.mxu0 0
    %5905 = vmatpush1.bf16.msra.mxu0 0
    %5906 = vmatprep.subr.bf16.mxu0 0
    %5907 = vmatpush1.bf16.msra.mxu0 0
    %5908 = vmatprep.subr.bf16.mxu0 0
    %5909 = vmatpush1.bf16.msra.mxu0 0
    %5910 = vmatprep.subr.bf16.mxu0 0
    %5911 = vmatpush1.bf16.msra.mxu0 0
    %5912 = vmatprep.subr.bf16.mxu0 0
    %5913 = vmatpush1.bf16.msra.mxu0 0
    %5914 = vmatprep.subr.bf16.mxu0 0
    %5915 = vmatpush1.bf16.msra.mxu0 0
    %5916 = vmatprep.subr.bf16.mxu0 0
    %5917 = vmatpush1.bf16.msra.mxu0 0
    %5918 = vmatprep.subr.bf16.mxu0 %v5902
    %5919 = vmatpush1.bf16.msra.mxu0 %v5899
    %5920 = vmatprep.subr.bf16.mxu0 0
    %5921 = vmatpush2.bf16.msra.mxu0 0
    %5922 = vmatprep.subr.bf16.mxu0 0
    %5923 = vmatpush2.bf16.msra.mxu0 0
    %5924 = vmatprep.subr.bf16.mxu0 0
    %5925 = vmatpush2.bf16.msra.mxu0 0
    %5926 = vmatprep.subr.bf16.mxu0 0
    %5927 = vmatpush2.bf16.msra.mxu0 0
    %5928 = vmatprep.subr.bf16.mxu0 0
    %5929 = vmatpush2.bf16.msra.mxu0 0
    %5930 = vmatprep.subr.bf16.mxu0 0
    %5931 = vmatpush2.bf16.msra.mxu0 0
    %5932 = vmatprep.subr.bf16.mxu0 0
    %5933 = vmatpush2.bf16.msra.mxu0 0
    %5934 = vmatprep.subr.bf16.mxu0 0
    %5935 = vmatpush2.bf16.msra.mxu0 0
    %5936 = vmatprep.mubr.bf16.mxu0 0
    %5937 = vmatmul.mubr.bf16.gmra.mxu0 %v5895
    %v5938 = vpop.f32.mrf.mxu0
    %v5939 = vadd.f32 %v5881, %v5938
    %v5940 = vpop.f32.mrf.mxu0
    %v5941 = vadd.f32 %v5885, %v5940
    %v5942 = vpop.f32.mrf.mxu0
    %v5943 = vpop.f32.mrf.mxu0
    %5944 = vdwg.mxu0
    %v5945 = vld [vmem:[#allocation2] ss:$6 sm:$0x3]
    %v5946 = vpack.c.bf16 %v5945, %v5945
    %v5947 = vld [vmem:[%s9] sm:$0xff]
    %v5948 = vld [vmem:[%s9 + $0x8] sm:$0xff]
    %v5949 = vld [vmem:[%s9 + $0x10] sm:$0xff]
    %v5950 = vld [vmem:[%s9 + $0x18] sm:$0xff]
    %v5955 = vunpack.c.l.b16 %v5947
    %v5956 = vunpack.c.h.b16 %v5947
    %v5957 = vunpack.c.l.b16 %v5948
    %v5958 = vunpack.c.h.b16 %v5948
    %v5959 = vunpack.c.l.b16 %v5949
    %v5960 = vunpack.c.h.b16 %v5949
    %v5961 = vunpack.c.l.b16 %v5950
    %v5962 = vunpack.c.h.b16 %v5950
    %v5963 = vpack.c.b16 %v5957, %v5955
    %v5964 = vpack.c.b16 %v5958, %v5956
    %v5965 = vpack.c.b16 %v5961, %v5959
    %v5966 = vpack.c.b16 %v5962, %v5960
    %v5972 = vsel %vm65, %v5946, 0
    %5974 = vmatprep.subr.bf16.mxu0 0
    %5975 = vmatpush1.bf16.msra.mxu0 0
    %5976 = vmatprep.subr.bf16.mxu0 0
    %5977 = vmatpush1.bf16.msra.mxu0 0
    %5978 = vmatprep.subr.bf16.mxu0 0
    %5979 = vmatpush1.bf16.msra.mxu0 0
    %5980 = vmatprep.subr.bf16.mxu0 0
    %5981 = vmatpush1.bf16.msra.mxu0 0
    %5982 = vmatprep.subr.bf16.mxu0 0
    %5983 = vmatpush1.bf16.msra.mxu0 0
    %5984 = vmatprep.subr.bf16.mxu0 0
    %5985 = vmatpush1.bf16.msra.mxu0 0
    %5986 = vmatprep.subr.bf16.mxu0 %v5966
    %5987 = vmatpush1.bf16.msra.mxu0 %v5965
    %5988 = vmatprep.subr.bf16.mxu0 %v5964
    %5989 = vmatpush1.bf16.msra.mxu0 %v5963
    %5990 = vmatprep.subr.bf16.mxu0 0
    %5991 = vmatpush2.bf16.msra.mxu0 0
    %5992 = vmatprep.subr.bf16.mxu0 0
    %5993 = vmatpush2.bf16.msra.mxu0 0
    %5994 = vmatprep.subr.bf16.mxu0 0
    %5995 = vmatpush2.bf16.msra.mxu0 0
    %5996 = vmatprep.subr.bf16.mxu0 0
    %5997 = vmatpush2.bf16.msra.mxu0 0
    %5998 = vmatprep.subr.bf16.mxu0 0
    %5999 = vmatpush2.bf16.msra.mxu0 0
    %6000 = vmatprep.subr.bf16.mxu0 0
    %6001 = vmatpush2.bf16.msra.mxu0 0
    %6002 = vmatprep.subr.bf16.mxu0 0
    %6003 = vmatpush2.bf16.msra.mxu0 0
    %6004 = vmatprep.subr.bf16.mxu0 0
    %6005 = vmatpush2.bf16.msra.mxu0 0
    %6006 = vmatprep.mubr.bf16.mxu0 0
    %6007 = vmatmul.mubr.bf16.gmra.mxu0 %v5972
    %v6008 = vpop.f32.mrf.mxu0
    %v6009 = vadd.f32 0.0, %v6008
    %v6010 = vpop.f32.mrf.mxu0
    %v6011 = vadd.f32 0.0, %v6010
    %v6012 = vpop.f32.mrf.mxu0
    %v6013 = vpop.f32.mrf.mxu0
    %6014 = vdwg.mxu0
    %v6015 = vadd.f32 %v5939, %v6009
    %v6016 = vadd.f32 %v5941, %v6011
    %s6017 = scalar_lea.vmem [#allocation2], 1
    %v6018 = vld [vmem:[%s6017] ss:$6 sm:$0x3]
    %v6019 = vpack.c.bf16 %v6018, %v6018
    %v6020 = vld [vmem:[%s9 + $0x20] sm:$0xff]
    %v6021 = vld [vmem:[%s9 + $0x28] sm:$0xff]
    %v6022 = vld [vmem:[%s9 + $0x30] sm:$0xff]
    %v6023 = vld [vmem:[%s9 + $0x38] sm:$0xff]
    %v6028 = vunpack.c.l.b16 %v6020
    %v6029 = vunpack.c.h.b16 %v6020
    %v6030 = vunpack.c.l.b16 %v6021
    %v6031 = vunpack.c.h.b16 %v6021
    %v6032 = vunpack.c.l.b16 %v6022
    %v6033 = vunpack.c.h.b16 %v6022
    %v6034 = vunpack.c.l.b16 %v6023
    %v6035 = vunpack.c.h.b16 %v6023
    %v6036 = vpack.c.b16 %v6030, %v6028
    %v6037 = vpack.c.b16 %v6031, %v6029
    %v6038 = vpack.c.b16 %v6034, %v6032
    %v6039 = vpack.c.b16 %v6035, %v6033
    %v6045 = vsel %vm65, %v6019, 0
    %6047 = vmatprep.subr.bf16.mxu0 0
    %6048 = vmatpush1.bf16.msra.mxu0 0
    %6049 = vmatprep.subr.bf16.mxu0 0
    %6050 = vmatpush1.bf16.msra.mxu0 0
    %6051 = vmatprep.subr.bf16.mxu0 0
    %6052 = vmatpush1.bf16.msra.mxu0 0
    %6053 = vmatprep.subr.bf16.mxu0 0
    %6054 = vmatpush1.bf16.msra.mxu0 0
    %6055 = vmatprep.subr.bf16.mxu0 0
    %6056 = vmatpush1.bf16.msra.mxu0 0
    %6057 = vmatprep.subr.bf16.mxu0 0
    %6058 = vmatpush1.bf16.msra.mxu0 0
    %6059 = vmatprep.subr.bf16.mxu0 %v6039
    %6060 = vmatpush1.bf16.msra.mxu0 %v6038
    %6061 = vmatprep.subr.bf16.mxu0 %v6037
    %6062 = vmatpush1.bf16.msra.mxu0 %v6036
    %6063 = vmatprep.subr.bf16.mxu0 0
    %6064 = vmatpush2.bf16.msra.mxu0 0
    %6065 = vmatprep.subr.bf16.mxu0 0
    %6066 = vmatpush2.bf16.msra.mxu0 0
    %6067 = vmatprep.subr.bf16.mxu0 0
    %6068 = vmatpush2.bf16.msra.mxu0 0
    %6069 = vmatprep.subr.bf16.mxu0 0
    %6070 = vmatpush2.bf16.msra.mxu0 0
    %6071 = vmatprep.subr.bf16.mxu0 0
    %6072 = vmatpush2.bf16.msra.mxu0 0
    %6073 = vmatprep.subr.bf16.mxu0 0
    %6074 = vmatpush2.bf16.msra.mxu0 0
    %6075 = vmatprep.subr.bf16.mxu0 0
    %6076 = vmatpush2.bf16.msra.mxu0 0
    %6077 = vmatprep.subr.bf16.mxu0 0
    %6078 = vmatpush2.bf16.msra.mxu0 0
    %6079 = vmatprep.mubr.bf16.mxu0 0
    %6080 = vmatmul.mubr.bf16.gmra.mxu0 %v6045
    %v6081 = vpop.f32.mrf.mxu0
    %v6082 = vadd.f32 0.0, %v6081
    %v6083 = vpop.f32.mrf.mxu0
    %v6084 = vadd.f32 0.0, %v6083
    %v6085 = vpop.f32.mrf.mxu0
    %v6086 = vpop.f32.mrf.mxu0
    %6087 = vdwg.mxu0
    %v6088 = vadd.f32 %v6015, %v6082
    %v6089 = vadd.f32 %v6016, %v6084
    %s6090 = scalar_lea.vmem [#allocation2], 2
    %v6091 = vld [vmem:[%s6090] ss:$6 sm:$0x3]
    %v6092 = vpack.c.bf16 %v6091, %v6091
    %v6093 = vld [vmem:[%s9 + $0x40] sm:$0xff]
    %v6094 = vld [vmem:[%s9 + $0x48] sm:$0xff]
    %v6095 = vld [vmem:[%s9 + $0x50] sm:$0xff]
    %v6096 = vld [vmem:[%s9 + $0x58] sm:$0xff]
    %v6101 = vunpack.c.l.b16 %v6093
    %v6102 = vunpack.c.h.b16 %v6093
    %v6103 = vunpack.c.l.b16 %v6094
    %v6104 = vunpack.c.h.b16 %v6094
    %v6105 = vunpack.c.l.b16 %v6095
    %v6106 = vunpack.c.h.b16 %v6095
    %v6107 = vunpack.c.l.b16 %v6096
    %v6108 = vunpack.c.h.b16 %v6096
    %v6109 = vpack.c.b16 %v6103, %v6101
    %v6110 = vpack.c.b16 %v6104, %v6102
    %v6111 = vpack.c.b16 %v6107, %v6105
    %v6112 = vpack.c.b16 %v6108, %v6106
    %v6118 = vsel %vm65, %v6092, 0
    %6120 = vmatprep.subr.bf16.mxu0 0
    %6121 = vmatpush1.bf16.msra.mxu0 0
    %6122 = vmatprep.subr.bf16.mxu0 0
    %6123 = vmatpush1.bf16.msra.mxu0 0
    %6124 = vmatprep.subr.bf16.mxu0 0
    %6125 = vmatpush1.bf16.msra.mxu0 0
    %6126 = vmatprep.subr.bf16.mxu0 0
    %6127 = vmatpush1.bf16.msra.mxu0 0
    %6128 = vmatprep.subr.bf16.mxu0 0
    %6129 = vmatpush1.bf16.msra.mxu0 0
    %6130 = vmatprep.subr.bf16.mxu0 0
    %6131 = vmatpush1.bf16.msra.mxu0 0
    %6132 = vmatprep.subr.bf16.mxu0 %v6112
    %6133 = vmatpush1.bf16.msra.mxu0 %v6111
    %6134 = vmatprep.subr.bf16.mxu0 %v6110
    %6135 = vmatpush1.bf16.msra.mxu0 %v6109
    %6136 = vmatprep.subr.bf16.mxu0 0
    %6137 = vmatpush2.bf16.msra.mxu0 0
    %6138 = vmatprep.subr.bf16.mxu0 0
    %6139 = vmatpush2.bf16.msra.mxu0 0
    %6140 = vmatprep.subr.bf16.mxu0 0
    %6141 = vmatpush2.bf16.msra.mxu0 0
    %6142 = vmatprep.subr.bf16.mxu0 0
    %6143 = vmatpush2.bf16.msra.mxu0 0
    %6144 = vmatprep.subr.bf16.mxu0 0
    %6145 = vmatpush2.bf16.msra.mxu0 0
    %6146 = vmatprep.subr.bf16.mxu0 0
    %6147 = vmatpush2.bf16.msra.mxu0 0
    %6148 = vmatprep.subr.bf16.mxu0 0
    %6149 = vmatpush2.bf16.msra.mxu0 0
    %6150 = vmatprep.subr.bf16.mxu0 0
    %6151 = vmatpush2.bf16.msra.mxu0 0
    %6152 = vmatprep.mubr.bf16.mxu0 0
    %6153 = vmatmul.mubr.bf16.gmra.mxu0 %v6118
    %v6154 = vpop.f32.mrf.mxu0
    %v6155 = vadd.f32 0.0, %v6154
    %v6156 = vpop.f32.mrf.mxu0
    %v6157 = vadd.f32 0.0, %v6156
    %v6158 = vpop.f32.mrf.mxu0
    %v6159 = vpop.f32.mrf.mxu0
    %6160 = vdwg.mxu0
    %v6161 = vadd.f32 %v6088, %v6155
    %v6162 = vadd.f32 %v6089, %v6157
    %s6163 = scalar_lea.vmem [#allocation2], 3
    %v6164 = vld [vmem:[%s6163] ss:$6 sm:$0x3]
    %v6165 = vpack.c.bf16 %v6164, %v6164
    %v6166 = vld [vmem:[%s9 + $0x60] sm:$0xff]
    %v6167 = vld [vmem:[%s9 + $0x68] sm:$0xff]
    %v6168 = vld [vmem:[%s9 + $0x70] sm:$0xff]
    %v6169 = vld [vmem:[%s9 + $0x78] sm:$0xff]
    %v6174 = vunpack.c.l.b16 %v6166
    %v6175 = vunpack.c.h.b16 %v6166
    %v6176 = vunpack.c.l.b16 %v6167
    %v6177 = vunpack.c.h.b16 %v6167
    %v6178 = vunpack.c.l.b16 %v6168
    %v6179 = vunpack.c.h.b16 %v6168
    %v6180 = vunpack.c.l.b16 %v6169
    %v6181 = vunpack.c.h.b16 %v6169
    %v6182 = vpack.c.b16 %v6176, %v6174
    %v6183 = vpack.c.b16 %v6177, %v6175
    %v6184 = vpack.c.b16 %v6180, %v6178
    %v6185 = vpack.c.b16 %v6181, %v6179
    %v6191 = vsel %vm65, %v6165, 0
    %6193 = vmatprep.subr.bf16.mxu0 0
    %6194 = vmatpush1.bf16.msra.mxu0 0
    %6195 = vmatprep.subr.bf16.mxu0 0
    %6196 = vmatpush1.bf16.msra.mxu0 0
    %6197 = vmatprep.subr.bf16.mxu0 0
    %6198 = vmatpush1.bf16.msra.mxu0 0
    %6199 = vmatprep.subr.bf16.mxu0 0
    %6200 = vmatpush1.bf16.msra.mxu0 0
    %6201 = vmatprep.subr.bf16.mxu0 0
    %6202 = vmatpush1.bf16.msra.mxu0 0
    %6203 = vmatprep.subr.bf16.mxu0 0
    %6204 = vmatpush1.bf16.msra.mxu0 0
    %6205 = vmatprep.subr.bf16.mxu0 %v6185
    %6206 = vmatpush1.bf16.msra.mxu0 %v6184
    %6207 = vmatprep.subr.bf16.mxu0 %v6183
    %6208 = vmatpush1.bf16.msra.mxu0 %v6182
    %6209 = vmatprep.subr.bf16.mxu0 0
    %6210 = vmatpush2.bf16.msra.mxu0 0
    %6211 = vmatprep.subr.bf16.mxu0 0
    %6212 = vmatpush2.bf16.msra.mxu0 0
    %6213 = vmatprep.subr.bf16.mxu0 0
    %6214 = vmatpush2.bf16.msra.mxu0 0
    %6215 = vmatprep.subr.bf16.mxu0 0
    %6216 = vmatpush2.bf16.msra.mxu0 0
    %6217 = vmatprep.subr.bf16.mxu0 0
    %6218 = vmatpush2.bf16.msra.mxu0 0
    %6219 = vmatprep.subr.bf16.mxu0 0
    %6220 = vmatpush2.bf16.msra.mxu0 0
    %6221 = vmatprep.subr.bf16.mxu0 0
    %6222 = vmatpush2.bf16.msra.mxu0 0
    %6223 = vmatprep.subr.bf16.mxu0 0
    %6224 = vmatpush2.bf16.msra.mxu0 0
    %6225 = vmatprep.mubr.bf16.mxu0 0
    %6226 = vmatmul.mubr.bf16.gmra.mxu0 %v6191
    %v6227 = vpop.f32.mrf.mxu0
    %v6228 = vadd.f32 0.0, %v6227
    %v6229 = vpop.f32.mrf.mxu0
    %v6230 = vadd.f32 0.0, %v6229
    %v6231 = vpop.f32.mrf.mxu0
    %v6232 = vpop.f32.mrf.mxu0
    %6233 = vdwg.mxu0
    %v6234 = vadd.f32 %v6161, %v6228
    %v6235 = vadd.f32 %v6162, %v6230
    %s6236 = scalar_lea.vmem [#allocation2], 4
    %v6237 = vld [vmem:[%s6236] ss:$6 sm:$0x3]
    %v6238 = vpack.c.bf16 %v6237, %v6237
    %v6239 = vld [vmem:[%s9 + $0x80] sm:$0xff]
    %v6240 = vld [vmem:[%s9 + $0x88] sm:$0xff]
    %v6241 = vld [vmem:[%s9 + $0x90] sm:$0xff]
    %v6242 = vld [vmem:[%s9 + $0x98] sm:$0xff]
    %v6247 = vunpack.c.l.b16 %v6239
    %v6248 = vunpack.c.h.b16 %v6239
    %v6249 = vunpack.c.l.b16 %v6240
    %v6250 = vunpack.c.h.b16 %v6240
    %v6251 = vunpack.c.l.b16 %v6241
    %v6252 = vunpack.c.h.b16 %v6241
    %v6253 = vunpack.c.l.b16 %v6242
    %v6254 = vunpack.c.h.b16 %v6242
    %v6255 = vpack.c.b16 %v6249, %v6247
    %v6256 = vpack.c.b16 %v6250, %v6248
    %v6257 = vpack.c.b16 %v6253, %v6251
    %v6258 = vpack.c.b16 %v6254, %v6252
    %v6264 = vsel %vm65, %v6238, 0
    %6266 = vmatprep.subr.bf16.mxu0 0
    %6267 = vmatpush1.bf16.msra.mxu0 0
    %6268 = vmatprep.subr.bf16.mxu0 0
    %6269 = vmatpush1.bf16.msra.mxu0 0
    %6270 = vmatprep.subr.bf16.mxu0 0
    %6271 = vmatpush1.bf16.msra.mxu0 0
    %6272 = vmatprep.subr.bf16.mxu0 0
    %6273 = vmatpush1.bf16.msra.mxu0 0
    %6274 = vmatprep.subr.bf16.mxu0 0
    %6275 = vmatpush1.bf16.msra.mxu0 0
    %6276 = vmatprep.subr.bf16.mxu0 0
    %6277 = vmatpush1.bf16.msra.mxu0 0
    %6278 = vmatprep.subr.bf16.mxu0 %v6258
    %6279 = vmatpush1.bf16.msra.mxu0 %v6257
    %6280 = vmatprep.subr.bf16.mxu0 %v6256
    %6281 = vmatpush1.bf16.msra.mxu0 %v6255
    %6282 = vmatprep.subr.bf16.mxu0 0
    %6283 = vmatpush2.bf16.msra.mxu0 0
    %6284 = vmatprep.subr.bf16.mxu0 0
    %6285 = vmatpush2.bf16.msra.mxu0 0
    %6286 = vmatprep.subr.bf16.mxu0 0
    %6287 = vmatpush2.bf16.msra.mxu0 0
    %6288 = vmatprep.subr.bf16.mxu0 0
    %6289 = vmatpush2.bf16.msra.mxu0 0
    %6290 = vmatprep.subr.bf16.mxu0 0
    %6291 = vmatpush2.bf16.msra.mxu0 0
    %6292 = vmatprep.subr.bf16.mxu0 0
    %6293 = vmatpush2.bf16.msra.mxu0 0
    %6294 = vmatprep.subr.bf16.mxu0 0
    %6295 = vmatpush2.bf16.msra.mxu0 0
    %6296 = vmatprep.subr.bf16.mxu0 0
    %6297 = vmatpush2.bf16.msra.mxu0 0
    %6298 = vmatprep.mubr.bf16.mxu0 0
    %6299 = vmatmul.mubr.bf16.gmra.mxu0 %v6264
    %v6300 = vpop.f32.mrf.mxu0
    %v6301 = vadd.f32 0.0, %v6300
    %v6302 = vpop.f32.mrf.mxu0
    %v6303 = vadd.f32 0.0, %v6302
    %v6304 = vpop.f32.mrf.mxu0
    %v6305 = vpop.f32.mrf.mxu0
    %6306 = vdwg.mxu0
    %v6307 = vadd.f32 %v6234, %v6301
    %v6308 = vadd.f32 %v6235, %v6303
    %s6309 = scalar_lea.vmem [#allocation2], 5
    %v6310 = vld [vmem:[%s6309] ss:$6 sm:$0x3]
    %v6311 = vpack.c.bf16 %v6310, %v6310
    %v6312 = vld [vmem:[%s9 + $0xa0] sm:$0xff]
    %v6313 = vld [vmem:[%s9 + $0xa8] sm:$0xff]
    %v6314 = vld [vmem:[%s9 + $0xb0] sm:$0xff]
    %v6315 = vld [vmem:[%s9 + $0xb8] sm:$0xff]
    %v6320 = vunpack.c.l.b16 %v6312
    %v6321 = vunpack.c.h.b16 %v6312
    %v6322 = vunpack.c.l.b16 %v6313
    %v6323 = vunpack.c.h.b16 %v6313
    %v6324 = vunpack.c.l.b16 %v6314
    %v6325 = vunpack.c.h.b16 %v6314
    %v6326 = vunpack.c.l.b16 %v6315
    %v6327 = vunpack.c.h.b16 %v6315
    %v6328 = vpack.c.b16 %v6322, %v6320
    %v6329 = vpack.c.b16 %v6323, %v6321
    %v6330 = vpack.c.b16 %v6326, %v6324
    %v6331 = vpack.c.b16 %v6327, %v6325
    %v6337 = vsel %vm65, %v6311, 0
    %6339 = vmatprep.subr.bf16.mxu0 0
    %6340 = vmatpush1.bf16.msra.mxu0 0
    %6341 = vmatprep.subr.bf16.mxu0 0
    %6342 = vmatpush1.bf16.msra.mxu0 0
    %6343 = vmatprep.subr.bf16.mxu0 0
    %6344 = vmatpush1.bf16.msra.mxu0 0
    %6345 = vmatprep.subr.bf16.mxu0 0
    %6346 = vmatpush1.bf16.msra.mxu0 0
    %6347 = vmatprep.subr.bf16.mxu0 0
    %6348 = vmatpush1.bf16.msra.mxu0 0
    %6349 = vmatprep.subr.bf16.mxu0 0
    %6350 = vmatpush1.bf16.msra.mxu0 0
    %6351 = vmatprep.subr.bf16.mxu0 %v6331
    %6352 = vmatpush1.bf16.msra.mxu0 %v6330
    %6353 = vmatprep.subr.bf16.mxu0 %v6329
    %6354 = vmatpush1.bf16.msra.mxu0 %v6328
    %6355 = vmatprep.subr.bf16.mxu0 0
    %6356 = vmatpush2.bf16.msra.mxu0 0
    %6357 = vmatprep.subr.bf16.mxu0 0
    %6358 = vmatpush2.bf16.msra.mxu0 0
    %6359 = vmatprep.subr.bf16.mxu0 0
    %6360 = vmatpush2.bf16.msra.mxu0 0
    %6361 = vmatprep.subr.bf16.mxu0 0
    %6362 = vmatpush2.bf16.msra.mxu0 0
    %6363 = vmatprep.subr.bf16.mxu0 0
    %6364 = vmatpush2.bf16.msra.mxu0 0
    %6365 = vmatprep.subr.bf16.mxu0 0
    %6366 = vmatpush2.bf16.msra.mxu0 0
    %6367 = vmatprep.subr.bf16.mxu0 0
    %6368 = vmatpush2.bf16.msra.mxu0 0
    %6369 = vmatprep.subr.bf16.mxu0 0
    %6370 = vmatpush2.bf16.msra.mxu0 0
    %6371 = vmatprep.mubr.bf16.mxu0 0
    %6372 = vmatmul.mubr.bf16.gmra.mxu0 %v6337
    %v6373 = vpop.f32.mrf.mxu0
    %v6374 = vadd.f32 0.0, %v6373
    %v6375 = vpop.f32.mrf.mxu0
    %v6376 = vadd.f32 0.0, %v6375
    %v6377 = vpop.f32.mrf.mxu0
    %v6378 = vpop.f32.mrf.mxu0
    %6379 = vdwg.mxu0
    %v6380 = vadd.f32 %v6307, %v6374
    %v6381 = vadd.f32 %v6308, %v6376
    %v6382 = vmax.f32 %v6380, 0.0
    %v6383 = vmax.f32 %v6381, 0.0
    %v6384 = vpack.c.bf16 %v6382, %v6382
    %v6385 = vpack.c.bf16 %v6383, %v6383
    %v6386 = vld [vmem:[%s10] sm:$0xf]
    %v6387 = vld [vmem:[%s10 + $0x4] sm:$0xf]
    %v6388 = vld [vmem:[%s10 + $0x8] sm:$0xf]
    %v6389 = vld [vmem:[%s10 + $0xc] sm:$0xf]
    %v6390 = vld [vmem:[%s10 + $0x10] sm:$0xf]
    %v6391 = vld [vmem:[%s10 + $0x14] sm:$0xf]
    %v6392 = vld [vmem:[%s10 + $0x18] sm:$0xf]
    %v6393 = vld [vmem:[%s10 + $0x1c] sm:$0xf]
    %v6394 = vld [vmem:[%s10 + $0x20] sm:$0xf]
    %v6395 = vld [vmem:[%s10 + $0x24] sm:$0xf]
    %v6396 = vld [vmem:[%s10 + $0x28] sm:$0xf]
    %v6397 = vld [vmem:[%s10 + $0x2c] sm:$0xf]
    %v6398 = vld [vmem:[%s10 + $0x30] sm:$0xf]
    %v6399 = vld [vmem:[%s10 + $0x34] sm:$0xf]
    %v6400 = vld [vmem:[%s10 + $0x38] sm:$0xf]
    %v6401 = vld [vmem:[%s10 + $0x3c] sm:$0xf]
    %v6402 = vld [vmem:[%s10 + $0x40] sm:$0xf]
    %v6403 = vld [vmem:[%s10 + $0x44] sm:$0xf]
    %v6404 = vld [vmem:[%s10 + $0x48] sm:$0xf]
    %v6405 = vld [vmem:[%s10 + $0x4c] sm:$0xf]
    %v6406 = vld [vmem:[%s10 + $0x50] sm:$0xf]
    %v6407 = vld [vmem:[%s10 + $0x54] sm:$0xf]
    %v6408 = vld [vmem:[%s10 + $0x58] sm:$0xf]
    %v6409 = vld [vmem:[%s10 + $0x5c] sm:$0xf]
    %v6410 = vld [vmem:[%s10 + $0x60] sm:$0xf]
    %v6411 = vld [vmem:[%s10 + $0x64] sm:$0xf]
    %v6412 = vld [vmem:[%s10 + $0x68] sm:$0xf]
    %v6413 = vld [vmem:[%s10 + $0x6c] sm:$0xf]
    %v6414 = vld [vmem:[%s10 + $0x70] sm:$0xf]
    %v6415 = vld [vmem:[%s10 + $0x74] sm:$0xf]
    %v6416 = vld [vmem:[%s10 + $0x78] sm:$0xf]
    %v6417 = vld [vmem:[%s10 + $0x7c] sm:$0xf]
    %v6418 = vld [vmem:[%s11 + $0x2] sm:$0x1]
    %v6420 = vlaneseq
    %v6421 = vshrl.u32 %v6420, 7
    %v6422 = vsub.s32 0, %v6421
    %v6423 = vrot.slane %v6418, %v6422
    %v6457 = vunpack.c.l.b16 %v6386
    %v6458 = vunpack.c.l.b16 %v6387
    %v6459 = vunpack.c.l.b16 %v6388
    %v6460 = vunpack.c.l.b16 %v6389
    %v6461 = vunpack.c.l.b16 %v6390
    %v6462 = vunpack.c.l.b16 %v6391
    %v6463 = vunpack.c.l.b16 %v6392
    %v6464 = vunpack.c.l.b16 %v6393
    %v6465 = vunpack.c.l.b16 %v6394
    %v6466 = vunpack.c.l.b16 %v6395
    %v6467 = vunpack.c.l.b16 %v6396
    %v6468 = vunpack.c.l.b16 %v6397
    %v6469 = vunpack.c.l.b16 %v6398
    %v6470 = vunpack.c.l.b16 %v6399
    %v6471 = vunpack.c.l.b16 %v6400
    %v6472 = vunpack.c.l.b16 %v6401
    %v6473 = vunpack.c.l.b16 %v6402
    %v6474 = vunpack.c.l.b16 %v6403
    %v6475 = vunpack.c.l.b16 %v6404
    %v6476 = vunpack.c.l.b16 %v6405
    %v6477 = vunpack.c.l.b16 %v6406
    %v6478 = vunpack.c.l.b16 %v6407
    %v6479 = vunpack.c.l.b16 %v6408
    %v6480 = vunpack.c.l.b16 %v6409
    %v6481 = vunpack.c.l.b16 %v6410
    %v6482 = vunpack.c.l.b16 %v6411
    %v6483 = vunpack.c.l.b16 %v6412
    %v6484 = vunpack.c.l.b16 %v6413
    %v6485 = vunpack.c.l.b16 %v6414
    %v6486 = vunpack.c.l.b16 %v6415
    %v6487 = vunpack.c.l.b16 %v6416
    %v6488 = vunpack.c.l.b16 %v6417
    %v6489 = vpack.c.b16 %v6458, %v6457
    %v6490 = vpack.c.b16 %v6460, %v6459
    %v6491 = vpack.c.b16 %v6462, %v6461
    %v6492 = vpack.c.b16 %v6464, %v6463
    %v6493 = vpack.c.b16 %v6466, %v6465
    %v6494 = vpack.c.b16 %v6468, %v6467
    %v6495 = vpack.c.b16 %v6470, %v6469
    %v6496 = vpack.c.b16 %v6472, %v6471
    %v6497 = vpack.c.b16 %v6474, %v6473
    %v6498 = vpack.c.b16 %v6476, %v6475
    %v6499 = vpack.c.b16 %v6478, %v6477
    %v6500 = vpack.c.b16 %v6480, %v6479
    %v6501 = vpack.c.b16 %v6482, %v6481
    %v6502 = vpack.c.b16 %v6484, %v6483
    %v6503 = vpack.c.b16 %v6486, %v6485
    %v6504 = vpack.c.b16 %v6488, %v6487
    %6521 = vmatprep.subr.bf16.mxu0 0
    %6522 = vmatpush1.bf16.msra.mxu0 %v6496
    %6523 = vmatprep.subr.bf16.mxu0 0
    %6524 = vmatpush1.bf16.msra.mxu0 %v6495
    %6525 = vmatprep.subr.bf16.mxu0 0
    %6526 = vmatpush1.bf16.msra.mxu0 %v6494
    %6527 = vmatprep.subr.bf16.mxu0 0
    %6528 = vmatpush1.bf16.msra.mxu0 %v6493
    %6529 = vmatprep.subr.bf16.mxu0 0
    %6530 = vmatpush1.bf16.msra.mxu0 %v6492
    %6531 = vmatprep.subr.bf16.mxu0 0
    %6532 = vmatpush1.bf16.msra.mxu0 %v6491
    %6533 = vmatprep.subr.bf16.mxu0 0
    %6534 = vmatpush1.bf16.msra.mxu0 %v6490
    %6535 = vmatprep.subr.bf16.mxu0 0
    %6536 = vmatpush1.bf16.msra.mxu0 %v6489
    %6537 = vmatprep.subr.bf16.mxu0 0
    %6538 = vmatpush2.bf16.msra.mxu0 %v6504
    %6539 = vmatprep.subr.bf16.mxu0 0
    %6540 = vmatpush2.bf16.msra.mxu0 %v6503
    %6541 = vmatprep.subr.bf16.mxu0 0
    %6542 = vmatpush2.bf16.msra.mxu0 %v6502
    %6543 = vmatprep.subr.bf16.mxu0 0
    %6544 = vmatpush2.bf16.msra.mxu0 %v6501
    %6545 = vmatprep.subr.bf16.mxu0 0
    %6546 = vmatpush2.bf16.msra.mxu0 %v6500
    %6547 = vmatprep.subr.bf16.mxu0 0
    %6548 = vmatpush2.bf16.msra.mxu0 %v6499
    %6549 = vmatprep.subr.bf16.mxu0 0
    %6550 = vmatpush2.bf16.msra.mxu0 %v6498
    %6551 = vmatprep.subr.bf16.mxu0 0
    %6552 = vmatpush2.bf16.msra.mxu0 %v6497
    %6553 = vmatprep.mubr.bf16.mxu0 %v6385
    %6554 = vmatmul.mubr.bf16.gmra.mxu0 %v6384
    %v6555 = vpop.f32.mrf.mxu0
    %v6556 = vadd.f32 %v6423, %v6555
    %v6557 = vpop.f32.mrf.mxu0
    %v6558 = vpop.f32.mrf.mxu0
    %v6559 = vpop.f32.mrf.mxu0
    %6560 = vdwg.mxu0
    %6561 = vst [vmem:[#allocation3] sm:$0x3] %v6556
    // Predicated region
    $region50: #{tpu_custom_call.1} parent=1 // pred_check
      _
    $region51: #{tpu_custom_call.1} parent=1 // pred_check_branch
      %6563 = sbr.rel (0) target = $region53
    $region52: #{tpu_custom_call.1} parent=1 // pred_region
      %s6565 = ssub.s32 32, 32
      %6566 = vsyncadd [#allocation4], %s6565
      %s6568 = sshll.u32 [#allocation3], 4
      %s6569 = int_to_ptr.vmem [resolvable:$true] %s6568
      %6571 = dma.vmem_to_hbm [thread:$0]  %s6569, 32, %s12, [#allocation4]
    $region53: #{tpu_custom_call.1} parent=1 // pred_fallthru
      _
    // Predicated region
    $region54: #{tpu_custom_call.1} parent=1 // pred_check
      _
    $region55: #{tpu_custom_call.1} parent=1 // pred_check_branch
      %6573 = sbr.rel (0) target = $region57
    $region56: #{tpu_custom_call.1} parent=1 // pred_region
      %6574 = dma.done [#allocation4], 32
    $region57: #{tpu_custom_call.1} parent=1 // pred_fallthru
      _
    %6575 = vsyncpa [#allocation4], 1

</llo_original>
